<compile_context>
chip_gen: v7x
topology: tpu7x:2x2x1
jax: 0.10.0
libtpu: 0.0.40
codegen_flags: <defaults>
</compile_context>

<pallas_src>
import functools

import jax
import jax.numpy as jnp
from jax.experimental import pallas as pl
from jax.experimental.pallas import tpu as pltpu

CP = 128  # padded output-channel width -> lane-dense (128-wide) matmul stores


def _pick_tile(dim, candidates):
    for c in candidates:
        if c <= dim and dim % c == 0:
            return c
    return dim


def _vmem_limit(tile_bytes):
    """Per-call scoped-VMEM budget: ~2x the actual tile footprint, >=8 MiB,
    capped well under v7x's 64 MiB physical VMEM."""
    return int(min(40 * 1024 * 1024, max(8 * 1024 * 1024, 2 * tile_bytes)))


# ---------------- fused conv matmul: (x @ w + b) -> optional ReLU ----------- #
# Eval-BN is folded into w/b at init, so the epilogue is just bias + ReLU.

def _matmul_kernel(x_ref, w_ref, b_ref, o_ref, acc_ref, *, relu):
    k = pl.program_id(2)

    @pl.when(k == 0)
    def _():
        acc_ref[...] = jnp.zeros_like(acc_ref)

    acc_ref[...] += jnp.dot(x_ref[...], w_ref[...],
                            preferred_element_type=jnp.float32)

    @pl.when(k == pl.num_programs(2) - 1)
    def _():
        y = acc_ref[...] + b_ref[...]
        if relu:
            y = jnp.maximum(y, 0.0)
        o_ref[...] = y.astype(o_ref.dtype)


def fused_matmul(x, w, b, *, relu, out_dtype):
    M, K = x.shape
    Kw, N = w.shape
    assert K == Kw
    tm = _pick_tile(M, (512, 256, 128, 64, 32, 16, 8))
    if M // tm < 2 and tm >= 16:   # keep >=2 parallel M blocks for v7x's 2 TCs
        tm //= 2
    tn = 128 if N % 128 == 0 else N
    tk = _pick_tile(K, (2048, 1024, 512, 384, 256, 128))

    tile_bytes = (2 * (tm * tk * x.dtype.itemsize + tk * tn * w.dtype.itemsize
                       + tn * b.dtype.itemsize)
                  + 2 * tm * tn * jnp.dtype(out_dtype).itemsize
                  + tm * tn * 4)

    return pl.pallas_call(
        functools.partial(_matmul_kernel, relu=relu),
        out_shape=jax.ShapeDtypeStruct((M, N), out_dtype),
        grid=(M // tm, N // tn, K // tk),
        in_specs=[pl.BlockSpec((tm, tk), lambda i, j, k: (i, k)),
                  pl.BlockSpec((tk, tn), lambda i, j, k: (k, j)),
                  pl.BlockSpec((1, tn), lambda i, j, k: (0, j))],
        out_specs=pl.BlockSpec((tm, tn), lambda i, j, k: (i, j)),
        scratch_shapes=[pltpu.VMEM((tm, tn), jnp.float32)],
        compiler_params=pltpu.CompilerParams(
            dimension_semantics=("parallel", "parallel", "arbitrary"),
            vmem_limit_bytes=_vmem_limit(tile_bytes)),
    )(x, w, b)


# ---------- fused fc1+fc2: relu(x @ w1 + b1) @ w2 + b2 in ONE call ---------- #
# h=(B,512) stays in a VMEM scratch; fc1's K is streamed in tk-wide chunks.

def _fc_kernel(x_ref, w1_ref, b1_ref, w2_ref, b2_ref, o_ref, acc_ref):
    k = pl.program_id(0)

    @pl.when(k == 0)
    def _():
        acc_ref[...] = jnp.zeros_like(acc_ref)

    acc_ref[...] += jnp.dot(x_ref[...], w1_ref[...],
                            preferred_element_type=jnp.float32)

    @pl.when(k == pl.num_programs(0) - 1)
    def _():
        h = jnp.maximum(acc_ref[...] + b1_ref[...], 0.0).astype(w2_ref.dtype)
        o_ref[...] = (jnp.dot(h, w2_ref[...], preferred_element_type=jnp.float32)
                      + b2_ref[...]).astype(o_ref.dtype)


def fused_fc(x, w1, b1, w2, b2):
    B, K = x.shape
    _, H = w1.shape
    _, N = w2.shape
    tk = _pick_tile(K, (2048, 1024, 512, 256, 128))

    tile_bytes = (2 * (B * tk * x.dtype.itemsize + tk * H * w1.dtype.itemsize)
                  + 2 * H * N * w2.dtype.itemsize
                  + B * H * 4 + 2 * B * N * 4)

    return pl.pallas_call(
        _fc_kernel,
        out_shape=jax.ShapeDtypeStruct((B, N), jnp.float32),
        grid=(K // tk,),
        in_specs=[pl.BlockSpec((B, tk), lambda k: (0, k)),
                  pl.BlockSpec((tk, H), lambda k: (k, 0)),
                  pl.BlockSpec((1, H), lambda k: (0, 0)),
                  pl.BlockSpec((H, N), lambda k: (0, 0)),
                  pl.BlockSpec((1, N), lambda k: (0, 0))],
        out_specs=pl.BlockSpec((B, N), lambda k: (0, 0)),
        scratch_shapes=[pltpu.VMEM((B, H), jnp.float32)],
        compiler_params=pltpu.CompilerParams(
            dimension_semantics=("arbitrary",),
            vmem_limit_bytes=_vmem_limit(tile_bytes)),
    )(x, w1, b1, w2, b2)


# ----------------------------- max-pool kernel ------------------------------ #

def _maxpool_kernel(x_ref, o_ref, *, c):
    # x_ref: (gb, 2, Wo, 2*c) -- (row-pair, col-pair-interleaved-in-lanes)
    rows = jnp.maximum(x_ref[:, 0], x_ref[:, 1])          # pool the 2 H rows
    cols = jnp.maximum(rows[..., :c], rows[..., c:])      # pool even/odd W cols
    o_ref[...] = cols[..., :o_ref.shape[-1]].astype(o_ref.dtype)


def maxpool2x2(x, out_channels=None):
    B, H, W, C = x.shape
    Ho, Wo = H // 2, W // 2
    c_out = C if out_channels is None else out_channels
    rows = B * Ho
    xr = x.reshape(rows, 2, Wo, 2 * C)                    # pure reshape (free)
    gb = _pick_tile(rows, (128, 64, 32, 16, 8, 4, 2, 1))
    out = pl.pallas_call(
        functools.partial(_maxpool_kernel, c=C),
        out_shape=jax.ShapeDtypeStruct((rows, Wo, c_out), x.dtype),
        grid=(rows // gb,),
        in_specs=[pl.BlockSpec((gb, 2, Wo, 2 * C), lambda i: (i, 0, 0, 0))],
        out_specs=pl.BlockSpec((gb, Wo, c_out), lambda i: (i, 0, 0)),
        compiler_params=pltpu.CompilerParams(
            dimension_semantics=("parallel",)),
    )(xr)
    return out.reshape(B, Ho, Wo, c_out)


# -------------------------------- JAX glue ---------------------------------- #

def im2col_3x3(x_nhwc):
    """padding=1, kernel=3 patch extraction -> (B*H*W, 9*C); K order (dy, dx, c)."""
    # TODO(synk): at training-scale batch replace with an in-kernel 9-step
    # shifted-window accumulation to avoid the 9x activation HBM blowup.
    B, H, W, C = x_nhwc.shape
    xp = jnp.pad(x_nhwc, ((0, 0), (1, 1), (1, 1), (0, 0)))
    cols = [xp[:, dy:dy + H, dx:dx + W, :] for dy in range(3) for dx in range(3)]
    return jnp.concatenate(cols, axis=-1).reshape(B * H * W, 9 * C)


def init_params(key):
    k1, k2, k3, k4 = jax.random.split(key, 4)
    f32, bf16 = jnp.float32, jnp.bfloat16
    eps = 1e-5
    # kaiming_normal_(mode='fan_out', nonlinearity='relu'): std = sqrt(2 / fan_out)
    w1 = jax.random.normal(k1, (3, 3, 3, 32), f32) * jnp.sqrt(2.0 / (32 * 9))
    w2 = jax.random.normal(k2, (3, 3, 32, 64), f32) * jnp.sqrt(2.0 / (64 * 9))
    # fc weights stored as (in, out); fc1 rows laid out in NHWC flatten order
    # (== one-time permutation of PyTorch's NCHW-flatten rows; random init here).
    wfc1 = jax.random.normal(k3, (64 * 8 * 8, 512), f32) * jnp.sqrt(2.0 / 512)
    wfc2 = jax.random.normal(k4, (512, 10), f32) * jnp.sqrt(2.0 / 10)

    # Eval-mode BN (gamma=1, beta=0, mean=0, var=1) is y * 1/sqrt(1+eps) with
    # zero shift and positive scale, so it commutes with ReLU -> fold into w/b.
    bn_scale = 1.0 / jnp.sqrt(1.0 + eps)
    p = {}
    # conv1: N padded 32 -> 128 (padded output channels are exact zeros).
    p["w1"] = jnp.zeros((27, CP), bf16).at[:, :32].set(
        (w1.reshape(27, 32) * bn_scale).astype(bf16))
    p["b1"] = jnp.zeros((1, CP), f32)
    # conv2: K = 9*32 = 288 (pool1 emits only the 32 real channels), N 64 -> 128.
    p["w2"] = jnp.zeros((288, CP), bf16).at[:, :64].set(
        (w2.reshape(288, 64) * bn_scale).astype(bf16))
    p["b2"] = jnp.zeros((1, CP), f32)
    p["wfc1"] = wfc1.astype(bf16)
    p["bfc1"] = jnp.zeros((1, 512), f32)
    # fc2: N padded 10 -> 128; extra logits are exact zeros and sliced off.
    p["wfc2"] = jnp.zeros((512, CP), bf16).at[:, :10].set(wfc2.astype(bf16))
    p["bfc2"] = jnp.zeros((1, CP), f32)
    return p


@jax.jit
def simple_cnn_forward(x_nchw, p):
    B = x_nchw.shape[0]
    x = jnp.transpose(x_nchw, (0, 2, 3, 1)).astype(jnp.bfloat16)   # NCHW -> NHWC

    # conv1 (+BN1 folded) -> ReLU (output channels padded to 128, lane-dense)
    y = fused_matmul(im2col_3x3(x), p["w1"], p["b1"],
                     relu=True, out_dtype=jnp.bfloat16)            # (B*1024, 128)
    # pool1 keeps only the 32 real channels so conv2's K is 288, not 1152
    y = maxpool2x2(y.reshape(B, 32, 32, CP), out_channels=32)      # (B,16,16,32)

    # conv2 (+BN2 folded) -> ReLU
    y = fused_matmul(im2col_3x3(y), p["w2"], p["b2"],
                     relu=True, out_dtype=jnp.bfloat16)            # (B*256, 128)
    y = maxpool2x2(y.reshape(B, 16, 16, CP), out_channels=64)      # (B,8,8,64)

    # dropout1 (p=0.0) == identity; flatten in NHWC order (wfc1 rows match)
    flat = y.reshape(B, 64 * 8 * 8)
    # fc1 -> ReLU -> dropout2 (p=0.0, identity) -> fc2, fused in one pallas_call
    out = fused_fc(flat, p["wfc1"], p["bfc1"], p["wfc2"], p["bfc2"])  # (B,128) f32
    return out[:, :10]                                             # (B, 10)


if __name__ == "__main__":
    key = jax.random.PRNGKey(0)
    pkey, xkey = jax.random.split(key)
    params = init_params(pkey)
    # SimpleCNN requires 3x32x32 inputs (fc1 expects 64*8*8 after two 2x2 pools).
    x = jax.random.normal(xkey, (2, 3, 32, 32), jnp.float32)       # NCHW like PyTorch
    out = simple_cnn_forward(x, params)
    out = jax.block_until_ready(out)
    assert out.shape == (2, 10) and out.dtype == jnp.float32
    assert bool(jnp.all(jnp.isfinite(out)))
    print("KERNEL_OK")
</pallas_src>

<mosaic_0001>
module attributes {stable_mosaic.version = 11 : i64} {
  func.func @_matmul_kernel(%arg0: i32, %arg1: i32, %arg2: i32, %arg3: memref<512x27xbf16, #tpu.memory_space<vmem>>, %arg4: memref<27x128xbf16, #tpu.memory_space<vmem>>, %arg5: memref<1x128xf32, #tpu.memory_space<vmem>>, %arg6: memref<512x128xbf16, #tpu.memory_space<vmem>>, %arg7: memref<512x128xf32, #tpu.memory_space<vmem>>) attributes {dimension_semantics = [#tpu.dimension_semantics<parallel>, #tpu.dimension_semantics<parallel>, #tpu.dimension_semantics<arbitrary>], iteration_bounds = array<i64: 4, 1, 1>, scalar_prefetch = 0 : i64, scratch_operands = 1 : i64, tpu.core_type = #tpu.core_type<tc>, window_params = [{transform_indices = @transform_0, window_bounds = array<i64: 512, 27>}, {transform_indices = @transform_1, window_bounds = array<i64: 27, 128>}, {transform_indices = @transform_2, window_bounds = array<i64: 1, 128>}, {transform_indices = @transform_3, window_bounds = array<i64: 512, 128>}]} {
    %c0_i32 = arith.constant 0 : i32
    %0 = arith.cmpi eq, %arg2, %c0_i32 : i32
    %1 = arith.extui %0 : i1 to i32
    %c0_i32_0 = arith.constant 0 : i32
    %2 = arith.cmpi ne, %1, %c0_i32_0 : i32
    scf.if %2 {
      %cst_10 = arith.constant 0.000000e+00 : f32
      %12 = vector.broadcast %cst_10 : f32 to vector<512x128xf32>
      %c0_11 = arith.constant 0 : index
      %c0_12 = arith.constant 0 : index
      %13 = vector.load %arg7[%c0_11, %c0_12] : memref<512x128xf32, #tpu.memory_space<vmem>>, vector<512x128xf32>
      tpu.vector_store %arg7[%c0_11, %c0_12], %12 {strides = array<i32>} : memref<512x128xf32, #tpu.memory_space<vmem>>, vector<512x128xf32>,
    } else {
    }
    %c0 = arith.constant 0 : index
    %c0_1 = arith.constant 0 : index
    %3 = vector.load %arg7[%c0, %c0_1] : memref<512x128xf32, #tpu.memory_space<vmem>>, vector<512x128xf32>
    %c0_2 = arith.constant 0 : index
    %c0_3 = arith.constant 0 : index
    %4 = vector.load %arg3[%c0_2, %c0_3] : memref<512x27xbf16, #tpu.memory_space<vmem>>, vector<512x27xbf16>
    %c0_4 = arith.constant 0 : index
    %c0_5 = arith.constant 0 : index
    %5 = vector.load %arg4[%c0_4, %c0_5] : memref<27x128xbf16, #tpu.memory_space<vmem>>, vector<27x128xbf16>
    %cst = arith.constant dense<0.000000e+00> : vector<512x128xf32>
    %6 = tpu.matmul %4, %5, %cst {dimension_numbers = #tpu.dot_dimension_numbers<[1], [0], [0], [1], [0, 0, 1, 1], [], []>} : vector<512x27xbf16>, vector<27x128xbf16>, vector<512x128xf32> -> vector<512x128xf32>
    %7 = arith.addf %3, %6 : vector<512x128xf32>
    %c0_6 = arith.constant 0 : index
    %c0_7 = arith.constant 0 : index
    %8 = vector.load %arg7[%c0_6, %c0_7] : memref<512x128xf32, #tpu.memory_space<vmem>>, vector<512x128xf32>
    tpu.vector_store %arg7[%c0_6, %c0_7], %7 {strides = array<i32>} : memref<512x128xf32, #tpu.memory_space<vmem>>, vector<512x128xf32>,
    %c0_i32_8 = arith.constant 0 : i32
    %9 = arith.cmpi eq, %arg2, %c0_i32_8 : i32
    %10 = arith.extui %9 : i1 to i32
    %c0_i32_9 = arith.constant 0 : i32
    %11 = arith.cmpi ne, %10, %c0_i32_9 : i32
    scf.if %11 {
      %c0_10 = arith.constant 0 : index
      %c0_11 = arith.constant 0 : index
      %12 = vector.load %arg7[%c0_10, %c0_11] : memref<512x128xf32, #tpu.memory_space<vmem>>, vector<512x128xf32>
      %c0_12 = arith.constant 0 : index
      %c0_13 = arith.constant 0 : index
      %13 = vector.load %arg5[%c0_12, %c0_13] : memref<1x128xf32, #tpu.memory_space<vmem>>, vector<1x128xf32>
      %14 = vector.broadcast %13 : vector<1x128xf32> to vector<512x128xf32>
      %15 = arith.addf %12, %14 : vector<512x128xf32>
      %cst_14 = arith.constant 0.000000e+00 : f32
      %16 = vector.broadcast %cst_14 : f32 to vector<512x128xf32>
      %17 = arith.maximumf %15, %16 : vector<512x128xf32>
      %18 = arith.truncf %17 : vector<512x128xf32> to vector<512x128xbf16>
      %c0_15 = arith.constant 0 : index
      %c0_16 = arith.constant 0 : index
      %19 = vector.load %arg6[%c0_15, %c0_16] : memref<512x128xbf16, #tpu.memory_space<vmem>>, vector<512x128xbf16>
      tpu.vector_store %arg6[%c0_15, %c0_16], %18 {strides = array<i32>} : memref<512x128xbf16, #tpu.memory_space<vmem>>, vector<512x128xbf16>,
    } else {
    }
    return
  }
  func.func @transform_0(%arg0: i32, %arg1: i32, %arg2: i32) -> (i32, i32) {
    %c0_i32 = arith.constant 0 : i32
    return %arg0, %arg2 : i32, i32
  }
  func.func @transform_1(%arg0: i32, %arg1: i32, %arg2: i32) -> (i32, i32) {
    %c0_i32 = arith.constant 0 : i32
    return %arg2, %arg1 : i32, i32
  }
  func.func @transform_2(%arg0: i32, %arg1: i32, %arg2: i32) -> (i32, i32) {
    %c0_i32 = arith.constant 0 : i32
    %c0_i32_0 = arith.constant 0 : i32
    return %c0_i32, %arg1 : i32, i32
  }
  func.func @transform_3(%arg0: i32, %arg1: i32, %arg2: i32) -> (i32, i32) {
    %c0_i32 = arith.constant 0 : i32
    return %arg0, %arg1 : i32, i32
  }
}

module attributes {stable_mosaic.version = 11 : i64} {
  func.func @_maxpool_kernel(%arg0: i32, %arg1: memref<32x2x16x256xbf16, #tpu.memory_space<vmem>>, %arg2: memref<32x16x32xbf16, #tpu.memory_space<vmem>>) attributes {dimension_semantics = [#tpu.dimension_semantics<parallel>], iteration_bounds = array<i64: 1>, scalar_prefetch = 0 : i64, scratch_operands = 0 : i64, tpu.core_type = #tpu.core_type<tc>, window_params = [{transform_indices = @transform_0, window_bounds = array<i64: 32, 2, 16, 256>}, {transform_indices = @transform_1, window_bounds = array<i64: 32, 16, 32>}]} {
    %c0 = arith.constant 0 : index
    %c0_0 = arith.constant 0 : index
    %c0_1 = arith.constant 0 : index
    %c0_2 = arith.constant 0 : index
    %0 = vector.load %arg1[%c0, %c0_0, %c0_1, %c0_2] : memref<32x2x16x256xbf16, #tpu.memory_space<vmem>>, vector<32x1x16x256xbf16>
    %1 = vector.shape_cast %0 : vector<32x1x16x256xbf16> to vector<32x16x256xbf16>
    %c0_3 = arith.constant 0 : index
    %c1 = arith.constant 1 : index
    %c0_4 = arith.constant 0 : index
    %c0_5 = arith.constant 0 : index
    %2 = vector.load %arg1[%c0_3, %c1, %c0_4, %c0_5] : memref<32x2x16x256xbf16, #tpu.memory_space<vmem>>, vector<32x1x16x256xbf16>
    %3 = vector.shape_cast %2 : vector<32x1x16x256xbf16> to vector<32x16x256xbf16>
    %4 = arith.maximumf %1, %3 : vector<32x16x256xbf16>
    %5 = vector.extract_strided_slice %4 {offsets = [0, 0, 0], sizes = [32, 16, 128], strides = [1, 1, 1]} : vector<32x16x256xbf16> to vector<32x16x128xbf16>
    %6 = vector.extract_strided_slice %4 {offsets = [0, 0, 128], sizes = [32, 16, 128], strides = [1, 1, 1]} : vector<32x16x256xbf16> to vector<32x16x128xbf16>
    %7 = arith.maximumf %5, %6 : vector<32x16x128xbf16>
    %8 = vector.extract_strided_slice %7 {offsets = [0, 0, 0], sizes = [32, 16, 32], strides = [1, 1, 1]} : vector<32x16x128xbf16> to vector<32x16x32xbf16>
    %c0_6 = arith.constant 0 : index
    %c0_7 = arith.constant 0 : index
    %c0_8 = arith.constant 0 : index
    %9 = vector.load %arg2[%c0_6, %c0_7, %c0_8] : memref<32x16x32xbf16, #tpu.memory_space<vmem>>, vector<32x16x32xbf16>
    tpu.vector_store %arg2[%c0_6, %c0_7, %c0_8], %8 {strides = array<i32>} : memref<32x16x32xbf16, #tpu.memory_space<vmem>>, vector<32x16x32xbf16>,
    return
  }
  func.func @transform_0(%arg0: i32) -> (i32, i32, i32, i32) {
    %c0_i32 = arith.constant 0 : i32
    %c0_i32_0 = arith.constant 0 : i32
    %c0_i32_1 = arith.constant 0 : i32
    %c0_i32_2 = arith.constant 0 : i32
    return %arg0, %c0_i32, %c0_i32_0, %c0_i32_1 : i32, i32, i32, i32
  }
  func.func @transform_1(%arg0: i32) -> (i32, i32, i32) {
    %c0_i32 = arith.constant 0 : i32
    %c0_i32_0 = arith.constant 0 : i32
    %c0_i32_1 = arith.constant 0 : i32
    return %arg0, %c0_i32, %c0_i32_0 : i32, i32, i32
  }
}

module attributes {stable_mosaic.version = 11 : i64} {
  func.func @_matmul_kernel(%arg0: i32, %arg1: i32, %arg2: i32, %arg3: memref<256x288xbf16, #tpu.memory_space<vmem>>, %arg4: memref<288x128xbf16, #tpu.memory_space<vmem>>, %arg5: memref<1x128xf32, #tpu.memory_space<vmem>>, %arg6: memref<256x128xbf16, #tpu.memory_space<vmem>>, %arg7: memref<256x128xf32, #tpu.memory_space<vmem>>) attributes {dimension_semantics = [#tpu.dimension_semantics<parallel>, #tpu.dimension_semantics<parallel>, #tpu.dimension_semantics<arbitrary>], iteration_bounds = array<i64: 2, 1, 1>, scalar_prefetch = 0 : i64, scratch_operands = 1 : i64, tpu.core_type = #tpu.core_type<tc>, window_params = [{transform_indices = @transform_0, window_bounds = array<i64: 256, 288>}, {transform_indices = @transform_1, window_bounds = array<i64: 288, 128>}, {transform_indices = @transform_2, window_bounds = array<i64: 1, 128>}, {transform_indices = @transform_3, window_bounds = array<i64: 256, 128>}]} {
    %c0_i32 = arith.constant 0 : i32
    %0 = arith.cmpi eq, %arg2, %c0_i32 : i32
    %1 = arith.extui %0 : i1 to i32
    %c0_i32_0 = arith.constant 0 : i32
    %2 = arith.cmpi ne, %1, %c0_i32_0 : i32
    scf.if %2 {
      %cst_10 = arith.constant 0.000000e+00 : f32
      %12 = vector.broadcast %cst_10 : f32 to vector<256x128xf32>
      %c0_11 = arith.constant 0 : index
      %c0_12 = arith.constant 0 : index
      %13 = vector.load %arg7[%c0_11, %c0_12] : memref<256x128xf32, #tpu.memory_space<vmem>>, vector<256x128xf32>
      tpu.vector_store %arg7[%c0_11, %c0_12], %12 {strides = array<i32>} : memref<256x128xf32, #tpu.memory_space<vmem>>, vector<256x128xf32>,
    } else {
    }
    %c0 = arith.constant 0 : index
    %c0_1 = arith.constant 0 : index
    %3 = vector.load %arg7[%c0, %c0_1] : memref<256x128xf32, #tpu.memory_space<vmem>>, vector<256x128xf32>
    %c0_2 = arith.constant 0 : index
    %c0_3 = arith.constant 0 : index
    %4 = vector.load %arg3[%c0_2, %c0_3] : memref<256x288xbf16, #tpu.memory_space<vmem>>, vector<256x288xbf16>
    %c0_4 = arith.constant 0 : index
    %c0_5 = arith.constant 0 : index
    %5 = vector.load %arg4[%c0_4, %c0_5] : memref<288x128xbf16, #tpu.memory_space<vmem>>, vector<288x128xbf16>
    %cst = arith.constant dense<0.000000e+00> : vector<256x128xf32>
    %6 = tpu.matmul %4, %5, %cst {dimension_numbers = #tpu.dot_dimension_numbers<[1], [0], [0], [1], [0, 0, 1, 1], [], []>} : vector<256x288xbf16>, vector<288x128xbf16>, vector<256x128xf32> -> vector<256x128xf32>
    %7 = arith.addf %3, %6 : vector<256x128xf32>
    %c0_6 = arith.constant 0 : index
    %c0_7 = arith.constant 0 : index
    %8 = vector.load %arg7[%c0_6, %c0_7] : memref<256x128xf32, #tpu.memory_space<vmem>>, vector<256x128xf32>
    tpu.vector_store %arg7[%c0_6, %c0_7], %7 {strides = array<i32>} : memref<256x128xf32, #tpu.memory_space<vmem>>, vector<256x128xf32>,
    %c0_i32_8 = arith.constant 0 : i32
    %9 = arith.cmpi eq, %arg2, %c0_i32_8 : i32
    %10 = arith.extui %9 : i1 to i32
    %c0_i32_9 = arith.constant 0 : i32
    %11 = arith.cmpi ne, %10, %c0_i32_9 : i32
    scf.if %11 {
      %c0_10 = arith.constant 0 : index
      %c0_11 = arith.constant 0 : index
      %12 = vector.load %arg7[%c0_10, %c0_11] : memref<256x128xf32, #tpu.memory_space<vmem>>, vector<256x128xf32>
      %c0_12 = arith.constant 0 : index
      %c0_13 = arith.constant 0 : index
      %13 = vector.load %arg5[%c0_12, %c0_13] : memref<1x128xf32, #tpu.memory_space<vmem>>, vector<1x128xf32>
      %14 = vector.broadcast %13 : vector<1x128xf32> to vector<256x128xf32>
      %15 = arith.addf %12, %14 : vector<256x128xf32>
      %cst_14 = arith.constant 0.000000e+00 : f32
      %16 = vector.broadcast %cst_14 : f32 to vector<256x128xf32>
      %17 = arith.maximumf %15, %16 : vector<256x128xf32>
      %18 = arith.truncf %17 : vector<256x128xf32> to vector<256x128xbf16>
      %c0_15 = arith.constant 0 : index
      %c0_16 = arith.constant 0 : index
      %19 = vector.load %arg6[%c0_15, %c0_16] : memref<256x128xbf16, #tpu.memory_space<vmem>>, vector<256x128xbf16>
      tpu.vector_store %arg6[%c0_15, %c0_16], %18 {strides = array<i32>} : memref<256x128xbf16, #tpu.memory_space<vmem>>, vector<256x128xbf16>,
    } else {
    }
    return
  }
  func.func @transform_0(%arg0: i32, %arg1: i32, %arg2: i32) -> (i32, i32) {
    %c0_i32 = arith.constant 0 : i32
    return %arg0, %arg2 : i32, i32
  }
  func.func @transform_1(%arg0: i32, %arg1: i32, %arg2: i32) -> (i32, i32) {
    %c0_i32 = arith.constant 0 : i32
    return %arg2, %arg1 : i32, i32
  }
  func.func @transform_2(%arg0: i32, %arg1: i32, %arg2: i32) -> (i32, i32) {
    %c0_i32 = arith.constant 0 : i32
    %c0_i32_0 = arith.constant 0 : i32
    return %c0_i32, %arg1 : i32, i32
  }
  func.func @transform_3(%arg0: i32, %arg1: i32, %arg2: i32) -> (i32, i32) {
    %c0_i32 = arith.constant 0 : i32
    return %arg0, %arg1 : i32, i32
  }
}

module attributes {stable_mosaic.version = 11 : i64} {
  func.func @_maxpool_kernel(%arg0: i32, %arg1: memref<16x2x8x256xbf16, #tpu.memory_space<vmem>>, %arg2: memref<16x8x64xbf16, #tpu.memory_space<vmem>>) attributes {dimension_semantics = [#tpu.dimension_semantics<parallel>], iteration_bounds = array<i64: 1>, scalar_prefetch = 0 : i64, scratch_operands = 0 : i64, tpu.core_type = #tpu.core_type<tc>, window_params = [{transform_indices = @transform_0, window_bounds = array<i64: 16, 2, 8, 256>}, {transform_indices = @transform_1, window_bounds = array<i64: 16, 8, 64>}]} {
    %c0 = arith.constant 0 : index
    %c0_0 = arith.constant 0 : index
    %c0_1 = arith.constant 0 : index
    %c0_2 = arith.constant 0 : index
    %0 = vector.load %arg1[%c0, %c0_0, %c0_1, %c0_2] : memref<16x2x8x256xbf16, #tpu.memory_space<vmem>>, vector<16x1x8x256xbf16>
    %1 = vector.shape_cast %0 : vector<16x1x8x256xbf16> to vector<16x8x256xbf16>
    %c0_3 = arith.constant 0 : index
    %c1 = arith.constant 1 : index
    %c0_4 = arith.constant 0 : index
    %c0_5 = arith.constant 0 : index
    %2 = vector.load %arg1[%c0_3, %c1, %c0_4, %c0_5] : memref<16x2x8x256xbf16, #tpu.memory_space<vmem>>, vector<16x1x8x256xbf16>
    %3 = vector.shape_cast %2 : vector<16x1x8x256xbf16> to vector<16x8x256xbf16>
    %4 = arith.maximumf %1, %3 : vector<16x8x256xbf16>
    %5 = vector.extract_strided_slice %4 {offsets = [0, 0, 0], sizes = [16, 8, 128], strides = [1, 1, 1]} : vector<16x8x256xbf16> to vector<16x8x128xbf16>
    %6 = vector.extract_strided_slice %4 {offsets = [0, 0, 128], sizes = [16, 8, 128], strides = [1, 1, 1]} : vector<16x8x256xbf16> to vector<16x8x128xbf16>
    %7 = arith.maximumf %5, %6 : vector<16x8x128xbf16>
    %8 = vector.extract_strided_slice %7 {offsets = [0, 0, 0], sizes = [16, 8, 64], strides = [1, 1, 1]} : vector<16x8x128xbf16> to vector<16x8x64xbf16>
    %c0_6 = arith.constant 0 : index
    %c0_7 = arith.constant 0 : index
    %c0_8 = arith.constant 0 : index
    %9 = vector.load %arg2[%c0_6, %c0_7, %c0_8] : memref<16x8x64xbf16, #tpu.memory_space<vmem>>, vector<16x8x64xbf16>
    tpu.vector_store %arg2[%c0_6, %c0_7, %c0_8], %8 {strides = array<i32>} : memref<16x8x64xbf16, #tpu.memory_space<vmem>>, vector<16x8x64xbf16>,
    return
  }
  func.func @transform_0(%arg0: i32) -> (i32, i32, i32, i32) {
    %c0_i32 = arith.constant 0 : i32
    %c0_i32_0 = arith.constant 0 : i32
    %c0_i32_1 = arith.constant 0 : i32
    %c0_i32_2 = arith.constant 0 : i32
    return %arg0, %c0_i32, %c0_i32_0, %c0_i32_1 : i32, i32, i32, i32
  }
  func.func @transform_1(%arg0: i32) -> (i32, i32, i32) {
    %c0_i32 = arith.constant 0 : i32
    %c0_i32_0 = arith.constant 0 : i32
    %c0_i32_1 = arith.constant 0 : i32
    return %arg0, %c0_i32, %c0_i32_0 : i32, i32, i32
  }
}

module attributes {stable_mosaic.version = 11 : i64} {
  func.func @_fc_kernel(%arg0: i32, %arg1: memref<2x2048xbf16, #tpu.memory_space<vmem>>, %arg2: memref<2048x512xbf16, #tpu.memory_space<vmem>>, %arg3: memref<1x512xf32, #tpu.memory_space<vmem>>, %arg4: memref<512x128xbf16, #tpu.memory_space<vmem>>, %arg5: memref<1x128xf32, #tpu.memory_space<vmem>>, %arg6: memref<2x128xf32, #tpu.memory_space<vmem>>, %arg7: memref<2x512xf32, #tpu.memory_space<vmem>>) attributes {dimension_semantics = [#tpu.dimension_semantics<arbitrary>], iteration_bounds = array<i64: 2>, scalar_prefetch = 0 : i64, scratch_operands = 1 : i64, tpu.core_type = #tpu.core_type<tc>, window_params = [{transform_indices = @transform_0, window_bounds = array<i64: 2, 2048>}, {transform_indices = @transform_1, window_bounds = array<i64: 2048, 512>}, {pipeline_mode = #tpu.pipeline_mode<synchronous>, transform_indices = @transform_2, window_bounds = array<i64: 1, 512>}, {pipeline_mode = #tpu.pipeline_mode<synchronous>, transform_indices = @transform_3, window_bounds = array<i64: 512, 128>}, {pipeline_mode = #tpu.pipeline_mode<synchronous>, transform_indices = @transform_4, window_bounds = array<i64: 1, 128>}, {pipeline_mode = #tpu.pipeline_mode<synchronous>, transform_indices = @transform_5, window_bounds = array<i64: 2, 128>}]} {
    %c0_i32 = arith.constant 0 : i32
    %0 = arith.cmpi eq, %arg0, %c0_i32 : i32
    %1 = arith.extui %0 : i1 to i32
    %c0_i32_0 = arith.constant 0 : i32
    %2 = arith.cmpi ne, %1, %c0_i32_0 : i32
    scf.if %2 {
      %cst_9 = arith.constant 0.000000e+00 : f32
      %12 = vector.broadcast %cst_9 : f32 to vector<2x512xf32>
      %c0_10 = arith.constant 0 : index
      %c0_11 = arith.constant 0 : index
      %13 = vector.load %arg7[%c0_10, %c0_11] : memref<2x512xf32, #tpu.memory_space<vmem>>, vector<2x512xf32>
      tpu.vector_store %arg7[%c0_10, %c0_11], %12 {strides = array<i32>} : memref<2x512xf32, #tpu.memory_space<vmem>>, vector<2x512xf32>,
    } else {
    }
    %c0 = arith.constant 0 : index
    %c0_1 = arith.constant 0 : index
    %3 = vector.load %arg7[%c0, %c0_1] : memref<2x512xf32, #tpu.memory_space<vmem>>, vector<2x512xf32>
    %c0_2 = arith.constant 0 : index
    %c0_3 = arith.constant 0 : index
    %4 = vector.load %arg1[%c0_2, %c0_3] : memref<2x2048xbf16, #tpu.memory_space<vmem>>, vector<2x2048xbf16>
    %c0_4 = arith.constant 0 : index
    %c0_5 = arith.constant 0 : index
    %5 = vector.load %arg2[%c0_4, %c0_5] : memref<2048x512xbf16, #tpu.memory_space<vmem>>, vector<2048x512xbf16>
    %cst = arith.constant dense<0.000000e+00> : vector<2x512xf32>
    %6 = tpu.matmul %4, %5, %cst {dimension_numbers = #tpu.dot_dimension_numbers<[1], [0], [0], [1], [0, 0, 1, 1], [], []>} : vector<2x2048xbf16>, vector<2048x512xbf16>, vector<2x512xf32> -> vector<2x512xf32>
    %7 = arith.addf %3, %6 : vector<2x512xf32>
    %c0_6 = arith.constant 0 : index
    %c0_7 = arith.constant 0 : index
    %8 = vector.load %arg7[%c0_6, %c0_7] : memref<2x512xf32, #tpu.memory_space<vmem>>, vector<2x512xf32>
    tpu.vector_store %arg7[%c0_6, %c0_7], %7 {strides = array<i32>} : memref<2x512xf32, #tpu.memory_space<vmem>>, vector<2x512xf32>,
    %c1_i32 = arith.constant 1 : i32
    %9 = arith.cmpi eq, %arg0, %c1_i32 : i32
    %10 = arith.extui %9 : i1 to i32
    %c0_i32_8 = arith.constant 0 : i32
    %11 = arith.cmpi ne, %10, %c0_i32_8 : i32
    scf.if %11 {
      %c0_9 = arith.constant 0 : index
      %c0_10 = arith.constant 0 : index
      %12 = vector.load %arg7[%c0_9, %c0_10] : memref<2x512xf32, #tpu.memory_space<vmem>>, vector<2x512xf32>
      %c0_11 = arith.constant 0 : index
      %c0_12 = arith.constant 0 : index
      %13 = vector.load %arg3[%c0_11, %c0_12] : memref<1x512xf32, #tpu.memory_space<vmem>>, vector<1x512xf32>
      %14 = vector.broadcast %13 : vector<1x512xf32> to vector<2x512xf32>
      %15 = arith.addf %12, %14 : vector<2x512xf32>
      %cst_13 = arith.constant 0.000000e+00 : f32
      %16 = vector.broadcast %cst_13 : f32 to vector<2x512xf32>
      %17 = arith.maximumf %15, %16 : vector<2x512xf32>
      %18 = arith.truncf %17 : vector<2x512xf32> to vector<2x512xbf16>
      %c0_14 = arith.constant 0 : index
      %c0_15 = arith.constant 0 : index
      %19 = vector.load %arg4[%c0_14, %c0_15] : memref<512x128xbf16, #tpu.memory_space<vmem>>, vector<512x128xbf16>
      %cst_16 = arith.constant dense<0.000000e+00> : vector<2x128xf32>
      %20 = tpu.matmul %18, %19, %cst_16 {dimension_numbers = #tpu.dot_dimension_numbers<[1], [0], [0], [1], [0, 0, 1, 1], [], []>} : vector<2x512xbf16>, vector<512x128xbf16>, vector<2x128xf32> -> vector<2x128xf32>
      %c0_17 = arith.constant 0 : index
      %c0_18 = arith.constant 0 : index
      %21 = vector.load %arg5[%c0_17, %c0_18] : memref<1x128xf32, #tpu.memory_space<vmem>>, vector<1x128xf32>
      %22 = vector.broadcast %21 : vector<1x128xf32> to vector<2x128xf32>
      %23 = arith.addf %20, %22 : vector<2x128xf32>
      %c0_19 = arith.constant 0 : index
      %c0_20 = arith.constant 0 : index
      %24 = vector.load %arg6[%c0_19, %c0_20] : memref<2x128xf32, #tpu.memory_space<vmem>>, vector<2x128xf32>
      tpu.vector_store %arg6[%c0_19, %c0_20], %23 {strides = array<i32>} : memref<2x128xf32, #tpu.memory_space<vmem>>, vector<2x128xf32>,
    } else {
    }
    return
  }
  func.func @transform_0(%arg0: i32) -> (i32, i32) {
    %c0_i32 = arith.constant 0 : i32
    %c0_i32_0 = arith.constant 0 : i32
    return %c0_i32, %arg0 : i32, i32
  }
  func.func @transform_1(%arg0: i32) -> (i32, i32) {
    %c0_i32 = arith.constant 0 : i32
    %c0_i32_0 = arith.constant 0 : i32
    return %arg0, %c0_i32 : i32, i32
  }
  func.func @transform_2(%arg0: i32) -> (i32, i32) {
    %c0_i32 = arith.constant 0 : i32
    %c0_i32_0 = arith.constant 0 : i32
    %c0_i32_1 = arith.constant 0 : i32
    return %c0_i32, %c0_i32_0 : i32, i32
  }
  func.func @transform_3(%arg0: i32) -> (i32, i32) {
    %c0_i32 = arith.constant 0 : i32
    %c0_i32_0 = arith.constant 0 : i32
    %c0_i32_1 = arith.constant 0 : i32
    return %c0_i32, %c0_i32_0 : i32, i32
  }
  func.func @transform_4(%arg0: i32) -> (i32, i32) {
    %c0_i32 = arith.constant 0 : i32
    %c0_i32_0 = arith.constant 0 : i32
    %c0_i32_1 = arith.constant 0 : i32
    return %c0_i32, %c0_i32_0 : i32, i32
  }
  func.func @transform_5(%arg0: i32) -> (i32, i32) {
    %c0_i32 = arith.constant 0 : i32
    %c0_i32_0 = arith.constant 0 : i32
    %c0_i32_1 = arith.constant 0 : i32
    return %c0_i32, %c0_i32_0 : i32, i32
  }
}

</mosaic_0001>

<llo_original>
// kernel: simple_cnn_forward.6
$region0: #{simple_cnn_forward.6}
  #allocation0 [shape = 'u32[]', space=smem, size = 0x4, offset = 0x4, fixed_abs, tag = 'smem constant byte address 0x4 - core index']
  #allocation1 [shape = 'u32[144,128]{1,0:T(1,128)}', space=vmem, size = 0x12000, scoped, tag = 'internal scratch']
  %s0 = inlined_call_operand.vmem [shape: bf16[32,2,16,256], index: 0, kind: input, shape index: {}]
  %s1 = inlined_call_operand.vmem [shape: bf16[32,16,32], index: 1, kind: output, shape index: {}]
  %s2 = sld [smem:[#allocation0]]
  $region14: #{simple_cnn_forward.6} parent=0
    _
  %s4 = ssub.s32 1, %s2
  %s5 = scalar_select 0, %s4, %s2
  // Predicated region
  $region2: #{simple_cnn_forward.6} parent=0 // pred_check
    _
  $region3: #{simple_cnn_forward.6} parent=0 // pred_check_branch
    %7 = sbr.rel (0) target = $region5
  $region4: #{simple_cnn_forward.6} parent=0 // pred_region
    _
  $region5: #{simple_cnn_forward.6} parent=0 // pred_fallthru
    _
  %v8 = vld [vmem:[%s0] sm:$0xff]
  %v9 = vld [vmem:[%s0 + $0x8] sm:$0xff]
  %v10 = vld [vmem:[%s0 + $0x20] sm:$0xff]
  %v11 = vld [vmem:[%s0 + $0x28] sm:$0xff]
  %v12 = vld [vmem:[%s0 + $0x40] sm:$0xff]
  %v13 = vld [vmem:[%s0 + $0x48] sm:$0xff]
  %v14 = vld [vmem:[%s0 + $0x60] sm:$0xff]
  %v15 = vld [vmem:[%s0 + $0x68] sm:$0xff]
  %v16 = vld [vmem:[%s0 + $0x80] sm:$0xff]
  %v17 = vld [vmem:[%s0 + $0x88] sm:$0xff]
  %v18 = vld [vmem:[%s0 + $0xa0] sm:$0xff]
  %v19 = vld [vmem:[%s0 + $0xa8] sm:$0xff]
  %v20 = vld [vmem:[%s0 + $0xc0] sm:$0xff]
  %v21 = vld [vmem:[%s0 + $0xc8] sm:$0xff]
  %v22 = vld [vmem:[%s0 + $0xe0] sm:$0xff]
  %v23 = vld [vmem:[%s0 + $0xe8] sm:$0xff]
  %v24 = vld [vmem:[%s0 + $0x100] sm:$0xff]
  %v25 = vld [vmem:[%s0 + $0x108] sm:$0xff]
  %v26 = vld [vmem:[%s0 + $0x120] sm:$0xff]
  %v27 = vld [vmem:[%s0 + $0x128] sm:$0xff]
  %v28 = vld [vmem:[%s0 + $0x140] sm:$0xff]
  %v29 = vld [vmem:[%s0 + $0x148] sm:$0xff]
  %v30 = vld [vmem:[%s0 + $0x160] sm:$0xff]
  %v31 = vld [vmem:[%s0 + $0x168] sm:$0xff]
  %v32 = vld [vmem:[%s0 + $0x180] sm:$0xff]
  %v33 = vld [vmem:[%s0 + $0x188] sm:$0xff]
  %v34 = vld [vmem:[%s0 + $0x1a0] sm:$0xff]
  %v35 = vld [vmem:[%s0 + $0x1a8] sm:$0xff]
  %v36 = vld [vmem:[%s0 + $0x1c0] sm:$0xff]
  %v37 = vld [vmem:[%s0 + $0x1c8] sm:$0xff]
  %v38 = vld [vmem:[%s0 + $0x1e0] sm:$0xff]
  %v39 = vld [vmem:[%s0 + $0x1e8] sm:$0xff]
  %v40 = vld [vmem:[%s0 + $0x200] sm:$0xff]
  %v41 = vld [vmem:[%s0 + $0x208] sm:$0xff]
  %v42 = vld [vmem:[%s0 + $0x220] sm:$0xff]
  %v43 = vld [vmem:[%s0 + $0x228] sm:$0xff]
  %v44 = vld [vmem:[%s0 + $0x240] sm:$0xff]
  %v45 = vld [vmem:[%s0 + $0x248] sm:$0xff]
  %v46 = vld [vmem:[%s0 + $0x260] sm:$0xff]
  %v47 = vld [vmem:[%s0 + $0x268] sm:$0xff]
  %v48 = vld [vmem:[%s0 + $0x280] sm:$0xff]
  %v49 = vld [vmem:[%s0 + $0x288] sm:$0xff]
  %v50 = vld [vmem:[%s0 + $0x2a0] sm:$0xff]
  %v51 = vld [vmem:[%s0 + $0x2a8] sm:$0xff]
  %v52 = vld [vmem:[%s0 + $0x2c0] sm:$0xff]
  %v53 = vld [vmem:[%s0 + $0x2c8] sm:$0xff]
  %v54 = vld [vmem:[%s0 + $0x2e0] sm:$0xff]
  %v55 = vld [vmem:[%s0 + $0x2e8] sm:$0xff]
  %v56 = vld [vmem:[%s0 + $0x300] sm:$0xff]
  %v57 = vld [vmem:[%s0 + $0x308] sm:$0xff]
  %v58 = vld [vmem:[%s0 + $0x320] sm:$0xff]
  %v59 = vld [vmem:[%s0 + $0x328] sm:$0xff]
  %v60 = vld [vmem:[%s0 + $0x340] sm:$0xff]
  %v61 = vld [vmem:[%s0 + $0x348] sm:$0xff]
  %v62 = vld [vmem:[%s0 + $0x360] sm:$0xff]
  %v63 = vld [vmem:[%s0 + $0x368] sm:$0xff]
  %v64 = vld [vmem:[%s0 + $0x380] sm:$0xff]
  %v65 = vld [vmem:[%s0 + $0x388] sm:$0xff]
  %v66 = vld [vmem:[%s0 + $0x3a0] sm:$0xff]
  %v67 = vld [vmem:[%s0 + $0x3a8] sm:$0xff]
  %v68 = vld [vmem:[%s0 + $0x3c0] sm:$0xff]
  %v69 = vld [vmem:[%s0 + $0x3c8] sm:$0xff]
  %v70 = vld [vmem:[%s0 + $0x3e0] sm:$0xff]
  %v71 = vld [vmem:[%s0 + $0x3e8] sm:$0xff]
  %s72 = scalar_lea.vmem %s0, 16
  %v73 = vld [vmem:[%s72] sm:$0xff]
  %v74 = vld [vmem:[%s72 + $0x8] sm:$0xff]
  %v75 = vld [vmem:[%s72 + $0x20] sm:$0xff]
  %v76 = vld [vmem:[%s72 + $0x28] sm:$0xff]
  %v77 = vld [vmem:[%s72 + $0x40] sm:$0xff]
  %v78 = vld [vmem:[%s72 + $0x48] sm:$0xff]
  %v79 = vld [vmem:[%s72 + $0x60] sm:$0xff]
  %v80 = vld [vmem:[%s72 + $0x68] sm:$0xff]
  %v81 = vld [vmem:[%s72 + $0x80] sm:$0xff]
  %v82 = vld [vmem:[%s72 + $0x88] sm:$0xff]
  %v83 = vld [vmem:[%s72 + $0xa0] sm:$0xff]
  %v84 = vld [vmem:[%s72 + $0xa8] sm:$0xff]
  %v85 = vld [vmem:[%s72 + $0xc0] sm:$0xff]
  %v86 = vld [vmem:[%s72 + $0xc8] sm:$0xff]
  %v87 = vld [vmem:[%s72 + $0xe0] sm:$0xff]
  %v88 = vld [vmem:[%s72 + $0xe8] sm:$0xff]
  %v89 = vld [vmem:[%s72 + $0x100] sm:$0xff]
  %v90 = vld [vmem:[%s72 + $0x108] sm:$0xff]
  %v91 = vld [vmem:[%s72 + $0x120] sm:$0xff]
  %v92 = vld [vmem:[%s72 + $0x128] sm:$0xff]
  %v93 = vld [vmem:[%s72 + $0x140] sm:$0xff]
  %v94 = vld [vmem:[%s72 + $0x148] sm:$0xff]
  %v95 = vld [vmem:[%s72 + $0x160] sm:$0xff]
  %v96 = vld [vmem:[%s72 + $0x168] sm:$0xff]
  %v97 = vld [vmem:[%s72 + $0x180] sm:$0xff]
  %v98 = vld [vmem:[%s72 + $0x188] sm:$0xff]
  %v99 = vld [vmem:[%s72 + $0x1a0] sm:$0xff]
  %v100 = vld [vmem:[%s72 + $0x1a8] sm:$0xff]
  %v101 = vld [vmem:[%s72 + $0x1c0] sm:$0xff]
  %v102 = vld [vmem:[%s72 + $0x1c8] sm:$0xff]
  %v103 = vld [vmem:[%s72 + $0x1e0] sm:$0xff]
  %v104 = vld [vmem:[%s72 + $0x1e8] sm:$0xff]
  %v105 = vld [vmem:[%s72 + $0x200] sm:$0xff]
  %v106 = vld [vmem:[%s72 + $0x208] sm:$0xff]
  %v107 = vld [vmem:[%s72 + $0x220] sm:$0xff]
  %v108 = vld [vmem:[%s72 + $0x228] sm:$0xff]
  %v109 = vld [vmem:[%s72 + $0x240] sm:$0xff]
  %v110 = vld [vmem:[%s72 + $0x248] sm:$0xff]
  %v111 = vld [vmem:[%s72 + $0x260] sm:$0xff]
  %v112 = vld [vmem:[%s72 + $0x268] sm:$0xff]
  %v113 = vld [vmem:[%s72 + $0x280] sm:$0xff]
  %v114 = vld [vmem:[%s72 + $0x288] sm:$0xff]
  %v115 = vld [vmem:[%s72 + $0x2a0] sm:$0xff]
  %v116 = vld [vmem:[%s72 + $0x2a8] sm:$0xff]
  %v117 = vld [vmem:[%s72 + $0x2c0] sm:$0xff]
  %v118 = vld [vmem:[%s72 + $0x2c8] sm:$0xff]
  %v119 = vld [vmem:[%s72 + $0x2e0] sm:$0xff]
  %v120 = vld [vmem:[%s72 + $0x2e8] sm:$0xff]
  %v121 = vld [vmem:[%s72 + $0x300] sm:$0xff]
  %v122 = vld [vmem:[%s72 + $0x308] sm:$0xff]
  %v123 = vld [vmem:[%s72 + $0x320] sm:$0xff]
  %v124 = vld [vmem:[%s72 + $0x328] sm:$0xff]
  %v125 = vld [vmem:[%s72 + $0x340] sm:$0xff]
  %v126 = vld [vmem:[%s72 + $0x348] sm:$0xff]
  %v127 = vld [vmem:[%s72 + $0x360] sm:$0xff]
  %v128 = vld [vmem:[%s72 + $0x368] sm:$0xff]
  %v129 = vld [vmem:[%s72 + $0x380] sm:$0xff]
  %v130 = vld [vmem:[%s72 + $0x388] sm:$0xff]
  %v131 = vld [vmem:[%s72 + $0x3a0] sm:$0xff]
  %v132 = vld [vmem:[%s72 + $0x3a8] sm:$0xff]
  %v133 = vld [vmem:[%s72 + $0x3c0] sm:$0xff]
  %v134 = vld [vmem:[%s72 + $0x3c8] sm:$0xff]
  %v135 = vld [vmem:[%s72 + $0x3e0] sm:$0xff]
  %v136 = vld [vmem:[%s72 + $0x3e8] sm:$0xff]
  %v137 = vmax.bf16 %v8, %v73
  %v138 = vmax.bf16 %v9, %v74
  %v139 = vmax.bf16 %v10, %v75
  %v140 = vmax.bf16 %v11, %v76
  %v141 = vmax.bf16 %v12, %v77
  %v142 = vmax.bf16 %v13, %v78
  %v143 = vmax.bf16 %v14, %v79
  %v144 = vmax.bf16 %v15, %v80
  %v145 = vmax.bf16 %v16, %v81
  %v146 = vmax.bf16 %v17, %v82
  %v147 = vmax.bf16 %v18, %v83
  %v148 = vmax.bf16 %v19, %v84
  %v149 = vmax.bf16 %v20, %v85
  %v150 = vmax.bf16 %v21, %v86
  %v151 = vmax.bf16 %v22, %v87
  %v152 = vmax.bf16 %v23, %v88
  %v153 = vmax.bf16 %v24, %v89
  %v154 = vmax.bf16 %v25, %v90
  %v155 = vmax.bf16 %v26, %v91
  %v156 = vmax.bf16 %v27, %v92
  %v157 = vmax.bf16 %v28, %v93
  %v158 = vmax.bf16 %v29, %v94
  %v159 = vmax.bf16 %v30, %v95
  %v160 = vmax.bf16 %v31, %v96
  %v161 = vmax.bf16 %v32, %v97
  %v162 = vmax.bf16 %v33, %v98
  %v163 = vmax.bf16 %v34, %v99
  %v164 = vmax.bf16 %v35, %v100
  %v165 = vmax.bf16 %v36, %v101
  %v166 = vmax.bf16 %v37, %v102
  %v167 = vmax.bf16 %v38, %v103
  %v168 = vmax.bf16 %v39, %v104
  %v169 = vmax.bf16 %v40, %v105
  %v170 = vmax.bf16 %v41, %v106
  %v171 = vmax.bf16 %v42, %v107
  %v172 = vmax.bf16 %v43, %v108
  %v173 = vmax.bf16 %v44, %v109
  %v174 = vmax.bf16 %v45, %v110
  %v175 = vmax.bf16 %v46, %v111
  %v176 = vmax.bf16 %v47, %v112
  %v177 = vmax.bf16 %v48, %v113
  %v178 = vmax.bf16 %v49, %v114
  %v179 = vmax.bf16 %v50, %v115
  %v180 = vmax.bf16 %v51, %v116
  %v181 = vmax.bf16 %v52, %v117
  %v182 = vmax.bf16 %v53, %v118
  %v183 = vmax.bf16 %v54, %v119
  %v184 = vmax.bf16 %v55, %v120
  %v185 = vmax.bf16 %v56, %v121
  %v186 = vmax.bf16 %v57, %v122
  %v187 = vmax.bf16 %v58, %v123
  %v188 = vmax.bf16 %v59, %v124
  %v189 = vmax.bf16 %v60, %v125
  %v190 = vmax.bf16 %v61, %v126
  %v191 = vmax.bf16 %v62, %v127
  %v192 = vmax.bf16 %v63, %v128
  %v193 = vmax.bf16 %v64, %v129
  %v194 = vmax.bf16 %v65, %v130
  %v195 = vmax.bf16 %v66, %v131
  %v196 = vmax.bf16 %v67, %v132
  %v197 = vmax.bf16 %v68, %v133
  %v198 = vmax.bf16 %v69, %v134
  %v199 = vmax.bf16 %v70, %v135
  %v200 = vmax.bf16 %v71, %v136
  %v265 = vrot.slane %v137, 4
  %v266 = vrot.slane %v138, 4
  %v267 = vrot.slane %v139, 4
  %v268 = vrot.slane %v140, 4
  %v269 = vrot.slane %v141, 4
  %v270 = vrot.slane %v142, 4
  %v271 = vrot.slane %v143, 4
  %v272 = vrot.slane %v144, 4
  %v273 = vrot.slane %v145, 4
  %v274 = vrot.slane %v146, 4
  %v275 = vrot.slane %v147, 4
  %v276 = vrot.slane %v148, 4
  %v277 = vrot.slane %v149, 4
  %v278 = vrot.slane %v150, 4
  %v279 = vrot.slane %v151, 4
  %v280 = vrot.slane %v152, 4
  %v281 = vrot.slane %v153, 4
  %v282 = vrot.slane %v154, 4
  %v283 = vrot.slane %v155, 4
  %v284 = vrot.slane %v156, 4
  %v285 = vrot.slane %v157, 4
  %v286 = vrot.slane %v158, 4
  %v287 = vrot.slane %v159, 4
  %v288 = vrot.slane %v160, 4
  %v289 = vrot.slane %v161, 4
  %v290 = vrot.slane %v162, 4
  %v291 = vrot.slane %v163, 4
  %v292 = vrot.slane %v164, 4
  %v293 = vrot.slane %v165, 4
  %v294 = vrot.slane %v166, 4
  %v295 = vrot.slane %v167, 4
  %v296 = vrot.slane %v168, 4
  %v297 = vrot.slane %v169, 4
  %v298 = vrot.slane %v170, 4
  %v299 = vrot.slane %v171, 4
  %v300 = vrot.slane %v172, 4
  %v301 = vrot.slane %v173, 4
  %v302 = vrot.slane %v174, 4
  %v303 = vrot.slane %v175, 4
  %v304 = vrot.slane %v176, 4
  %v305 = vrot.slane %v177, 4
  %v306 = vrot.slane %v178, 4
  %v307 = vrot.slane %v179, 4
  %v308 = vrot.slane %v180, 4
  %v309 = vrot.slane %v181, 4
  %v310 = vrot.slane %v182, 4
  %v311 = vrot.slane %v183, 4
  %v312 = vrot.slane %v184, 4
  %v313 = vrot.slane %v185, 4
  %v314 = vrot.slane %v186, 4
  %v315 = vrot.slane %v187, 4
  %v316 = vrot.slane %v188, 4
  %v317 = vrot.slane %v189, 4
  %v318 = vrot.slane %v190, 4
  %v319 = vrot.slane %v191, 4
  %v320 = vrot.slane %v192, 4
  %v321 = vrot.slane %v193, 4
  %v322 = vrot.slane %v194, 4
  %v323 = vrot.slane %v195, 4
  %v324 = vrot.slane %v196, 4
  %v325 = vrot.slane %v197, 4
  %v326 = vrot.slane %v198, 4
  %v327 = vrot.slane %v199, 4
  %v328 = vrot.slane %v200, 4
  %v393 = vmax.bf16 %v137, %v265
  %v394 = vmax.bf16 %v138, %v266
  %v395 = vmax.bf16 %v139, %v267
  %v396 = vmax.bf16 %v140, %v268
  %v397 = vmax.bf16 %v141, %v269
  %v398 = vmax.bf16 %v142, %v270
  %v399 = vmax.bf16 %v143, %v271
  %v400 = vmax.bf16 %v144, %v272
  %v401 = vmax.bf16 %v145, %v273
  %v402 = vmax.bf16 %v146, %v274
  %v403 = vmax.bf16 %v147, %v275
  %v404 = vmax.bf16 %v148, %v276
  %v405 = vmax.bf16 %v149, %v277
  %v406 = vmax.bf16 %v150, %v278
  %v407 = vmax.bf16 %v151, %v279
  %v408 = vmax.bf16 %v152, %v280
  %v409 = vmax.bf16 %v153, %v281
  %v410 = vmax.bf16 %v154, %v282
  %v411 = vmax.bf16 %v155, %v283
  %v412 = vmax.bf16 %v156, %v284
  %v413 = vmax.bf16 %v157, %v285
  %v414 = vmax.bf16 %v158, %v286
  %v415 = vmax.bf16 %v159, %v287
  %v416 = vmax.bf16 %v160, %v288
  %v417 = vmax.bf16 %v161, %v289
  %v418 = vmax.bf16 %v162, %v290
  %v419 = vmax.bf16 %v163, %v291
  %v420 = vmax.bf16 %v164, %v292
  %v421 = vmax.bf16 %v165, %v293
  %v422 = vmax.bf16 %v166, %v294
  %v423 = vmax.bf16 %v167, %v295
  %v424 = vmax.bf16 %v168, %v296
  %v425 = vmax.bf16 %v169, %v297
  %v426 = vmax.bf16 %v170, %v298
  %v427 = vmax.bf16 %v171, %v299
  %v428 = vmax.bf16 %v172, %v300
  %v429 = vmax.bf16 %v173, %v301
  %v430 = vmax.bf16 %v174, %v302
  %v431 = vmax.bf16 %v175, %v303
  %v432 = vmax.bf16 %v176, %v304
  %v433 = vmax.bf16 %v177, %v305
  %v434 = vmax.bf16 %v178, %v306
  %v435 = vmax.bf16 %v179, %v307
  %v436 = vmax.bf16 %v180, %v308
  %v437 = vmax.bf16 %v181, %v309
  %v438 = vmax.bf16 %v182, %v310
  %v439 = vmax.bf16 %v183, %v311
  %v440 = vmax.bf16 %v184, %v312
  %v441 = vmax.bf16 %v185, %v313
  %v442 = vmax.bf16 %v186, %v314
  %v443 = vmax.bf16 %v187, %v315
  %v444 = vmax.bf16 %v188, %v316
  %v445 = vmax.bf16 %v189, %v317
  %v446 = vmax.bf16 %v190, %v318
  %v447 = vmax.bf16 %v191, %v319
  %v448 = vmax.bf16 %v192, %v320
  %v449 = vmax.bf16 %v193, %v321
  %v450 = vmax.bf16 %v194, %v322
  %v451 = vmax.bf16 %v195, %v323
  %v452 = vmax.bf16 %v196, %v324
  %v453 = vmax.bf16 %v197, %v325
  %v454 = vmax.bf16 %v198, %v326
  %v455 = vmax.bf16 %v199, %v327
  %v456 = vmax.bf16 %v200, %v328
  %vm457 = vcmask 257024
  %458 = vst.msk [vmem:[%s1] sm:$0xf] %vm457, %v393
  %459 = vst.msk [vmem:[%s1 + $0x4] sm:$0xf] %vm457, %v394
  %460 = vst.msk [vmem:[%s1 + $0x8] sm:$0xf] %vm457, %v395
  %461 = vst.msk [vmem:[%s1 + $0xc] sm:$0xf] %vm457, %v396
  %462 = vst.msk [vmem:[%s1 + $0x10] sm:$0xf] %vm457, %v397
  %463 = vst.msk [vmem:[%s1 + $0x14] sm:$0xf] %vm457, %v398
  %464 = vst.msk [vmem:[%s1 + $0x18] sm:$0xf] %vm457, %v399
  %465 = vst.msk [vmem:[%s1 + $0x1c] sm:$0xf] %vm457, %v400
  %466 = vst.msk [vmem:[%s1 + $0x20] sm:$0xf] %vm457, %v401
  %467 = vst.msk [vmem:[%s1 + $0x24] sm:$0xf] %vm457, %v402
  %468 = vst.msk [vmem:[%s1 + $0x28] sm:$0xf] %vm457, %v403
  %469 = vst.msk [vmem:[%s1 + $0x2c] sm:$0xf] %vm457, %v404
  %470 = vst.msk [vmem:[%s1 + $0x30] sm:$0xf] %vm457, %v405
  %471 = vst.msk [vmem:[%s1 + $0x34] sm:$0xf] %vm457, %v406
  %472 = vst.msk [vmem:[%s1 + $0x38] sm:$0xf] %vm457, %v407
  %473 = vst.msk [vmem:[%s1 + $0x3c] sm:$0xf] %vm457, %v408
  %474 = vst.msk [vmem:[%s1 + $0x40] sm:$0xf] %vm457, %v409
  %475 = vst.msk [vmem:[%s1 + $0x44] sm:$0xf] %vm457, %v410
  %476 = vst.msk [vmem:[%s1 + $0x48] sm:$0xf] %vm457, %v411
  %477 = vst.msk [vmem:[%s1 + $0x4c] sm:$0xf] %vm457, %v412
  %478 = vst.msk [vmem:[%s1 + $0x50] sm:$0xf] %vm457, %v413
  %479 = vst.msk [vmem:[%s1 + $0x54] sm:$0xf] %vm457, %v414
  %480 = vst.msk [vmem:[%s1 + $0x58] sm:$0xf] %vm457, %v415
  %481 = vst.msk [vmem:[%s1 + $0x5c] sm:$0xf] %vm457, %v416
  %482 = vst.msk [vmem:[%s1 + $0x60] sm:$0xf] %vm457, %v417
  %483 = vst.msk [vmem:[%s1 + $0x64] sm:$0xf] %vm457, %v418
  %484 = vst.msk [vmem:[%s1 + $0x68] sm:$0xf] %vm457, %v419
  %485 = vst.msk [vmem:[%s1 + $0x6c] sm:$0xf] %vm457, %v420
  %486 = vst.msk [vmem:[%s1 + $0x70] sm:$0xf] %vm457, %v421
  %487 = vst.msk [vmem:[%s1 + $0x74] sm:$0xf] %vm457, %v422
  %488 = vst.msk [vmem:[%s1 + $0x78] sm:$0xf] %vm457, %v423
  %489 = vst.msk [vmem:[%s1 + $0x7c] sm:$0xf] %vm457, %v424
  %490 = vst.msk [vmem:[%s1 + $0x80] sm:$0xf] %vm457, %v425
  %491 = vst.msk [vmem:[%s1 + $0x84] sm:$0xf] %vm457, %v426
  %492 = vst.msk [vmem:[%s1 + $0x88] sm:$0xf] %vm457, %v427
  %493 = vst.msk [vmem:[%s1 + $0x8c] sm:$0xf] %vm457, %v428
  %494 = vst.msk [vmem:[%s1 + $0x90] sm:$0xf] %vm457, %v429
  %495 = vst.msk [vmem:[%s1 + $0x94] sm:$0xf] %vm457, %v430
  %496 = vst.msk [vmem:[%s1 + $0x98] sm:$0xf] %vm457, %v431
  %497 = vst.msk [vmem:[%s1 + $0x9c] sm:$0xf] %vm457, %v432
  %498 = vst.msk [vmem:[%s1 + $0xa0] sm:$0xf] %vm457, %v433
  %499 = vst.msk [vmem:[%s1 + $0xa4] sm:$0xf] %vm457, %v434
  %500 = vst.msk [vmem:[%s1 + $0xa8] sm:$0xf] %vm457, %v435
  %501 = vst.msk [vmem:[%s1 + $0xac] sm:$0xf] %vm457, %v436
  %502 = vst.msk [vmem:[%s1 + $0xb0] sm:$0xf] %vm457, %v437
  %503 = vst.msk [vmem:[%s1 + $0xb4] sm:$0xf] %vm457, %v438
  %504 = vst.msk [vmem:[%s1 + $0xb8] sm:$0xf] %vm457, %v439
  %505 = vst.msk [vmem:[%s1 + $0xbc] sm:$0xf] %vm457, %v440
  %506 = vst.msk [vmem:[%s1 + $0xc0] sm:$0xf] %vm457, %v441
  %507 = vst.msk [vmem:[%s1 + $0xc4] sm:$0xf] %vm457, %v442
  %508 = vst.msk [vmem:[%s1 + $0xc8] sm:$0xf] %vm457, %v443
  %509 = vst.msk [vmem:[%s1 + $0xcc] sm:$0xf] %vm457, %v444
  %510 = vst.msk [vmem:[%s1 + $0xd0] sm:$0xf] %vm457, %v445
  %511 = vst.msk [vmem:[%s1 + $0xd4] sm:$0xf] %vm457, %v446
  %512 = vst.msk [vmem:[%s1 + $0xd8] sm:$0xf] %vm457, %v447
  %513 = vst.msk [vmem:[%s1 + $0xdc] sm:$0xf] %vm457, %v448
  %514 = vst.msk [vmem:[%s1 + $0xe0] sm:$0xf] %vm457, %v449
  %515 = vst.msk [vmem:[%s1 + $0xe4] sm:$0xf] %vm457, %v450
  %516 = vst.msk [vmem:[%s1 + $0xe8] sm:$0xf] %vm457, %v451
  %517 = vst.msk [vmem:[%s1 + $0xec] sm:$0xf] %vm457, %v452
  %518 = vst.msk [vmem:[%s1 + $0xf0] sm:$0xf] %vm457, %v453
  %519 = vst.msk [vmem:[%s1 + $0xf4] sm:$0xf] %vm457, %v454
  %520 = vst.msk [vmem:[%s1 + $0xf8] sm:$0xf] %vm457, %v455
  %521 = vst.msk [vmem:[%s1 + $0xfc] sm:$0xf] %vm457, %v456
  // Predicated region
  $region6: #{simple_cnn_forward.6} parent=0 // pred_check
    _
  $region7: #{simple_cnn_forward.6} parent=0 // pred_check_branch
    %523 = sbr.rel (0) target = $region9
  $region8: #{simple_cnn_forward.6} parent=0 // pred_region
    _
  $region9: #{simple_cnn_forward.6} parent=0 // pred_fallthru
    _
  // Predicated region
  $region10: #{simple_cnn_forward.6} parent=0 // pred_check
    _
  $region11: #{simple_cnn_forward.6} parent=0 // pred_check_branch
    %525 = sbr.rel (0) target = $region13
  $region12: #{simple_cnn_forward.6} parent=0 // pred_region
    _
  $region13: #{simple_cnn_forward.6} parent=0 // pred_fallthru
    _

// kernel: simple_cnn_forward.5
$region0: #{simple_cnn_forward.5}
  #allocation0 [shape = 'u32[]', space=smem, size = 0x4, offset = 0x4, fixed_abs, tag = 'smem constant byte address 0x4 - core index']
  #allocation1 [shape = 'u32[144,128]{1,0:T(1,128)}', space=vmem, size = 0x12000, scoped, tag = 'internal scratch']
  #allocation2 [shape = 'f32[512,128]{1,0:T(8,128)}', space=vmem, size = 0x40000, scoped, tag = 'scratch operand']
  %s0 = inlined_call_operand.vmem [shape: bf16[2048,27], index: 0, kind: input, shape index: {}]
  %s1 = inlined_call_operand.hbm [shape: bf16[27,128], index: 1, kind: input, shape index: {}]
  %s2 = inlined_call_operand.hbm [shape: f32[1,128], index: 2, kind: input, shape index: {}]
  %s3 = inlined_call_operand.vmem [shape: bf16[2048,128], index: 3, kind: output, shape index: {}]
  %s4 = sld [smem:[#allocation0]]
  $region61: #{simple_cnn_forward.5} parent=0
    _
  %s6 = ssub.s32 1, %s4
  %s7 = scalar_select 0, %s6, %s4
  $region1: #{simple_cnn_forward.5} parent=0
    #allocation3 [shape = 'u8[8192]{0}', space=vmem, size = 0x2000, scoped, tag = 'input window, operand 1, single buffered']
    #allocation4 [shape = 's32[2]{0}', space=sflag, size = 0x8, scoped, tag = 'scoped memory for simple_cnn_forward.5']
    #allocation5 [shape = 'u8[512]{0}', space=vmem, size = 0x400, scoped, tag = 'input window, operand 2, single buffered']
    #allocation6 [shape = 's32[1]{0}', space=sflag, size = 0x4, scoped, tag = 'scoped memory for simple_cnn_forward.5']
    %8 = vsyncpa [#allocation4], 0
    %9 = vsyncpa [#allocation6], 0
    loop: start=0, step=1, limit=6
    $region2: #{simple_cnn_forward.5} parent=1 // loop_pre_header
      _
    $region3: #{simple_cnn_forward.5} parent=1 // loop_header
      %s11 = sphi 0, %s15
      %p12 = scmp.ge.s32.totalorder %s11, 6
      %s18 = sphi 0, %s37
      %s19 = sphi 0, %s33
      %s20 = sphi 0, %s29
      %s21 = sphi 0, %s18
      %s22 = sphi 0, %s19
      %s23 = sphi 0, %s20
      %s24 = sphi 0, %s21
      %s25 = sphi 0, %s22
      %s26 = sphi 0, %s23
      %s42 = sphi 0, %s44
      %s45 = sphi 0, %s42
      %s46 = sphi 0, %s45
      %s62 = sphi 0, %s46
      %s70 = sphi 0, %s72
      %s73 = sphi 0, %s70
      %s74 = sphi 0, %s73
      %s90 = sphi 0, %s74
      %s96 = sphi 0, %s98
      %s99 = sphi 0, %s96
      %s100 = sphi 0, %s99
      %s116 = sphi 0, %s100
      %s124 = sphi 0, %s126
      %s127 = sphi 0, %s124
      %s128 = sphi 0, %s127
      %s144 = sphi 0, %s128
    $region4: #{simple_cnn_forward.5} parent=1 // loop_header_branch
      %14 = sbr.rel (%p12) target = $region8
    $region5: #{simple_cnn_forward.5} parent=1 // loop_body
      %s16 = ssub.s32 %s11, 1
      %s17 = ssub.s32 %s11, 2
      %s27 = sadd.s32 1, %s20
      %p28 = scmp.ge.s32.totalorder %s27, 1
      %s29 = scalar_select %p28, 0, %s27
      %s30 = sadd.s32 1, %s19
      %s31 = scalar_select %p28, %s30, %s19
      %p32 = scmp.ge.s32.totalorder %s31, 1
      %s33 = scalar_select %p32, 0, %s31
      %s34 = sadd.s32 1, %s18
      %s35 = scalar_select %p32, %s34, %s18
      %p36 = scmp.ge.s32.totalorder %s35, 4
      %s37 = scalar_select %p36, 0, %s35
      %s38 = ssub.s32 %s18, %s37
      %s39 = ssub.s32 %s20, %s29
      %s40 = sor.u32 %s38, %s39
      %p41 = scmp.eq.s32.totalorder %s40, 0
      %s43 = sadd.s32 %s42, 1
      %s44 = scalar_select %p41, %s42, %s43
      %p47 = pneg %p41
      %p48 = scmp.eq.s32.totalorder %s11, 3
      %p49 = por %p47, %p48
      %p50 = scmp.ne.s32.totalorder %s42, %s45
      %p51 = scmp.eq.s32.totalorder %s11, 0
      %p52 = por %p50, %p51
      %p53 = scmp.ne.s32.totalorder %s42, %s45
      %p54 = scmp.eq.s32.totalorder %s16, 3
      %p55 = por %p53, %p54
      %p56 = scmp.ne.s32.totalorder %s45, %s46
      %p57 = scmp.eq.s32.totalorder %s16, 0
      %p58 = por %p56, %p57
      %p59 = scmp.ne.s32.totalorder %s45, %s46
      %p60 = scmp.eq.s32.totalorder %s17, 3
      %p61 = por %p59, %p60
      %p63 = scmp.ne.s32.totalorder %s46, %s62
      %p64 = scmp.eq.s32.totalorder %s17, 0
      %p65 = por %p63, %p64
      %s66 = ssub.s32 %s20, %s29
      %s67 = ssub.s32 %s19, %s33
      %s68 = sor.u32 %s66, %s67
      %p69 = scmp.eq.s32.totalorder %s68, 0
      %s71 = sadd.s32 %s70, 1
      %s72 = scalar_select %p69, %s70, %s71
      %p75 = pneg %p69
      %p76 = scmp.eq.s32.totalorder %s11, 3
      %p77 = por %p75, %p76
      %p78 = scmp.ne.s32.totalorder %s70, %s73
      %p79 = scmp.eq.s32.totalorder %s11, 0
      %p80 = por %p78, %p79
      %p81 = scmp.ne.s32.totalorder %s70, %s73
      %p82 = scmp.eq.s32.totalorder %s16, 3
      %p83 = por %p81, %p82
      %p84 = scmp.ne.s32.totalorder %s73, %s74
      %p85 = scmp.eq.s32.totalorder %s16, 0
      %p86 = por %p84, %p85
      %p87 = scmp.ne.s32.totalorder %s73, %s74
      %p88 = scmp.eq.s32.totalorder %s17, 3
      %p89 = por %p87, %p88
      %p91 = scmp.ne.s32.totalorder %s74, %s90
      %p92 = scmp.eq.s32.totalorder %s17, 0
      %p93 = por %p91, %p92
      %s94 = ssub.s32 %s19, %s33
      %p95 = scmp.eq.s32.totalorder %s94, 0
      %s97 = sadd.s32 %s96, 1
      %s98 = scalar_select %p95, %s96, %s97
      %p101 = pneg %p95
      %p102 = scmp.eq.s32.totalorder %s11, 3
      %p103 = por %p101, %p102
      %p104 = scmp.ne.s32.totalorder %s96, %s99
      %p105 = scmp.eq.s32.totalorder %s11, 0
      %p106 = por %p104, %p105
      %p107 = scmp.ne.s32.totalorder %s96, %s99
      %p108 = scmp.eq.s32.totalorder %s16, 3
      %p109 = por %p107, %p108
      %p110 = scmp.ne.s32.totalorder %s99, %s100
      %p111 = scmp.eq.s32.totalorder %s16, 0
      %p112 = por %p110, %p111
      %p113 = scmp.ne.s32.totalorder %s99, %s100
      %p114 = scmp.eq.s32.totalorder %s17, 3
      %p115 = por %p113, %p114
      %p117 = scmp.ne.s32.totalorder %s100, %s116
      %p118 = scmp.eq.s32.totalorder %s17, 0
      %p119 = por %p117, %p118
      %s120 = ssub.s32 %s18, %s37
      %s121 = ssub.s32 %s19, %s33
      %s122 = sor.u32 %s120, %s121
      %p123 = scmp.eq.s32.totalorder %s122, 0
      %s125 = sadd.s32 %s124, 1
      %s126 = scalar_select %p123, %s124, %s125
      %p129 = pneg %p123
      %p130 = scmp.eq.s32.totalorder %s11, 3
      %p131 = por %p129, %p130
      %p132 = scmp.ne.s32.totalorder %s124, %s127
      %p133 = scmp.eq.s32.totalorder %s11, 0
      %p134 = por %p132, %p133
      %p135 = scmp.ne.s32.totalorder %s124, %s127
      %p136 = scmp.eq.s32.totalorder %s16, 3
      %p137 = por %p135, %p136
      %p138 = scmp.ne.s32.totalorder %s127, %s128
      %p139 = scmp.eq.s32.totalorder %s16, 0
      %p140 = por %p138, %p139
      %p141 = scmp.ne.s32.totalorder %s127, %s128
      %p142 = scmp.eq.s32.totalorder %s17, 3
      %p143 = por %p141, %p142
      %p145 = scmp.ne.s32.totalorder %s128, %s144
      %p146 = scmp.eq.s32.totalorder %s17, 0
      %p147 = por %p145, %p146
      %p148 = scmp.le.s32.totalorder 1, %s11
      %p149 = scmp.lt.s32.totalorder %s11, 5
      %p150 = pnand %p148, %p149
      %p151 = pneg %p150
      // Predicated region
      $region9: #{simple_cnn_forward.5} parent=5 // pred_check
        _
      $region10: #{simple_cnn_forward.5} parent=5 // pred_check_branch
        %153 = sbr.rel (%p150) target = $region12
      $region11: #{simple_cnn_forward.5} parent=5 // pred_region
        %s154 = ssub.s32 %s11, 1
        // Predicated region
        $region13: #{simple_cnn_forward.5} parent=11 // pred_check
          %p155 = pneg %p86
        $region14: #{simple_cnn_forward.5} parent=11 // pred_check_branch
          %157 = sbr.rel (%p155) target = $region16
        $region15: #{simple_cnn_forward.5} parent=11 // pred_region
          %s158 = smul.u32 4, %s23
          %s160 = ssub.s32 256, 256
          %161 = vsyncadd [#allocation4], %s160
          %s162 = sadd.s32 %s22, %s158
          %s163 = smul.addr %s162, 64
          %s164 = scalar_lea.hbm %s1, %s163
          %s165 = sshll.u32 [#allocation3], 4
          %s166 = int_to_ptr.vmem [resolvable:$true] %s165
          %171 = dma.hbm_to_vmem [thread:$0]  %s164, 256, %s166, [#allocation4], 64, 64, 4
        $region16: #{simple_cnn_forward.5} parent=11 // pred_fallthru
          _
        // Predicated region
        $region17: #{simple_cnn_forward.5} parent=11 // pred_check
          %p172 = pneg %p112
        $region18: #{simple_cnn_forward.5} parent=11 // pred_check_branch
          %174 = sbr.rel (%p172) target = $region20
        $region19: #{simple_cnn_forward.5} parent=11 // pred_region
          %s176 = ssub.s32 16, 16
          %177 = vsyncadd [#allocation6], %s176
          %s178 = smul.addr %s22, 16
          %s179 = scalar_lea.hbm %s2, %s178
          %s181 = sshll.u32 [#allocation5], 4
          %s182 = int_to_ptr.vmem [resolvable:$true] %s181
          %184 = dma.hbm_to_vmem [thread:$0]  %s179, 16, %s182, [#allocation6]
        $region20: #{simple_cnn_forward.5} parent=11 // pred_fallthru
          _
      $region12: #{simple_cnn_forward.5} parent=5 // pred_fallthru
        _
      %p185 = scmp.lt.s32.totalorder %s11, 4
      // Predicated region
      $region21: #{simple_cnn_forward.5} parent=5 // pred_check
        %p186 = pneg %p185
      $region22: #{simple_cnn_forward.5} parent=5 // pred_check_branch
        %188 = sbr.rel (%p186) target = $region24
      $region23: #{simple_cnn_forward.5} parent=5 // pred_region
        // Predicated region
        $region25: #{simple_cnn_forward.5} parent=23 // pred_check
          %p189 = pneg %p52
        $region26: #{simple_cnn_forward.5} parent=23 // pred_check_branch
          %191 = sbr.rel (%p189) target = $region28
        $region27: #{simple_cnn_forward.5} parent=23 // pred_region
          %s192 = smul.u32 64, %s18
          %p193 = scmp.lt.s32.totalorder %s192, 255
          %s194 = scalar_select %p193, %s192, 255
          %p195 = scmp.lt.s32.totalorder %s20, 0
          %s196 = scalar_select %p195, %s20, 0
          %s197 = sadd.s32 %s196, %s194
          %s198 = smul.addr %s197, 4
          %s199 = scalar_lea.vmem %s0, %s198
          %s200 = smul.u32 64, %s18
        $region28: #{simple_cnn_forward.5} parent=23 // pred_fallthru
          _
      $region24: #{simple_cnn_forward.5} parent=5 // pred_fallthru
        _
      %p201 = scmp.le.s32.totalorder 1, %s11
      %p202 = scmp.lt.s32.totalorder %s11, 5
      %p203 = pnand %p201, %p202
      %p204 = pneg %p203
      // Predicated region
      $region29: #{simple_cnn_forward.5} parent=5 // pred_check
        _
      $region30: #{simple_cnn_forward.5} parent=5 // pred_check_branch
        %206 = sbr.rel (%p203) target = $region32
      $region31: #{simple_cnn_forward.5} parent=5 // pred_region
        %s207 = ssub.s32 %s11, 1
        // Predicated region
        $region33: #{simple_cnn_forward.5} parent=31 // pred_check
          %p208 = pneg %p86
        $region34: #{simple_cnn_forward.5} parent=31 // pred_check_branch
          %210 = sbr.rel (%p208) target = $region36
        $region35: #{simple_cnn_forward.5} parent=31 // pred_region
          %211 = dma.done [#allocation4], 256
        $region36: #{simple_cnn_forward.5} parent=31 // pred_fallthru
          _
        // Predicated region
        $region37: #{simple_cnn_forward.5} parent=31 // pred_check
          %p212 = pneg %p112
        $region38: #{simple_cnn_forward.5} parent=31 // pred_check_branch
          %214 = sbr.rel (%p212) target = $region40
        $region39: #{simple_cnn_forward.5} parent=31 // pred_region
          %215 = dma.done [#allocation6], 16
        $region40: #{simple_cnn_forward.5} parent=31 // pred_fallthru
          _
        %s216 = smul.u32 64, %s21
        %p217 = scmp.lt.s32.totalorder %s216, 255
        %s218 = scalar_select %p217, %s216, 255
        %p219 = scmp.lt.s32.totalorder %s23, 0
        %s220 = scalar_select %p219, %s23, 0
        %s221 = sadd.s32 %s220, %s218
        %s222 = smul.addr %s221, 4
        %s223 = scalar_lea.vmem %s0, %s222
        %p224 = pneg %p58
        %p225 = pneg %p55
        %p226 = pneg %p86
        %p227 = pneg %p83
        %p228 = pneg %p112
        %p229 = pneg %p109
        %p230 = pneg %p140
        %p231 = pneg %p137
        %s232 = smul.u32 64, %s21
        %p233 = scmp.lt.s32.totalorder %s232, 255
        %s234 = scalar_select %p233, %s232, 255
        %p235 = scmp.lt.s32.totalorder %s22, 0
        %s236 = scalar_select %p235, %s22, 0
        %s237 = sadd.s32 %s236, %s234
        %s238 = smul.addr %s237, 4
        %s239 = scalar_lea.vmem %s3, %s238
        %s240 = smul.u32 64, %s21
        %p241 = scmp.lt.s32.totalorder %s240, 255
        %s242 = scalar_select %p241, %s240, 255
        %p243 = scmp.lt.s32.totalorder %s23, 0
        %s244 = scalar_select %p243, %s23, 0
        %s245 = sadd.s32 %s244, %s242
        %s246 = smul.addr %s245, 4
        %s247 = scalar_lea.vmem %s0, %s246
        %s248 = smul.u32 64, %s21
        %s249 = smul.u32 4, %s23
        %s250 = smul.u32 64, %s21
        %p251 = scmp.lt.s32.totalorder %s250, 255
        %s252 = scalar_select %p251, %s250, 255
        %p253 = scmp.lt.s32.totalorder %s22, 0
        %s254 = scalar_select %p253, %s22, 0
        %s255 = sadd.s32 %s254, %s252
        %s256 = smul.addr %s255, 4
        %s257 = scalar_lea.vmem %s3, %s256
        %s258 = smul.u32 64, %s21
        %p260 = scmp.eq.s32.totalorder %s23, 0
        // Predicated region
        $region41: #{simple_cnn_forward.5} parent=31 // pred_check
          %p261 = pneg %p260
        $region42: #{simple_cnn_forward.5} parent=31 // pred_check_branch
          %263 = sbr.rel (%p261) target = $region44
        $region43: #{simple_cnn_forward.5} parent=31 // pred_region
          %264 = vst [vmem:[#allocation2] sm:$0xff] 0.0
          %265 = vst [vmem:[#allocation2 + $0x8] sm:$0xff] 0.0
          %266 = vst [vmem:[#allocation2 + $0x10] sm:$0xff] 0.0
          %267 = vst [vmem:[#allocation2 + $0x18] sm:$0xff] 0.0
          %268 = vst [vmem:[#allocation2 + $0x20] sm:$0xff] 0.0
          %269 = vst [vmem:[#allocation2 + $0x28] sm:$0xff] 0.0
          %270 = vst [vmem:[#allocation2 + $0x30] sm:$0xff] 0.0
          %271 = vst [vmem:[#allocation2 + $0x38] sm:$0xff] 0.0
          %272 = vst [vmem:[#allocation2 + $0x40] sm:$0xff] 0.0
          %273 = vst [vmem:[#allocation2 + $0x48] sm:$0xff] 0.0
          %274 = vst [vmem:[#allocation2 + $0x50] sm:$0xff] 0.0
          %275 = vst [vmem:[#allocation2 + $0x58] sm:$0xff] 0.0
          %276 = vst [vmem:[#allocation2 + $0x60] sm:$0xff] 0.0
          %277 = vst [vmem:[#allocation2 + $0x68] sm:$0xff] 0.0
          %278 = vst [vmem:[#allocation2 + $0x70] sm:$0xff] 0.0
          %279 = vst [vmem:[#allocation2 + $0x78] sm:$0xff] 0.0
          %280 = vst [vmem:[#allocation2 + $0x80] sm:$0xff] 0.0
          %281 = vst [vmem:[#allocation2 + $0x88] sm:$0xff] 0.0
          %282 = vst [vmem:[#allocation2 + $0x90] sm:$0xff] 0.0
          %283 = vst [vmem:[#allocation2 + $0x98] sm:$0xff] 0.0
          %284 = vst [vmem:[#allocation2 + $0xa0] sm:$0xff] 0.0
          %285 = vst [vmem:[#allocation2 + $0xa8] sm:$0xff] 0.0
          %286 = vst [vmem:[#allocation2 + $0xb0] sm:$0xff] 0.0
          %287 = vst [vmem:[#allocation2 + $0xb8] sm:$0xff] 0.0
          %288 = vst [vmem:[#allocation2 + $0xc0] sm:$0xff] 0.0
          %289 = vst [vmem:[#allocation2 + $0xc8] sm:$0xff] 0.0
          %290 = vst [vmem:[#allocation2 + $0xd0] sm:$0xff] 0.0
          %291 = vst [vmem:[#allocation2 + $0xd8] sm:$0xff] 0.0
          %292 = vst [vmem:[#allocation2 + $0xe0] sm:$0xff] 0.0
          %293 = vst [vmem:[#allocation2 + $0xe8] sm:$0xff] 0.0
          %294 = vst [vmem:[#allocation2 + $0xf0] sm:$0xff] 0.0
          %295 = vst [vmem:[#allocation2 + $0xf8] sm:$0xff] 0.0
          %296 = vst [vmem:[#allocation2 + $0x100] sm:$0xff] 0.0
          %297 = vst [vmem:[#allocation2 + $0x108] sm:$0xff] 0.0
          %298 = vst [vmem:[#allocation2 + $0x110] sm:$0xff] 0.0
          %299 = vst [vmem:[#allocation2 + $0x118] sm:$0xff] 0.0
          %300 = vst [vmem:[#allocation2 + $0x120] sm:$0xff] 0.0
          %301 = vst [vmem:[#allocation2 + $0x128] sm:$0xff] 0.0
          %302 = vst [vmem:[#allocation2 + $0x130] sm:$0xff] 0.0
          %303 = vst [vmem:[#allocation2 + $0x138] sm:$0xff] 0.0
          %304 = vst [vmem:[#allocation2 + $0x140] sm:$0xff] 0.0
          %305 = vst [vmem:[#allocation2 + $0x148] sm:$0xff] 0.0
          %306 = vst [vmem:[#allocation2 + $0x150] sm:$0xff] 0.0
          %307 = vst [vmem:[#allocation2 + $0x158] sm:$0xff] 0.0
          %308 = vst [vmem:[#allocation2 + $0x160] sm:$0xff] 0.0
          %309 = vst [vmem:[#allocation2 + $0x168] sm:$0xff] 0.0
          %310 = vst [vmem:[#allocation2 + $0x170] sm:$0xff] 0.0
          %311 = vst [vmem:[#allocation2 + $0x178] sm:$0xff] 0.0
          %312 = vst [vmem:[#allocation2 + $0x180] sm:$0xff] 0.0
          %313 = vst [vmem:[#allocation2 + $0x188] sm:$0xff] 0.0
          %314 = vst [vmem:[#allocation2 + $0x190] sm:$0xff] 0.0
          %315 = vst [vmem:[#allocation2 + $0x198] sm:$0xff] 0.0
          %316 = vst [vmem:[#allocation2 + $0x1a0] sm:$0xff] 0.0
          %317 = vst [vmem:[#allocation2 + $0x1a8] sm:$0xff] 0.0
          %318 = vst [vmem:[#allocation2 + $0x1b0] sm:$0xff] 0.0
          %319 = vst [vmem:[#allocation2 + $0x1b8] sm:$0xff] 0.0
          %320 = vst [vmem:[#allocation2 + $0x1c0] sm:$0xff] 0.0
          %321 = vst [vmem:[#allocation2 + $0x1c8] sm:$0xff] 0.0
          %322 = vst [vmem:[#allocation2 + $0x1d0] sm:$0xff] 0.0
          %323 = vst [vmem:[#allocation2 + $0x1d8] sm:$0xff] 0.0
          %324 = vst [vmem:[#allocation2 + $0x1e0] sm:$0xff] 0.0
          %325 = vst [vmem:[#allocation2 + $0x1e8] sm:$0xff] 0.0
          %326 = vst [vmem:[#allocation2 + $0x1f0] sm:$0xff] 0.0
          %327 = vst [vmem:[#allocation2 + $0x1f8] sm:$0xff] 0.0
        $region44: #{simple_cnn_forward.5} parent=31 // pred_fallthru
          _
        %v328 = vld [vmem:[#allocation2] sm:$0xff]
        %v329 = vld [vmem:[#allocation2 + $0x8] sm:$0xff]
        %v330 = vld [vmem:[#allocation2 + $0x10] sm:$0xff]
        %v331 = vld [vmem:[#allocation2 + $0x18] sm:$0xff]
        %v332 = vld [vmem:[#allocation2 + $0x20] sm:$0xff]
        %v333 = vld [vmem:[#allocation2 + $0x28] sm:$0xff]
        %v334 = vld [vmem:[#allocation2 + $0x30] sm:$0xff]
        %v335 = vld [vmem:[#allocation2 + $0x38] sm:$0xff]
        %v336 = vld [vmem:[#allocation2 + $0x40] sm:$0xff]
        %v337 = vld [vmem:[#allocation2 + $0x48] sm:$0xff]
        %v338 = vld [vmem:[#allocation2 + $0x50] sm:$0xff]
        %v339 = vld [vmem:[#allocation2 + $0x58] sm:$0xff]
        %v340 = vld [vmem:[#allocation2 + $0x60] sm:$0xff]
        %v341 = vld [vmem:[#allocation2 + $0x68] sm:$0xff]
        %v342 = vld [vmem:[#allocation2 + $0x70] sm:$0xff]
        %v343 = vld [vmem:[#allocation2 + $0x78] sm:$0xff]
        %v344 = vld [vmem:[#allocation2 + $0x80] sm:$0xff]
        %v345 = vld [vmem:[#allocation2 + $0x88] sm:$0xff]
        %v346 = vld [vmem:[#allocation2 + $0x90] sm:$0xff]
        %v347 = vld [vmem:[#allocation2 + $0x98] sm:$0xff]
        %v348 = vld [vmem:[#allocation2 + $0xa0] sm:$0xff]
        %v349 = vld [vmem:[#allocation2 + $0xa8] sm:$0xff]
        %v350 = vld [vmem:[#allocation2 + $0xb0] sm:$0xff]
        %v351 = vld [vmem:[#allocation2 + $0xb8] sm:$0xff]
        %v352 = vld [vmem:[#allocation2 + $0xc0] sm:$0xff]
        %v353 = vld [vmem:[#allocation2 + $0xc8] sm:$0xff]
        %v354 = vld [vmem:[#allocation2 + $0xd0] sm:$0xff]
        %v355 = vld [vmem:[#allocation2 + $0xd8] sm:$0xff]
        %v356 = vld [vmem:[#allocation2 + $0xe0] sm:$0xff]
        %v357 = vld [vmem:[#allocation2 + $0xe8] sm:$0xff]
        %v358 = vld [vmem:[#allocation2 + $0xf0] sm:$0xff]
        %v359 = vld [vmem:[#allocation2 + $0xf8] sm:$0xff]
        %v360 = vld [vmem:[#allocation2 + $0x100] sm:$0xff]
        %v361 = vld [vmem:[#allocation2 + $0x108] sm:$0xff]
        %v362 = vld [vmem:[#allocation2 + $0x110] sm:$0xff]
        %v363 = vld [vmem:[#allocation2 + $0x118] sm:$0xff]
        %v364 = vld [vmem:[#allocation2 + $0x120] sm:$0xff]
        %v365 = vld [vmem:[#allocation2 + $0x128] sm:$0xff]
        %v366 = vld [vmem:[#allocation2 + $0x130] sm:$0xff]
        %v367 = vld [vmem:[#allocation2 + $0x138] sm:$0xff]
        %v368 = vld [vmem:[#allocation2 + $0x140] sm:$0xff]
        %v369 = vld [vmem:[#allocation2 + $0x148] sm:$0xff]
        %v370 = vld [vmem:[#allocation2 + $0x150] sm:$0xff]
        %v371 = vld [vmem:[#allocation2 + $0x158] sm:$0xff]
        %v372 = vld [vmem:[#allocation2 + $0x160] sm:$0xff]
        %v373 = vld [vmem:[#allocation2 + $0x168] sm:$0xff]
        %v374 = vld [vmem:[#allocation2 + $0x170] sm:$0xff]
        %v375 = vld [vmem:[#allocation2 + $0x178] sm:$0xff]
        %v376 = vld [vmem:[#allocation2 + $0x180] sm:$0xff]
        %v377 = vld [vmem:[#allocation2 + $0x188] sm:$0xff]
        %v378 = vld [vmem:[#allocation2 + $0x190] sm:$0xff]
        %v379 = vld [vmem:[#allocation2 + $0x198] sm:$0xff]
        %v380 = vld [vmem:[#allocation2 + $0x1a0] sm:$0xff]
        %v381 = vld [vmem:[#allocation2 + $0x1a8] sm:$0xff]
        %v382 = vld [vmem:[#allocation2 + $0x1b0] sm:$0xff]
        %v383 = vld [vmem:[#allocation2 + $0x1b8] sm:$0xff]
        %v384 = vld [vmem:[#allocation2 + $0x1c0] sm:$0xff]
        %v385 = vld [vmem:[#allocation2 + $0x1c8] sm:$0xff]
        %v386 = vld [vmem:[#allocation2 + $0x1d0] sm:$0xff]
        %v387 = vld [vmem:[#allocation2 + $0x1d8] sm:$0xff]
        %v388 = vld [vmem:[#allocation2 + $0x1e0] sm:$0xff]
        %v389 = vld [vmem:[#allocation2 + $0x1e8] sm:$0xff]
        %v390 = vld [vmem:[#allocation2 + $0x1f0] sm:$0xff]
        %v391 = vld [vmem:[#allocation2 + $0x1f8] sm:$0xff]
        %v392 = vld [vmem:[%s247] sm:$0xf]
        %v393 = vld [vmem:[%s247 + $0x4] sm:$0xf]
        %v394 = vld [vmem:[%s247 + $0x8] sm:$0xf]
        %v395 = vld [vmem:[%s247 + $0xc] sm:$0xf]
        %v396 = vld [vmem:[%s247 + $0x10] sm:$0xf]
        %v397 = vld [vmem:[%s247 + $0x14] sm:$0xf]
        %v398 = vld [vmem:[%s247 + $0x18] sm:$0xf]
        %v399 = vld [vmem:[%s247 + $0x1c] sm:$0xf]
        %v400 = vld [vmem:[%s247 + $0x20] sm:$0xf]
        %v401 = vld [vmem:[%s247 + $0x24] sm:$0xf]
        %v402 = vld [vmem:[%s247 + $0x28] sm:$0xf]
        %v403 = vld [vmem:[%s247 + $0x2c] sm:$0xf]
        %v404 = vld [vmem:[%s247 + $0x30] sm:$0xf]
        %v405 = vld [vmem:[%s247 + $0x34] sm:$0xf]
        %v406 = vld [vmem:[%s247 + $0x38] sm:$0xf]
        %v407 = vld [vmem:[%s247 + $0x3c] sm:$0xf]
        %v408 = vld [vmem:[%s247 + $0x40] sm:$0xf]
        %v409 = vld [vmem:[%s247 + $0x44] sm:$0xf]
        %v410 = vld [vmem:[%s247 + $0x48] sm:$0xf]
        %v411 = vld [vmem:[%s247 + $0x4c] sm:$0xf]
        %v412 = vld [vmem:[%s247 + $0x50] sm:$0xf]
        %v413 = vld [vmem:[%s247 + $0x54] sm:$0xf]
        %v414 = vld [vmem:[%s247 + $0x58] sm:$0xf]
        %v415 = vld [vmem:[%s247 + $0x5c] sm:$0xf]
        %v416 = vld [vmem:[%s247 + $0x60] sm:$0xf]
        %v417 = vld [vmem:[%s247 + $0x64] sm:$0xf]
        %v418 = vld [vmem:[%s247 + $0x68] sm:$0xf]
        %v419 = vld [vmem:[%s247 + $0x6c] sm:$0xf]
        %v420 = vld [vmem:[%s247 + $0x70] sm:$0xf]
        %v421 = vld [vmem:[%s247 + $0x74] sm:$0xf]
        %v422 = vld [vmem:[%s247 + $0x78] sm:$0xf]
        %v423 = vld [vmem:[%s247 + $0x7c] sm:$0xf]
        %v424 = vld [vmem:[%s247 + $0x80] sm:$0xf]
        %v425 = vld [vmem:[%s247 + $0x84] sm:$0xf]
        %v426 = vld [vmem:[%s247 + $0x88] sm:$0xf]
        %v427 = vld [vmem:[%s247 + $0x8c] sm:$0xf]
        %v428 = vld [vmem:[%s247 + $0x90] sm:$0xf]
        %v429 = vld [vmem:[%s247 + $0x94] sm:$0xf]
        %v430 = vld [vmem:[%s247 + $0x98] sm:$0xf]
        %v431 = vld [vmem:[%s247 + $0x9c] sm:$0xf]
        %v432 = vld [vmem:[%s247 + $0xa0] sm:$0xf]
        %v433 = vld [vmem:[%s247 + $0xa4] sm:$0xf]
        %v434 = vld [vmem:[%s247 + $0xa8] sm:$0xf]
        %v435 = vld [vmem:[%s247 + $0xac] sm:$0xf]
        %v436 = vld [vmem:[%s247 + $0xb0] sm:$0xf]
        %v437 = vld [vmem:[%s247 + $0xb4] sm:$0xf]
        %v438 = vld [vmem:[%s247 + $0xb8] sm:$0xf]
        %v439 = vld [vmem:[%s247 + $0xbc] sm:$0xf]
        %v440 = vld [vmem:[%s247 + $0xc0] sm:$0xf]
        %v441 = vld [vmem:[%s247 + $0xc4] sm:$0xf]
        %v442 = vld [vmem:[%s247 + $0xc8] sm:$0xf]
        %v443 = vld [vmem:[%s247 + $0xcc] sm:$0xf]
        %v444 = vld [vmem:[%s247 + $0xd0] sm:$0xf]
        %v445 = vld [vmem:[%s247 + $0xd4] sm:$0xf]
        %v446 = vld [vmem:[%s247 + $0xd8] sm:$0xf]
        %v447 = vld [vmem:[%s247 + $0xdc] sm:$0xf]
        %v448 = vld [vmem:[%s247 + $0xe0] sm:$0xf]
        %v449 = vld [vmem:[%s247 + $0xe4] sm:$0xf]
        %v450 = vld [vmem:[%s247 + $0xe8] sm:$0xf]
        %v451 = vld [vmem:[%s247 + $0xec] sm:$0xf]
        %v452 = vld [vmem:[%s247 + $0xf0] sm:$0xf]
        %v453 = vld [vmem:[%s247 + $0xf4] sm:$0xf]
        %v454 = vld [vmem:[%s247 + $0xf8] sm:$0xf]
        %v455 = vld [vmem:[%s247 + $0xfc] sm:$0xf]
        %v456 = vld [vmem:[#allocation3] sm:$0xf]
        %v457 = vld [vmem:[#allocation3 + $0x4] sm:$0xf]
        %v458 = vld [vmem:[#allocation3 + $0x8] sm:$0xf]
        %v459 = vld [vmem:[#allocation3 + $0xc] sm:$0x3]
        %v524 = vunpack.c.l.b16 %v392
        %v525 = vunpack.c.l.b16 %v393
        %v526 = vunpack.c.l.b16 %v394
        %v527 = vunpack.c.l.b16 %v395
        %v528 = vunpack.c.l.b16 %v396
        %v529 = vunpack.c.l.b16 %v397
        %v530 = vunpack.c.l.b16 %v398
        %v531 = vunpack.c.l.b16 %v399
        %v532 = vunpack.c.l.b16 %v400
        %v533 = vunpack.c.l.b16 %v401
        %v534 = vunpack.c.l.b16 %v402
        %v535 = vunpack.c.l.b16 %v403
        %v536 = vunpack.c.l.b16 %v404
        %v537 = vunpack.c.l.b16 %v405
        %v538 = vunpack.c.l.b16 %v406
        %v539 = vunpack.c.l.b16 %v407
        %v540 = vunpack.c.l.b16 %v408
        %v541 = vunpack.c.l.b16 %v409
        %v542 = vunpack.c.l.b16 %v410
        %v543 = vunpack.c.l.b16 %v411
        %v544 = vunpack.c.l.b16 %v412
        %v545 = vunpack.c.l.b16 %v413
        %v546 = vunpack.c.l.b16 %v414
        %v547 = vunpack.c.l.b16 %v415
        %v548 = vunpack.c.l.b16 %v416
        %v549 = vunpack.c.l.b16 %v417
        %v550 = vunpack.c.l.b16 %v418
        %v551 = vunpack.c.l.b16 %v419
        %v552 = vunpack.c.l.b16 %v420
        %v553 = vunpack.c.l.b16 %v421
        %v554 = vunpack.c.l.b16 %v422
        %v555 = vunpack.c.l.b16 %v423
        %v556 = vunpack.c.l.b16 %v424
        %v557 = vunpack.c.l.b16 %v425
        %v558 = vunpack.c.l.b16 %v426
        %v559 = vunpack.c.l.b16 %v427
        %v560 = vunpack.c.l.b16 %v428
        %v561 = vunpack.c.l.b16 %v429
        %v562 = vunpack.c.l.b16 %v430
        %v563 = vunpack.c.l.b16 %v431
        %v564 = vunpack.c.l.b16 %v432
        %v565 = vunpack.c.l.b16 %v433
        %v566 = vunpack.c.l.b16 %v434
        %v567 = vunpack.c.l.b16 %v435
        %v568 = vunpack.c.l.b16 %v436
        %v569 = vunpack.c.l.b16 %v437
        %v570 = vunpack.c.l.b16 %v438
        %v571 = vunpack.c.l.b16 %v439
        %v572 = vunpack.c.l.b16 %v440
        %v573 = vunpack.c.l.b16 %v441
        %v574 = vunpack.c.l.b16 %v442
        %v575 = vunpack.c.l.b16 %v443
        %v576 = vunpack.c.l.b16 %v444
        %v577 = vunpack.c.l.b16 %v445
        %v578 = vunpack.c.l.b16 %v446
        %v579 = vunpack.c.l.b16 %v447
        %v580 = vunpack.c.l.b16 %v448
        %v581 = vunpack.c.l.b16 %v449
        %v582 = vunpack.c.l.b16 %v450
        %v583 = vunpack.c.l.b16 %v451
        %v584 = vunpack.c.l.b16 %v452
        %v585 = vunpack.c.l.b16 %v453
        %v586 = vunpack.c.l.b16 %v454
        %v587 = vunpack.c.l.b16 %v455
        %v588 = vpack.c.b16 %v525, %v524
        %v589 = vpack.c.b16 %v527, %v526
        %v590 = vpack.c.b16 %v529, %v528
        %v591 = vpack.c.b16 %v531, %v530
        %v592 = vpack.c.b16 %v533, %v532
        %v593 = vpack.c.b16 %v535, %v534
        %v594 = vpack.c.b16 %v537, %v536
        %v595 = vpack.c.b16 %v539, %v538
        %v596 = vpack.c.b16 %v541, %v540
        %v597 = vpack.c.b16 %v543, %v542
        %v598 = vpack.c.b16 %v545, %v544
        %v599 = vpack.c.b16 %v547, %v546
        %v600 = vpack.c.b16 %v549, %v548
        %v601 = vpack.c.b16 %v551, %v550
        %v602 = vpack.c.b16 %v553, %v552
        %v603 = vpack.c.b16 %v555, %v554
        %v604 = vpack.c.b16 %v557, %v556
        %v605 = vpack.c.b16 %v559, %v558
        %v606 = vpack.c.b16 %v561, %v560
        %v607 = vpack.c.b16 %v563, %v562
        %v608 = vpack.c.b16 %v565, %v564
        %v609 = vpack.c.b16 %v567, %v566
        %v610 = vpack.c.b16 %v569, %v568
        %v611 = vpack.c.b16 %v571, %v570
        %v612 = vpack.c.b16 %v573, %v572
        %v613 = vpack.c.b16 %v575, %v574
        %v614 = vpack.c.b16 %v577, %v576
        %v615 = vpack.c.b16 %v579, %v578
        %v616 = vpack.c.b16 %v581, %v580
        %v617 = vpack.c.b16 %v583, %v582
        %v618 = vpack.c.b16 %v585, %v584
        %v619 = vpack.c.b16 %v587, %v586
        %v624 = vunpack.c.l.b16 %v456
        %v625 = vunpack.c.l.b16 %v457
        %v626 = vunpack.c.l.b16 %v458
        %v627 = vunpack.c.l.b16 %v459
        %v628 = vpack.c.b16 %v625, %v624
        %v629 = vpack.c.b16 %v627, %v626
        %vm631 = vcmask 220160
        %v633 = vsel %vm631, %v588, 0
        %v636 = vsel %vm631, %v589, 0
        %v639 = vsel %vm631, %v590, 0
        %v642 = vsel %vm631, %v591, 0
        %v645 = vsel %vm631, %v592, 0
        %v648 = vsel %vm631, %v593, 0
        %v651 = vsel %vm631, %v594, 0
        %v654 = vsel %vm631, %v595, 0
        %v657 = vsel %vm631, %v596, 0
        %v660 = vsel %vm631, %v597, 0
        %v663 = vsel %vm631, %v598, 0
        %v666 = vsel %vm631, %v599, 0
        %v669 = vsel %vm631, %v600, 0
        %v672 = vsel %vm631, %v601, 0
        %v675 = vsel %vm631, %v602, 0
        %v678 = vsel %vm631, %v603, 0
        %v681 = vsel %vm631, %v604, 0
        %v684 = vsel %vm631, %v605, 0
        %v687 = vsel %vm631, %v606, 0
        %v690 = vsel %vm631, %v607, 0
        %v693 = vsel %vm631, %v608, 0
        %v696 = vsel %vm631, %v609, 0
        %v699 = vsel %vm631, %v610, 0
        %v702 = vsel %vm631, %v611, 0
        %v705 = vsel %vm631, %v612, 0
        %v708 = vsel %vm631, %v613, 0
        %v711 = vsel %vm631, %v614, 0
        %v714 = vsel %vm631, %v615, 0
        %v717 = vsel %vm631, %v616, 0
        %v720 = vsel %vm631, %v617, 0
        %v723 = vsel %vm631, %v618, 0
        %v726 = vsel %vm631, %v619, 0
        %vm728 = vcmask 1044480
        %vm729 = vcmask 1045504
        %v730 = vsel %vm728, 4294967295, 65535
        %v731 = vsel %vm729, %v730, 0
        %v733 = vand.u32 %v629, %v731
        %735 = vmatprep.subr.bf16.mxu0 0
        %736 = vmatpush1.bf16.msra.mxu0 %v628
        %737 = vmatprep.subr.bf16.mxu0 0
        %738 = vmatpush1.bf16.msra.mxu0 %v733
        %739 = vmatprep.subr.bf16.mxu0 0
        %740 = vmatpush1.bf16.msra.mxu0 0
        %741 = vmatprep.subr.bf16.mxu0 0
        %742 = vmatpush1.bf16.msra.mxu0 0
        %743 = vmatprep.subr.bf16.mxu0 0
        %744 = vmatpush1.bf16.msra.mxu0 0
        %745 = vmatprep.subr.bf16.mxu0 0
        %746 = vmatpush1.bf16.msra.mxu0 0
        %747 = vmatprep.subr.bf16.mxu0 0
        %748 = vmatpush1.bf16.msra.mxu0 0
        %749 = vmatprep.subr.bf16.mxu0 0
        %750 = vmatpush1.bf16.msra.mxu0 0
        %751 = vmatprep.subr.bf16.mxu0 0
        %752 = vmatpush1.bf16.msra.mxu0 0
        %753 = vmatprep.subr.bf16.mxu0 0
        %754 = vmatpush1.bf16.msra.mxu0 0
        %755 = vmatprep.subr.bf16.mxu0 0
        %756 = vmatpush1.bf16.msra.mxu0 0
        %757 = vmatprep.subr.bf16.mxu0 0
        %758 = vmatpush1.bf16.msra.mxu0 0
        %759 = vmatprep.subr.bf16.mxu0 0
        %760 = vmatpush1.bf16.msra.mxu0 0
        %761 = vmatprep.subr.bf16.mxu0 0
        %762 = vmatpush1.bf16.msra.mxu0 0
        %763 = vmatprep.subr.bf16.mxu0 0
        %764 = vmatpush1.bf16.msra.mxu0 0
        %765 = vmatprep.subr.bf16.mxu0 0
        %766 = vmatpush1.bf16.msra.mxu0 0
        %767 = vmatprep.mubr.bf16.mxu0 0
        %768 = vmatmul.mubr.bf16.gmra.mrb[0].mxu0 %v633
        %v769 = vpop.f32.mrb[0].mxu0
        %v770 = vadd.f32 0.0, %v769
        %v771 = vpop.f32.mrb[0].mxu0
        %v772 = vpop.f32.mrb[0].mxu0
        %v773 = vadd.f32 0.0, %v772
        %v774 = vpop.f32.mrb[0].mxu0
        %775 = vmatprep.mubr.bf16.mxu0 0
        %776 = vmatmul.mubr.bf16.gmra.mrb[0].mxu0 %v636
        %v777 = vpop.f32.mrb[0].mxu0
        %v778 = vadd.f32 0.0, %v777
        %v779 = vpop.f32.mrb[0].mxu0
        %v780 = vpop.f32.mrb[0].mxu0
        %v781 = vadd.f32 0.0, %v780
        %v782 = vpop.f32.mrb[0].mxu0
        %783 = vmatprep.mubr.bf16.mxu0 0
        %784 = vmatmul.mubr.bf16.gmra.mrb[0].mxu0 %v639
        %v785 = vpop.f32.mrb[0].mxu0
        %v786 = vadd.f32 0.0, %v785
        %v787 = vpop.f32.mrb[0].mxu0
        %v788 = vpop.f32.mrb[0].mxu0
        %v789 = vadd.f32 0.0, %v788
        %v790 = vpop.f32.mrb[0].mxu0
        %791 = vmatprep.mubr.bf16.mxu0 0
        %792 = vmatmul.mubr.bf16.gmra.mrb[0].mxu0 %v642
        %v793 = vpop.f32.mrb[0].mxu0
        %v794 = vadd.f32 0.0, %v793
        %v795 = vpop.f32.mrb[0].mxu0
        %v796 = vpop.f32.mrb[0].mxu0
        %v797 = vadd.f32 0.0, %v796
        %v798 = vpop.f32.mrb[0].mxu0
        %799 = vmatprep.mubr.bf16.mxu0 0
        %800 = vmatmul.mubr.bf16.gmra.mrb[0].mxu0 %v645
        %v801 = vpop.f32.mrb[0].mxu0
        %v802 = vadd.f32 0.0, %v801
        %v803 = vpop.f32.mrb[0].mxu0
        %v804 = vpop.f32.mrb[0].mxu0
        %v805 = vadd.f32 0.0, %v804
        %v806 = vpop.f32.mrb[0].mxu0
        %807 = vmatprep.mubr.bf16.mxu0 0
        %808 = vmatmul.mubr.bf16.gmra.mrb[0].mxu0 %v648
        %v809 = vpop.f32.mrb[0].mxu0
        %v810 = vadd.f32 0.0, %v809
        %v811 = vpop.f32.mrb[0].mxu0
        %v812 = vpop.f32.mrb[0].mxu0
        %v813 = vadd.f32 0.0, %v812
        %v814 = vpop.f32.mrb[0].mxu0
        %815 = vmatprep.mubr.bf16.mxu0 0
        %816 = vmatmul.mubr.bf16.gmra.mrb[0].mxu0 %v651
        %v817 = vpop.f32.mrb[0].mxu0
        %v818 = vadd.f32 0.0, %v817
        %v819 = vpop.f32.mrb[0].mxu0
        %v820 = vpop.f32.mrb[0].mxu0
        %v821 = vadd.f32 0.0, %v820
        %v822 = vpop.f32.mrb[0].mxu0
        %823 = vmatprep.mubr.bf16.mxu0 0
        %824 = vmatmul.mubr.bf16.gmra.mrb[0].mxu0 %v654
        %v825 = vpop.f32.mrb[0].mxu0
        %v826 = vadd.f32 0.0, %v825
        %v827 = vpop.f32.mrb[0].mxu0
        %v828 = vpop.f32.mrb[0].mxu0
        %v829 = vadd.f32 0.0, %v828
        %v830 = vpop.f32.mrb[0].mxu0
        %831 = vmatprep.mubr.bf16.mxu0 0
        %832 = vmatmul.mubr.bf16.gmra.mrb[0].mxu0 %v657
        %v833 = vpop.f32.mrb[0].mxu0
        %v834 = vadd.f32 0.0, %v833
        %v835 = vpop.f32.mrb[0].mxu0
        %v836 = vpop.f32.mrb[0].mxu0
        %v837 = vadd.f32 0.0, %v836
        %v838 = vpop.f32.mrb[0].mxu0
        %839 = vmatprep.mubr.bf16.mxu0 0
        %840 = vmatmul.mubr.bf16.gmra.mrb[0].mxu0 %v660
        %v841 = vpop.f32.mrb[0].mxu0
        %v842 = vadd.f32 0.0, %v841
        %v843 = vpop.f32.mrb[0].mxu0
        %v844 = vpop.f32.mrb[0].mxu0
        %v845 = vadd.f32 0.0, %v844
        %v846 = vpop.f32.mrb[0].mxu0
        %847 = vmatprep.mubr.bf16.mxu0 0
        %848 = vmatmul.mubr.bf16.gmra.mrb[0].mxu0 %v663
        %v849 = vpop.f32.mrb[0].mxu0
        %v850 = vadd.f32 0.0, %v849
        %v851 = vpop.f32.mrb[0].mxu0
        %v852 = vpop.f32.mrb[0].mxu0
        %v853 = vadd.f32 0.0, %v852
        %v854 = vpop.f32.mrb[0].mxu0
        %855 = vmatprep.mubr.bf16.mxu0 0
        %856 = vmatmul.mubr.bf16.gmra.mrb[0].mxu0 %v666
        %v857 = vpop.f32.mrb[0].mxu0
        %v858 = vadd.f32 0.0, %v857
        %v859 = vpop.f32.mrb[0].mxu0
        %v860 = vpop.f32.mrb[0].mxu0
        %v861 = vadd.f32 0.0, %v860
        %v862 = vpop.f32.mrb[0].mxu0
        %863 = vmatprep.mubr.bf16.mxu0 0
        %864 = vmatmul.mubr.bf16.gmra.mrb[0].mxu0 %v669
        %v865 = vpop.f32.mrb[0].mxu0
        %v866 = vadd.f32 0.0, %v865
        %v867 = vpop.f32.mrb[0].mxu0
        %v868 = vpop.f32.mrb[0].mxu0
        %v869 = vadd.f32 0.0, %v868
        %v870 = vpop.f32.mrb[0].mxu0
        %871 = vmatprep.mubr.bf16.mxu0 0
        %872 = vmatmul.mubr.bf16.gmra.mrb[0].mxu0 %v672
        %v873 = vpop.f32.mrb[0].mxu0
        %v874 = vadd.f32 0.0, %v873
        %v875 = vpop.f32.mrb[0].mxu0
        %v876 = vpop.f32.mrb[0].mxu0
        %v877 = vadd.f32 0.0, %v876
        %v878 = vpop.f32.mrb[0].mxu0
        %879 = vmatprep.mubr.bf16.mxu0 0
        %880 = vmatmul.mubr.bf16.gmra.mrb[0].mxu0 %v675
        %v881 = vpop.f32.mrb[0].mxu0
        %v882 = vadd.f32 0.0, %v881
        %v883 = vpop.f32.mrb[0].mxu0
        %v884 = vpop.f32.mrb[0].mxu0
        %v885 = vadd.f32 0.0, %v884
        %v886 = vpop.f32.mrb[0].mxu0
        %887 = vmatprep.mubr.bf16.mxu0 0
        %888 = vmatmul.mubr.bf16.gmra.mrb[0].mxu0 %v678
        %v889 = vpop.f32.mrb[0].mxu0
        %v890 = vadd.f32 0.0, %v889
        %v891 = vpop.f32.mrb[0].mxu0
        %v892 = vpop.f32.mrb[0].mxu0
        %v893 = vadd.f32 0.0, %v892
        %v894 = vpop.f32.mrb[0].mxu0
        %895 = vmatprep.mubr.bf16.mxu0 0
        %896 = vmatmul.mubr.bf16.gmra.mrb[0].mxu0 %v681
        %v897 = vpop.f32.mrb[0].mxu0
        %v898 = vadd.f32 0.0, %v897
        %v899 = vpop.f32.mrb[0].mxu0
        %v900 = vpop.f32.mrb[0].mxu0
        %v901 = vadd.f32 0.0, %v900
        %v902 = vpop.f32.mrb[0].mxu0
        %903 = vmatprep.mubr.bf16.mxu0 0
        %904 = vmatmul.mubr.bf16.gmra.mrb[0].mxu0 %v684
        %v905 = vpop.f32.mrb[0].mxu0
        %v906 = vadd.f32 0.0, %v905
        %v907 = vpop.f32.mrb[0].mxu0
        %v908 = vpop.f32.mrb[0].mxu0
        %v909 = vadd.f32 0.0, %v908
        %v910 = vpop.f32.mrb[0].mxu0
        %911 = vmatprep.mubr.bf16.mxu0 0
        %912 = vmatmul.mubr.bf16.gmra.mrb[0].mxu0 %v687
        %v913 = vpop.f32.mrb[0].mxu0
        %v914 = vadd.f32 0.0, %v913
        %v915 = vpop.f32.mrb[0].mxu0
        %v916 = vpop.f32.mrb[0].mxu0
        %v917 = vadd.f32 0.0, %v916
        %v918 = vpop.f32.mrb[0].mxu0
        %919 = vmatprep.mubr.bf16.mxu0 0
        %920 = vmatmul.mubr.bf16.gmra.mrb[0].mxu0 %v690
        %v921 = vpop.f32.mrb[0].mxu0
        %v922 = vadd.f32 0.0, %v921
        %v923 = vpop.f32.mrb[0].mxu0
        %v924 = vpop.f32.mrb[0].mxu0
        %v925 = vadd.f32 0.0, %v924
        %v926 = vpop.f32.mrb[0].mxu0
        %927 = vmatprep.mubr.bf16.mxu0 0
        %928 = vmatmul.mubr.bf16.gmra.mrb[0].mxu0 %v693
        %v929 = vpop.f32.mrb[0].mxu0
        %v930 = vadd.f32 0.0, %v929
        %v931 = vpop.f32.mrb[0].mxu0
        %v932 = vpop.f32.mrb[0].mxu0
        %v933 = vadd.f32 0.0, %v932
        %v934 = vpop.f32.mrb[0].mxu0
        %935 = vmatprep.mubr.bf16.mxu0 0
        %936 = vmatmul.mubr.bf16.gmra.mrb[0].mxu0 %v696
        %v937 = vpop.f32.mrb[0].mxu0
        %v938 = vadd.f32 0.0, %v937
        %v939 = vpop.f32.mrb[0].mxu0
        %v940 = vpop.f32.mrb[0].mxu0
        %v941 = vadd.f32 0.0, %v940
        %v942 = vpop.f32.mrb[0].mxu0
        %943 = vmatprep.mubr.bf16.mxu0 0
        %944 = vmatmul.mubr.bf16.gmra.mrb[0].mxu0 %v699
        %v945 = vpop.f32.mrb[0].mxu0
        %v946 = vadd.f32 0.0, %v945
        %v947 = vpop.f32.mrb[0].mxu0
        %v948 = vpop.f32.mrb[0].mxu0
        %v949 = vadd.f32 0.0, %v948
        %v950 = vpop.f32.mrb[0].mxu0
        %951 = vmatprep.mubr.bf16.mxu0 0
        %952 = vmatmul.mubr.bf16.gmra.mrb[0].mxu0 %v702
        %v953 = vpop.f32.mrb[0].mxu0
        %v954 = vadd.f32 0.0, %v953
        %v955 = vpop.f32.mrb[0].mxu0
        %v956 = vpop.f32.mrb[0].mxu0
        %v957 = vadd.f32 0.0, %v956
        %v958 = vpop.f32.mrb[0].mxu0
        %959 = vmatprep.mubr.bf16.mxu0 0
        %960 = vmatmul.mubr.bf16.gmra.mrb[0].mxu0 %v705
        %v961 = vpop.f32.mrb[0].mxu0
        %v962 = vadd.f32 0.0, %v961
        %v963 = vpop.f32.mrb[0].mxu0
        %v964 = vpop.f32.mrb[0].mxu0
        %v965 = vadd.f32 0.0, %v964
        %v966 = vpop.f32.mrb[0].mxu0
        %967 = vmatprep.mubr.bf16.mxu0 0
        %968 = vmatmul.mubr.bf16.gmra.mrb[0].mxu0 %v708
        %v969 = vpop.f32.mrb[0].mxu0
        %v970 = vadd.f32 0.0, %v969
        %v971 = vpop.f32.mrb[0].mxu0
        %v972 = vpop.f32.mrb[0].mxu0
        %v973 = vadd.f32 0.0, %v972
        %v974 = vpop.f32.mrb[0].mxu0
        %975 = vmatprep.mubr.bf16.mxu0 0
        %976 = vmatmul.mubr.bf16.gmra.mrb[0].mxu0 %v711
        %v977 = vpop.f32.mrb[0].mxu0
        %v978 = vadd.f32 0.0, %v977
        %v979 = vpop.f32.mrb[0].mxu0
        %v980 = vpop.f32.mrb[0].mxu0
        %v981 = vadd.f32 0.0, %v980
        %v982 = vpop.f32.mrb[0].mxu0
        %983 = vmatprep.mubr.bf16.mxu0 0
        %984 = vmatmul.mubr.bf16.gmra.mrb[0].mxu0 %v714
        %v985 = vpop.f32.mrb[0].mxu0
        %v986 = vadd.f32 0.0, %v985
        %v987 = vpop.f32.mrb[0].mxu0
        %v988 = vpop.f32.mrb[0].mxu0
        %v989 = vadd.f32 0.0, %v988
        %v990 = vpop.f32.mrb[0].mxu0
        %991 = vmatprep.mubr.bf16.mxu0 0
        %992 = vmatmul.mubr.bf16.gmra.mrb[0].mxu0 %v717
        %v993 = vpop.f32.mrb[0].mxu0
        %v994 = vadd.f32 0.0, %v993
        %v995 = vpop.f32.mrb[0].mxu0
        %v996 = vpop.f32.mrb[0].mxu0
        %v997 = vadd.f32 0.0, %v996
        %v998 = vpop.f32.mrb[0].mxu0
        %999 = vmatprep.mubr.bf16.mxu0 0
        %1000 = vmatmul.mubr.bf16.gmra.mrb[0].mxu0 %v720
        %v1001 = vpop.f32.mrb[0].mxu0
        %v1002 = vadd.f32 0.0, %v1001
        %v1003 = vpop.f32.mrb[0].mxu0
        %v1004 = vpop.f32.mrb[0].mxu0
        %v1005 = vadd.f32 0.0, %v1004
        %v1006 = vpop.f32.mrb[0].mxu0
        %1007 = vmatprep.mubr.bf16.mxu0 0
        %1008 = vmatmul.mubr.bf16.gmra.mrb[0].mxu0 %v723
        %v1009 = vpop.f32.mrb[0].mxu0
        %v1010 = vadd.f32 0.0, %v1009
        %v1011 = vpop.f32.mrb[0].mxu0
        %v1012 = vpop.f32.mrb[0].mxu0
        %v1013 = vadd.f32 0.0, %v1012
        %v1014 = vpop.f32.mrb[0].mxu0
        %1015 = vmatprep.mubr.bf16.mxu0 0
        %1016 = vmatmul.mubr.bf16.gmra.mrb[0].mxu0 %v726
        %v1017 = vpop.f32.mrb[0].mxu0
        %v1018 = vadd.f32 0.0, %v1017
        %v1019 = vpop.f32.mrb[0].mxu0
        %v1020 = vpop.f32.mrb[0].mxu0
        %v1021 = vadd.f32 0.0, %v1020
        %v1022 = vpop.f32.mrb[0].mxu0
        %1023 = vdwg.mxu0
        %v1024 = vadd.f32 %v328, %v770
        %v1025 = vadd.f32 %v329, %v773
        %v1026 = vadd.f32 %v330, %v778
        %v1027 = vadd.f32 %v331, %v781
        %v1028 = vadd.f32 %v332, %v786
        %v1029 = vadd.f32 %v333, %v789
        %v1030 = vadd.f32 %v334, %v794
        %v1031 = vadd.f32 %v335, %v797
        %v1032 = vadd.f32 %v336, %v802
        %v1033 = vadd.f32 %v337, %v805
        %v1034 = vadd.f32 %v338, %v810
        %v1035 = vadd.f32 %v339, %v813
        %v1036 = vadd.f32 %v340, %v818
        %v1037 = vadd.f32 %v341, %v821
        %v1038 = vadd.f32 %v342, %v826
        %v1039 = vadd.f32 %v343, %v829
        %v1040 = vadd.f32 %v344, %v834
        %v1041 = vadd.f32 %v345, %v837
        %v1042 = vadd.f32 %v346, %v842
        %v1043 = vadd.f32 %v347, %v845
        %v1044 = vadd.f32 %v348, %v850
        %v1045 = vadd.f32 %v349, %v853
        %v1046 = vadd.f32 %v350, %v858
        %v1047 = vadd.f32 %v351, %v861
        %v1048 = vadd.f32 %v352, %v866
        %v1049 = vadd.f32 %v353, %v869
        %v1050 = vadd.f32 %v354, %v874
        %v1051 = vadd.f32 %v355, %v877
        %v1052 = vadd.f32 %v356, %v882
        %v1053 = vadd.f32 %v357, %v885
        %v1054 = vadd.f32 %v358, %v890
        %v1055 = vadd.f32 %v359, %v893
        %v1056 = vadd.f32 %v360, %v898
        %v1057 = vadd.f32 %v361, %v901
        %v1058 = vadd.f32 %v362, %v906
        %v1059 = vadd.f32 %v363, %v909
        %v1060 = vadd.f32 %v364, %v914
        %v1061 = vadd.f32 %v365, %v917
        %v1062 = vadd.f32 %v366, %v922
        %v1063 = vadd.f32 %v367, %v925
        %v1064 = vadd.f32 %v368, %v930
        %v1065 = vadd.f32 %v369, %v933
        %v1066 = vadd.f32 %v370, %v938
        %v1067 = vadd.f32 %v371, %v941
        %v1068 = vadd.f32 %v372, %v946
        %v1069 = vadd.f32 %v373, %v949
        %v1070 = vadd.f32 %v374, %v954
        %v1071 = vadd.f32 %v375, %v957
        %v1072 = vadd.f32 %v376, %v962
        %v1073 = vadd.f32 %v377, %v965
        %v1074 = vadd.f32 %v378, %v970
        %v1075 = vadd.f32 %v379, %v973
        %v1076 = vadd.f32 %v380, %v978
        %v1077 = vadd.f32 %v381, %v981
        %v1078 = vadd.f32 %v382, %v986
        %v1079 = vadd.f32 %v383, %v989
        %v1080 = vadd.f32 %v384, %v994
        %v1081 = vadd.f32 %v385, %v997
        %v1082 = vadd.f32 %v386, %v1002
        %v1083 = vadd.f32 %v387, %v1005
        %v1084 = vadd.f32 %v388, %v1010
        %v1085 = vadd.f32 %v389, %v1013
        %v1086 = vadd.f32 %v390, %v1018
        %v1087 = vadd.f32 %v391, %v1021
        %1088 = vst [vmem:[#allocation2] sm:$0xff] %v1024
        %1089 = vst [vmem:[#allocation2 + $0x8] sm:$0xff] %v1025
        %1090 = vst [vmem:[#allocation2 + $0x10] sm:$0xff] %v1026
        %1091 = vst [vmem:[#allocation2 + $0x18] sm:$0xff] %v1027
        %1092 = vst [vmem:[#allocation2 + $0x20] sm:$0xff] %v1028
        %1093 = vst [vmem:[#allocation2 + $0x28] sm:$0xff] %v1029
        %1094 = vst [vmem:[#allocation2 + $0x30] sm:$0xff] %v1030
        %1095 = vst [vmem:[#allocation2 + $0x38] sm:$0xff] %v1031
        %1096 = vst [vmem:[#allocation2 + $0x40] sm:$0xff] %v1032
        %1097 = vst [vmem:[#allocation2 + $0x48] sm:$0xff] %v1033
        %1098 = vst [vmem:[#allocation2 + $0x50] sm:$0xff] %v1034
        %1099 = vst [vmem:[#allocation2 + $0x58] sm:$0xff] %v1035
        %1100 = vst [vmem:[#allocation2 + $0x60] sm:$0xff] %v1036
        %1101 = vst [vmem:[#allocation2 + $0x68] sm:$0xff] %v1037
        %1102 = vst [vmem:[#allocation2 + $0x70] sm:$0xff] %v1038
        %1103 = vst [vmem:[#allocation2 + $0x78] sm:$0xff] %v1039
        %1104 = vst [vmem:[#allocation2 + $0x80] sm:$0xff] %v1040
        %1105 = vst [vmem:[#allocation2 + $0x88] sm:$0xff] %v1041
        %1106 = vst [vmem:[#allocation2 + $0x90] sm:$0xff] %v1042
        %1107 = vst [vmem:[#allocation2 + $0x98] sm:$0xff] %v1043
        %1108 = vst [vmem:[#allocation2 + $0xa0] sm:$0xff] %v1044
        %1109 = vst [vmem:[#allocation2 + $0xa8] sm:$0xff] %v1045
        %1110 = vst [vmem:[#allocation2 + $0xb0] sm:$0xff] %v1046
        %1111 = vst [vmem:[#allocation2 + $0xb8] sm:$0xff] %v1047
        %1112 = vst [vmem:[#allocation2 + $0xc0] sm:$0xff] %v1048
        %1113 = vst [vmem:[#allocation2 + $0xc8] sm:$0xff] %v1049
        %1114 = vst [vmem:[#allocation2 + $0xd0] sm:$0xff] %v1050
        %1115 = vst [vmem:[#allocation2 + $0xd8] sm:$0xff] %v1051
        %1116 = vst [vmem:[#allocation2 + $0xe0] sm:$0xff] %v1052
        %1117 = vst [vmem:[#allocation2 + $0xe8] sm:$0xff] %v1053
        %1118 = vst [vmem:[#allocation2 + $0xf0] sm:$0xff] %v1054
        %1119 = vst [vmem:[#allocation2 + $0xf8] sm:$0xff] %v1055
        %1120 = vst [vmem:[#allocation2 + $0x100] sm:$0xff] %v1056
        %1121 = vst [vmem:[#allocation2 + $0x108] sm:$0xff] %v1057
        %1122 = vst [vmem:[#allocation2 + $0x110] sm:$0xff] %v1058
        %1123 = vst [vmem:[#allocation2 + $0x118] sm:$0xff] %v1059
        %1124 = vst [vmem:[#allocation2 + $0x120] sm:$0xff] %v1060
        %1125 = vst [vmem:[#allocation2 + $0x128] sm:$0xff] %v1061
        %1126 = vst [vmem:[#allocation2 + $0x130] sm:$0xff] %v1062
        %1127 = vst [vmem:[#allocation2 + $0x138] sm:$0xff] %v1063
        %1128 = vst [vmem:[#allocation2 + $0x140] sm:$0xff] %v1064
        %1129 = vst [vmem:[#allocation2 + $0x148] sm:$0xff] %v1065
        %1130 = vst [vmem:[#allocation2 + $0x150] sm:$0xff] %v1066
        %1131 = vst [vmem:[#allocation2 + $0x158] sm:$0xff] %v1067
        %1132 = vst [vmem:[#allocation2 + $0x160] sm:$0xff] %v1068
        %1133 = vst [vmem:[#allocation2 + $0x168] sm:$0xff] %v1069
        %1134 = vst [vmem:[#allocation2 + $0x170] sm:$0xff] %v1070
        %1135 = vst [vmem:[#allocation2 + $0x178] sm:$0xff] %v1071
        %1136 = vst [vmem:[#allocation2 + $0x180] sm:$0xff] %v1072
        %1137 = vst [vmem:[#allocation2 + $0x188] sm:$0xff] %v1073
        %1138 = vst [vmem:[#allocation2 + $0x190] sm:$0xff] %v1074
        %1139 = vst [vmem:[#allocation2 + $0x198] sm:$0xff] %v1075
        %1140 = vst [vmem:[#allocation2 + $0x1a0] sm:$0xff] %v1076
        %1141 = vst [vmem:[#allocation2 + $0x1a8] sm:$0xff] %v1077
        %1142 = vst [vmem:[#allocation2 + $0x1b0] sm:$0xff] %v1078
        %1143 = vst [vmem:[#allocation2 + $0x1b8] sm:$0xff] %v1079
        %1144 = vst [vmem:[#allocation2 + $0x1c0] sm:$0xff] %v1080
        %1145 = vst [vmem:[#allocation2 + $0x1c8] sm:$0xff] %v1081
        %1146 = vst [vmem:[#allocation2 + $0x1d0] sm:$0xff] %v1082
        %1147 = vst [vmem:[#allocation2 + $0x1d8] sm:$0xff] %v1083
        %1148 = vst [vmem:[#allocation2 + $0x1e0] sm:$0xff] %v1084
        %1149 = vst [vmem:[#allocation2 + $0x1e8] sm:$0xff] %v1085
        %1150 = vst [vmem:[#allocation2 + $0x1f0] sm:$0xff] %v1086
        %1151 = vst [vmem:[#allocation2 + $0x1f8] sm:$0xff] %v1087
        // Predicated region
        $region45: #{simple_cnn_forward.5} parent=31 // pred_check
          %p1152 = pneg %p260
        $region46: #{simple_cnn_forward.5} parent=31 // pred_check_branch
          %1154 = sbr.rel (%p1152) target = $region48
        $region47: #{simple_cnn_forward.5} parent=31 // pred_region
          %v1155 = vld [vmem:[#allocation2] sm:$0xff]
          %v1156 = vld [vmem:[#allocation2 + $0x8] sm:$0xff]
          %v1157 = vld [vmem:[#allocation2 + $0x10] sm:$0xff]
          %v1158 = vld [vmem:[#allocation2 + $0x18] sm:$0xff]
          %v1159 = vld [vmem:[#allocation2 + $0x20] sm:$0xff]
          %v1160 = vld [vmem:[#allocation2 + $0x28] sm:$0xff]
          %v1161 = vld [vmem:[#allocation2 + $0x30] sm:$0xff]
          %v1162 = vld [vmem:[#allocation2 + $0x38] sm:$0xff]
          %v1163 = vld [vmem:[#allocation2 + $0x40] sm:$0xff]
          %v1164 = vld [vmem:[#allocation2 + $0x48] sm:$0xff]
          %v1165 = vld [vmem:[#allocation2 + $0x50] sm:$0xff]
          %v1166 = vld [vmem:[#allocation2 + $0x58] sm:$0xff]
          %v1167 = vld [vmem:[#allocation2 + $0x60] sm:$0xff]
          %v1168 = vld [vmem:[#allocation2 + $0x68] sm:$0xff]
          %v1169 = vld [vmem:[#allocation2 + $0x70] sm:$0xff]
          %v1170 = vld [vmem:[#allocation2 + $0x78] sm:$0xff]
          %v1171 = vld [vmem:[#allocation2 + $0x80] sm:$0xff]
          %v1172 = vld [vmem:[#allocation2 + $0x88] sm:$0xff]
          %v1173 = vld [vmem:[#allocation2 + $0x90] sm:$0xff]
          %v1174 = vld [vmem:[#allocation2 + $0x98] sm:$0xff]
          %v1175 = vld [vmem:[#allocation2 + $0xa0] sm:$0xff]
          %v1176 = vld [vmem:[#allocation2 + $0xa8] sm:$0xff]
          %v1177 = vld [vmem:[#allocation2 + $0xb0] sm:$0xff]
          %v1178 = vld [vmem:[#allocation2 + $0xb8] sm:$0xff]
          %v1179 = vld [vmem:[#allocation2 + $0xc0] sm:$0xff]
          %v1180 = vld [vmem:[#allocation2 + $0xc8] sm:$0xff]
          %v1181 = vld [vmem:[#allocation2 + $0xd0] sm:$0xff]
          %v1182 = vld [vmem:[#allocation2 + $0xd8] sm:$0xff]
          %v1183 = vld [vmem:[#allocation2 + $0xe0] sm:$0xff]
          %v1184 = vld [vmem:[#allocation2 + $0xe8] sm:$0xff]
          %v1185 = vld [vmem:[#allocation2 + $0xf0] sm:$0xff]
          %v1186 = vld [vmem:[#allocation2 + $0xf8] sm:$0xff]
          %v1187 = vld [vmem:[#allocation2 + $0x100] sm:$0xff]
          %v1188 = vld [vmem:[#allocation2 + $0x108] sm:$0xff]
          %v1189 = vld [vmem:[#allocation2 + $0x110] sm:$0xff]
          %v1190 = vld [vmem:[#allocation2 + $0x118] sm:$0xff]
          %v1191 = vld [vmem:[#allocation2 + $0x120] sm:$0xff]
          %v1192 = vld [vmem:[#allocation2 + $0x128] sm:$0xff]
          %v1193 = vld [vmem:[#allocation2 + $0x130] sm:$0xff]
          %v1194 = vld [vmem:[#allocation2 + $0x138] sm:$0xff]
          %v1195 = vld [vmem:[#allocation2 + $0x140] sm:$0xff]
          %v1196 = vld [vmem:[#allocation2 + $0x148] sm:$0xff]
          %v1197 = vld [vmem:[#allocation2 + $0x150] sm:$0xff]
          %v1198 = vld [vmem:[#allocation2 + $0x158] sm:$0xff]
          %v1199 = vld [vmem:[#allocation2 + $0x160] sm:$0xff]
          %v1200 = vld [vmem:[#allocation2 + $0x168] sm:$0xff]
          %v1201 = vld [vmem:[#allocation2 + $0x170] sm:$0xff]
          %v1202 = vld [vmem:[#allocation2 + $0x178] sm:$0xff]
          %v1203 = vld [vmem:[#allocation2 + $0x180] sm:$0xff]
          %v1204 = vld [vmem:[#allocation2 + $0x188] sm:$0xff]
          %v1205 = vld [vmem:[#allocation2 + $0x190] sm:$0xff]
          %v1206 = vld [vmem:[#allocation2 + $0x198] sm:$0xff]
          %v1207 = vld [vmem:[#allocation2 + $0x1a0] sm:$0xff]
          %v1208 = vld [vmem:[#allocation2 + $0x1a8] sm:$0xff]
          %v1209 = vld [vmem:[#allocation2 + $0x1b0] sm:$0xff]
          %v1210 = vld [vmem:[#allocation2 + $0x1b8] sm:$0xff]
          %v1211 = vld [vmem:[#allocation2 + $0x1c0] sm:$0xff]
          %v1212 = vld [vmem:[#allocation2 + $0x1c8] sm:$0xff]
          %v1213 = vld [vmem:[#allocation2 + $0x1d0] sm:$0xff]
          %v1214 = vld [vmem:[#allocation2 + $0x1d8] sm:$0xff]
          %v1215 = vld [vmem:[#allocation2 + $0x1e0] sm:$0xff]
          %v1216 = vld [vmem:[#allocation2 + $0x1e8] sm:$0xff]
          %v1217 = vld [vmem:[#allocation2 + $0x1f0] sm:$0xff]
          %v1218 = vld [vmem:[#allocation2 + $0x1f8] sm:$0xff]
          %v1219 = vld [vmem:[#allocation5] sm:$0x1]
          %v1221 = vlaneseq
          %v1222 = vshrl.u32 %v1221, 7
          %v1223 = vsub.s32 0, %v1222
          %v1224 = vrot.slane %v1219, %v1223
          %v1226 = vadd.f32 %v1155, %v1224
          %v1227 = vadd.f32 %v1156, %v1224
          %v1228 = vadd.f32 %v1157, %v1224
          %v1229 = vadd.f32 %v1158, %v1224
          %v1230 = vadd.f32 %v1159, %v1224
          %v1231 = vadd.f32 %v1160, %v1224
          %v1232 = vadd.f32 %v1161, %v1224
          %v1233 = vadd.f32 %v1162, %v1224
          %v1234 = vadd.f32 %v1163, %v1224
          %v1235 = vadd.f32 %v1164, %v1224
          %v1236 = vadd.f32 %v1165, %v1224
          %v1237 = vadd.f32 %v1166, %v1224
          %v1238 = vadd.f32 %v1167, %v1224
          %v1239 = vadd.f32 %v1168, %v1224
          %v1240 = vadd.f32 %v1169, %v1224
          %v1241 = vadd.f32 %v1170, %v1224
          %v1242 = vadd.f32 %v1171, %v1224
          %v1243 = vadd.f32 %v1172, %v1224
          %v1244 = vadd.f32 %v1173, %v1224
          %v1245 = vadd.f32 %v1174, %v1224
          %v1246 = vadd.f32 %v1175, %v1224
          %v1247 = vadd.f32 %v1176, %v1224
          %v1248 = vadd.f32 %v1177, %v1224
          %v1249 = vadd.f32 %v1178, %v1224
          %v1250 = vadd.f32 %v1179, %v1224
          %v1251 = vadd.f32 %v1180, %v1224
          %v1252 = vadd.f32 %v1181, %v1224
          %v1253 = vadd.f32 %v1182, %v1224
          %v1254 = vadd.f32 %v1183, %v1224
          %v1255 = vadd.f32 %v1184, %v1224
          %v1256 = vadd.f32 %v1185, %v1224
          %v1257 = vadd.f32 %v1186, %v1224
          %v1258 = vadd.f32 %v1187, %v1224
          %v1259 = vadd.f32 %v1188, %v1224
          %v1260 = vadd.f32 %v1189, %v1224
          %v1261 = vadd.f32 %v1190, %v1224
          %v1262 = vadd.f32 %v1191, %v1224
          %v1263 = vadd.f32 %v1192, %v1224
          %v1264 = vadd.f32 %v1193, %v1224
          %v1265 = vadd.f32 %v1194, %v1224
          %v1266 = vadd.f32 %v1195, %v1224
          %v1267 = vadd.f32 %v1196, %v1224
          %v1268 = vadd.f32 %v1197, %v1224
          %v1269 = vadd.f32 %v1198, %v1224
          %v1270 = vadd.f32 %v1199, %v1224
          %v1271 = vadd.f32 %v1200, %v1224
          %v1272 = vadd.f32 %v1201, %v1224
          %v1273 = vadd.f32 %v1202, %v1224
          %v1274 = vadd.f32 %v1203, %v1224
          %v1275 = vadd.f32 %v1204, %v1224
          %v1276 = vadd.f32 %v1205, %v1224
          %v1277 = vadd.f32 %v1206, %v1224
          %v1278 = vadd.f32 %v1207, %v1224
          %v1279 = vadd.f32 %v1208, %v1224
          %v1280 = vadd.f32 %v1209, %v1224
          %v1281 = vadd.f32 %v1210, %v1224
          %v1282 = vadd.f32 %v1211, %v1224
          %v1283 = vadd.f32 %v1212, %v1224
          %v1284 = vadd.f32 %v1213, %v1224
          %v1285 = vadd.f32 %v1214, %v1224
          %v1286 = vadd.f32 %v1215, %v1224
          %v1287 = vadd.f32 %v1216, %v1224
          %v1288 = vadd.f32 %v1217, %v1224
          %v1289 = vadd.f32 %v1218, %v1224
          %v1290 = vmax.f32 %v1226, 0.0
          %v1291 = vmax.f32 %v1227, 0.0
          %v1292 = vmax.f32 %v1228, 0.0
          %v1293 = vmax.f32 %v1229, 0.0
          %v1294 = vmax.f32 %v1230, 0.0
          %v1295 = vmax.f32 %v1231, 0.0
          %v1296 = vmax.f32 %v1232, 0.0
          %v1297 = vmax.f32 %v1233, 0.0
          %v1298 = vmax.f32 %v1234, 0.0
          %v1299 = vmax.f32 %v1235, 0.0
          %v1300 = vmax.f32 %v1236, 0.0
          %v1301 = vmax.f32 %v1237, 0.0
          %v1302 = vmax.f32 %v1238, 0.0
          %v1303 = vmax.f32 %v1239, 0.0
          %v1304 = vmax.f32 %v1240, 0.0
          %v1305 = vmax.f32 %v1241, 0.0
          %v1306 = vmax.f32 %v1242, 0.0
          %v1307 = vmax.f32 %v1243, 0.0
          %v1308 = vmax.f32 %v1244, 0.0
          %v1309 = vmax.f32 %v1245, 0.0
          %v1310 = vmax.f32 %v1246, 0.0
          %v1311 = vmax.f32 %v1247, 0.0
          %v1312 = vmax.f32 %v1248, 0.0
          %v1313 = vmax.f32 %v1249, 0.0
          %v1314 = vmax.f32 %v1250, 0.0
          %v1315 = vmax.f32 %v1251, 0.0
          %v1316 = vmax.f32 %v1252, 0.0
          %v1317 = vmax.f32 %v1253, 0.0
          %v1318 = vmax.f32 %v1254, 0.0
          %v1319 = vmax.f32 %v1255, 0.0
          %v1320 = vmax.f32 %v1256, 0.0
          %v1321 = vmax.f32 %v1257, 0.0
          %v1322 = vmax.f32 %v1258, 0.0
          %v1323 = vmax.f32 %v1259, 0.0
          %v1324 = vmax.f32 %v1260, 0.0
          %v1325 = vmax.f32 %v1261, 0.0
          %v1326 = vmax.f32 %v1262, 0.0
          %v1327 = vmax.f32 %v1263, 0.0
          %v1328 = vmax.f32 %v1264, 0.0
          %v1329 = vmax.f32 %v1265, 0.0
          %v1330 = vmax.f32 %v1266, 0.0
          %v1331 = vmax.f32 %v1267, 0.0
          %v1332 = vmax.f32 %v1268, 0.0
          %v1333 = vmax.f32 %v1269, 0.0
          %v1334 = vmax.f32 %v1270, 0.0
          %v1335 = vmax.f32 %v1271, 0.0
          %v1336 = vmax.f32 %v1272, 0.0
          %v1337 = vmax.f32 %v1273, 0.0
          %v1338 = vmax.f32 %v1274, 0.0
          %v1339 = vmax.f32 %v1275, 0.0
          %v1340 = vmax.f32 %v1276, 0.0
          %v1341 = vmax.f32 %v1277, 0.0
          %v1342 = vmax.f32 %v1278, 0.0
          %v1343 = vmax.f32 %v1279, 0.0
          %v1344 = vmax.f32 %v1280, 0.0
          %v1345 = vmax.f32 %v1281, 0.0
          %v1346 = vmax.f32 %v1282, 0.0
          %v1347 = vmax.f32 %v1283, 0.0
          %v1348 = vmax.f32 %v1284, 0.0
          %v1349 = vmax.f32 %v1285, 0.0
          %v1350 = vmax.f32 %v1286, 0.0
          %v1351 = vmax.f32 %v1287, 0.0
          %v1352 = vmax.f32 %v1288, 0.0
          %v1353 = vmax.f32 %v1289, 0.0
          %v1354 = vpack.c.bf16 %v1291, %v1290
          %v1355 = vpack.c.bf16 %v1293, %v1292
          %v1356 = vpack.c.bf16 %v1295, %v1294
          %v1357 = vpack.c.bf16 %v1297, %v1296
          %v1358 = vpack.c.bf16 %v1299, %v1298
          %v1359 = vpack.c.bf16 %v1301, %v1300
          %v1360 = vpack.c.bf16 %v1303, %v1302
          %v1361 = vpack.c.bf16 %v1305, %v1304
          %v1362 = vpack.c.bf16 %v1307, %v1306
          %v1363 = vpack.c.bf16 %v1309, %v1308
          %v1364 = vpack.c.bf16 %v1311, %v1310
          %v1365 = vpack.c.bf16 %v1313, %v1312
          %v1366 = vpack.c.bf16 %v1315, %v1314
          %v1367 = vpack.c.bf16 %v1317, %v1316
          %v1368 = vpack.c.bf16 %v1319, %v1318
          %v1369 = vpack.c.bf16 %v1321, %v1320
          %v1370 = vpack.c.bf16 %v1323, %v1322
          %v1371 = vpack.c.bf16 %v1325, %v1324
          %v1372 = vpack.c.bf16 %v1327, %v1326
          %v1373 = vpack.c.bf16 %v1329, %v1328
          %v1374 = vpack.c.bf16 %v1331, %v1330
          %v1375 = vpack.c.bf16 %v1333, %v1332
          %v1376 = vpack.c.bf16 %v1335, %v1334
          %v1377 = vpack.c.bf16 %v1337, %v1336
          %v1378 = vpack.c.bf16 %v1339, %v1338
          %v1379 = vpack.c.bf16 %v1341, %v1340
          %v1380 = vpack.c.bf16 %v1343, %v1342
          %v1381 = vpack.c.bf16 %v1345, %v1344
          %v1382 = vpack.c.bf16 %v1347, %v1346
          %v1383 = vpack.c.bf16 %v1349, %v1348
          %v1384 = vpack.c.bf16 %v1351, %v1350
          %v1385 = vpack.c.bf16 %v1353, %v1352
          %v1418 = vunpack.c.l.b16 %v1354
          %v1419 = vunpack.c.h.b16 %v1354
          %v1420 = vunpack.c.l.b16 %v1355
          %v1421 = vunpack.c.h.b16 %v1355
          %v1422 = vunpack.c.l.b16 %v1356
          %v1423 = vunpack.c.h.b16 %v1356
          %v1424 = vunpack.c.l.b16 %v1357
          %v1425 = vunpack.c.h.b16 %v1357
          %v1426 = vunpack.c.l.b16 %v1358
          %v1427 = vunpack.c.h.b16 %v1358
          %v1428 = vunpack.c.l.b16 %v1359
          %v1429 = vunpack.c.h.b16 %v1359
          %v1430 = vunpack.c.l.b16 %v1360
          %v1431 = vunpack.c.h.b16 %v1360
          %v1432 = vunpack.c.l.b16 %v1361
          %v1433 = vunpack.c.h.b16 %v1361
          %v1434 = vunpack.c.l.b16 %v1362
          %v1435 = vunpack.c.h.b16 %v1362
          %v1436 = vunpack.c.l.b16 %v1363
          %v1437 = vunpack.c.h.b16 %v1363
          %v1438 = vunpack.c.l.b16 %v1364
          %v1439 = vunpack.c.h.b16 %v1364
          %v1440 = vunpack.c.l.b16 %v1365
          %v1441 = vunpack.c.h.b16 %v1365
          %v1442 = vunpack.c.l.b16 %v1366
          %v1443 = vunpack.c.h.b16 %v1366
          %v1444 = vunpack.c.l.b16 %v1367
          %v1445 = vunpack.c.h.b16 %v1367
          %v1446 = vunpack.c.l.b16 %v1368
          %v1447 = vunpack.c.h.b16 %v1368
          %v1448 = vunpack.c.l.b16 %v1369
          %v1449 = vunpack.c.h.b16 %v1369
          %v1450 = vunpack.c.l.b16 %v1370
          %v1451 = vunpack.c.h.b16 %v1370
          %v1452 = vunpack.c.l.b16 %v1371
          %v1453 = vunpack.c.h.b16 %v1371
          %v1454 = vunpack.c.l.b16 %v1372
          %v1455 = vunpack.c.h.b16 %v1372
          %v1456 = vunpack.c.l.b16 %v1373
          %v1457 = vunpack.c.h.b16 %v1373
          %v1458 = vunpack.c.l.b16 %v1374
          %v1459 = vunpack.c.h.b16 %v1374
          %v1460 = vunpack.c.l.b16 %v1375
          %v1461 = vunpack.c.h.b16 %v1375
          %v1462 = vunpack.c.l.b16 %v1376
          %v1463 = vunpack.c.h.b16 %v1376
          %v1464 = vunpack.c.l.b16 %v1377
          %v1465 = vunpack.c.h.b16 %v1377
          %v1466 = vunpack.c.l.b16 %v1378
          %v1467 = vunpack.c.h.b16 %v1378
          %v1468 = vunpack.c.l.b16 %v1379
          %v1469 = vunpack.c.h.b16 %v1379
          %v1470 = vunpack.c.l.b16 %v1380
          %v1471 = vunpack.c.h.b16 %v1380
          %v1472 = vunpack.c.l.b16 %v1381
          %v1473 = vunpack.c.h.b16 %v1381
          %v1474 = vunpack.c.l.b16 %v1382
          %v1475 = vunpack.c.h.b16 %v1382
          %v1476 = vunpack.c.l.b16 %v1383
          %v1477 = vunpack.c.h.b16 %v1383
          %v1478 = vunpack.c.l.b16 %v1384
          %v1479 = vunpack.c.h.b16 %v1384
          %v1480 = vunpack.c.l.b16 %v1385
          %v1481 = vunpack.c.h.b16 %v1385
          %v1482 = vpack.c.b16 %v1418, %v1418
          %v1483 = vpack.c.b16 %v1419, %v1419
          %v1484 = vpack.c.b16 %v1420, %v1420
          %v1485 = vpack.c.b16 %v1421, %v1421
          %v1486 = vpack.c.b16 %v1422, %v1422
          %v1487 = vpack.c.b16 %v1423, %v1423
          %v1488 = vpack.c.b16 %v1424, %v1424
          %v1489 = vpack.c.b16 %v1425, %v1425
          %v1490 = vpack.c.b16 %v1426, %v1426
          %v1491 = vpack.c.b16 %v1427, %v1427
          %v1492 = vpack.c.b16 %v1428, %v1428
          %v1493 = vpack.c.b16 %v1429, %v1429
          %v1494 = vpack.c.b16 %v1430, %v1430
          %v1495 = vpack.c.b16 %v1431, %v1431
          %v1496 = vpack.c.b16 %v1432, %v1432
          %v1497 = vpack.c.b16 %v1433, %v1433
          %v1498 = vpack.c.b16 %v1434, %v1434
          %v1499 = vpack.c.b16 %v1435, %v1435
          %v1500 = vpack.c.b16 %v1436, %v1436
          %v1501 = vpack.c.b16 %v1437, %v1437
          %v1502 = vpack.c.b16 %v1438, %v1438
          %v1503 = vpack.c.b16 %v1439, %v1439
          %v1504 = vpack.c.b16 %v1440, %v1440
          %v1505 = vpack.c.b16 %v1441, %v1441
          %v1506 = vpack.c.b16 %v1442, %v1442
          %v1507 = vpack.c.b16 %v1443, %v1443
          %v1508 = vpack.c.b16 %v1444, %v1444
          %v1509 = vpack.c.b16 %v1445, %v1445
          %v1510 = vpack.c.b16 %v1446, %v1446
          %v1511 = vpack.c.b16 %v1447, %v1447
          %v1512 = vpack.c.b16 %v1448, %v1448
          %v1513 = vpack.c.b16 %v1449, %v1449
          %v1514 = vpack.c.b16 %v1450, %v1450
          %v1515 = vpack.c.b16 %v1451, %v1451
          %v1516 = vpack.c.b16 %v1452, %v1452
          %v1517 = vpack.c.b16 %v1453, %v1453
          %v1518 = vpack.c.b16 %v1454, %v1454
          %v1519 = vpack.c.b16 %v1455, %v1455
          %v1520 = vpack.c.b16 %v1456, %v1456
          %v1521 = vpack.c.b16 %v1457, %v1457
          %v1522 = vpack.c.b16 %v1458, %v1458
          %v1523 = vpack.c.b16 %v1459, %v1459
          %v1524 = vpack.c.b16 %v1460, %v1460
          %v1525 = vpack.c.b16 %v1461, %v1461
          %v1526 = vpack.c.b16 %v1462, %v1462
          %v1527 = vpack.c.b16 %v1463, %v1463
          %v1528 = vpack.c.b16 %v1464, %v1464
          %v1529 = vpack.c.b16 %v1465, %v1465
          %v1530 = vpack.c.b16 %v1466, %v1466
          %v1531 = vpack.c.b16 %v1467, %v1467
          %v1532 = vpack.c.b16 %v1468, %v1468
          %v1533 = vpack.c.b16 %v1469, %v1469
          %v1534 = vpack.c.b16 %v1470, %v1470
          %v1535 = vpack.c.b16 %v1471, %v1471
          %v1536 = vpack.c.b16 %v1472, %v1472
          %v1537 = vpack.c.b16 %v1473, %v1473
          %v1538 = vpack.c.b16 %v1474, %v1474
          %v1539 = vpack.c.b16 %v1475, %v1475
          %v1540 = vpack.c.b16 %v1476, %v1476
          %v1541 = vpack.c.b16 %v1477, %v1477
          %v1542 = vpack.c.b16 %v1478, %v1478
          %v1543 = vpack.c.b16 %v1479, %v1479
          %v1544 = vpack.c.b16 %v1480, %v1480
          %v1545 = vpack.c.b16 %v1481, %v1481
          %1610 = vst [vmem:[%s257] sm:$0xf] %v1482
          %1611 = vst [vmem:[%s257 + $0x4] sm:$0xf] %v1483
          %1612 = vst [vmem:[%s257 + $0x8] sm:$0xf] %v1484
          %1613 = vst [vmem:[%s257 + $0xc] sm:$0xf] %v1485
          %1614 = vst [vmem:[%s257 + $0x10] sm:$0xf] %v1486
          %1615 = vst [vmem:[%s257 + $0x14] sm:$0xf] %v1487
          %1616 = vst [vmem:[%s257 + $0x18] sm:$0xf] %v1488
          %1617 = vst [vmem:[%s257 + $0x1c] sm:$0xf] %v1489
          %1618 = vst [vmem:[%s257 + $0x20] sm:$0xf] %v1490
          %1619 = vst [vmem:[%s257 + $0x24] sm:$0xf] %v1491
          %1620 = vst [vmem:[%s257 + $0x28] sm:$0xf] %v1492
          %1621 = vst [vmem:[%s257 + $0x2c] sm:$0xf] %v1493
          %1622 = vst [vmem:[%s257 + $0x30] sm:$0xf] %v1494
          %1623 = vst [vmem:[%s257 + $0x34] sm:$0xf] %v1495
          %1624 = vst [vmem:[%s257 + $0x38] sm:$0xf] %v1496
          %1625 = vst [vmem:[%s257 + $0x3c] sm:$0xf] %v1497
          %1626 = vst [vmem:[%s257 + $0x40] sm:$0xf] %v1498
          %1627 = vst [vmem:[%s257 + $0x44] sm:$0xf] %v1499
          %1628 = vst [vmem:[%s257 + $0x48] sm:$0xf] %v1500
          %1629 = vst [vmem:[%s257 + $0x4c] sm:$0xf] %v1501
          %1630 = vst [vmem:[%s257 + $0x50] sm:$0xf] %v1502
          %1631 = vst [vmem:[%s257 + $0x54] sm:$0xf] %v1503
          %1632 = vst [vmem:[%s257 + $0x58] sm:$0xf] %v1504
          %1633 = vst [vmem:[%s257 + $0x5c] sm:$0xf] %v1505
          %1634 = vst [vmem:[%s257 + $0x60] sm:$0xf] %v1506
          %1635 = vst [vmem:[%s257 + $0x64] sm:$0xf] %v1507
          %1636 = vst [vmem:[%s257 + $0x68] sm:$0xf] %v1508
          %1637 = vst [vmem:[%s257 + $0x6c] sm:$0xf] %v1509
          %1638 = vst [vmem:[%s257 + $0x70] sm:$0xf] %v1510
          %1639 = vst [vmem:[%s257 + $0x74] sm:$0xf] %v1511
          %1640 = vst [vmem:[%s257 + $0x78] sm:$0xf] %v1512
          %1641 = vst [vmem:[%s257 + $0x7c] sm:$0xf] %v1513
          %1642 = vst [vmem:[%s257 + $0x80] sm:$0xf] %v1514
          %1643 = vst [vmem:[%s257 + $0x84] sm:$0xf] %v1515
          %1644 = vst [vmem:[%s257 + $0x88] sm:$0xf] %v1516
          %1645 = vst [vmem:[%s257 + $0x8c] sm:$0xf] %v1517
          %1646 = vst [vmem:[%s257 + $0x90] sm:$0xf] %v1518
          %1647 = vst [vmem:[%s257 + $0x94] sm:$0xf] %v1519
          %1648 = vst [vmem:[%s257 + $0x98] sm:$0xf] %v1520
          %1649 = vst [vmem:[%s257 + $0x9c] sm:$0xf] %v1521
          %1650 = vst [vmem:[%s257 + $0xa0] sm:$0xf] %v1522
          %1651 = vst [vmem:[%s257 + $0xa4] sm:$0xf] %v1523
          %1652 = vst [vmem:[%s257 + $0xa8] sm:$0xf] %v1524
          %1653 = vst [vmem:[%s257 + $0xac] sm:$0xf] %v1525
          %1654 = vst [vmem:[%s257 + $0xb0] sm:$0xf] %v1526
          %1655 = vst [vmem:[%s257 + $0xb4] sm:$0xf] %v1527
          %1656 = vst [vmem:[%s257 + $0xb8] sm:$0xf] %v1528
          %1657 = vst [vmem:[%s257 + $0xbc] sm:$0xf] %v1529
          %1658 = vst [vmem:[%s257 + $0xc0] sm:$0xf] %v1530
          %1659 = vst [vmem:[%s257 + $0xc4] sm:$0xf] %v1531
          %1660 = vst [vmem:[%s257 + $0xc8] sm:$0xf] %v1532
          %1661 = vst [vmem:[%s257 + $0xcc] sm:$0xf] %v1533
          %1662 = vst [vmem:[%s257 + $0xd0] sm:$0xf] %v1534
          %1663 = vst [vmem:[%s257 + $0xd4] sm:$0xf] %v1535
          %1664 = vst [vmem:[%s257 + $0xd8] sm:$0xf] %v1536
          %1665 = vst [vmem:[%s257 + $0xdc] sm:$0xf] %v1537
          %1666 = vst [vmem:[%s257 + $0xe0] sm:$0xf] %v1538
          %1667 = vst [vmem:[%s257 + $0xe4] sm:$0xf] %v1539
          %1668 = vst [vmem:[%s257 + $0xe8] sm:$0xf] %v1540
          %1669 = vst [vmem:[%s257 + $0xec] sm:$0xf] %v1541
          %1670 = vst [vmem:[%s257 + $0xf0] sm:$0xf] %v1542
          %1671 = vst [vmem:[%s257 + $0xf4] sm:$0xf] %v1543
          %1672 = vst [vmem:[%s257 + $0xf8] sm:$0xf] %v1544
          %1673 = vst [vmem:[%s257 + $0xfc] sm:$0xf] %v1545
        $region48: #{simple_cnn_forward.5} parent=31 // pred_fallthru
          _
        %s1674 = smul.u32 64, %s21
        %p1675 = scmp.lt.s32.totalorder %s1674, 255
        %s1676 = scalar_select %p1675, %s1674, 255
        %p1677 = scmp.lt.s32.totalorder %s22, 0
        %s1678 = scalar_select %p1677, %s22, 0
        %s1679 = sadd.s32 %s1678, %s1676
        %s1680 = smul.addr %s1679, 4
        %s1681 = scalar_lea.vmem %s3, %s1680
        // Predicated region
        $region49: #{simple_cnn_forward.5} parent=31 // pred_check
          %p1682 = pneg %p137
        $region50: #{simple_cnn_forward.5} parent=31 // pred_check_branch
          %1684 = sbr.rel (%p1682) target = $region52
        $region51: #{simple_cnn_forward.5} parent=31 // pred_region
          %s1685 = smul.u32 64, %s21
        $region52: #{simple_cnn_forward.5} parent=31 // pred_fallthru
          _
      $region32: #{simple_cnn_forward.5} parent=5 // pred_fallthru
        _
      %p1686 = scmp.le.s32.totalorder 2, %s11
      // Predicated region
      $region53: #{simple_cnn_forward.5} parent=5 // pred_check
        %p1687 = pneg %p1686
      $region54: #{simple_cnn_forward.5} parent=5 // pred_check_branch
        %1689 = sbr.rel (%p1687) target = $region56
      $region55: #{simple_cnn_forward.5} parent=5 // pred_region
        %s1690 = ssub.s32 %s11, 2
        // Predicated region
        $region57: #{simple_cnn_forward.5} parent=55 // pred_check
          %p1691 = pneg %p143
        $region58: #{simple_cnn_forward.5} parent=55 // pred_check_branch
          %1693 = sbr.rel (%p1691) target = $region60
        $region59: #{simple_cnn_forward.5} parent=55 // pred_region
          %s1694 = smul.u32 64, %s24
          %p1695 = scmp.lt.s32.totalorder %s1694, 255
          %s1696 = scalar_select %p1695, %s1694, 255
          %p1697 = scmp.lt.s32.totalorder %s25, 0
          %s1698 = scalar_select %p1697, %s25, 0
          %s1699 = sadd.s32 %s1698, %s1696
          %s1700 = smul.addr %s1699, 4
          %s1701 = scalar_lea.vmem %s3, %s1700
        $region60: #{simple_cnn_forward.5} parent=55 // pred_fallthru
          _
      $region56: #{simple_cnn_forward.5} parent=5 // pred_fallthru
        _
    $region6: #{simple_cnn_forward.5} parent=1 // loop_footer
      %s15 = sadd.s32 1, %s11
    $region7: #{simple_cnn_forward.5} parent=1 // loop_footer_branch
      %10 = sbr.rel target = $region3
    $region8: #{simple_cnn_forward.5} parent=1 // loop_exit
      _
    %1702 = vsyncpa [#allocation4], 1
    %s1703 = scalar_lea.sflag [#allocation4], 1
    %1704 = vsyncpa %s1703, 1
    %1705 = vsyncpa [#allocation6], 1

// kernel: simple_cnn_forward.7
$region0: #{simple_cnn_forward.7}
  #allocation0 [shape = 'u32[]', space=smem, size = 0x4, offset = 0x4, fixed_abs, tag = 'smem constant byte address 0x4 - core index']
  #allocation1 [shape = 'u32[144,128]{1,0:T(1,128)}', space=vmem, size = 0x12000, scoped, tag = 'internal scratch']
  #allocation2 [shape = 'f32[256,128]{1,0:T(8,128)}', space=vmem, size = 0x20000, scoped, tag = 'scratch operand']
  %s0 = inlined_call_operand.vmem [shape: bf16[512,288], index: 0, kind: input, shape index: {}]
  %s1 = inlined_call_operand.vmem [shape: bf16[288,128], index: 1, kind: input, shape index: {}]
  %s2 = inlined_call_operand.vmem [shape: f32[1,128], index: 2, kind: input, shape index: {}]
  %s3 = inlined_call_operand.vmem [shape: bf16[512,128], index: 3, kind: output, shape index: {}]
  %s4 = sld [smem:[#allocation0]]
  $region53: #{simple_cnn_forward.7} parent=0
    _
  %s6 = ssub.s32 1, %s4
  %s7 = scalar_select 0, %s6, %s4
  loop: start=0, step=1, limit=4
  $region2: #{simple_cnn_forward.7} parent=0 // loop_pre_header
    _
  $region3: #{simple_cnn_forward.7} parent=0 // loop_header
    %s9 = sphi 0, %s13
    %p10 = scmp.ge.s32.totalorder %s9, 4
    %s16 = sphi 0, %s35
    %s17 = sphi 0, %s31
    %s18 = sphi 0, %s27
    %s19 = sphi 0, %s16
    %s20 = sphi 0, %s17
    %s21 = sphi 0, %s18
    %s22 = sphi 0, %s19
    %s23 = sphi 0, %s20
    %s24 = sphi 0, %s21
    %s40 = sphi 0, %s42
    %s43 = sphi 0, %s40
    %s44 = sphi 0, %s43
    %s60 = sphi 0, %s44
    %s68 = sphi 0, %s70
    %s71 = sphi 0, %s68
    %s72 = sphi 0, %s71
    %s88 = sphi 0, %s72
    %s94 = sphi 0, %s96
    %s97 = sphi 0, %s94
    %s98 = sphi 0, %s97
    %s114 = sphi 0, %s98
    %s122 = sphi 0, %s124
    %s125 = sphi 0, %s122
    %s126 = sphi 0, %s125
    %s142 = sphi 0, %s126
  $region4: #{simple_cnn_forward.7} parent=0 // loop_header_branch
    %12 = sbr.rel (%p10) target = $region8
  $region5: #{simple_cnn_forward.7} parent=0 // loop_body
    %s14 = ssub.s32 %s9, 1
    %s15 = ssub.s32 %s9, 2
    %s25 = sadd.s32 1, %s18
    %p26 = scmp.ge.s32.totalorder %s25, 1
    %s27 = scalar_select %p26, 0, %s25
    %s28 = sadd.s32 1, %s17
    %s29 = scalar_select %p26, %s28, %s17
    %p30 = scmp.ge.s32.totalorder %s29, 1
    %s31 = scalar_select %p30, 0, %s29
    %s32 = sadd.s32 1, %s16
    %s33 = scalar_select %p30, %s32, %s16
    %p34 = scmp.ge.s32.totalorder %s33, 2
    %s35 = scalar_select %p34, 0, %s33
    %s36 = ssub.s32 %s16, %s35
    %s37 = ssub.s32 %s18, %s27
    %s38 = sor.u32 %s36, %s37
    %p39 = scmp.eq.s32.totalorder %s38, 0
    %s41 = sadd.s32 %s40, 1
    %s42 = scalar_select %p39, %s40, %s41
    %p45 = pneg %p39
    %p46 = scmp.eq.s32.totalorder %s9, 1
    %p47 = por %p45, %p46
    %p48 = scmp.ne.s32.totalorder %s40, %s43
    %p49 = scmp.eq.s32.totalorder %s9, 0
    %p50 = por %p48, %p49
    %p51 = scmp.ne.s32.totalorder %s40, %s43
    %p52 = scmp.eq.s32.totalorder %s14, 1
    %p53 = por %p51, %p52
    %p54 = scmp.ne.s32.totalorder %s43, %s44
    %p55 = scmp.eq.s32.totalorder %s14, 0
    %p56 = por %p54, %p55
    %p57 = scmp.ne.s32.totalorder %s43, %s44
    %p58 = scmp.eq.s32.totalorder %s15, 1
    %p59 = por %p57, %p58
    %p61 = scmp.ne.s32.totalorder %s44, %s60
    %p62 = scmp.eq.s32.totalorder %s15, 0
    %p63 = por %p61, %p62
    %s64 = ssub.s32 %s18, %s27
    %s65 = ssub.s32 %s17, %s31
    %s66 = sor.u32 %s64, %s65
    %p67 = scmp.eq.s32.totalorder %s66, 0
    %s69 = sadd.s32 %s68, 1
    %s70 = scalar_select %p67, %s68, %s69
    %p73 = pneg %p67
    %p74 = scmp.eq.s32.totalorder %s9, 1
    %p75 = por %p73, %p74
    %p76 = scmp.ne.s32.totalorder %s68, %s71
    %p77 = scmp.eq.s32.totalorder %s9, 0
    %p78 = por %p76, %p77
    %p79 = scmp.ne.s32.totalorder %s68, %s71
    %p80 = scmp.eq.s32.totalorder %s14, 1
    %p81 = por %p79, %p80
    %p82 = scmp.ne.s32.totalorder %s71, %s72
    %p83 = scmp.eq.s32.totalorder %s14, 0
    %p84 = por %p82, %p83
    %p85 = scmp.ne.s32.totalorder %s71, %s72
    %p86 = scmp.eq.s32.totalorder %s15, 1
    %p87 = por %p85, %p86
    %p89 = scmp.ne.s32.totalorder %s72, %s88
    %p90 = scmp.eq.s32.totalorder %s15, 0
    %p91 = por %p89, %p90
    %s92 = ssub.s32 %s17, %s31
    %p93 = scmp.eq.s32.totalorder %s92, 0
    %s95 = sadd.s32 %s94, 1
    %s96 = scalar_select %p93, %s94, %s95
    %p99 = pneg %p93
    %p100 = scmp.eq.s32.totalorder %s9, 1
    %p101 = por %p99, %p100
    %p102 = scmp.ne.s32.totalorder %s94, %s97
    %p103 = scmp.eq.s32.totalorder %s9, 0
    %p104 = por %p102, %p103
    %p105 = scmp.ne.s32.totalorder %s94, %s97
    %p106 = scmp.eq.s32.totalorder %s14, 1
    %p107 = por %p105, %p106
    %p108 = scmp.ne.s32.totalorder %s97, %s98
    %p109 = scmp.eq.s32.totalorder %s14, 0
    %p110 = por %p108, %p109
    %p111 = scmp.ne.s32.totalorder %s97, %s98
    %p112 = scmp.eq.s32.totalorder %s15, 1
    %p113 = por %p111, %p112
    %p115 = scmp.ne.s32.totalorder %s98, %s114
    %p116 = scmp.eq.s32.totalorder %s15, 0
    %p117 = por %p115, %p116
    %s118 = ssub.s32 %s16, %s35
    %s119 = ssub.s32 %s17, %s31
    %s120 = sor.u32 %s118, %s119
    %p121 = scmp.eq.s32.totalorder %s120, 0
    %s123 = sadd.s32 %s122, 1
    %s124 = scalar_select %p121, %s122, %s123
    %p127 = pneg %p121
    %p128 = scmp.eq.s32.totalorder %s9, 1
    %p129 = por %p127, %p128
    %p130 = scmp.ne.s32.totalorder %s122, %s125
    %p131 = scmp.eq.s32.totalorder %s9, 0
    %p132 = por %p130, %p131
    %p133 = scmp.ne.s32.totalorder %s122, %s125
    %p134 = scmp.eq.s32.totalorder %s14, 1
    %p135 = por %p133, %p134
    %p136 = scmp.ne.s32.totalorder %s125, %s126
    %p137 = scmp.eq.s32.totalorder %s14, 0
    %p138 = por %p136, %p137
    %p139 = scmp.ne.s32.totalorder %s125, %s126
    %p140 = scmp.eq.s32.totalorder %s15, 1
    %p141 = por %p139, %p140
    %p143 = scmp.ne.s32.totalorder %s126, %s142
    %p144 = scmp.eq.s32.totalorder %s15, 0
    %p145 = por %p143, %p144
    %p146 = scmp.le.s32.totalorder 1, %s9
    %p147 = scmp.lt.s32.totalorder %s9, 3
    %p148 = pnand %p146, %p147
    %p149 = pneg %p148
    // Predicated region
    $region9: #{simple_cnn_forward.7} parent=5 // pred_check
      _
    $region10: #{simple_cnn_forward.7} parent=5 // pred_check_branch
      %151 = sbr.rel (%p148) target = $region12
    $region11: #{simple_cnn_forward.7} parent=5 // pred_region
      %s152 = ssub.s32 %s9, 1
      // Predicated region
      $region13: #{simple_cnn_forward.7} parent=11 // pred_check
        %p153 = pneg %p84
      $region14: #{simple_cnn_forward.7} parent=11 // pred_check_branch
        %155 = sbr.rel (%p153) target = $region16
      $region15: #{simple_cnn_forward.7} parent=11 // pred_region
        %s156 = smul.u32 36, %s21
        %p157 = scmp.lt.s32.totalorder %s156, 35
        %s158 = scalar_select %p157, %s156, 35
        %p159 = scmp.lt.s32.totalorder %s20, 0
        %s160 = scalar_select %p159, %s20, 0
        %s161 = sadd.s32 %s160, %s158
        %s162 = smul.addr %s161, 4
        %s163 = scalar_lea.vmem %s1, %s162
        %s164 = smul.u32 36, %s21
      $region16: #{simple_cnn_forward.7} parent=11 // pred_fallthru
        _
      // Predicated region
      $region17: #{simple_cnn_forward.7} parent=11 // pred_check
        %p165 = pneg %p110
      $region18: #{simple_cnn_forward.7} parent=11 // pred_check_branch
        %167 = sbr.rel (%p165) target = $region20
      $region19: #{simple_cnn_forward.7} parent=11 // pred_region
        %p168 = scmp.lt.s32.totalorder %s20, 0
        %s169 = scalar_select %p168, %s20, 0
        %s170 = scalar_lea.vmem %s2, %s169
      $region20: #{simple_cnn_forward.7} parent=11 // pred_fallthru
        _
    $region12: #{simple_cnn_forward.7} parent=5 // pred_fallthru
      _
    %p171 = scmp.lt.s32.totalorder %s9, 2
    // Predicated region
    $region21: #{simple_cnn_forward.7} parent=5 // pred_check
      %p172 = pneg %p171
    $region22: #{simple_cnn_forward.7} parent=5 // pred_check_branch
      %174 = sbr.rel (%p172) target = $region24
    $region23: #{simple_cnn_forward.7} parent=5 // pred_region
      // Predicated region
      $region25: #{simple_cnn_forward.7} parent=23 // pred_check
        %p175 = pneg %p50
      $region26: #{simple_cnn_forward.7} parent=23 // pred_check_branch
        %177 = sbr.rel (%p175) target = $region28
      $region27: #{simple_cnn_forward.7} parent=23 // pred_region
        %s178 = smul.u32 32, %s16
        %s179 = smul.u32 3, %s18
        %p180 = scmp.lt.s32.totalorder %s178, 63
        %s181 = scalar_select %p180, %s178, 63
        %p182 = scmp.lt.s32.totalorder %s179, 2
        %s183 = scalar_select %p182, %s179, 2
        %s184 = smul.addr %s181, 3
        %s185 = sadd.s32 %s183, %s184
        %s186 = smul.addr %s185, 4
        %s187 = scalar_lea.vmem %s0, %s186
        %s188 = smul.u32 32, %s16
        %s189 = smul.u32 3, %s18
      $region28: #{simple_cnn_forward.7} parent=23 // pred_fallthru
        _
    $region24: #{simple_cnn_forward.7} parent=5 // pred_fallthru
      _
    %p190 = scmp.le.s32.totalorder 1, %s9
    %p191 = scmp.lt.s32.totalorder %s9, 3
    %p192 = pnand %p190, %p191
    %p193 = pneg %p192
    // Predicated region
    $region29: #{simple_cnn_forward.7} parent=5 // pred_check
      _
    $region30: #{simple_cnn_forward.7} parent=5 // pred_check_branch
      %195 = sbr.rel (%p192) target = $region32
    $region31: #{simple_cnn_forward.7} parent=5 // pred_region
      %s196 = ssub.s32 %s9, 1
      %s197 = smul.u32 32, %s19
      %s198 = smul.u32 3, %s21
      %p199 = scmp.lt.s32.totalorder %s197, 63
      %s200 = scalar_select %p199, %s197, 63
      %p201 = scmp.lt.s32.totalorder %s198, 2
      %s202 = scalar_select %p201, %s198, 2
      %s203 = smul.addr %s200, 3
      %s204 = sadd.s32 %s202, %s203
      %s205 = smul.addr %s204, 4
      %s206 = scalar_lea.vmem %s0, %s205
      %p207 = pneg %p56
      %p208 = pneg %p53
      %s209 = smul.u32 36, %s21
      %p210 = scmp.lt.s32.totalorder %s209, 35
      %s211 = scalar_select %p210, %s209, 35
      %p212 = scmp.lt.s32.totalorder %s20, 0
      %s213 = scalar_select %p212, %s20, 0
      %s214 = sadd.s32 %s213, %s211
      %s215 = smul.addr %s214, 4
      %s216 = scalar_lea.vmem %s1, %s215
      %p217 = pneg %p84
      %p218 = pneg %p81
      %p219 = scmp.lt.s32.totalorder %s20, 0
      %s220 = scalar_select %p219, %s20, 0
      %s221 = scalar_lea.vmem %s2, %s220
      %p222 = pneg %p110
      %p223 = pneg %p107
      %p224 = pneg %p138
      %p225 = pneg %p135
      %s226 = smul.u32 32, %s19
      %p227 = scmp.lt.s32.totalorder %s226, 63
      %s228 = scalar_select %p227, %s226, 63
      %p229 = scmp.lt.s32.totalorder %s20, 0
      %s230 = scalar_select %p229, %s20, 0
      %s231 = sadd.s32 %s230, %s228
      %s232 = smul.addr %s231, 4
      %s233 = scalar_lea.vmem %s3, %s232
      %s234 = smul.u32 32, %s19
      %s235 = smul.u32 3, %s21
      %p236 = scmp.lt.s32.totalorder %s234, 63
      %s237 = scalar_select %p236, %s234, 63
      %p238 = scmp.lt.s32.totalorder %s235, 2
      %s239 = scalar_select %p238, %s235, 2
      %s240 = smul.addr %s237, 3
      %s241 = sadd.s32 %s239, %s240
      %s242 = smul.addr %s241, 4
      %s243 = scalar_lea.vmem %s0, %s242
      %s244 = smul.u32 32, %s19
      %s245 = smul.u32 3, %s21
      %s246 = smul.u32 36, %s21
      %p247 = scmp.lt.s32.totalorder %s246, 35
      %s248 = scalar_select %p247, %s246, 35
      %p249 = scmp.lt.s32.totalorder %s20, 0
      %s250 = scalar_select %p249, %s20, 0
      %s251 = sadd.s32 %s250, %s248
      %s252 = smul.addr %s251, 4
      %s253 = scalar_lea.vmem %s1, %s252
      %s254 = smul.u32 36, %s21
      %p255 = scmp.lt.s32.totalorder %s20, 0
      %s256 = scalar_select %p255, %s20, 0
      %s257 = scalar_lea.vmem %s2, %s256
      %s258 = smul.u32 32, %s19
      %p259 = scmp.lt.s32.totalorder %s258, 63
      %s260 = scalar_select %p259, %s258, 63
      %p261 = scmp.lt.s32.totalorder %s20, 0
      %s262 = scalar_select %p261, %s20, 0
      %s263 = sadd.s32 %s262, %s260
      %s264 = smul.addr %s263, 4
      %s265 = scalar_lea.vmem %s3, %s264
      %s266 = smul.u32 32, %s19
      %p268 = scmp.eq.s32.totalorder %s21, 0
      // Predicated region
      $region33: #{simple_cnn_forward.7} parent=31 // pred_check
        %p269 = pneg %p268
      $region34: #{simple_cnn_forward.7} parent=31 // pred_check_branch
        %271 = sbr.rel (%p269) target = $region36
      $region35: #{simple_cnn_forward.7} parent=31 // pred_region
        %272 = vst [vmem:[#allocation2] sm:$0xff] 0.0
        %273 = vst [vmem:[#allocation2 + $0x8] sm:$0xff] 0.0
        %274 = vst [vmem:[#allocation2 + $0x10] sm:$0xff] 0.0
        %275 = vst [vmem:[#allocation2 + $0x18] sm:$0xff] 0.0
        %276 = vst [vmem:[#allocation2 + $0x20] sm:$0xff] 0.0
        %277 = vst [vmem:[#allocation2 + $0x28] sm:$0xff] 0.0
        %278 = vst [vmem:[#allocation2 + $0x30] sm:$0xff] 0.0
        %279 = vst [vmem:[#allocation2 + $0x38] sm:$0xff] 0.0
        %280 = vst [vmem:[#allocation2 + $0x40] sm:$0xff] 0.0
        %281 = vst [vmem:[#allocation2 + $0x48] sm:$0xff] 0.0
        %282 = vst [vmem:[#allocation2 + $0x50] sm:$0xff] 0.0
        %283 = vst [vmem:[#allocation2 + $0x58] sm:$0xff] 0.0
        %284 = vst [vmem:[#allocation2 + $0x60] sm:$0xff] 0.0
        %285 = vst [vmem:[#allocation2 + $0x68] sm:$0xff] 0.0
        %286 = vst [vmem:[#allocation2 + $0x70] sm:$0xff] 0.0
        %287 = vst [vmem:[#allocation2 + $0x78] sm:$0xff] 0.0
        %288 = vst [vmem:[#allocation2 + $0x80] sm:$0xff] 0.0
        %289 = vst [vmem:[#allocation2 + $0x88] sm:$0xff] 0.0
        %290 = vst [vmem:[#allocation2 + $0x90] sm:$0xff] 0.0
        %291 = vst [vmem:[#allocation2 + $0x98] sm:$0xff] 0.0
        %292 = vst [vmem:[#allocation2 + $0xa0] sm:$0xff] 0.0
        %293 = vst [vmem:[#allocation2 + $0xa8] sm:$0xff] 0.0
        %294 = vst [vmem:[#allocation2 + $0xb0] sm:$0xff] 0.0
        %295 = vst [vmem:[#allocation2 + $0xb8] sm:$0xff] 0.0
        %296 = vst [vmem:[#allocation2 + $0xc0] sm:$0xff] 0.0
        %297 = vst [vmem:[#allocation2 + $0xc8] sm:$0xff] 0.0
        %298 = vst [vmem:[#allocation2 + $0xd0] sm:$0xff] 0.0
        %299 = vst [vmem:[#allocation2 + $0xd8] sm:$0xff] 0.0
        %300 = vst [vmem:[#allocation2 + $0xe0] sm:$0xff] 0.0
        %301 = vst [vmem:[#allocation2 + $0xe8] sm:$0xff] 0.0
        %302 = vst [vmem:[#allocation2 + $0xf0] sm:$0xff] 0.0
        %303 = vst [vmem:[#allocation2 + $0xf8] sm:$0xff] 0.0
      $region36: #{simple_cnn_forward.7} parent=31 // pred_fallthru
        _
      %v304 = vld [vmem:[#allocation2] sm:$0xff]
      %v305 = vld [vmem:[#allocation2 + $0x8] sm:$0xff]
      %v306 = vld [vmem:[#allocation2 + $0x10] sm:$0xff]
      %v307 = vld [vmem:[#allocation2 + $0x18] sm:$0xff]
      %v308 = vld [vmem:[#allocation2 + $0x20] sm:$0xff]
      %v309 = vld [vmem:[#allocation2 + $0x28] sm:$0xff]
      %v310 = vld [vmem:[#allocation2 + $0x30] sm:$0xff]
      %v311 = vld [vmem:[#allocation2 + $0x38] sm:$0xff]
      %v312 = vld [vmem:[#allocation2 + $0x40] sm:$0xff]
      %v313 = vld [vmem:[#allocation2 + $0x48] sm:$0xff]
      %v314 = vld [vmem:[#allocation2 + $0x50] sm:$0xff]
      %v315 = vld [vmem:[#allocation2 + $0x58] sm:$0xff]
      %v316 = vld [vmem:[#allocation2 + $0x60] sm:$0xff]
      %v317 = vld [vmem:[#allocation2 + $0x68] sm:$0xff]
      %v318 = vld [vmem:[#allocation2 + $0x70] sm:$0xff]
      %v319 = vld [vmem:[#allocation2 + $0x78] sm:$0xff]
      %v320 = vld [vmem:[#allocation2 + $0x80] sm:$0xff]
      %v321 = vld [vmem:[#allocation2 + $0x88] sm:$0xff]
      %v322 = vld [vmem:[#allocation2 + $0x90] sm:$0xff]
      %v323 = vld [vmem:[#allocation2 + $0x98] sm:$0xff]
      %v324 = vld [vmem:[#allocation2 + $0xa0] sm:$0xff]
      %v325 = vld [vmem:[#allocation2 + $0xa8] sm:$0xff]
      %v326 = vld [vmem:[#allocation2 + $0xb0] sm:$0xff]
      %v327 = vld [vmem:[#allocation2 + $0xb8] sm:$0xff]
      %v328 = vld [vmem:[#allocation2 + $0xc0] sm:$0xff]
      %v329 = vld [vmem:[#allocation2 + $0xc8] sm:$0xff]
      %v330 = vld [vmem:[#allocation2 + $0xd0] sm:$0xff]
      %v331 = vld [vmem:[#allocation2 + $0xd8] sm:$0xff]
      %v332 = vld [vmem:[#allocation2 + $0xe0] sm:$0xff]
      %v333 = vld [vmem:[#allocation2 + $0xe8] sm:$0xff]
      %v334 = vld [vmem:[#allocation2 + $0xf0] sm:$0xff]
      %v335 = vld [vmem:[#allocation2 + $0xf8] sm:$0xff]
      %v336 = vld [vmem:[%s243] sm:$0xff]
      %v337 = vld [vmem:[%s243 + $0x8] sm:$0xf]
      %v338 = vld [vmem:[%s243 + $0xc] sm:$0xff]
      %v339 = vld [vmem:[%s243 + $0x14] sm:$0xf]
      %v340 = vld [vmem:[%s243 + $0x18] sm:$0xff]
      %v341 = vld [vmem:[%s243 + $0x20] sm:$0xf]
      %v342 = vld [vmem:[%s243 + $0x24] sm:$0xff]
      %v343 = vld [vmem:[%s243 + $0x2c] sm:$0xf]
      %v344 = vld [vmem:[%s243 + $0x30] sm:$0xff]
      %v345 = vld [vmem:[%s243 + $0x38] sm:$0xf]
      %v346 = vld [vmem:[%s243 + $0x3c] sm:$0xff]
      %v347 = vld [vmem:[%s243 + $0x44] sm:$0xf]
      %v348 = vld [vmem:[%s243 + $0x48] sm:$0xff]
      %v349 = vld [vmem:[%s243 + $0x50] sm:$0xf]
      %v350 = vld [vmem:[%s243 + $0x54] sm:$0xff]
      %v351 = vld [vmem:[%s243 + $0x5c] sm:$0xf]
      %v352 = vld [vmem:[%s243 + $0x60] sm:$0xff]
      %v353 = vld [vmem:[%s243 + $0x68] sm:$0xf]
      %v354 = vld [vmem:[%s243 + $0x6c] sm:$0xff]
      %v355 = vld [vmem:[%s243 + $0x74] sm:$0xf]
      %v356 = vld [vmem:[%s243 + $0x78] sm:$0xff]
      %v357 = vld [vmem:[%s243 + $0x80] sm:$0xf]
      %v358 = vld [vmem:[%s243 + $0x84] sm:$0xff]
      %v359 = vld [vmem:[%s243 + $0x8c] sm:$0xf]
      %v360 = vld [vmem:[%s243 + $0x90] sm:$0xff]
      %v361 = vld [vmem:[%s243 + $0x98] sm:$0xf]
      %v362 = vld [vmem:[%s243 + $0x9c] sm:$0xff]
      %v363 = vld [vmem:[%s243 + $0xa4] sm:$0xf]
      %v364 = vld [vmem:[%s243 + $0xa8] sm:$0xff]
      %v365 = vld [vmem:[%s243 + $0xb0] sm:$0xf]
      %v366 = vld [vmem:[%s243 + $0xb4] sm:$0xff]
      %v367 = vld [vmem:[%s243 + $0xbc] sm:$0xf]
      %v368 = vld [vmem:[%s243 + $0xc0] sm:$0xff]
      %v369 = vld [vmem:[%s243 + $0xc8] sm:$0xf]
      %v370 = vld [vmem:[%s243 + $0xcc] sm:$0xff]
      %v371 = vld [vmem:[%s243 + $0xd4] sm:$0xf]
      %v372 = vld [vmem:[%s243 + $0xd8] sm:$0xff]
      %v373 = vld [vmem:[%s243 + $0xe0] sm:$0xf]
      %v374 = vld [vmem:[%s243 + $0xe4] sm:$0xff]
      %v375 = vld [vmem:[%s243 + $0xec] sm:$0xf]
      %v376 = vld [vmem:[%s243 + $0xf0] sm:$0xff]
      %v377 = vld [vmem:[%s243 + $0xf8] sm:$0xf]
      %v378 = vld [vmem:[%s243 + $0xfc] sm:$0xff]
      %v379 = vld [vmem:[%s243 + $0x104] sm:$0xf]
      %v380 = vld [vmem:[%s243 + $0x108] sm:$0xff]
      %v381 = vld [vmem:[%s243 + $0x110] sm:$0xf]
      %v382 = vld [vmem:[%s243 + $0x114] sm:$0xff]
      %v383 = vld [vmem:[%s243 + $0x11c] sm:$0xf]
      %v384 = vld [vmem:[%s243 + $0x120] sm:$0xff]
      %v385 = vld [vmem:[%s243 + $0x128] sm:$0xf]
      %v386 = vld [vmem:[%s243 + $0x12c] sm:$0xff]
      %v387 = vld [vmem:[%s243 + $0x134] sm:$0xf]
      %v388 = vld [vmem:[%s243 + $0x138] sm:$0xff]
      %v389 = vld [vmem:[%s243 + $0x140] sm:$0xf]
      %v390 = vld [vmem:[%s243 + $0x144] sm:$0xff]
      %v391 = vld [vmem:[%s243 + $0x14c] sm:$0xf]
      %v392 = vld [vmem:[%s243 + $0x150] sm:$0xff]
      %v393 = vld [vmem:[%s243 + $0x158] sm:$0xf]
      %v394 = vld [vmem:[%s243 + $0x15c] sm:$0xff]
      %v395 = vld [vmem:[%s243 + $0x164] sm:$0xf]
      %v396 = vld [vmem:[%s243 + $0x168] sm:$0xff]
      %v397 = vld [vmem:[%s243 + $0x170] sm:$0xf]
      %v398 = vld [vmem:[%s243 + $0x174] sm:$0xff]
      %v399 = vld [vmem:[%s243 + $0x17c] sm:$0xf]
      %v400 = vld [vmem:[%s253] sm:$0xf]
      %v401 = vld [vmem:[%s253 + $0x4] sm:$0xf]
      %v402 = vld [vmem:[%s253 + $0x8] sm:$0xf]
      %v403 = vld [vmem:[%s253 + $0xc] sm:$0xf]
      %v404 = vld [vmem:[%s253 + $0x10] sm:$0xf]
      %v405 = vld [vmem:[%s253 + $0x14] sm:$0xf]
      %v406 = vld [vmem:[%s253 + $0x18] sm:$0xf]
      %v407 = vld [vmem:[%s253 + $0x1c] sm:$0xf]
      %v408 = vld [vmem:[%s253 + $0x20] sm:$0xf]
      %v409 = vld [vmem:[%s253 + $0x24] sm:$0xf]
      %v410 = vld [vmem:[%s253 + $0x28] sm:$0xf]
      %v411 = vld [vmem:[%s253 + $0x2c] sm:$0xf]
      %v412 = vld [vmem:[%s253 + $0x30] sm:$0xf]
      %v413 = vld [vmem:[%s253 + $0x34] sm:$0xf]
      %v414 = vld [vmem:[%s253 + $0x38] sm:$0xf]
      %v415 = vld [vmem:[%s253 + $0x3c] sm:$0xf]
      %v416 = vld [vmem:[%s253 + $0x40] sm:$0xf]
      %v417 = vld [vmem:[%s253 + $0x44] sm:$0xf]
      %v418 = vld [vmem:[%s253 + $0x48] sm:$0xf]
      %v419 = vld [vmem:[%s253 + $0x4c] sm:$0xf]
      %v420 = vld [vmem:[%s253 + $0x50] sm:$0xf]
      %v421 = vld [vmem:[%s253 + $0x54] sm:$0xf]
      %v422 = vld [vmem:[%s253 + $0x58] sm:$0xf]
      %v423 = vld [vmem:[%s253 + $0x5c] sm:$0xf]
      %v424 = vld [vmem:[%s253 + $0x60] sm:$0xf]
      %v425 = vld [vmem:[%s253 + $0x64] sm:$0xf]
      %v426 = vld [vmem:[%s253 + $0x68] sm:$0xf]
      %v427 = vld [vmem:[%s253 + $0x6c] sm:$0xf]
      %v428 = vld [vmem:[%s253 + $0x70] sm:$0xf]
      %v429 = vld [vmem:[%s253 + $0x74] sm:$0xf]
      %v430 = vld [vmem:[%s253 + $0x78] sm:$0xf]
      %v431 = vld [vmem:[%s253 + $0x7c] sm:$0xf]
      %v432 = vld [vmem:[%s253 + $0x80] sm:$0xf]
      %v433 = vld [vmem:[%s253 + $0x84] sm:$0xf]
      %v434 = vld [vmem:[%s253 + $0x88] sm:$0xf]
      %v435 = vld [vmem:[%s253 + $0x8c] sm:$0xf]
      %v500 = vunpack.c.l.b16 %v336
      %v501 = vunpack.c.h.b16 %v336
      %v502 = vunpack.c.l.b16 %v337
      %v503 = vunpack.c.l.b16 %v338
      %v504 = vunpack.c.h.b16 %v338
      %v505 = vunpack.c.l.b16 %v339
      %v506 = vunpack.c.l.b16 %v340
      %v507 = vunpack.c.h.b16 %v340
      %v508 = vunpack.c.l.b16 %v341
      %v509 = vunpack.c.l.b16 %v342
      %v510 = vunpack.c.h.b16 %v342
      %v511 = vunpack.c.l.b16 %v343
      %v512 = vunpack.c.l.b16 %v344
      %v513 = vunpack.c.h.b16 %v344
      %v514 = vunpack.c.l.b16 %v345
      %v515 = vunpack.c.l.b16 %v346
      %v516 = vunpack.c.h.b16 %v346
      %v517 = vunpack.c.l.b16 %v347
      %v518 = vunpack.c.l.b16 %v348
      %v519 = vunpack.c.h.b16 %v348
      %v520 = vunpack.c.l.b16 %v349
      %v521 = vunpack.c.l.b16 %v350
      %v522 = vunpack.c.h.b16 %v350
      %v523 = vunpack.c.l.b16 %v351
      %v524 = vunpack.c.l.b16 %v352
      %v525 = vunpack.c.h.b16 %v352
      %v526 = vunpack.c.l.b16 %v353
      %v527 = vunpack.c.l.b16 %v354
      %v528 = vunpack.c.h.b16 %v354
      %v529 = vunpack.c.l.b16 %v355
      %v530 = vunpack.c.l.b16 %v356
      %v531 = vunpack.c.h.b16 %v356
      %v532 = vunpack.c.l.b16 %v357
      %v533 = vunpack.c.l.b16 %v358
      %v534 = vunpack.c.h.b16 %v358
      %v535 = vunpack.c.l.b16 %v359
      %v536 = vunpack.c.l.b16 %v360
      %v537 = vunpack.c.h.b16 %v360
      %v538 = vunpack.c.l.b16 %v361
      %v539 = vunpack.c.l.b16 %v362
      %v540 = vunpack.c.h.b16 %v362
      %v541 = vunpack.c.l.b16 %v363
      %v542 = vunpack.c.l.b16 %v364
      %v543 = vunpack.c.h.b16 %v364
      %v544 = vunpack.c.l.b16 %v365
      %v545 = vunpack.c.l.b16 %v366
      %v546 = vunpack.c.h.b16 %v366
      %v547 = vunpack.c.l.b16 %v367
      %v548 = vunpack.c.l.b16 %v368
      %v549 = vunpack.c.h.b16 %v368
      %v550 = vunpack.c.l.b16 %v369
      %v551 = vunpack.c.l.b16 %v370
      %v552 = vunpack.c.h.b16 %v370
      %v553 = vunpack.c.l.b16 %v371
      %v554 = vunpack.c.l.b16 %v372
      %v555 = vunpack.c.h.b16 %v372
      %v556 = vunpack.c.l.b16 %v373
      %v557 = vunpack.c.l.b16 %v374
      %v558 = vunpack.c.h.b16 %v374
      %v559 = vunpack.c.l.b16 %v375
      %v560 = vunpack.c.l.b16 %v376
      %v561 = vunpack.c.h.b16 %v376
      %v562 = vunpack.c.l.b16 %v377
      %v563 = vunpack.c.l.b16 %v378
      %v564 = vunpack.c.h.b16 %v378
      %v565 = vunpack.c.l.b16 %v379
      %v566 = vunpack.c.l.b16 %v380
      %v567 = vunpack.c.h.b16 %v380
      %v568 = vunpack.c.l.b16 %v381
      %v569 = vunpack.c.l.b16 %v382
      %v570 = vunpack.c.h.b16 %v382
      %v571 = vunpack.c.l.b16 %v383
      %v572 = vunpack.c.l.b16 %v384
      %v573 = vunpack.c.h.b16 %v384
      %v574 = vunpack.c.l.b16 %v385
      %v575 = vunpack.c.l.b16 %v386
      %v576 = vunpack.c.h.b16 %v386
      %v577 = vunpack.c.l.b16 %v387
      %v578 = vunpack.c.l.b16 %v388
      %v579 = vunpack.c.h.b16 %v388
      %v580 = vunpack.c.l.b16 %v389
      %v581 = vunpack.c.l.b16 %v390
      %v582 = vunpack.c.h.b16 %v390
      %v583 = vunpack.c.l.b16 %v391
      %v584 = vunpack.c.l.b16 %v392
      %v585 = vunpack.c.h.b16 %v392
      %v586 = vunpack.c.l.b16 %v393
      %v587 = vunpack.c.l.b16 %v394
      %v588 = vunpack.c.h.b16 %v394
      %v589 = vunpack.c.l.b16 %v395
      %v590 = vunpack.c.l.b16 %v396
      %v591 = vunpack.c.h.b16 %v396
      %v592 = vunpack.c.l.b16 %v397
      %v593 = vunpack.c.l.b16 %v398
      %v594 = vunpack.c.h.b16 %v398
      %v595 = vunpack.c.l.b16 %v399
      %v596 = vpack.c.b16 %v503, %v500
      %v597 = vpack.c.b16 %v504, %v501
      %v598 = vpack.c.b16 %v505, %v502
      %v599 = vpack.c.b16 %v509, %v506
      %v600 = vpack.c.b16 %v510, %v507
      %v601 = vpack.c.b16 %v511, %v508
      %v602 = vpack.c.b16 %v515, %v512
      %v603 = vpack.c.b16 %v516, %v513
      %v604 = vpack.c.b16 %v517, %v514
      %v605 = vpack.c.b16 %v521, %v518
      %v606 = vpack.c.b16 %v522, %v519
      %v607 = vpack.c.b16 %v523, %v520
      %v608 = vpack.c.b16 %v527, %v524
      %v609 = vpack.c.b16 %v528, %v525
      %v610 = vpack.c.b16 %v529, %v526
      %v611 = vpack.c.b16 %v533, %v530
      %v612 = vpack.c.b16 %v534, %v531
      %v613 = vpack.c.b16 %v535, %v532
      %v614 = vpack.c.b16 %v539, %v536
      %v615 = vpack.c.b16 %v540, %v537
      %v616 = vpack.c.b16 %v541, %v538
      %v617 = vpack.c.b16 %v545, %v542
      %v618 = vpack.c.b16 %v546, %v543
      %v619 = vpack.c.b16 %v547, %v544
      %v620 = vpack.c.b16 %v551, %v548
      %v621 = vpack.c.b16 %v552, %v549
      %v622 = vpack.c.b16 %v553, %v550
      %v623 = vpack.c.b16 %v557, %v554
      %v624 = vpack.c.b16 %v558, %v555
      %v625 = vpack.c.b16 %v559, %v556
      %v626 = vpack.c.b16 %v563, %v560
      %v627 = vpack.c.b16 %v564, %v561
      %v628 = vpack.c.b16 %v565, %v562
      %v629 = vpack.c.b16 %v569, %v566
      %v630 = vpack.c.b16 %v570, %v567
      %v631 = vpack.c.b16 %v571, %v568
      %v632 = vpack.c.b16 %v575, %v572
      %v633 = vpack.c.b16 %v576, %v573
      %v634 = vpack.c.b16 %v577, %v574
      %v635 = vpack.c.b16 %v581, %v578
      %v636 = vpack.c.b16 %v582, %v579
      %v637 = vpack.c.b16 %v583, %v580
      %v638 = vpack.c.b16 %v587, %v584
      %v639 = vpack.c.b16 %v588, %v585
      %v640 = vpack.c.b16 %v589, %v586
      %v641 = vpack.c.b16 %v593, %v590
      %v642 = vpack.c.b16 %v594, %v591
      %v643 = vpack.c.b16 %v595, %v592
      %v712 = vunpack.c.l.b16 %v400
      %v713 = vunpack.c.l.b16 %v401
      %v714 = vunpack.c.l.b16 %v402
      %v715 = vunpack.c.l.b16 %v403
      %v716 = vunpack.c.l.b16 %v404
      %v717 = vunpack.c.l.b16 %v405
      %v718 = vunpack.c.l.b16 %v406
      %v719 = vunpack.c.l.b16 %v407
      %v720 = vunpack.c.l.b16 %v408
      %v721 = vunpack.c.l.b16 %v409
      %v722 = vunpack.c.l.b16 %v410
      %v723 = vunpack.c.l.b16 %v411
      %v724 = vunpack.c.l.b16 %v412
      %v725 = vunpack.c.l.b16 %v413
      %v726 = vunpack.c.l.b16 %v414
      %v727 = vunpack.c.l.b16 %v415
      %v728 = vunpack.c.l.b16 %v416
      %v729 = vunpack.c.l.b16 %v417
      %v730 = vunpack.c.l.b16 %v418
      %v731 = vunpack.c.l.b16 %v419
      %v732 = vunpack.c.l.b16 %v420
      %v733 = vunpack.c.l.b16 %v421
      %v734 = vunpack.c.l.b16 %v422
      %v735 = vunpack.c.l.b16 %v423
      %v736 = vunpack.c.l.b16 %v424
      %v737 = vunpack.c.l.b16 %v425
      %v738 = vunpack.c.l.b16 %v426
      %v739 = vunpack.c.l.b16 %v427
      %v740 = vunpack.c.l.b16 %v428
      %v741 = vunpack.c.l.b16 %v429
      %v742 = vunpack.c.l.b16 %v430
      %v743 = vunpack.c.l.b16 %v431
      %v744 = vunpack.c.l.b16 %v432
      %v745 = vunpack.c.l.b16 %v433
      %v746 = vunpack.c.l.b16 %v434
      %v747 = vunpack.c.l.b16 %v435
      %v748 = vpack.c.b16 %v713, %v712
      %v749 = vpack.c.b16 %v715, %v714
      %v750 = vpack.c.b16 %v717, %v716
      %v751 = vpack.c.b16 %v719, %v718
      %v752 = vpack.c.b16 %v721, %v720
      %v753 = vpack.c.b16 %v723, %v722
      %v754 = vpack.c.b16 %v725, %v724
      %v755 = vpack.c.b16 %v727, %v726
      %v756 = vpack.c.b16 %v729, %v728
      %v757 = vpack.c.b16 %v731, %v730
      %v758 = vpack.c.b16 %v733, %v732
      %v759 = vpack.c.b16 %v735, %v734
      %v760 = vpack.c.b16 %v737, %v736
      %v761 = vpack.c.b16 %v739, %v738
      %v762 = vpack.c.b16 %v741, %v740
      %v763 = vpack.c.b16 %v743, %v742
      %v764 = vpack.c.b16 %v745, %v744
      %v765 = vpack.c.b16 %v747, %v746
      %vm784 = vcmask 261120
      %v786 = vsel %vm784, %v598, 0
      %v789 = vsel %vm784, %v601, 0
      %v792 = vsel %vm784, %v604, 0
      %v795 = vsel %vm784, %v607, 0
      %v798 = vsel %vm784, %v610, 0
      %v801 = vsel %vm784, %v613, 0
      %v804 = vsel %vm784, %v616, 0
      %v807 = vsel %vm784, %v619, 0
      %v810 = vsel %vm784, %v622, 0
      %v813 = vsel %vm784, %v625, 0
      %v816 = vsel %vm784, %v628, 0
      %v819 = vsel %vm784, %v631, 0
      %v822 = vsel %vm784, %v634, 0
      %v825 = vsel %vm784, %v637, 0
      %v828 = vsel %vm784, %v640, 0
      %v831 = vsel %vm784, %v643, 0
      %833 = vmatprep.subr.bf16.mxu0 0
      %834 = vmatpush1.bf16.msra.mxu0 %v748
      %835 = vmatprep.subr.bf16.mxu0 0
      %836 = vmatpush1.bf16.msra.mxu0 %v749
      %837 = vmatprep.subr.bf16.mxu0 0
      %838 = vmatpush1.bf16.msra.mxu0 %v750
      %839 = vmatprep.subr.bf16.mxu0 0
      %840 = vmatpush1.bf16.msra.mxu0 %v751
      %841 = vmatprep.subr.bf16.mxu0 0
      %842 = vmatpush1.bf16.msra.mxu0 %v752
      %843 = vmatprep.subr.bf16.mxu0 0
      %844 = vmatpush1.bf16.msra.mxu0 %v753
      %845 = vmatprep.subr.bf16.mxu0 0
      %846 = vmatpush1.bf16.msra.mxu0 %v754
      %847 = vmatprep.subr.bf16.mxu0 0
      %848 = vmatpush1.bf16.msra.mxu0 %v755
      %849 = vmatprep.subr.bf16.mxu0 0
      %850 = vmatpush1.bf16.msra.mxu0 %v756
      %851 = vmatprep.subr.bf16.mxu0 0
      %852 = vmatpush1.bf16.msra.mxu0 %v757
      %853 = vmatprep.subr.bf16.mxu0 0
      %854 = vmatpush1.bf16.msra.mxu0 %v758
      %855 = vmatprep.subr.bf16.mxu0 0
      %856 = vmatpush1.bf16.msra.mxu0 %v759
      %857 = vmatprep.subr.bf16.mxu0 0
      %858 = vmatpush1.bf16.msra.mxu0 %v760
      %859 = vmatprep.subr.bf16.mxu0 0
      %860 = vmatpush1.bf16.msra.mxu0 %v761
      %861 = vmatprep.subr.bf16.mxu0 0
      %862 = vmatpush1.bf16.msra.mxu0 %v762
      %863 = vmatprep.subr.bf16.mxu0 0
      %864 = vmatpush1.bf16.msra.mxu0 %v763
      %865 = vmatprep.mubr.bf16.mxu0 %v597
      %866 = vmatmul.mubr.bf16.gmra.mrb[0].mxu0 %v596
      %v867 = vpop.f32.mrb[0].mxu0
      %v868 = vadd.f32 0.0, %v867
      %v869 = vpop.f32.mrb[0].mxu0
      %v870 = vpop.f32.mrb[0].mxu0
      %v871 = vadd.f32 0.0, %v870
      %v872 = vpop.f32.mrb[0].mxu0
      %873 = vmatprep.mubr.bf16.mxu0 %v600
      %874 = vmatmul.mubr.bf16.gmra.mrb[0].mxu0 %v599
      %v875 = vpop.f32.mrb[0].mxu0
      %v876 = vadd.f32 0.0, %v875
      %v877 = vpop.f32.mrb[0].mxu0
      %v878 = vpop.f32.mrb[0].mxu0
      %v879 = vadd.f32 0.0, %v878
      %v880 = vpop.f32.mrb[0].mxu0
      %881 = vmatprep.mubr.bf16.mxu0 %v603
      %882 = vmatmul.mubr.bf16.gmra.mrb[0].mxu0 %v602
      %v883 = vpop.f32.mrb[0].mxu0
      %v884 = vadd.f32 0.0, %v883
      %v885 = vpop.f32.mrb[0].mxu0
      %v886 = vpop.f32.mrb[0].mxu0
      %v887 = vadd.f32 0.0, %v886
      %v888 = vpop.f32.mrb[0].mxu0
      %889 = vmatprep.mubr.bf16.mxu0 %v606
      %890 = vmatmul.mubr.bf16.gmra.mrb[0].mxu0 %v605
      %v891 = vpop.f32.mrb[0].mxu0
      %v892 = vadd.f32 0.0, %v891
      %v893 = vpop.f32.mrb[0].mxu0
      %v894 = vpop.f32.mrb[0].mxu0
      %v895 = vadd.f32 0.0, %v894
      %v896 = vpop.f32.mrb[0].mxu0
      %897 = vmatprep.mubr.bf16.mxu0 %v609
      %898 = vmatmul.mubr.bf16.gmra.mrb[0].mxu0 %v608
      %v899 = vpop.f32.mrb[0].mxu0
      %v900 = vadd.f32 0.0, %v899
      %v901 = vpop.f32.mrb[0].mxu0
      %v902 = vpop.f32.mrb[0].mxu0
      %v903 = vadd.f32 0.0, %v902
      %v904 = vpop.f32.mrb[0].mxu0
      %905 = vmatprep.mubr.bf16.mxu0 %v612
      %906 = vmatmul.mubr.bf16.gmra.mrb[0].mxu0 %v611
      %v907 = vpop.f32.mrb[0].mxu0
      %v908 = vadd.f32 0.0, %v907
      %v909 = vpop.f32.mrb[0].mxu0
      %v910 = vpop.f32.mrb[0].mxu0
      %v911 = vadd.f32 0.0, %v910
      %v912 = vpop.f32.mrb[0].mxu0
      %913 = vmatprep.mubr.bf16.mxu0 %v615
      %914 = vmatmul.mubr.bf16.gmra.mrb[0].mxu0 %v614
      %v915 = vpop.f32.mrb[0].mxu0
      %v916 = vadd.f32 0.0, %v915
      %v917 = vpop.f32.mrb[0].mxu0
      %v918 = vpop.f32.mrb[0].mxu0
      %v919 = vadd.f32 0.0, %v918
      %v920 = vpop.f32.mrb[0].mxu0
      %921 = vmatprep.mubr.bf16.mxu0 %v618
      %922 = vmatmul.mubr.bf16.gmra.mrb[0].mxu0 %v617
      %v923 = vpop.f32.mrb[0].mxu0
      %v924 = vadd.f32 0.0, %v923
      %v925 = vpop.f32.mrb[0].mxu0
      %v926 = vpop.f32.mrb[0].mxu0
      %v927 = vadd.f32 0.0, %v926
      %v928 = vpop.f32.mrb[0].mxu0
      %929 = vmatprep.mubr.bf16.mxu0 %v621
      %930 = vmatmul.mubr.bf16.gmra.mrb[0].mxu0 %v620
      %v931 = vpop.f32.mrb[0].mxu0
      %v932 = vadd.f32 0.0, %v931
      %v933 = vpop.f32.mrb[0].mxu0
      %v934 = vpop.f32.mrb[0].mxu0
      %v935 = vadd.f32 0.0, %v934
      %v936 = vpop.f32.mrb[0].mxu0
      %937 = vmatprep.mubr.bf16.mxu0 %v624
      %938 = vmatmul.mubr.bf16.gmra.mrb[0].mxu0 %v623
      %v939 = vpop.f32.mrb[0].mxu0
      %v940 = vadd.f32 0.0, %v939
      %v941 = vpop.f32.mrb[0].mxu0
      %v942 = vpop.f32.mrb[0].mxu0
      %v943 = vadd.f32 0.0, %v942
      %v944 = vpop.f32.mrb[0].mxu0
      %945 = vmatprep.mubr.bf16.mxu0 %v627
      %946 = vmatmul.mubr.bf16.gmra.mrb[0].mxu0 %v626
      %v947 = vpop.f32.mrb[0].mxu0
      %v948 = vadd.f32 0.0, %v947
      %v949 = vpop.f32.mrb[0].mxu0
      %v950 = vpop.f32.mrb[0].mxu0
      %v951 = vadd.f32 0.0, %v950
      %v952 = vpop.f32.mrb[0].mxu0
      %953 = vmatprep.mubr.bf16.mxu0 %v630
      %954 = vmatmul.mubr.bf16.gmra.mrb[0].mxu0 %v629
      %v955 = vpop.f32.mrb[0].mxu0
      %v956 = vadd.f32 0.0, %v955
      %v957 = vpop.f32.mrb[0].mxu0
      %v958 = vpop.f32.mrb[0].mxu0
      %v959 = vadd.f32 0.0, %v958
      %v960 = vpop.f32.mrb[0].mxu0
      %961 = vmatprep.mubr.bf16.mxu0 %v633
      %962 = vmatmul.mubr.bf16.gmra.mrb[0].mxu0 %v632
      %v963 = vpop.f32.mrb[0].mxu0
      %v964 = vadd.f32 0.0, %v963
      %v965 = vpop.f32.mrb[0].mxu0
      %v966 = vpop.f32.mrb[0].mxu0
      %v967 = vadd.f32 0.0, %v966
      %v968 = vpop.f32.mrb[0].mxu0
      %969 = vmatprep.mubr.bf16.mxu0 %v636
      %970 = vmatmul.mubr.bf16.gmra.mrb[0].mxu0 %v635
      %v971 = vpop.f32.mrb[0].mxu0
      %v972 = vadd.f32 0.0, %v971
      %v973 = vpop.f32.mrb[0].mxu0
      %v974 = vpop.f32.mrb[0].mxu0
      %v975 = vadd.f32 0.0, %v974
      %v976 = vpop.f32.mrb[0].mxu0
      %977 = vmatprep.mubr.bf16.mxu0 %v639
      %978 = vmatmul.mubr.bf16.gmra.mrb[0].mxu0 %v638
      %v979 = vpop.f32.mrb[0].mxu0
      %v980 = vadd.f32 0.0, %v979
      %v981 = vpop.f32.mrb[0].mxu0
      %v982 = vpop.f32.mrb[0].mxu0
      %v983 = vadd.f32 0.0, %v982
      %v984 = vpop.f32.mrb[0].mxu0
      %985 = vmatprep.mubr.bf16.mxu0 %v642
      %986 = vmatmul.mubr.bf16.gmra.mrb[0].mxu0 %v641
      %v987 = vpop.f32.mrb[0].mxu0
      %v988 = vadd.f32 0.0, %v987
      %v989 = vpop.f32.mrb[0].mxu0
      %v990 = vpop.f32.mrb[0].mxu0
      %v991 = vadd.f32 0.0, %v990
      %v992 = vpop.f32.mrb[0].mxu0
      %993 = vdwg.mxu0
      %994 = vmatprep.subr.bf16.mxu0 0
      %995 = vmatpush1.bf16.msra.mxu0 %v764
      %996 = vmatprep.subr.bf16.mxu0 0
      %997 = vmatpush1.bf16.msra.mxu0 %v765
      %998 = vmatprep.subr.bf16.mxu0 0
      %999 = vmatpush1.bf16.msra.mxu0 0
      %1000 = vmatprep.subr.bf16.mxu0 0
      %1001 = vmatpush1.bf16.msra.mxu0 0
      %1002 = vmatprep.subr.bf16.mxu0 0
      %1003 = vmatpush1.bf16.msra.mxu0 0
      %1004 = vmatprep.subr.bf16.mxu0 0
      %1005 = vmatpush1.bf16.msra.mxu0 0
      %1006 = vmatprep.subr.bf16.mxu0 0
      %1007 = vmatpush1.bf16.msra.mxu0 0
      %1008 = vmatprep.subr.bf16.mxu0 0
      %1009 = vmatpush1.bf16.msra.mxu0 0
      %1010 = vmatprep.subr.bf16.mxu0 0
      %1011 = vmatpush1.bf16.msra.mxu0 0
      %1012 = vmatprep.subr.bf16.mxu0 0
      %1013 = vmatpush1.bf16.msra.mxu0 0
      %1014 = vmatprep.subr.bf16.mxu0 0
      %1015 = vmatpush1.bf16.msra.mxu0 0
      %1016 = vmatprep.subr.bf16.mxu0 0
      %1017 = vmatpush1.bf16.msra.mxu0 0
      %1018 = vmatprep.subr.bf16.mxu0 0
      %1019 = vmatpush1.bf16.msra.mxu0 0
      %1020 = vmatprep.subr.bf16.mxu0 0
      %1021 = vmatpush1.bf16.msra.mxu0 0
      %1022 = vmatprep.subr.bf16.mxu0 0
      %1023 = vmatpush1.bf16.msra.mxu0 0
      %1024 = vmatprep.subr.bf16.mxu0 0
      %1025 = vmatpush1.bf16.msra.mxu0 0
      %1026 = vmatprep.mubr.bf16.mxu0 0
      %1027 = vmatmul.mubr.bf16.gmra.mrb[0].mxu0 %v786
      %v1028 = vpop.f32.mrb[0].mxu0
      %v1029 = vadd.f32 %v868, %v1028
      %v1030 = vpop.f32.mrb[0].mxu0
      %v1031 = vpop.f32.mrb[0].mxu0
      %v1032 = vadd.f32 %v871, %v1031
      %v1033 = vpop.f32.mrb[0].mxu0
      %1034 = vmatprep.mubr.bf16.mxu0 0
      %1035 = vmatmul.mubr.bf16.gmra.mrb[0].mxu0 %v789
      %v1036 = vpop.f32.mrb[0].mxu0
      %v1037 = vadd.f32 %v876, %v1036
      %v1038 = vpop.f32.mrb[0].mxu0
      %v1039 = vpop.f32.mrb[0].mxu0
      %v1040 = vadd.f32 %v879, %v1039
      %v1041 = vpop.f32.mrb[0].mxu0
      %1042 = vmatprep.mubr.bf16.mxu0 0
      %1043 = vmatmul.mubr.bf16.gmra.mrb[0].mxu0 %v792
      %v1044 = vpop.f32.mrb[0].mxu0
      %v1045 = vadd.f32 %v884, %v1044
      %v1046 = vpop.f32.mrb[0].mxu0
      %v1047 = vpop.f32.mrb[0].mxu0
      %v1048 = vadd.f32 %v887, %v1047
      %v1049 = vpop.f32.mrb[0].mxu0
      %1050 = vmatprep.mubr.bf16.mxu0 0
      %1051 = vmatmul.mubr.bf16.gmra.mrb[0].mxu0 %v795
      %v1052 = vpop.f32.mrb[0].mxu0
      %v1053 = vadd.f32 %v892, %v1052
      %v1054 = vpop.f32.mrb[0].mxu0
      %v1055 = vpop.f32.mrb[0].mxu0
      %v1056 = vadd.f32 %v895, %v1055
      %v1057 = vpop.f32.mrb[0].mxu0
      %1058 = vmatprep.mubr.bf16.mxu0 0
      %1059 = vmatmul.mubr.bf16.gmra.mrb[0].mxu0 %v798
      %v1060 = vpop.f32.mrb[0].mxu0
      %v1061 = vadd.f32 %v900, %v1060
      %v1062 = vpop.f32.mrb[0].mxu0
      %v1063 = vpop.f32.mrb[0].mxu0
      %v1064 = vadd.f32 %v903, %v1063
      %v1065 = vpop.f32.mrb[0].mxu0
      %1066 = vmatprep.mubr.bf16.mxu0 0
      %1067 = vmatmul.mubr.bf16.gmra.mrb[0].mxu0 %v801
      %v1068 = vpop.f32.mrb[0].mxu0
      %v1069 = vadd.f32 %v908, %v1068
      %v1070 = vpop.f32.mrb[0].mxu0
      %v1071 = vpop.f32.mrb[0].mxu0
      %v1072 = vadd.f32 %v911, %v1071
      %v1073 = vpop.f32.mrb[0].mxu0
      %1074 = vmatprep.mubr.bf16.mxu0 0
      %1075 = vmatmul.mubr.bf16.gmra.mrb[0].mxu0 %v804
      %v1076 = vpop.f32.mrb[0].mxu0
      %v1077 = vadd.f32 %v916, %v1076
      %v1078 = vpop.f32.mrb[0].mxu0
      %v1079 = vpop.f32.mrb[0].mxu0
      %v1080 = vadd.f32 %v919, %v1079
      %v1081 = vpop.f32.mrb[0].mxu0
      %1082 = vmatprep.mubr.bf16.mxu0 0
      %1083 = vmatmul.mubr.bf16.gmra.mrb[0].mxu0 %v807
      %v1084 = vpop.f32.mrb[0].mxu0
      %v1085 = vadd.f32 %v924, %v1084
      %v1086 = vpop.f32.mrb[0].mxu0
      %v1087 = vpop.f32.mrb[0].mxu0
      %v1088 = vadd.f32 %v927, %v1087
      %v1089 = vpop.f32.mrb[0].mxu0
      %1090 = vmatprep.mubr.bf16.mxu0 0
      %1091 = vmatmul.mubr.bf16.gmra.mrb[0].mxu0 %v810
      %v1092 = vpop.f32.mrb[0].mxu0
      %v1093 = vadd.f32 %v932, %v1092
      %v1094 = vpop.f32.mrb[0].mxu0
      %v1095 = vpop.f32.mrb[0].mxu0
      %v1096 = vadd.f32 %v935, %v1095
      %v1097 = vpop.f32.mrb[0].mxu0
      %1098 = vmatprep.mubr.bf16.mxu0 0
      %1099 = vmatmul.mubr.bf16.gmra.mrb[0].mxu0 %v813
      %v1100 = vpop.f32.mrb[0].mxu0
      %v1101 = vadd.f32 %v940, %v1100
      %v1102 = vpop.f32.mrb[0].mxu0
      %v1103 = vpop.f32.mrb[0].mxu0
      %v1104 = vadd.f32 %v943, %v1103
      %v1105 = vpop.f32.mrb[0].mxu0
      %1106 = vmatprep.mubr.bf16.mxu0 0
      %1107 = vmatmul.mubr.bf16.gmra.mrb[0].mxu0 %v816
      %v1108 = vpop.f32.mrb[0].mxu0
      %v1109 = vadd.f32 %v948, %v1108
      %v1110 = vpop.f32.mrb[0].mxu0
      %v1111 = vpop.f32.mrb[0].mxu0
      %v1112 = vadd.f32 %v951, %v1111
      %v1113 = vpop.f32.mrb[0].mxu0
      %1114 = vmatprep.mubr.bf16.mxu0 0
      %1115 = vmatmul.mubr.bf16.gmra.mrb[0].mxu0 %v819
      %v1116 = vpop.f32.mrb[0].mxu0
      %v1117 = vadd.f32 %v956, %v1116
      %v1118 = vpop.f32.mrb[0].mxu0
      %v1119 = vpop.f32.mrb[0].mxu0
      %v1120 = vadd.f32 %v959, %v1119
      %v1121 = vpop.f32.mrb[0].mxu0
      %1122 = vmatprep.mubr.bf16.mxu0 0
      %1123 = vmatmul.mubr.bf16.gmra.mrb[0].mxu0 %v822
      %v1124 = vpop.f32.mrb[0].mxu0
      %v1125 = vadd.f32 %v964, %v1124
      %v1126 = vpop.f32.mrb[0].mxu0
      %v1127 = vpop.f32.mrb[0].mxu0
      %v1128 = vadd.f32 %v967, %v1127
      %v1129 = vpop.f32.mrb[0].mxu0
      %1130 = vmatprep.mubr.bf16.mxu0 0
      %1131 = vmatmul.mubr.bf16.gmra.mrb[0].mxu0 %v825
      %v1132 = vpop.f32.mrb[0].mxu0
      %v1133 = vadd.f32 %v972, %v1132
      %v1134 = vpop.f32.mrb[0].mxu0
      %v1135 = vpop.f32.mrb[0].mxu0
      %v1136 = vadd.f32 %v975, %v1135
      %v1137 = vpop.f32.mrb[0].mxu0
      %1138 = vmatprep.mubr.bf16.mxu0 0
      %1139 = vmatmul.mubr.bf16.gmra.mrb[0].mxu0 %v828
      %v1140 = vpop.f32.mrb[0].mxu0
      %v1141 = vadd.f32 %v980, %v1140
      %v1142 = vpop.f32.mrb[0].mxu0
      %v1143 = vpop.f32.mrb[0].mxu0
      %v1144 = vadd.f32 %v983, %v1143
      %v1145 = vpop.f32.mrb[0].mxu0
      %1146 = vmatprep.mubr.bf16.mxu0 0
      %1147 = vmatmul.mubr.bf16.gmra.mrb[0].mxu0 %v831
      %v1148 = vpop.f32.mrb[0].mxu0
      %v1149 = vadd.f32 %v988, %v1148
      %v1150 = vpop.f32.mrb[0].mxu0
      %v1151 = vpop.f32.mrb[0].mxu0
      %v1152 = vadd.f32 %v991, %v1151
      %v1153 = vpop.f32.mrb[0].mxu0
      %1154 = vdwg.mxu0
      %v1155 = vadd.f32 %v304, %v1029
      %v1156 = vadd.f32 %v305, %v1032
      %v1157 = vadd.f32 %v306, %v1037
      %v1158 = vadd.f32 %v307, %v1040
      %v1159 = vadd.f32 %v308, %v1045
      %v1160 = vadd.f32 %v309, %v1048
      %v1161 = vadd.f32 %v310, %v1053
      %v1162 = vadd.f32 %v311, %v1056
      %v1163 = vadd.f32 %v312, %v1061
      %v1164 = vadd.f32 %v313, %v1064
      %v1165 = vadd.f32 %v314, %v1069
      %v1166 = vadd.f32 %v315, %v1072
      %v1167 = vadd.f32 %v316, %v1077
      %v1168 = vadd.f32 %v317, %v1080
      %v1169 = vadd.f32 %v318, %v1085
      %v1170 = vadd.f32 %v319, %v1088
      %v1171 = vadd.f32 %v320, %v1093
      %v1172 = vadd.f32 %v321, %v1096
      %v1173 = vadd.f32 %v322, %v1101
      %v1174 = vadd.f32 %v323, %v1104
      %v1175 = vadd.f32 %v324, %v1109
      %v1176 = vadd.f32 %v325, %v1112
      %v1177 = vadd.f32 %v326, %v1117
      %v1178 = vadd.f32 %v327, %v1120
      %v1179 = vadd.f32 %v328, %v1125
      %v1180 = vadd.f32 %v329, %v1128
      %v1181 = vadd.f32 %v330, %v1133
      %v1182 = vadd.f32 %v331, %v1136
      %v1183 = vadd.f32 %v332, %v1141
      %v1184 = vadd.f32 %v333, %v1144
      %v1185 = vadd.f32 %v334, %v1149
      %v1186 = vadd.f32 %v335, %v1152
      %1187 = vst [vmem:[#allocation2] sm:$0xff] %v1155
      %1188 = vst [vmem:[#allocation2 + $0x8] sm:$0xff] %v1156
      %1189 = vst [vmem:[#allocation2 + $0x10] sm:$0xff] %v1157
      %1190 = vst [vmem:[#allocation2 + $0x18] sm:$0xff] %v1158
      %1191 = vst [vmem:[#allocation2 + $0x20] sm:$0xff] %v1159
      %1192 = vst [vmem:[#allocation2 + $0x28] sm:$0xff] %v1160
      %1193 = vst [vmem:[#allocation2 + $0x30] sm:$0xff] %v1161
      %1194 = vst [vmem:[#allocation2 + $0x38] sm:$0xff] %v1162
      %1195 = vst [vmem:[#allocation2 + $0x40] sm:$0xff] %v1163
      %1196 = vst [vmem:[#allocation2 + $0x48] sm:$0xff] %v1164
      %1197 = vst [vmem:[#allocation2 + $0x50] sm:$0xff] %v1165
      %1198 = vst [vmem:[#allocation2 + $0x58] sm:$0xff] %v1166
      %1199 = vst [vmem:[#allocation2 + $0x60] sm:$0xff] %v1167
      %1200 = vst [vmem:[#allocation2 + $0x68] sm:$0xff] %v1168
      %1201 = vst [vmem:[#allocation2 + $0x70] sm:$0xff] %v1169
      %1202 = vst [vmem:[#allocation2 + $0x78] sm:$0xff] %v1170
      %1203 = vst [vmem:[#allocation2 + $0x80] sm:$0xff] %v1171
      %1204 = vst [vmem:[#allocation2 + $0x88] sm:$0xff] %v1172
      %1205 = vst [vmem:[#allocation2 + $0x90] sm:$0xff] %v1173
      %1206 = vst [vmem:[#allocation2 + $0x98] sm:$0xff] %v1174
      %1207 = vst [vmem:[#allocation2 + $0xa0] sm:$0xff] %v1175
      %1208 = vst [vmem:[#allocation2 + $0xa8] sm:$0xff] %v1176
      %1209 = vst [vmem:[#allocation2 + $0xb0] sm:$0xff] %v1177
      %1210 = vst [vmem:[#allocation2 + $0xb8] sm:$0xff] %v1178
      %1211 = vst [vmem:[#allocation2 + $0xc0] sm:$0xff] %v1179
      %1212 = vst [vmem:[#allocation2 + $0xc8] sm:$0xff] %v1180
      %1213 = vst [vmem:[#allocation2 + $0xd0] sm:$0xff] %v1181
      %1214 = vst [vmem:[#allocation2 + $0xd8] sm:$0xff] %v1182
      %1215 = vst [vmem:[#allocation2 + $0xe0] sm:$0xff] %v1183
      %1216 = vst [vmem:[#allocation2 + $0xe8] sm:$0xff] %v1184
      %1217 = vst [vmem:[#allocation2 + $0xf0] sm:$0xff] %v1185
      %1218 = vst [vmem:[#allocation2 + $0xf8] sm:$0xff] %v1186
      // Predicated region
      $region37: #{simple_cnn_forward.7} parent=31 // pred_check
        %p1219 = pneg %p268
      $region38: #{simple_cnn_forward.7} parent=31 // pred_check_branch
        %1221 = sbr.rel (%p1219) target = $region40
      $region39: #{simple_cnn_forward.7} parent=31 // pred_region
        %v1222 = vld [vmem:[#allocation2] sm:$0xff]
        %v1223 = vld [vmem:[#allocation2 + $0x8] sm:$0xff]
        %v1224 = vld [vmem:[#allocation2 + $0x10] sm:$0xff]
        %v1225 = vld [vmem:[#allocation2 + $0x18] sm:$0xff]
        %v1226 = vld [vmem:[#allocation2 + $0x20] sm:$0xff]
        %v1227 = vld [vmem:[#allocation2 + $0x28] sm:$0xff]
        %v1228 = vld [vmem:[#allocation2 + $0x30] sm:$0xff]
        %v1229 = vld [vmem:[#allocation2 + $0x38] sm:$0xff]
        %v1230 = vld [vmem:[#allocation2 + $0x40] sm:$0xff]
        %v1231 = vld [vmem:[#allocation2 + $0x48] sm:$0xff]
        %v1232 = vld [vmem:[#allocation2 + $0x50] sm:$0xff]
        %v1233 = vld [vmem:[#allocation2 + $0x58] sm:$0xff]
        %v1234 = vld [vmem:[#allocation2 + $0x60] sm:$0xff]
        %v1235 = vld [vmem:[#allocation2 + $0x68] sm:$0xff]
        %v1236 = vld [vmem:[#allocation2 + $0x70] sm:$0xff]
        %v1237 = vld [vmem:[#allocation2 + $0x78] sm:$0xff]
        %v1238 = vld [vmem:[#allocation2 + $0x80] sm:$0xff]
        %v1239 = vld [vmem:[#allocation2 + $0x88] sm:$0xff]
        %v1240 = vld [vmem:[#allocation2 + $0x90] sm:$0xff]
        %v1241 = vld [vmem:[#allocation2 + $0x98] sm:$0xff]
        %v1242 = vld [vmem:[#allocation2 + $0xa0] sm:$0xff]
        %v1243 = vld [vmem:[#allocation2 + $0xa8] sm:$0xff]
        %v1244 = vld [vmem:[#allocation2 + $0xb0] sm:$0xff]
        %v1245 = vld [vmem:[#allocation2 + $0xb8] sm:$0xff]
        %v1246 = vld [vmem:[#allocation2 + $0xc0] sm:$0xff]
        %v1247 = vld [vmem:[#allocation2 + $0xc8] sm:$0xff]
        %v1248 = vld [vmem:[#allocation2 + $0xd0] sm:$0xff]
        %v1249 = vld [vmem:[#allocation2 + $0xd8] sm:$0xff]
        %v1250 = vld [vmem:[#allocation2 + $0xe0] sm:$0xff]
        %v1251 = vld [vmem:[#allocation2 + $0xe8] sm:$0xff]
        %v1252 = vld [vmem:[#allocation2 + $0xf0] sm:$0xff]
        %v1253 = vld [vmem:[#allocation2 + $0xf8] sm:$0xff]
        %v1254 = vld [vmem:[%s257] sm:$0x1]
        %v1256 = vlaneseq
        %v1257 = vshrl.u32 %v1256, 7
        %v1258 = vsub.s32 0, %v1257
        %v1259 = vrot.slane %v1254, %v1258
        %v1261 = vadd.f32 %v1222, %v1259
        %v1262 = vadd.f32 %v1223, %v1259
        %v1263 = vadd.f32 %v1224, %v1259
        %v1264 = vadd.f32 %v1225, %v1259
        %v1265 = vadd.f32 %v1226, %v1259
        %v1266 = vadd.f32 %v1227, %v1259
        %v1267 = vadd.f32 %v1228, %v1259
        %v1268 = vadd.f32 %v1229, %v1259
        %v1269 = vadd.f32 %v1230, %v1259
        %v1270 = vadd.f32 %v1231, %v1259
        %v1271 = vadd.f32 %v1232, %v1259
        %v1272 = vadd.f32 %v1233, %v1259
        %v1273 = vadd.f32 %v1234, %v1259
        %v1274 = vadd.f32 %v1235, %v1259
        %v1275 = vadd.f32 %v1236, %v1259
        %v1276 = vadd.f32 %v1237, %v1259
        %v1277 = vadd.f32 %v1238, %v1259
        %v1278 = vadd.f32 %v1239, %v1259
        %v1279 = vadd.f32 %v1240, %v1259
        %v1280 = vadd.f32 %v1241, %v1259
        %v1281 = vadd.f32 %v1242, %v1259
        %v1282 = vadd.f32 %v1243, %v1259
        %v1283 = vadd.f32 %v1244, %v1259
        %v1284 = vadd.f32 %v1245, %v1259
        %v1285 = vadd.f32 %v1246, %v1259
        %v1286 = vadd.f32 %v1247, %v1259
        %v1287 = vadd.f32 %v1248, %v1259
        %v1288 = vadd.f32 %v1249, %v1259
        %v1289 = vadd.f32 %v1250, %v1259
        %v1290 = vadd.f32 %v1251, %v1259
        %v1291 = vadd.f32 %v1252, %v1259
        %v1292 = vadd.f32 %v1253, %v1259
        %v1293 = vmax.f32 %v1261, 0.0
        %v1294 = vmax.f32 %v1262, 0.0
        %v1295 = vmax.f32 %v1263, 0.0
        %v1296 = vmax.f32 %v1264, 0.0
        %v1297 = vmax.f32 %v1265, 0.0
        %v1298 = vmax.f32 %v1266, 0.0
        %v1299 = vmax.f32 %v1267, 0.0
        %v1300 = vmax.f32 %v1268, 0.0
        %v1301 = vmax.f32 %v1269, 0.0
        %v1302 = vmax.f32 %v1270, 0.0
        %v1303 = vmax.f32 %v1271, 0.0
        %v1304 = vmax.f32 %v1272, 0.0
        %v1305 = vmax.f32 %v1273, 0.0
        %v1306 = vmax.f32 %v1274, 0.0
        %v1307 = vmax.f32 %v1275, 0.0
        %v1308 = vmax.f32 %v1276, 0.0
        %v1309 = vmax.f32 %v1277, 0.0
        %v1310 = vmax.f32 %v1278, 0.0
        %v1311 = vmax.f32 %v1279, 0.0
        %v1312 = vmax.f32 %v1280, 0.0
        %v1313 = vmax.f32 %v1281, 0.0
        %v1314 = vmax.f32 %v1282, 0.0
        %v1315 = vmax.f32 %v1283, 0.0
        %v1316 = vmax.f32 %v1284, 0.0
        %v1317 = vmax.f32 %v1285, 0.0
        %v1318 = vmax.f32 %v1286, 0.0
        %v1319 = vmax.f32 %v1287, 0.0
        %v1320 = vmax.f32 %v1288, 0.0
        %v1321 = vmax.f32 %v1289, 0.0
        %v1322 = vmax.f32 %v1290, 0.0
        %v1323 = vmax.f32 %v1291, 0.0
        %v1324 = vmax.f32 %v1292, 0.0
        %v1325 = vpack.c.bf16 %v1294, %v1293
        %v1326 = vpack.c.bf16 %v1296, %v1295
        %v1327 = vpack.c.bf16 %v1298, %v1297
        %v1328 = vpack.c.bf16 %v1300, %v1299
        %v1329 = vpack.c.bf16 %v1302, %v1301
        %v1330 = vpack.c.bf16 %v1304, %v1303
        %v1331 = vpack.c.bf16 %v1306, %v1305
        %v1332 = vpack.c.bf16 %v1308, %v1307
        %v1333 = vpack.c.bf16 %v1310, %v1309
        %v1334 = vpack.c.bf16 %v1312, %v1311
        %v1335 = vpack.c.bf16 %v1314, %v1313
        %v1336 = vpack.c.bf16 %v1316, %v1315
        %v1337 = vpack.c.bf16 %v1318, %v1317
        %v1338 = vpack.c.bf16 %v1320, %v1319
        %v1339 = vpack.c.bf16 %v1322, %v1321
        %v1340 = vpack.c.bf16 %v1324, %v1323
        %v1357 = vunpack.c.l.b16 %v1325
        %v1358 = vunpack.c.h.b16 %v1325
        %v1359 = vunpack.c.l.b16 %v1326
        %v1360 = vunpack.c.h.b16 %v1326
        %v1361 = vunpack.c.l.b16 %v1327
        %v1362 = vunpack.c.h.b16 %v1327
        %v1363 = vunpack.c.l.b16 %v1328
        %v1364 = vunpack.c.h.b16 %v1328
        %v1365 = vunpack.c.l.b16 %v1329
        %v1366 = vunpack.c.h.b16 %v1329
        %v1367 = vunpack.c.l.b16 %v1330
        %v1368 = vunpack.c.h.b16 %v1330
        %v1369 = vunpack.c.l.b16 %v1331
        %v1370 = vunpack.c.h.b16 %v1331
        %v1371 = vunpack.c.l.b16 %v1332
        %v1372 = vunpack.c.h.b16 %v1332
        %v1373 = vunpack.c.l.b16 %v1333
        %v1374 = vunpack.c.h.b16 %v1333
        %v1375 = vunpack.c.l.b16 %v1334
        %v1376 = vunpack.c.h.b16 %v1334
        %v1377 = vunpack.c.l.b16 %v1335
        %v1378 = vunpack.c.h.b16 %v1335
        %v1379 = vunpack.c.l.b16 %v1336
        %v1380 = vunpack.c.h.b16 %v1336
        %v1381 = vunpack.c.l.b16 %v1337
        %v1382 = vunpack.c.h.b16 %v1337
        %v1383 = vunpack.c.l.b16 %v1338
        %v1384 = vunpack.c.h.b16 %v1338
        %v1385 = vunpack.c.l.b16 %v1339
        %v1386 = vunpack.c.h.b16 %v1339
        %v1387 = vunpack.c.l.b16 %v1340
        %v1388 = vunpack.c.h.b16 %v1340
        %v1389 = vpack.c.b16 %v1357, %v1357
        %v1390 = vpack.c.b16 %v1358, %v1358
        %v1391 = vpack.c.b16 %v1359, %v1359
        %v1392 = vpack.c.b16 %v1360, %v1360
        %v1393 = vpack.c.b16 %v1361, %v1361
        %v1394 = vpack.c.b16 %v1362, %v1362
        %v1395 = vpack.c.b16 %v1363, %v1363
        %v1396 = vpack.c.b16 %v1364, %v1364
        %v1397 = vpack.c.b16 %v1365, %v1365
        %v1398 = vpack.c.b16 %v1366, %v1366
        %v1399 = vpack.c.b16 %v1367, %v1367
        %v1400 = vpack.c.b16 %v1368, %v1368
        %v1401 = vpack.c.b16 %v1369, %v1369
        %v1402 = vpack.c.b16 %v1370, %v1370
        %v1403 = vpack.c.b16 %v1371, %v1371
        %v1404 = vpack.c.b16 %v1372, %v1372
        %v1405 = vpack.c.b16 %v1373, %v1373
        %v1406 = vpack.c.b16 %v1374, %v1374
        %v1407 = vpack.c.b16 %v1375, %v1375
        %v1408 = vpack.c.b16 %v1376, %v1376
        %v1409 = vpack.c.b16 %v1377, %v1377
        %v1410 = vpack.c.b16 %v1378, %v1378
        %v1411 = vpack.c.b16 %v1379, %v1379
        %v1412 = vpack.c.b16 %v1380, %v1380
        %v1413 = vpack.c.b16 %v1381, %v1381
        %v1414 = vpack.c.b16 %v1382, %v1382
        %v1415 = vpack.c.b16 %v1383, %v1383
        %v1416 = vpack.c.b16 %v1384, %v1384
        %v1417 = vpack.c.b16 %v1385, %v1385
        %v1418 = vpack.c.b16 %v1386, %v1386
        %v1419 = vpack.c.b16 %v1387, %v1387
        %v1420 = vpack.c.b16 %v1388, %v1388
        %1453 = vst [vmem:[%s265] sm:$0xf] %v1389
        %1454 = vst [vmem:[%s265 + $0x4] sm:$0xf] %v1390
        %1455 = vst [vmem:[%s265 + $0x8] sm:$0xf] %v1391
        %1456 = vst [vmem:[%s265 + $0xc] sm:$0xf] %v1392
        %1457 = vst [vmem:[%s265 + $0x10] sm:$0xf] %v1393
        %1458 = vst [vmem:[%s265 + $0x14] sm:$0xf] %v1394
        %1459 = vst [vmem:[%s265 + $0x18] sm:$0xf] %v1395
        %1460 = vst [vmem:[%s265 + $0x1c] sm:$0xf] %v1396
        %1461 = vst [vmem:[%s265 + $0x20] sm:$0xf] %v1397
        %1462 = vst [vmem:[%s265 + $0x24] sm:$0xf] %v1398
        %1463 = vst [vmem:[%s265 + $0x28] sm:$0xf] %v1399
        %1464 = vst [vmem:[%s265 + $0x2c] sm:$0xf] %v1400
        %1465 = vst [vmem:[%s265 + $0x30] sm:$0xf] %v1401
        %1466 = vst [vmem:[%s265 + $0x34] sm:$0xf] %v1402
        %1467 = vst [vmem:[%s265 + $0x38] sm:$0xf] %v1403
        %1468 = vst [vmem:[%s265 + $0x3c] sm:$0xf] %v1404
        %1469 = vst [vmem:[%s265 + $0x40] sm:$0xf] %v1405
        %1470 = vst [vmem:[%s265 + $0x44] sm:$0xf] %v1406
        %1471 = vst [vmem:[%s265 + $0x48] sm:$0xf] %v1407
        %1472 = vst [vmem:[%s265 + $0x4c] sm:$0xf] %v1408
        %1473 = vst [vmem:[%s265 + $0x50] sm:$0xf] %v1409
        %1474 = vst [vmem:[%s265 + $0x54] sm:$0xf] %v1410
        %1475 = vst [vmem:[%s265 + $0x58] sm:$0xf] %v1411
        %1476 = vst [vmem:[%s265 + $0x5c] sm:$0xf] %v1412
        %1477 = vst [vmem:[%s265 + $0x60] sm:$0xf] %v1413
        %1478 = vst [vmem:[%s265 + $0x64] sm:$0xf] %v1414
        %1479 = vst [vmem:[%s265 + $0x68] sm:$0xf] %v1415
        %1480 = vst [vmem:[%s265 + $0x6c] sm:$0xf] %v1416
        %1481 = vst [vmem:[%s265 + $0x70] sm:$0xf] %v1417
        %1482 = vst [vmem:[%s265 + $0x74] sm:$0xf] %v1418
        %1483 = vst [vmem:[%s265 + $0x78] sm:$0xf] %v1419
        %1484 = vst [vmem:[%s265 + $0x7c] sm:$0xf] %v1420
      $region40: #{simple_cnn_forward.7} parent=31 // pred_fallthru
        _
      %s1485 = smul.u32 32, %s19
      %p1486 = scmp.lt.s32.totalorder %s1485, 63
      %s1487 = scalar_select %p1486, %s1485, 63
      %p1488 = scmp.lt.s32.totalorder %s20, 0
      %s1489 = scalar_select %p1488, %s20, 0
      %s1490 = sadd.s32 %s1489, %s1487
      %s1491 = smul.addr %s1490, 4
      %s1492 = scalar_lea.vmem %s3, %s1491
      // Predicated region
      $region41: #{simple_cnn_forward.7} parent=31 // pred_check
        %p1493 = pneg %p135
      $region42: #{simple_cnn_forward.7} parent=31 // pred_check_branch
        %1495 = sbr.rel (%p1493) target = $region44
      $region43: #{simple_cnn_forward.7} parent=31 // pred_region
        %s1496 = smul.u32 32, %s19
      $region44: #{simple_cnn_forward.7} parent=31 // pred_fallthru
        _
    $region32: #{simple_cnn_forward.7} parent=5 // pred_fallthru
      _
    %p1497 = scmp.le.s32.totalorder 2, %s9
    // Predicated region
    $region45: #{simple_cnn_forward.7} parent=5 // pred_check
      %p1498 = pneg %p1497
    $region46: #{simple_cnn_forward.7} parent=5 // pred_check_branch
      %1500 = sbr.rel (%p1498) target = $region48
    $region47: #{simple_cnn_forward.7} parent=5 // pred_region
      %s1501 = ssub.s32 %s9, 2
      // Predicated region
      $region49: #{simple_cnn_forward.7} parent=47 // pred_check
        %p1502 = pneg %p141
      $region50: #{simple_cnn_forward.7} parent=47 // pred_check_branch
        %1504 = sbr.rel (%p1502) target = $region52
      $region51: #{simple_cnn_forward.7} parent=47 // pred_region
        %s1505 = smul.u32 32, %s22
        %p1506 = scmp.lt.s32.totalorder %s1505, 63
        %s1507 = scalar_select %p1506, %s1505, 63
        %p1508 = scmp.lt.s32.totalorder %s23, 0
        %s1509 = scalar_select %p1508, %s23, 0
        %s1510 = sadd.s32 %s1509, %s1507
        %s1511 = smul.addr %s1510, 4
        %s1512 = scalar_lea.vmem %s3, %s1511
      $region52: #{simple_cnn_forward.7} parent=47 // pred_fallthru
        _
    $region48: #{simple_cnn_forward.7} parent=5 // pred_fallthru
      _
  $region6: #{simple_cnn_forward.7} parent=0 // loop_footer
    %s13 = sadd.s32 1, %s9
  $region7: #{simple_cnn_forward.7} parent=0 // loop_footer_branch
    %8 = sbr.rel target = $region3
  $region8: #{simple_cnn_forward.7} parent=0 // loop_exit
    _

// kernel: simple_cnn_forward.8
$region0: #{simple_cnn_forward.8}
  #allocation0 [shape = 'u32[]', space=smem, size = 0x4, offset = 0x4, fixed_abs, tag = 'smem constant byte address 0x4 - core index']
  #allocation1 [shape = 'u32[144,128]{1,0:T(1,128)}', space=vmem, size = 0x12000, scoped, tag = 'internal scratch']
  %s0 = inlined_call_operand.vmem [shape: bf16[16,2,8,256], index: 0, kind: input, shape index: {}]
  %s1 = inlined_call_operand.vmem [shape: bf16[16,8,64], index: 1, kind: output, shape index: {}]
  %s2 = sld [smem:[#allocation0]]
  $region14: #{simple_cnn_forward.8} parent=0
    _
  %s4 = ssub.s32 1, %s2
  %s5 = scalar_select 0, %s4, %s2
  // Predicated region
  $region2: #{simple_cnn_forward.8} parent=0 // pred_check
    _
  $region3: #{simple_cnn_forward.8} parent=0 // pred_check_branch
    %7 = sbr.rel (0) target = $region5
  $region4: #{simple_cnn_forward.8} parent=0 // pred_region
    _
  $region5: #{simple_cnn_forward.8} parent=0 // pred_fallthru
    _
  %v8 = vld [vmem:[%s0] sm:$0xff]
  %v9 = vld [vmem:[%s0 + $0x10] sm:$0xff]
  %v10 = vld [vmem:[%s0 + $0x20] sm:$0xff]
  %v11 = vld [vmem:[%s0 + $0x30] sm:$0xff]
  %v12 = vld [vmem:[%s0 + $0x40] sm:$0xff]
  %v13 = vld [vmem:[%s0 + $0x50] sm:$0xff]
  %v14 = vld [vmem:[%s0 + $0x60] sm:$0xff]
  %v15 = vld [vmem:[%s0 + $0x70] sm:$0xff]
  %v16 = vld [vmem:[%s0 + $0x80] sm:$0xff]
  %v17 = vld [vmem:[%s0 + $0x90] sm:$0xff]
  %v18 = vld [vmem:[%s0 + $0xa0] sm:$0xff]
  %v19 = vld [vmem:[%s0 + $0xb0] sm:$0xff]
  %v20 = vld [vmem:[%s0 + $0xc0] sm:$0xff]
  %v21 = vld [vmem:[%s0 + $0xd0] sm:$0xff]
  %v22 = vld [vmem:[%s0 + $0xe0] sm:$0xff]
  %v23 = vld [vmem:[%s0 + $0xf0] sm:$0xff]
  %s24 = scalar_lea.vmem %s0, 8
  %v25 = vld [vmem:[%s24] sm:$0xff]
  %v26 = vld [vmem:[%s24 + $0x10] sm:$0xff]
  %v27 = vld [vmem:[%s24 + $0x20] sm:$0xff]
  %v28 = vld [vmem:[%s24 + $0x30] sm:$0xff]
  %v29 = vld [vmem:[%s24 + $0x40] sm:$0xff]
  %v30 = vld [vmem:[%s24 + $0x50] sm:$0xff]
  %v31 = vld [vmem:[%s24 + $0x60] sm:$0xff]
  %v32 = vld [vmem:[%s24 + $0x70] sm:$0xff]
  %v33 = vld [vmem:[%s24 + $0x80] sm:$0xff]
  %v34 = vld [vmem:[%s24 + $0x90] sm:$0xff]
  %v35 = vld [vmem:[%s24 + $0xa0] sm:$0xff]
  %v36 = vld [vmem:[%s24 + $0xb0] sm:$0xff]
  %v37 = vld [vmem:[%s24 + $0xc0] sm:$0xff]
  %v38 = vld [vmem:[%s24 + $0xd0] sm:$0xff]
  %v39 = vld [vmem:[%s24 + $0xe0] sm:$0xff]
  %v40 = vld [vmem:[%s24 + $0xf0] sm:$0xff]
  %v41 = vmax.bf16 %v8, %v25
  %v42 = vmax.bf16 %v9, %v26
  %v43 = vmax.bf16 %v10, %v27
  %v44 = vmax.bf16 %v11, %v28
  %v45 = vmax.bf16 %v12, %v29
  %v46 = vmax.bf16 %v13, %v30
  %v47 = vmax.bf16 %v14, %v31
  %v48 = vmax.bf16 %v15, %v32
  %v49 = vmax.bf16 %v16, %v33
  %v50 = vmax.bf16 %v17, %v34
  %v51 = vmax.bf16 %v18, %v35
  %v52 = vmax.bf16 %v19, %v36
  %v53 = vmax.bf16 %v20, %v37
  %v54 = vmax.bf16 %v21, %v38
  %v55 = vmax.bf16 %v22, %v39
  %v56 = vmax.bf16 %v23, %v40
  %v73 = vrot.slane %v41, 4
  %v74 = vrot.slane %v42, 4
  %v75 = vrot.slane %v43, 4
  %v76 = vrot.slane %v44, 4
  %v77 = vrot.slane %v45, 4
  %v78 = vrot.slane %v46, 4
  %v79 = vrot.slane %v47, 4
  %v80 = vrot.slane %v48, 4
  %v81 = vrot.slane %v49, 4
  %v82 = vrot.slane %v50, 4
  %v83 = vrot.slane %v51, 4
  %v84 = vrot.slane %v52, 4
  %v85 = vrot.slane %v53, 4
  %v86 = vrot.slane %v54, 4
  %v87 = vrot.slane %v55, 4
  %v88 = vrot.slane %v56, 4
  %v105 = vmax.bf16 %v41, %v73
  %v106 = vmax.bf16 %v42, %v74
  %v107 = vmax.bf16 %v43, %v75
  %v108 = vmax.bf16 %v44, %v76
  %v109 = vmax.bf16 %v45, %v77
  %v110 = vmax.bf16 %v46, %v78
  %v111 = vmax.bf16 %v47, %v79
  %v112 = vmax.bf16 %v48, %v80
  %v113 = vmax.bf16 %v49, %v81
  %v114 = vmax.bf16 %v50, %v82
  %v115 = vmax.bf16 %v51, %v83
  %v116 = vmax.bf16 %v52, %v84
  %v117 = vmax.bf16 %v53, %v85
  %v118 = vmax.bf16 %v54, %v86
  %v119 = vmax.bf16 %v55, %v87
  %v120 = vmax.bf16 %v56, %v88
  %vm121 = vcmask 519168
  %122 = vst.msk [vmem:[%s1] sm:$0xf] %vm121, %v105
  %123 = vst.msk [vmem:[%s1 + $0x4] sm:$0xf] %vm121, %v106
  %124 = vst.msk [vmem:[%s1 + $0x8] sm:$0xf] %vm121, %v107
  %125 = vst.msk [vmem:[%s1 + $0xc] sm:$0xf] %vm121, %v108
  %126 = vst.msk [vmem:[%s1 + $0x10] sm:$0xf] %vm121, %v109
  %127 = vst.msk [vmem:[%s1 + $0x14] sm:$0xf] %vm121, %v110
  %128 = vst.msk [vmem:[%s1 + $0x18] sm:$0xf] %vm121, %v111
  %129 = vst.msk [vmem:[%s1 + $0x1c] sm:$0xf] %vm121, %v112
  %130 = vst.msk [vmem:[%s1 + $0x20] sm:$0xf] %vm121, %v113
  %131 = vst.msk [vmem:[%s1 + $0x24] sm:$0xf] %vm121, %v114
  %132 = vst.msk [vmem:[%s1 + $0x28] sm:$0xf] %vm121, %v115
  %133 = vst.msk [vmem:[%s1 + $0x2c] sm:$0xf] %vm121, %v116
  %134 = vst.msk [vmem:[%s1 + $0x30] sm:$0xf] %vm121, %v117
  %135 = vst.msk [vmem:[%s1 + $0x34] sm:$0xf] %vm121, %v118
  %136 = vst.msk [vmem:[%s1 + $0x38] sm:$0xf] %vm121, %v119
  %137 = vst.msk [vmem:[%s1 + $0x3c] sm:$0xf] %vm121, %v120
  // Predicated region
  $region6: #{simple_cnn_forward.8} parent=0 // pred_check
    _
  $region7: #{simple_cnn_forward.8} parent=0 // pred_check_branch
    %139 = sbr.rel (0) target = $region9
  $region8: #{simple_cnn_forward.8} parent=0 // pred_region
    _
  $region9: #{simple_cnn_forward.8} parent=0 // pred_fallthru
    _
  // Predicated region
  $region10: #{simple_cnn_forward.8} parent=0 // pred_check
    _
  $region11: #{simple_cnn_forward.8} parent=0 // pred_check_branch
    %141 = sbr.rel (0) target = $region13
  $region12: #{simple_cnn_forward.8} parent=0 // pred_region
    _
  $region13: #{simple_cnn_forward.8} parent=0 // pred_fallthru
    _

// kernel: simple_cnn_forward.9
$region0: #{simple_cnn_forward.9}
  #allocation0 [shape = 'u32[]', space=smem, size = 0x4, offset = 0x4, fixed_abs, tag = 'smem constant byte address 0x4 - core index']
  #allocation1 [shape = 'u32[144,128]{1,0:T(1,128)}', space=vmem, size = 0x12000, scoped, tag = 'internal scratch']
  #allocation2 [shape = 'f32[2,512]{1,0:T(2,128)}', space=vmem, size = 0x1000, scoped, tag = 'scratch operand']
  %s0 = inlined_call_operand.vmem [shape: bf16[2,4096], index: 0, kind: input, shape index: {}]
  %s1 = inlined_call_operand.vmem [shape: bf16[4096,512], index: 1, kind: input, shape index: {}]
  %s2 = inlined_call_operand.vmem [shape: f32[1,512], index: 2, kind: input, shape index: {}]
  %s3 = inlined_call_operand.vmem [shape: bf16[512,128], index: 3, kind: input, shape index: {}]
  %s4 = inlined_call_operand.vmem [shape: f32[1,128], index: 4, kind: input, shape index: {}]
  %s5 = inlined_call_operand.hbm [shape: f32[2,128], index: 5, kind: output, shape index: {}]
  %s6 = sld [smem:[#allocation0]]
  $region61: #{simple_cnn_forward.9} parent=0
    _
  %s8 = ssub.s32 1, %s6
  %s9 = scalar_select 0, %s8, %s6
  $region1: #{simple_cnn_forward.9} parent=0
    #allocation3 [shape = 'u8[1024]{0}', space=vmem, size = 0x400, scoped, tag = 'output window, operand 0, single buffered']
    #allocation4 [shape = 's32[2]{0}', space=sflag, size = 0x8, scoped, tag = 'scoped memory for simple_cnn_forward.9']
    %10 = vsyncpa [#allocation4], 0
    loop: start=0, step=1, limit=4
    $region2: #{simple_cnn_forward.9} parent=1 // loop_pre_header
      _
    $region3: #{simple_cnn_forward.9} parent=1 // loop_header
      %s12 = sphi 0, %s16
      %p13 = scmp.ge.s32.totalorder %s12, 4
      %s22 = sphi 0, %s24
      %s25 = sphi 0, %s22
      %s26 = sphi 0, %s25
      %s42 = sphi 0, %s26
      %s48 = sphi 0, %s50
      %s51 = sphi 0, %s48
      %s52 = sphi 0, %s51
      %s68 = sphi 0, %s52
      %s72 = sphi 0, %s72
      %s74 = sphi 0, %s72
      %s75 = sphi 0, %s74
      %s89 = sphi 0, %s75
      %s93 = sphi 0, %s93
      %s95 = sphi 0, %s93
      %s96 = sphi 0, %s95
      %s110 = sphi 0, %s96
      %s114 = sphi 0, %s114
      %s116 = sphi 0, %s114
      %s117 = sphi 0, %s116
      %s131 = sphi 0, %s117
      %s135 = sphi 0, %s135
      %s137 = sphi 0, %s135
      %s138 = sphi 0, %s137
      %s152 = sphi 0, %s138
    $region4: #{simple_cnn_forward.9} parent=1 // loop_header_branch
      %15 = sbr.rel (%p13) target = $region8
    $region5: #{simple_cnn_forward.9} parent=1 // loop_body
      %s17 = ssub.s32 %s12, 1
      %s18 = ssub.s32 %s12, 2
      %s19 = sadd.s32 %s12, 1
      %s20 = ssub.s32 %s12, %s19
      %p21 = scmp.eq.s32.totalorder %s20, 0
      %s23 = sadd.s32 %s22, 1
      %s24 = scalar_select %p21, %s22, %s23
      %p27 = pneg %p21
      %p28 = scmp.eq.s32.totalorder %s12, 1
      %p29 = por %p27, %p28
      %p30 = scmp.ne.s32.totalorder %s22, %s25
      %p31 = scmp.eq.s32.totalorder %s12, 0
      %p32 = por %p30, %p31
      %p33 = scmp.ne.s32.totalorder %s22, %s25
      %p34 = scmp.eq.s32.totalorder %s17, 1
      %p35 = por %p33, %p34
      %p36 = scmp.ne.s32.totalorder %s25, %s26
      %p37 = scmp.eq.s32.totalorder %s17, 0
      %p38 = por %p36, %p37
      %p39 = scmp.ne.s32.totalorder %s25, %s26
      %p40 = scmp.eq.s32.totalorder %s18, 1
      %p41 = por %p39, %p40
      %p43 = scmp.ne.s32.totalorder %s26, %s42
      %p44 = scmp.eq.s32.totalorder %s18, 0
      %p45 = por %p43, %p44
      %s46 = ssub.s32 %s12, %s19
      %p47 = scmp.eq.s32.totalorder %s46, 0
      %s49 = sadd.s32 %s48, 1
      %s50 = scalar_select %p47, %s48, %s49
      %p53 = pneg %p47
      %p54 = scmp.eq.s32.totalorder %s12, 1
      %p55 = por %p53, %p54
      %p56 = scmp.ne.s32.totalorder %s48, %s51
      %p57 = scmp.eq.s32.totalorder %s12, 0
      %p58 = por %p56, %p57
      %p59 = scmp.ne.s32.totalorder %s48, %s51
      %p60 = scmp.eq.s32.totalorder %s17, 1
      %p61 = por %p59, %p60
      %p62 = scmp.ne.s32.totalorder %s51, %s52
      %p63 = scmp.eq.s32.totalorder %s17, 0
      %p64 = por %p62, %p63
      %p65 = scmp.ne.s32.totalorder %s51, %s52
      %p66 = scmp.eq.s32.totalorder %s18, 1
      %p67 = por %p65, %p66
      %p69 = scmp.ne.s32.totalorder %s52, %s68
      %p70 = scmp.eq.s32.totalorder %s18, 0
      %p71 = por %p69, %p70
      %s73 = sadd.s32 %s72, 1
      %p76 = scmp.eq.s32.totalorder %s12, 1
      %p77 = scmp.ne.s32.totalorder %s72, %s74
      %p78 = scmp.eq.s32.totalorder %s12, 0
      %p79 = por %p77, %p78
      %p80 = scmp.ne.s32.totalorder %s72, %s74
      %p81 = scmp.eq.s32.totalorder %s17, 1
      %p82 = por %p80, %p81
      %p83 = scmp.ne.s32.totalorder %s74, %s75
      %p84 = scmp.eq.s32.totalorder %s17, 0
      %p85 = por %p83, %p84
      %p86 = scmp.ne.s32.totalorder %s74, %s75
      %p87 = scmp.eq.s32.totalorder %s18, 1
      %p88 = por %p86, %p87
      %p90 = scmp.ne.s32.totalorder %s75, %s89
      %p91 = scmp.eq.s32.totalorder %s18, 0
      %p92 = por %p90, %p91
      %s94 = sadd.s32 %s93, 1
      %p97 = scmp.eq.s32.totalorder %s12, 1
      %p98 = scmp.ne.s32.totalorder %s93, %s95
      %p99 = scmp.eq.s32.totalorder %s12, 0
      %p100 = por %p98, %p99
      %p101 = scmp.ne.s32.totalorder %s93, %s95
      %p102 = scmp.eq.s32.totalorder %s17, 1
      %p103 = por %p101, %p102
      %p104 = scmp.ne.s32.totalorder %s95, %s96
      %p105 = scmp.eq.s32.totalorder %s17, 0
      %p106 = por %p104, %p105
      %p107 = scmp.ne.s32.totalorder %s95, %s96
      %p108 = scmp.eq.s32.totalorder %s18, 1
      %p109 = por %p107, %p108
      %p111 = scmp.ne.s32.totalorder %s96, %s110
      %p112 = scmp.eq.s32.totalorder %s18, 0
      %p113 = por %p111, %p112
      %s115 = sadd.s32 %s114, 1
      %p118 = scmp.eq.s32.totalorder %s12, 1
      %p119 = scmp.ne.s32.totalorder %s114, %s116
      %p120 = scmp.eq.s32.totalorder %s12, 0
      %p121 = por %p119, %p120
      %p122 = scmp.ne.s32.totalorder %s114, %s116
      %p123 = scmp.eq.s32.totalorder %s17, 1
      %p124 = por %p122, %p123
      %p125 = scmp.ne.s32.totalorder %s116, %s117
      %p126 = scmp.eq.s32.totalorder %s17, 0
      %p127 = por %p125, %p126
      %p128 = scmp.ne.s32.totalorder %s116, %s117
      %p129 = scmp.eq.s32.totalorder %s18, 1
      %p130 = por %p128, %p129
      %p132 = scmp.ne.s32.totalorder %s117, %s131
      %p133 = scmp.eq.s32.totalorder %s18, 0
      %p134 = por %p132, %p133
      %s136 = sadd.s32 %s135, 1
      %p139 = scmp.eq.s32.totalorder %s12, 1
      %p140 = scmp.ne.s32.totalorder %s135, %s137
      %p141 = scmp.eq.s32.totalorder %s12, 0
      %p142 = por %p140, %p141
      %p143 = scmp.ne.s32.totalorder %s135, %s137
      %p144 = scmp.eq.s32.totalorder %s17, 1
      %p145 = por %p143, %p144
      %p146 = scmp.ne.s32.totalorder %s137, %s138
      %p147 = scmp.eq.s32.totalorder %s17, 0
      %p148 = por %p146, %p147
      %p149 = scmp.ne.s32.totalorder %s137, %s138
      %p150 = scmp.eq.s32.totalorder %s18, 1
      %p151 = por %p149, %p150
      %p153 = scmp.ne.s32.totalorder %s138, %s152
      %p154 = scmp.eq.s32.totalorder %s18, 0
      %p155 = por %p153, %p154
      %p156 = scmp.le.s32.totalorder 1, %s12
      %p157 = scmp.lt.s32.totalorder %s12, 3
      %p158 = pnand %p156, %p157
      %p159 = pneg %p158
      // Predicated region
      $region9: #{simple_cnn_forward.9} parent=5 // pred_check
        _
      $region10: #{simple_cnn_forward.9} parent=5 // pred_check_branch
        %161 = sbr.rel (%p158) target = $region12
      $region11: #{simple_cnn_forward.9} parent=5 // pred_region
        %s162 = ssub.s32 %s12, 1
        // Predicated region
        $region13: #{simple_cnn_forward.9} parent=11 // pred_check
          %p163 = pneg %p85
        $region14: #{simple_cnn_forward.9} parent=11 // pred_check_branch
          %165 = sbr.rel (%p163) target = $region16
        $region15: #{simple_cnn_forward.9} parent=11 // pred_region
          _
        $region16: #{simple_cnn_forward.9} parent=11 // pred_fallthru
          _
        // Predicated region
        $region17: #{simple_cnn_forward.9} parent=11 // pred_check
          %p166 = pneg %p106
        $region18: #{simple_cnn_forward.9} parent=11 // pred_check_branch
          %168 = sbr.rel (%p166) target = $region20
        $region19: #{simple_cnn_forward.9} parent=11 // pred_region
          _
        $region20: #{simple_cnn_forward.9} parent=11 // pred_fallthru
          _
        // Predicated region
        $region21: #{simple_cnn_forward.9} parent=11 // pred_check
          %p169 = pneg %p127
        $region22: #{simple_cnn_forward.9} parent=11 // pred_check_branch
          %171 = sbr.rel (%p169) target = $region24
        $region23: #{simple_cnn_forward.9} parent=11 // pred_region
          _
        $region24: #{simple_cnn_forward.9} parent=11 // pred_fallthru
          _
      $region12: #{simple_cnn_forward.9} parent=5 // pred_fallthru
        _
      %p172 = scmp.lt.s32.totalorder %s12, 2
      // Predicated region
      $region25: #{simple_cnn_forward.9} parent=5 // pred_check
        %p173 = pneg %p172
      $region26: #{simple_cnn_forward.9} parent=5 // pred_check_branch
        %175 = sbr.rel (%p173) target = $region28
      $region27: #{simple_cnn_forward.9} parent=5 // pred_region
        // Predicated region
        $region29: #{simple_cnn_forward.9} parent=27 // pred_check
          %p176 = pneg %p32
        $region30: #{simple_cnn_forward.9} parent=27 // pred_check_branch
          %178 = sbr.rel (%p176) target = $region32
        $region31: #{simple_cnn_forward.9} parent=27 // pred_region
          %s179 = smul.u32 16, %s12
          %p180 = scmp.lt.s32.totalorder %s179, 31
          %s181 = scalar_select %p180, %s179, 31
          %s182 = scalar_lea.vmem %s0, %s181
          %s183 = smul.u32 16, %s12
        $region32: #{simple_cnn_forward.9} parent=27 // pred_fallthru
          _
        // Predicated region
        $region33: #{simple_cnn_forward.9} parent=27 // pred_check
          %p184 = pneg %p58
        $region34: #{simple_cnn_forward.9} parent=27 // pred_check_branch
          %186 = sbr.rel (%p184) target = $region36
        $region35: #{simple_cnn_forward.9} parent=27 // pred_region
          %s187 = smul.u32 256, %s12
          %p188 = scmp.lt.s32.totalorder %s187, 511
          %s189 = scalar_select %p188, %s187, 511
          %s190 = smul.addr %s189, 4
          %s191 = smul.addr %s190, 4
          %s192 = scalar_lea.vmem %s1, %s191
          %s193 = smul.u32 256, %s12
        $region36: #{simple_cnn_forward.9} parent=27 // pred_fallthru
          _
      $region28: #{simple_cnn_forward.9} parent=5 // pred_fallthru
        _
      %p194 = scmp.le.s32.totalorder 1, %s12
      %p195 = scmp.lt.s32.totalorder %s12, 3
      %p196 = pnand %p194, %p195
      %p197 = pneg %p196
      // Predicated region
      $region37: #{simple_cnn_forward.9} parent=5 // pred_check
        _
      $region38: #{simple_cnn_forward.9} parent=5 // pred_check_branch
        %199 = sbr.rel (%p196) target = $region40
      $region39: #{simple_cnn_forward.9} parent=5 // pred_region
        %s200 = ssub.s32 %s12, 1
        %s201 = smul.u32 16, %s17
        %p202 = scmp.lt.s32.totalorder %s201, 31
        %s203 = scalar_select %p202, %s201, 31
        %s204 = scalar_lea.vmem %s0, %s203
        %p205 = pneg %p38
        %p206 = pneg %p35
        %s207 = smul.u32 256, %s17
        %p208 = scmp.lt.s32.totalorder %s207, 511
        %s209 = scalar_select %p208, %s207, 511
        %s210 = smul.addr %s209, 4
        %s211 = smul.addr %s210, 4
        %s212 = scalar_lea.vmem %s1, %s211
        %p213 = pneg %p64
        %p214 = pneg %p61
        %p215 = pneg %p85
        %p216 = pneg %p82
        %p217 = pneg %p106
        %p218 = pneg %p103
        %p219 = pneg %p127
        %p220 = pneg %p124
        %p221 = pneg %p148
        %p222 = pneg %p145
        %s223 = smul.u32 16, %s17
        %p224 = scmp.lt.s32.totalorder %s223, 31
        %s225 = scalar_select %p224, %s223, 31
        %s226 = scalar_lea.vmem %s0, %s225
        %s227 = smul.u32 16, %s17
        %s228 = smul.u32 256, %s17
        %p229 = scmp.lt.s32.totalorder %s228, 511
        %s230 = scalar_select %p229, %s228, 511
        %s231 = smul.addr %s230, 4
        %s232 = smul.addr %s231, 4
        %s233 = scalar_lea.vmem %s1, %s232
        %s234 = smul.u32 256, %s17
        %p236 = scmp.eq.s32.totalorder %s17, 0
        // Predicated region
        $region41: #{simple_cnn_forward.9} parent=39 // pred_check
          %p237 = pneg %p236
        $region42: #{simple_cnn_forward.9} parent=39 // pred_check_branch
          %239 = sbr.rel (%p237) target = $region44
        $region43: #{simple_cnn_forward.9} parent=39 // pred_region
          %240 = vst [vmem:[#allocation2] sm:$0xff] 0.0
        $region44: #{simple_cnn_forward.9} parent=39 // pred_fallthru
          _
        %v241 = vld [vmem:[#allocation2] sm:$0xff]
        %v242 = vld [vmem:[%s226] sm:$0xff]
        %v243 = vld [vmem:[%s226 + $0x8] sm:$0xff]
        %v244 = vld [vmem:[%s233] sm:$0xff]
        %v245 = vld [vmem:[%s233 + $0x8] sm:$0xff]
        %v246 = vld [vmem:[%s233 + $0x10] sm:$0xff]
        %v247 = vld [vmem:[%s233 + $0x18] sm:$0xff]
        %v248 = vld [vmem:[%s233 + $0x20] sm:$0xff]
        %v249 = vld [vmem:[%s233 + $0x28] sm:$0xff]
        %v250 = vld [vmem:[%s233 + $0x30] sm:$0xff]
        %v251 = vld [vmem:[%s233 + $0x38] sm:$0xff]
        %v252 = vld [vmem:[%s233 + $0x40] sm:$0xff]
        %v253 = vld [vmem:[%s233 + $0x48] sm:$0xff]
        %v254 = vld [vmem:[%s233 + $0x50] sm:$0xff]
        %v255 = vld [vmem:[%s233 + $0x58] sm:$0xff]
        %v256 = vld [vmem:[%s233 + $0x60] sm:$0xff]
        %v257 = vld [vmem:[%s233 + $0x68] sm:$0xff]
        %v258 = vld [vmem:[%s233 + $0x70] sm:$0xff]
        %v259 = vld [vmem:[%s233 + $0x78] sm:$0xff]
        %v260 = vld [vmem:[%s233 + $0x80] sm:$0xff]
        %v261 = vld [vmem:[%s233 + $0x88] sm:$0xff]
        %v262 = vld [vmem:[%s233 + $0x90] sm:$0xff]
        %v263 = vld [vmem:[%s233 + $0x98] sm:$0xff]
        %v264 = vld [vmem:[%s233 + $0xa0] sm:$0xff]
        %v265 = vld [vmem:[%s233 + $0xa8] sm:$0xff]
        %v266 = vld [vmem:[%s233 + $0xb0] sm:$0xff]
        %v267 = vld [vmem:[%s233 + $0xb8] sm:$0xff]
        %v268 = vld [vmem:[%s233 + $0xc0] sm:$0xff]
        %v269 = vld [vmem:[%s233 + $0xc8] sm:$0xff]
        %v270 = vld [vmem:[%s233 + $0xd0] sm:$0xff]
        %v271 = vld [vmem:[%s233 + $0xd8] sm:$0xff]
        %v272 = vld [vmem:[%s233 + $0xe0] sm:$0xff]
        %v273 = vld [vmem:[%s233 + $0xe8] sm:$0xff]
        %v274 = vld [vmem:[%s233 + $0xf0] sm:$0xff]
        %v275 = vld [vmem:[%s233 + $0xf8] sm:$0xff]
        %v276 = vld [vmem:[%s233 + $0x100] sm:$0xff]
        %v277 = vld [vmem:[%s233 + $0x108] sm:$0xff]
        %v278 = vld [vmem:[%s233 + $0x110] sm:$0xff]
        %v279 = vld [vmem:[%s233 + $0x118] sm:$0xff]
        %v280 = vld [vmem:[%s233 + $0x120] sm:$0xff]
        %v281 = vld [vmem:[%s233 + $0x128] sm:$0xff]
        %v282 = vld [vmem:[%s233 + $0x130] sm:$0xff]
        %v283 = vld [vmem:[%s233 + $0x138] sm:$0xff]
        %v284 = vld [vmem:[%s233 + $0x140] sm:$0xff]
        %v285 = vld [vmem:[%s233 + $0x148] sm:$0xff]
        %v286 = vld [vmem:[%s233 + $0x150] sm:$0xff]
        %v287 = vld [vmem:[%s233 + $0x158] sm:$0xff]
        %v288 = vld [vmem:[%s233 + $0x160] sm:$0xff]
        %v289 = vld [vmem:[%s233 + $0x168] sm:$0xff]
        %v290 = vld [vmem:[%s233 + $0x170] sm:$0xff]
        %v291 = vld [vmem:[%s233 + $0x178] sm:$0xff]
        %v292 = vld [vmem:[%s233 + $0x180] sm:$0xff]
        %v293 = vld [vmem:[%s233 + $0x188] sm:$0xff]
        %v294 = vld [vmem:[%s233 + $0x190] sm:$0xff]
        %v295 = vld [vmem:[%s233 + $0x198] sm:$0xff]
        %v296 = vld [vmem:[%s233 + $0x1a0] sm:$0xff]
        %v297 = vld [vmem:[%s233 + $0x1a8] sm:$0xff]
        %v298 = vld [vmem:[%s233 + $0x1b0] sm:$0xff]
        %v299 = vld [vmem:[%s233 + $0x1b8] sm:$0xff]
        %v300 = vld [vmem:[%s233 + $0x1c0] sm:$0xff]
        %v301 = vld [vmem:[%s233 + $0x1c8] sm:$0xff]
        %v302 = vld [vmem:[%s233 + $0x1d0] sm:$0xff]
        %v303 = vld [vmem:[%s233 + $0x1d8] sm:$0xff]
        %v304 = vld [vmem:[%s233 + $0x1e0] sm:$0xff]
        %v305 = vld [vmem:[%s233 + $0x1e8] sm:$0xff]
        %v306 = vld [vmem:[%s233 + $0x1f0] sm:$0xff]
        %v307 = vld [vmem:[%s233 + $0x1f8] sm:$0xff]
        %v308 = vld [vmem:[%s233 + $0x200] sm:$0xff]
        %v309 = vld [vmem:[%s233 + $0x208] sm:$0xff]
        %v310 = vld [vmem:[%s233 + $0x210] sm:$0xff]
        %v311 = vld [vmem:[%s233 + $0x218] sm:$0xff]
        %v312 = vld [vmem:[%s233 + $0x220] sm:$0xff]
        %v313 = vld [vmem:[%s233 + $0x228] sm:$0xff]
        %v314 = vld [vmem:[%s233 + $0x230] sm:$0xff]
        %v315 = vld [vmem:[%s233 + $0x238] sm:$0xff]
        %v316 = vld [vmem:[%s233 + $0x240] sm:$0xff]
        %v317 = vld [vmem:[%s233 + $0x248] sm:$0xff]
        %v318 = vld [vmem:[%s233 + $0x250] sm:$0xff]
        %v319 = vld [vmem:[%s233 + $0x258] sm:$0xff]
        %v320 = vld [vmem:[%s233 + $0x260] sm:$0xff]
        %v321 = vld [vmem:[%s233 + $0x268] sm:$0xff]
        %v322 = vld [vmem:[%s233 + $0x270] sm:$0xff]
        %v323 = vld [vmem:[%s233 + $0x278] sm:$0xff]
        %v324 = vld [vmem:[%s233 + $0x280] sm:$0xff]
        %v325 = vld [vmem:[%s233 + $0x288] sm:$0xff]
        %v326 = vld [vmem:[%s233 + $0x290] sm:$0xff]
        %v327 = vld [vmem:[%s233 + $0x298] sm:$0xff]
        %v328 = vld [vmem:[%s233 + $0x2a0] sm:$0xff]
        %v329 = vld [vmem:[%s233 + $0x2a8] sm:$0xff]
        %v330 = vld [vmem:[%s233 + $0x2b0] sm:$0xff]
        %v331 = vld [vmem:[%s233 + $0x2b8] sm:$0xff]
        %v332 = vld [vmem:[%s233 + $0x2c0] sm:$0xff]
        %v333 = vld [vmem:[%s233 + $0x2c8] sm:$0xff]
        %v334 = vld [vmem:[%s233 + $0x2d0] sm:$0xff]
        %v335 = vld [vmem:[%s233 + $0x2d8] sm:$0xff]
        %v336 = vld [vmem:[%s233 + $0x2e0] sm:$0xff]
        %v337 = vld [vmem:[%s233 + $0x2e8] sm:$0xff]
        %v338 = vld [vmem:[%s233 + $0x2f0] sm:$0xff]
        %v339 = vld [vmem:[%s233 + $0x2f8] sm:$0xff]
        %v340 = vld [vmem:[%s233 + $0x300] sm:$0xff]
        %v341 = vld [vmem:[%s233 + $0x308] sm:$0xff]
        %v342 = vld [vmem:[%s233 + $0x310] sm:$0xff]
        %v343 = vld [vmem:[%s233 + $0x318] sm:$0xff]
        %v344 = vld [vmem:[%s233 + $0x320] sm:$0xff]
        %v345 = vld [vmem:[%s233 + $0x328] sm:$0xff]
        %v346 = vld [vmem:[%s233 + $0x330] sm:$0xff]
        %v347 = vld [vmem:[%s233 + $0x338] sm:$0xff]
        %v348 = vld [vmem:[%s233 + $0x340] sm:$0xff]
        %v349 = vld [vmem:[%s233 + $0x348] sm:$0xff]
        %v350 = vld [vmem:[%s233 + $0x350] sm:$0xff]
        %v351 = vld [vmem:[%s233 + $0x358] sm:$0xff]
        %v352 = vld [vmem:[%s233 + $0x360] sm:$0xff]
        %v353 = vld [vmem:[%s233 + $0x368] sm:$0xff]
        %v354 = vld [vmem:[%s233 + $0x370] sm:$0xff]
        %v355 = vld [vmem:[%s233 + $0x378] sm:$0xff]
        %v356 = vld [vmem:[%s233 + $0x380] sm:$0xff]
        %v357 = vld [vmem:[%s233 + $0x388] sm:$0xff]
        %v358 = vld [vmem:[%s233 + $0x390] sm:$0xff]
        %v359 = vld [vmem:[%s233 + $0x398] sm:$0xff]
        %v360 = vld [vmem:[%s233 + $0x3a0] sm:$0xff]
        %v361 = vld [vmem:[%s233 + $0x3a8] sm:$0xff]
        %v362 = vld [vmem:[%s233 + $0x3b0] sm:$0xff]
        %v363 = vld [vmem:[%s233 + $0x3b8] sm:$0xff]
        %v364 = vld [vmem:[%s233 + $0x3c0] sm:$0xff]
        %v365 = vld [vmem:[%s233 + $0x3c8] sm:$0xff]
        %v366 = vld [vmem:[%s233 + $0x3d0] sm:$0xff]
        %v367 = vld [vmem:[%s233 + $0x3d8] sm:$0xff]
        %v368 = vld [vmem:[%s233 + $0x3e0] sm:$0xff]
        %v369 = vld [vmem:[%s233 + $0x3e8] sm:$0xff]
        %v370 = vld [vmem:[%s233 + $0x3f0] sm:$0xff]
        %v371 = vld [vmem:[%s233 + $0x3f8] sm:$0xff]
        %v372 = vld [vmem:[%s233 + $0x400] sm:$0xff]
        %v373 = vld [vmem:[%s233 + $0x408] sm:$0xff]
        %v374 = vld [vmem:[%s233 + $0x410] sm:$0xff]
        %v375 = vld [vmem:[%s233 + $0x418] sm:$0xff]
        %v376 = vld [vmem:[%s233 + $0x420] sm:$0xff]
        %v377 = vld [vmem:[%s233 + $0x428] sm:$0xff]
        %v378 = vld [vmem:[%s233 + $0x430] sm:$0xff]
        %v379 = vld [vmem:[%s233 + $0x438] sm:$0xff]
        %v380 = vld [vmem:[%s233 + $0x440] sm:$0xff]
        %v381 = vld [vmem:[%s233 + $0x448] sm:$0xff]
        %v382 = vld [vmem:[%s233 + $0x450] sm:$0xff]
        %v383 = vld [vmem:[%s233 + $0x458] sm:$0xff]
        %v384 = vld [vmem:[%s233 + $0x460] sm:$0xff]
        %v385 = vld [vmem:[%s233 + $0x468] sm:$0xff]
        %v386 = vld [vmem:[%s233 + $0x470] sm:$0xff]
        %v387 = vld [vmem:[%s233 + $0x478] sm:$0xff]
        %v388 = vld [vmem:[%s233 + $0x480] sm:$0xff]
        %v389 = vld [vmem:[%s233 + $0x488] sm:$0xff]
        %v390 = vld [vmem:[%s233 + $0x490] sm:$0xff]
        %v391 = vld [vmem:[%s233 + $0x498] sm:$0xff]
        %v392 = vld [vmem:[%s233 + $0x4a0] sm:$0xff]
        %v393 = vld [vmem:[%s233 + $0x4a8] sm:$0xff]
        %v394 = vld [vmem:[%s233 + $0x4b0] sm:$0xff]
        %v395 = vld [vmem:[%s233 + $0x4b8] sm:$0xff]
        %v396 = vld [vmem:[%s233 + $0x4c0] sm:$0xff]
        %v397 = vld [vmem:[%s233 + $0x4c8] sm:$0xff]
        %v398 = vld [vmem:[%s233 + $0x4d0] sm:$0xff]
        %v399 = vld [vmem:[%s233 + $0x4d8] sm:$0xff]
        %v400 = vld [vmem:[%s233 + $0x4e0] sm:$0xff]
        %v401 = vld [vmem:[%s233 + $0x4e8] sm:$0xff]
        %v402 = vld [vmem:[%s233 + $0x4f0] sm:$0xff]
        %v403 = vld [vmem:[%s233 + $0x4f8] sm:$0xff]
        %v404 = vld [vmem:[%s233 + $0x500] sm:$0xff]
        %v405 = vld [vmem:[%s233 + $0x508] sm:$0xff]
        %v406 = vld [vmem:[%s233 + $0x510] sm:$0xff]
        %v407 = vld [vmem:[%s233 + $0x518] sm:$0xff]
        %v408 = vld [vmem:[%s233 + $0x520] sm:$0xff]
        %v409 = vld [vmem:[%s233 + $0x528] sm:$0xff]
        %v410 = vld [vmem:[%s233 + $0x530] sm:$0xff]
        %v411 = vld [vmem:[%s233 + $0x538] sm:$0xff]
        %v412 = vld [vmem:[%s233 + $0x540] sm:$0xff]
        %v413 = vld [vmem:[%s233 + $0x548] sm:$0xff]
        %v414 = vld [vmem:[%s233 + $0x550] sm:$0xff]
        %v415 = vld [vmem:[%s233 + $0x558] sm:$0xff]
        %v416 = vld [vmem:[%s233 + $0x560] sm:$0xff]
        %v417 = vld [vmem:[%s233 + $0x568] sm:$0xff]
        %v418 = vld [vmem:[%s233 + $0x570] sm:$0xff]
        %v419 = vld [vmem:[%s233 + $0x578] sm:$0xff]
        %v420 = vld [vmem:[%s233 + $0x580] sm:$0xff]
        %v421 = vld [vmem:[%s233 + $0x588] sm:$0xff]
        %v422 = vld [vmem:[%s233 + $0x590] sm:$0xff]
        %v423 = vld [vmem:[%s233 + $0x598] sm:$0xff]
        %v424 = vld [vmem:[%s233 + $0x5a0] sm:$0xff]
        %v425 = vld [vmem:[%s233 + $0x5a8] sm:$0xff]
        %v426 = vld [vmem:[%s233 + $0x5b0] sm:$0xff]
        %v427 = vld [vmem:[%s233 + $0x5b8] sm:$0xff]
        %v428 = vld [vmem:[%s233 + $0x5c0] sm:$0xff]
        %v429 = vld [vmem:[%s233 + $0x5c8] sm:$0xff]
        %v430 = vld [vmem:[%s233 + $0x5d0] sm:$0xff]
        %v431 = vld [vmem:[%s233 + $0x5d8] sm:$0xff]
        %v432 = vld [vmem:[%s233 + $0x5e0] sm:$0xff]
        %v433 = vld [vmem:[%s233 + $0x5e8] sm:$0xff]
        %v434 = vld [vmem:[%s233 + $0x5f0] sm:$0xff]
        %v435 = vld [vmem:[%s233 + $0x5f8] sm:$0xff]
        %v436 = vld [vmem:[%s233 + $0x600] sm:$0xff]
        %v437 = vld [vmem:[%s233 + $0x608] sm:$0xff]
        %v438 = vld [vmem:[%s233 + $0x610] sm:$0xff]
        %v439 = vld [vmem:[%s233 + $0x618] sm:$0xff]
        %v440 = vld [vmem:[%s233 + $0x620] sm:$0xff]
        %v441 = vld [vmem:[%s233 + $0x628] sm:$0xff]
        %v442 = vld [vmem:[%s233 + $0x630] sm:$0xff]
        %v443 = vld [vmem:[%s233 + $0x638] sm:$0xff]
        %v444 = vld [vmem:[%s233 + $0x640] sm:$0xff]
        %v445 = vld [vmem:[%s233 + $0x648] sm:$0xff]
        %v446 = vld [vmem:[%s233 + $0x650] sm:$0xff]
        %v447 = vld [vmem:[%s233 + $0x658] sm:$0xff]
        %v448 = vld [vmem:[%s233 + $0x660] sm:$0xff]
        %v449 = vld [vmem:[%s233 + $0x668] sm:$0xff]
        %v450 = vld [vmem:[%s233 + $0x670] sm:$0xff]
        %v451 = vld [vmem:[%s233 + $0x678] sm:$0xff]
        %v452 = vld [vmem:[%s233 + $0x680] sm:$0xff]
        %v453 = vld [vmem:[%s233 + $0x688] sm:$0xff]
        %v454 = vld [vmem:[%s233 + $0x690] sm:$0xff]
        %v455 = vld [vmem:[%s233 + $0x698] sm:$0xff]
        %v456 = vld [vmem:[%s233 + $0x6a0] sm:$0xff]
        %v457 = vld [vmem:[%s233 + $0x6a8] sm:$0xff]
        %v458 = vld [vmem:[%s233 + $0x6b0] sm:$0xff]
        %v459 = vld [vmem:[%s233 + $0x6b8] sm:$0xff]
        %v460 = vld [vmem:[%s233 + $0x6c0] sm:$0xff]
        %v461 = vld [vmem:[%s233 + $0x6c8] sm:$0xff]
        %v462 = vld [vmem:[%s233 + $0x6d0] sm:$0xff]
        %v463 = vld [vmem:[%s233 + $0x6d8] sm:$0xff]
        %v464 = vld [vmem:[%s233 + $0x6e0] sm:$0xff]
        %v465 = vld [vmem:[%s233 + $0x6e8] sm:$0xff]
        %v466 = vld [vmem:[%s233 + $0x6f0] sm:$0xff]
        %v467 = vld [vmem:[%s233 + $0x6f8] sm:$0xff]
        %v468 = vld [vmem:[%s233 + $0x700] sm:$0xff]
        %v469 = vld [vmem:[%s233 + $0x708] sm:$0xff]
        %v470 = vld [vmem:[%s233 + $0x710] sm:$0xff]
        %v471 = vld [vmem:[%s233 + $0x718] sm:$0xff]
        %v472 = vld [vmem:[%s233 + $0x720] sm:$0xff]
        %v473 = vld [vmem:[%s233 + $0x728] sm:$0xff]
        %v474 = vld [vmem:[%s233 + $0x730] sm:$0xff]
        %v475 = vld [vmem:[%s233 + $0x738] sm:$0xff]
        %v476 = vld [vmem:[%s233 + $0x740] sm:$0xff]
        %v477 = vld [vmem:[%s233 + $0x748] sm:$0xff]
        %v478 = vld [vmem:[%s233 + $0x750] sm:$0xff]
        %v479 = vld [vmem:[%s233 + $0x758] sm:$0xff]
        %v480 = vld [vmem:[%s233 + $0x760] sm:$0xff]
        %v481 = vld [vmem:[%s233 + $0x768] sm:$0xff]
        %v482 = vld [vmem:[%s233 + $0x770] sm:$0xff]
        %v483 = vld [vmem:[%s233 + $0x778] sm:$0xff]
        %v484 = vld [vmem:[%s233 + $0x780] sm:$0xff]
        %v485 = vld [vmem:[%s233 + $0x788] sm:$0xff]
        %v486 = vld [vmem:[%s233 + $0x790] sm:$0xff]
        %v487 = vld [vmem:[%s233 + $0x798] sm:$0xff]
        %v488 = vld [vmem:[%s233 + $0x7a0] sm:$0xff]
        %v489 = vld [vmem:[%s233 + $0x7a8] sm:$0xff]
        %v490 = vld [vmem:[%s233 + $0x7b0] sm:$0xff]
        %v491 = vld [vmem:[%s233 + $0x7b8] sm:$0xff]
        %v492 = vld [vmem:[%s233 + $0x7c0] sm:$0xff]
        %v493 = vld [vmem:[%s233 + $0x7c8] sm:$0xff]
        %v494 = vld [vmem:[%s233 + $0x7d0] sm:$0xff]
        %v495 = vld [vmem:[%s233 + $0x7d8] sm:$0xff]
        %v496 = vld [vmem:[%s233 + $0x7e0] sm:$0xff]
        %v497 = vld [vmem:[%s233 + $0x7e8] sm:$0xff]
        %v498 = vld [vmem:[%s233 + $0x7f0] sm:$0xff]
        %v499 = vld [vmem:[%s233 + $0x7f8] sm:$0xff]
        %v500 = vld [vmem:[%s233 + $0x800] sm:$0xff]
        %v501 = vld [vmem:[%s233 + $0x808] sm:$0xff]
        %v502 = vld [vmem:[%s233 + $0x810] sm:$0xff]
        %v503 = vld [vmem:[%s233 + $0x818] sm:$0xff]
        %v504 = vld [vmem:[%s233 + $0x820] sm:$0xff]
        %v505 = vld [vmem:[%s233 + $0x828] sm:$0xff]
        %v506 = vld [vmem:[%s233 + $0x830] sm:$0xff]
        %v507 = vld [vmem:[%s233 + $0x838] sm:$0xff]
        %v508 = vld [vmem:[%s233 + $0x840] sm:$0xff]
        %v509 = vld [vmem:[%s233 + $0x848] sm:$0xff]
        %v510 = vld [vmem:[%s233 + $0x850] sm:$0xff]
        %v511 = vld [vmem:[%s233 + $0x858] sm:$0xff]
        %v512 = vld [vmem:[%s233 + $0x860] sm:$0xff]
        %v513 = vld [vmem:[%s233 + $0x868] sm:$0xff]
        %v514 = vld [vmem:[%s233 + $0x870] sm:$0xff]
        %v515 = vld [vmem:[%s233 + $0x878] sm:$0xff]
        %v516 = vld [vmem:[%s233 + $0x880] sm:$0xff]
        %v517 = vld [vmem:[%s233 + $0x888] sm:$0xff]
        %v518 = vld [vmem:[%s233 + $0x890] sm:$0xff]
        %v519 = vld [vmem:[%s233 + $0x898] sm:$0xff]
        %v520 = vld [vmem:[%s233 + $0x8a0] sm:$0xff]
        %v521 = vld [vmem:[%s233 + $0x8a8] sm:$0xff]
        %v522 = vld [vmem:[%s233 + $0x8b0] sm:$0xff]
        %v523 = vld [vmem:[%s233 + $0x8b8] sm:$0xff]
        %v524 = vld [vmem:[%s233 + $0x8c0] sm:$0xff]
        %v525 = vld [vmem:[%s233 + $0x8c8] sm:$0xff]
        %v526 = vld [vmem:[%s233 + $0x8d0] sm:$0xff]
        %v527 = vld [vmem:[%s233 + $0x8d8] sm:$0xff]
        %v528 = vld [vmem:[%s233 + $0x8e0] sm:$0xff]
        %v529 = vld [vmem:[%s233 + $0x8e8] sm:$0xff]
        %v530 = vld [vmem:[%s233 + $0x8f0] sm:$0xff]
        %v531 = vld [vmem:[%s233 + $0x8f8] sm:$0xff]
        %v532 = vld [vmem:[%s233 + $0x900] sm:$0xff]
        %v533 = vld [vmem:[%s233 + $0x908] sm:$0xff]
        %v534 = vld [vmem:[%s233 + $0x910] sm:$0xff]
        %v535 = vld [vmem:[%s233 + $0x918] sm:$0xff]
        %v536 = vld [vmem:[%s233 + $0x920] sm:$0xff]
        %v537 = vld [vmem:[%s233 + $0x928] sm:$0xff]
        %v538 = vld [vmem:[%s233 + $0x930] sm:$0xff]
        %v539 = vld [vmem:[%s233 + $0x938] sm:$0xff]
        %v540 = vld [vmem:[%s233 + $0x940] sm:$0xff]
        %v541 = vld [vmem:[%s233 + $0x948] sm:$0xff]
        %v542 = vld [vmem:[%s233 + $0x950] sm:$0xff]
        %v543 = vld [vmem:[%s233 + $0x958] sm:$0xff]
        %v544 = vld [vmem:[%s233 + $0x960] sm:$0xff]
        %v545 = vld [vmem:[%s233 + $0x968] sm:$0xff]
        %v546 = vld [vmem:[%s233 + $0x970] sm:$0xff]
        %v547 = vld [vmem:[%s233 + $0x978] sm:$0xff]
        %v548 = vld [vmem:[%s233 + $0x980] sm:$0xff]
        %v549 = vld [vmem:[%s233 + $0x988] sm:$0xff]
        %v550 = vld [vmem:[%s233 + $0x990] sm:$0xff]
        %v551 = vld [vmem:[%s233 + $0x998] sm:$0xff]
        %v552 = vld [vmem:[%s233 + $0x9a0] sm:$0xff]
        %v553 = vld [vmem:[%s233 + $0x9a8] sm:$0xff]
        %v554 = vld [vmem:[%s233 + $0x9b0] sm:$0xff]
        %v555 = vld [vmem:[%s233 + $0x9b8] sm:$0xff]
        %v556 = vld [vmem:[%s233 + $0x9c0] sm:$0xff]
        %v557 = vld [vmem:[%s233 + $0x9c8] sm:$0xff]
        %v558 = vld [vmem:[%s233 + $0x9d0] sm:$0xff]
        %v559 = vld [vmem:[%s233 + $0x9d8] sm:$0xff]
        %v560 = vld [vmem:[%s233 + $0x9e0] sm:$0xff]
        %v561 = vld [vmem:[%s233 + $0x9e8] sm:$0xff]
        %v562 = vld [vmem:[%s233 + $0x9f0] sm:$0xff]
        %v563 = vld [vmem:[%s233 + $0x9f8] sm:$0xff]
        %v564 = vld [vmem:[%s233 + $0xa00] sm:$0xff]
        %v565 = vld [vmem:[%s233 + $0xa08] sm:$0xff]
        %v566 = vld [vmem:[%s233 + $0xa10] sm:$0xff]
        %v567 = vld [vmem:[%s233 + $0xa18] sm:$0xff]
        %v568 = vld [vmem:[%s233 + $0xa20] sm:$0xff]
        %v569 = vld [vmem:[%s233 + $0xa28] sm:$0xff]
        %v570 = vld [vmem:[%s233 + $0xa30] sm:$0xff]
        %v571 = vld [vmem:[%s233 + $0xa38] sm:$0xff]
        %v572 = vld [vmem:[%s233 + $0xa40] sm:$0xff]
        %v573 = vld [vmem:[%s233 + $0xa48] sm:$0xff]
        %v574 = vld [vmem:[%s233 + $0xa50] sm:$0xff]
        %v575 = vld [vmem:[%s233 + $0xa58] sm:$0xff]
        %v576 = vld [vmem:[%s233 + $0xa60] sm:$0xff]
        %v577 = vld [vmem:[%s233 + $0xa68] sm:$0xff]
        %v578 = vld [vmem:[%s233 + $0xa70] sm:$0xff]
        %v579 = vld [vmem:[%s233 + $0xa78] sm:$0xff]
        %v580 = vld [vmem:[%s233 + $0xa80] sm:$0xff]
        %v581 = vld [vmem:[%s233 + $0xa88] sm:$0xff]
        %v582 = vld [vmem:[%s233 + $0xa90] sm:$0xff]
        %v583 = vld [vmem:[%s233 + $0xa98] sm:$0xff]
        %v584 = vld [vmem:[%s233 + $0xaa0] sm:$0xff]
        %v585 = vld [vmem:[%s233 + $0xaa8] sm:$0xff]
        %v586 = vld [vmem:[%s233 + $0xab0] sm:$0xff]
        %v587 = vld [vmem:[%s233 + $0xab8] sm:$0xff]
        %v588 = vld [vmem:[%s233 + $0xac0] sm:$0xff]
        %v589 = vld [vmem:[%s233 + $0xac8] sm:$0xff]
        %v590 = vld [vmem:[%s233 + $0xad0] sm:$0xff]
        %v591 = vld [vmem:[%s233 + $0xad8] sm:$0xff]
        %v592 = vld [vmem:[%s233 + $0xae0] sm:$0xff]
        %v593 = vld [vmem:[%s233 + $0xae8] sm:$0xff]
        %v594 = vld [vmem:[%s233 + $0xaf0] sm:$0xff]
        %v595 = vld [vmem:[%s233 + $0xaf8] sm:$0xff]
        %v596 = vld [vmem:[%s233 + $0xb00] sm:$0xff]
        %v597 = vld [vmem:[%s233 + $0xb08] sm:$0xff]
        %v598 = vld [vmem:[%s233 + $0xb10] sm:$0xff]
        %v599 = vld [vmem:[%s233 + $0xb18] sm:$0xff]
        %v600 = vld [vmem:[%s233 + $0xb20] sm:$0xff]
        %v601 = vld [vmem:[%s233 + $0xb28] sm:$0xff]
        %v602 = vld [vmem:[%s233 + $0xb30] sm:$0xff]
        %v603 = vld [vmem:[%s233 + $0xb38] sm:$0xff]
        %v604 = vld [vmem:[%s233 + $0xb40] sm:$0xff]
        %v605 = vld [vmem:[%s233 + $0xb48] sm:$0xff]
        %v606 = vld [vmem:[%s233 + $0xb50] sm:$0xff]
        %v607 = vld [vmem:[%s233 + $0xb58] sm:$0xff]
        %v608 = vld [vmem:[%s233 + $0xb60] sm:$0xff]
        %v609 = vld [vmem:[%s233 + $0xb68] sm:$0xff]
        %v610 = vld [vmem:[%s233 + $0xb70] sm:$0xff]
        %v611 = vld [vmem:[%s233 + $0xb78] sm:$0xff]
        %v612 = vld [vmem:[%s233 + $0xb80] sm:$0xff]
        %v613 = vld [vmem:[%s233 + $0xb88] sm:$0xff]
        %v614 = vld [vmem:[%s233 + $0xb90] sm:$0xff]
        %v615 = vld [vmem:[%s233 + $0xb98] sm:$0xff]
        %v616 = vld [vmem:[%s233 + $0xba0] sm:$0xff]
        %v617 = vld [vmem:[%s233 + $0xba8] sm:$0xff]
        %v618 = vld [vmem:[%s233 + $0xbb0] sm:$0xff]
        %v619 = vld [vmem:[%s233 + $0xbb8] sm:$0xff]
        %v620 = vld [vmem:[%s233 + $0xbc0] sm:$0xff]
        %v621 = vld [vmem:[%s233 + $0xbc8] sm:$0xff]
        %v622 = vld [vmem:[%s233 + $0xbd0] sm:$0xff]
        %v623 = vld [vmem:[%s233 + $0xbd8] sm:$0xff]
        %v624 = vld [vmem:[%s233 + $0xbe0] sm:$0xff]
        %v625 = vld [vmem:[%s233 + $0xbe8] sm:$0xff]
        %v626 = vld [vmem:[%s233 + $0xbf0] sm:$0xff]
        %v627 = vld [vmem:[%s233 + $0xbf8] sm:$0xff]
        %v628 = vld [vmem:[%s233 + $0xc00] sm:$0xff]
        %v629 = vld [vmem:[%s233 + $0xc08] sm:$0xff]
        %v630 = vld [vmem:[%s233 + $0xc10] sm:$0xff]
        %v631 = vld [vmem:[%s233 + $0xc18] sm:$0xff]
        %v632 = vld [vmem:[%s233 + $0xc20] sm:$0xff]
        %v633 = vld [vmem:[%s233 + $0xc28] sm:$0xff]
        %v634 = vld [vmem:[%s233 + $0xc30] sm:$0xff]
        %v635 = vld [vmem:[%s233 + $0xc38] sm:$0xff]
        %v636 = vld [vmem:[%s233 + $0xc40] sm:$0xff]
        %v637 = vld [vmem:[%s233 + $0xc48] sm:$0xff]
        %v638 = vld [vmem:[%s233 + $0xc50] sm:$0xff]
        %v639 = vld [vmem:[%s233 + $0xc58] sm:$0xff]
        %v640 = vld [vmem:[%s233 + $0xc60] sm:$0xff]
        %v641 = vld [vmem:[%s233 + $0xc68] sm:$0xff]
        %v642 = vld [vmem:[%s233 + $0xc70] sm:$0xff]
        %v643 = vld [vmem:[%s233 + $0xc78] sm:$0xff]
        %v644 = vld [vmem:[%s233 + $0xc80] sm:$0xff]
        %v645 = vld [vmem:[%s233 + $0xc88] sm:$0xff]
        %v646 = vld [vmem:[%s233 + $0xc90] sm:$0xff]
        %v647 = vld [vmem:[%s233 + $0xc98] sm:$0xff]
        %v648 = vld [vmem:[%s233 + $0xca0] sm:$0xff]
        %v649 = vld [vmem:[%s233 + $0xca8] sm:$0xff]
        %v650 = vld [vmem:[%s233 + $0xcb0] sm:$0xff]
        %v651 = vld [vmem:[%s233 + $0xcb8] sm:$0xff]
        %v652 = vld [vmem:[%s233 + $0xcc0] sm:$0xff]
        %v653 = vld [vmem:[%s233 + $0xcc8] sm:$0xff]
        %v654 = vld [vmem:[%s233 + $0xcd0] sm:$0xff]
        %v655 = vld [vmem:[%s233 + $0xcd8] sm:$0xff]
        %v656 = vld [vmem:[%s233 + $0xce0] sm:$0xff]
        %v657 = vld [vmem:[%s233 + $0xce8] sm:$0xff]
        %v658 = vld [vmem:[%s233 + $0xcf0] sm:$0xff]
        %v659 = vld [vmem:[%s233 + $0xcf8] sm:$0xff]
        %v660 = vld [vmem:[%s233 + $0xd00] sm:$0xff]
        %v661 = vld [vmem:[%s233 + $0xd08] sm:$0xff]
        %v662 = vld [vmem:[%s233 + $0xd10] sm:$0xff]
        %v663 = vld [vmem:[%s233 + $0xd18] sm:$0xff]
        %v664 = vld [vmem:[%s233 + $0xd20] sm:$0xff]
        %v665 = vld [vmem:[%s233 + $0xd28] sm:$0xff]
        %v666 = vld [vmem:[%s233 + $0xd30] sm:$0xff]
        %v667 = vld [vmem:[%s233 + $0xd38] sm:$0xff]
        %v668 = vld [vmem:[%s233 + $0xd40] sm:$0xff]
        %v669 = vld [vmem:[%s233 + $0xd48] sm:$0xff]
        %v670 = vld [vmem:[%s233 + $0xd50] sm:$0xff]
        %v671 = vld [vmem:[%s233 + $0xd58] sm:$0xff]
        %v672 = vld [vmem:[%s233 + $0xd60] sm:$0xff]
        %v673 = vld [vmem:[%s233 + $0xd68] sm:$0xff]
        %v674 = vld [vmem:[%s233 + $0xd70] sm:$0xff]
        %v675 = vld [vmem:[%s233 + $0xd78] sm:$0xff]
        %v676 = vld [vmem:[%s233 + $0xd80] sm:$0xff]
        %v677 = vld [vmem:[%s233 + $0xd88] sm:$0xff]
        %v678 = vld [vmem:[%s233 + $0xd90] sm:$0xff]
        %v679 = vld [vmem:[%s233 + $0xd98] sm:$0xff]
        %v680 = vld [vmem:[%s233 + $0xda0] sm:$0xff]
        %v681 = vld [vmem:[%s233 + $0xda8] sm:$0xff]
        %v682 = vld [vmem:[%s233 + $0xdb0] sm:$0xff]
        %v683 = vld [vmem:[%s233 + $0xdb8] sm:$0xff]
        %v684 = vld [vmem:[%s233 + $0xdc0] sm:$0xff]
        %v685 = vld [vmem:[%s233 + $0xdc8] sm:$0xff]
        %v686 = vld [vmem:[%s233 + $0xdd0] sm:$0xff]
        %v687 = vld [vmem:[%s233 + $0xdd8] sm:$0xff]
        %v688 = vld [vmem:[%s233 + $0xde0] sm:$0xff]
        %v689 = vld [vmem:[%s233 + $0xde8] sm:$0xff]
        %v690 = vld [vmem:[%s233 + $0xdf0] sm:$0xff]
        %v691 = vld [vmem:[%s233 + $0xdf8] sm:$0xff]
        %v692 = vld [vmem:[%s233 + $0xe00] sm:$0xff]
        %v693 = vld [vmem:[%s233 + $0xe08] sm:$0xff]
        %v694 = vld [vmem:[%s233 + $0xe10] sm:$0xff]
        %v695 = vld [vmem:[%s233 + $0xe18] sm:$0xff]
        %v696 = vld [vmem:[%s233 + $0xe20] sm:$0xff]
        %v697 = vld [vmem:[%s233 + $0xe28] sm:$0xff]
        %v698 = vld [vmem:[%s233 + $0xe30] sm:$0xff]
        %v699 = vld [vmem:[%s233 + $0xe38] sm:$0xff]
        %v700 = vld [vmem:[%s233 + $0xe40] sm:$0xff]
        %v701 = vld [vmem:[%s233 + $0xe48] sm:$0xff]
        %v702 = vld [vmem:[%s233 + $0xe50] sm:$0xff]
        %v703 = vld [vmem:[%s233 + $0xe58] sm:$0xff]
        %v704 = vld [vmem:[%s233 + $0xe60] sm:$0xff]
        %v705 = vld [vmem:[%s233 + $0xe68] sm:$0xff]
        %v706 = vld [vmem:[%s233 + $0xe70] sm:$0xff]
        %v707 = vld [vmem:[%s233 + $0xe78] sm:$0xff]
        %v708 = vld [vmem:[%s233 + $0xe80] sm:$0xff]
        %v709 = vld [vmem:[%s233 + $0xe88] sm:$0xff]
        %v710 = vld [vmem:[%s233 + $0xe90] sm:$0xff]
        %v711 = vld [vmem:[%s233 + $0xe98] sm:$0xff]
        %v712 = vld [vmem:[%s233 + $0xea0] sm:$0xff]
        %v713 = vld [vmem:[%s233 + $0xea8] sm:$0xff]
        %v714 = vld [vmem:[%s233 + $0xeb0] sm:$0xff]
        %v715 = vld [vmem:[%s233 + $0xeb8] sm:$0xff]
        %v716 = vld [vmem:[%s233 + $0xec0] sm:$0xff]
        %v717 = vld [vmem:[%s233 + $0xec8] sm:$0xff]
        %v718 = vld [vmem:[%s233 + $0xed0] sm:$0xff]
        %v719 = vld [vmem:[%s233 + $0xed8] sm:$0xff]
        %v720 = vld [vmem:[%s233 + $0xee0] sm:$0xff]
        %v721 = vld [vmem:[%s233 + $0xee8] sm:$0xff]
        %v722 = vld [vmem:[%s233 + $0xef0] sm:$0xff]
        %v723 = vld [vmem:[%s233 + $0xef8] sm:$0xff]
        %v724 = vld [vmem:[%s233 + $0xf00] sm:$0xff]
        %v725 = vld [vmem:[%s233 + $0xf08] sm:$0xff]
        %v726 = vld [vmem:[%s233 + $0xf10] sm:$0xff]
        %v727 = vld [vmem:[%s233 + $0xf18] sm:$0xff]
        %v728 = vld [vmem:[%s233 + $0xf20] sm:$0xff]
        %v729 = vld [vmem:[%s233 + $0xf28] sm:$0xff]
        %v730 = vld [vmem:[%s233 + $0xf30] sm:$0xff]
        %v731 = vld [vmem:[%s233 + $0xf38] sm:$0xff]
        %v732 = vld [vmem:[%s233 + $0xf40] sm:$0xff]
        %v733 = vld [vmem:[%s233 + $0xf48] sm:$0xff]
        %v734 = vld [vmem:[%s233 + $0xf50] sm:$0xff]
        %v735 = vld [vmem:[%s233 + $0xf58] sm:$0xff]
        %v736 = vld [vmem:[%s233 + $0xf60] sm:$0xff]
        %v737 = vld [vmem:[%s233 + $0xf68] sm:$0xff]
        %v738 = vld [vmem:[%s233 + $0xf70] sm:$0xff]
        %v739 = vld [vmem:[%s233 + $0xf78] sm:$0xff]
        %v740 = vld [vmem:[%s233 + $0xf80] sm:$0xff]
        %v741 = vld [vmem:[%s233 + $0xf88] sm:$0xff]
        %v742 = vld [vmem:[%s233 + $0xf90] sm:$0xff]
        %v743 = vld [vmem:[%s233 + $0xf98] sm:$0xff]
        %v744 = vld [vmem:[%s233 + $0xfa0] sm:$0xff]
        %v745 = vld [vmem:[%s233 + $0xfa8] sm:$0xff]
        %v746 = vld [vmem:[%s233 + $0xfb0] sm:$0xff]
        %v747 = vld [vmem:[%s233 + $0xfb8] sm:$0xff]
        %v748 = vld [vmem:[%s233 + $0xfc0] sm:$0xff]
        %v749 = vld [vmem:[%s233 + $0xfc8] sm:$0xff]
        %v750 = vld [vmem:[%s233 + $0xfd0] sm:$0xff]
        %v751 = vld [vmem:[%s233 + $0xfd8] sm:$0xff]
        %v752 = vld [vmem:[%s233 + $0xfe0] sm:$0xff]
        %v753 = vld [vmem:[%s233 + $0xfe8] sm:$0xff]
        %v754 = vld [vmem:[%s233 + $0xff0] sm:$0xff]
        %v755 = vld [vmem:[%s233 + $0xff8] sm:$0xff]
        %v758 = vcombine.high %v242, %v242
        %v760 = vunpack.c.l.s4 1966171168
        %v761 = vunpack.c.0.s8 %v760
        %v762 = vlaneseq
        %v763 = vshrl.u32 %v762, 7
        %v764 = vsub.s32 %v761, %v763
        %v765 = vrot.slane %v242, %v764
        %v767 = vunpack.c.l.s4 1966171168
        %v768 = vunpack.c.0.s8 %v767
        %v769 = vlaneseq
        %v770 = vshrl.u32 %v769, 7
        %v771 = vsub.s32 %v768, %v770
        %v772 = vrot.slane %v758, %v771
        %v773 = vcombine.high %v765, %v765
        %v774 = vcombine.high %v772, %v772
        %v776 = vunpack.c.l.s4 1966171168
        %v777 = vunpack.c.0.s8 %v776
        %v778 = vlaneseq
        %v779 = vshrl.u32 %v778, 7
        %v780 = vsub.s32 %v777, %v779
        %v781 = vrot.slane %v765, %v780
        %v783 = vunpack.c.l.s4 1966171168
        %v784 = vunpack.c.0.s8 %v783
        %v785 = vlaneseq
        %v786 = vshrl.u32 %v785, 7
        %v787 = vsub.s32 %v784, %v786
        %v788 = vrot.slane %v772, %v787
        %v790 = vunpack.c.l.s4 1966171168
        %v791 = vunpack.c.0.s8 %v790
        %v792 = vlaneseq
        %v793 = vshrl.u32 %v792, 7
        %v794 = vsub.s32 %v791, %v793
        %v795 = vrot.slane %v773, %v794
        %v797 = vunpack.c.l.s4 1966171168
        %v798 = vunpack.c.0.s8 %v797
        %v799 = vlaneseq
        %v800 = vshrl.u32 %v799, 7
        %v801 = vsub.s32 %v798, %v800
        %v802 = vrot.slane %v774, %v801
        %v803 = vcombine.high %v781, %v781
        %v804 = vcombine.high %v788, %v788
        %v805 = vcombine.high %v795, %v795
        %v806 = vcombine.high %v802, %v802
        %v807 = vcombine.high %v243, %v243
        %v809 = vunpack.c.l.s4 1966171168
        %v810 = vunpack.c.0.s8 %v809
        %v811 = vlaneseq
        %v812 = vshrl.u32 %v811, 7
        %v813 = vsub.s32 %v810, %v812
        %v814 = vrot.slane %v243, %v813
        %v816 = vunpack.c.l.s4 1966171168
        %v817 = vunpack.c.0.s8 %v816
        %v818 = vlaneseq
        %v819 = vshrl.u32 %v818, 7
        %v820 = vsub.s32 %v817, %v819
        %v821 = vrot.slane %v807, %v820
        %v822 = vcombine.high %v814, %v814
        %v823 = vcombine.high %v821, %v821
        %v825 = vunpack.c.l.s4 1966171168
        %v826 = vunpack.c.0.s8 %v825
        %v827 = vlaneseq
        %v828 = vshrl.u32 %v827, 7
        %v829 = vsub.s32 %v826, %v828
        %v830 = vrot.slane %v814, %v829
        %v832 = vunpack.c.l.s4 1966171168
        %v833 = vunpack.c.0.s8 %v832
        %v834 = vlaneseq
        %v835 = vshrl.u32 %v834, 7
        %v836 = vsub.s32 %v833, %v835
        %v837 = vrot.slane %v821, %v836
        %v839 = vunpack.c.l.s4 1966171168
        %v840 = vunpack.c.0.s8 %v839
        %v841 = vlaneseq
        %v842 = vshrl.u32 %v841, 7
        %v843 = vsub.s32 %v840, %v842
        %v844 = vrot.slane %v822, %v843
        %v846 = vunpack.c.l.s4 1966171168
        %v847 = vunpack.c.0.s8 %v846
        %v848 = vlaneseq
        %v849 = vshrl.u32 %v848, 7
        %v850 = vsub.s32 %v847, %v849
        %v851 = vrot.slane %v823, %v850
        %v852 = vcombine.high %v830, %v830
        %v853 = vcombine.high %v837, %v837
        %v854 = vcombine.high %v844, %v844
        %v855 = vcombine.high %v851, %v851
        %v1384 = vunpack.c.l.b16 %v244
        %v1385 = vunpack.c.h.b16 %v244
        %v1386 = vunpack.c.l.b16 %v245
        %v1387 = vunpack.c.h.b16 %v245
        %v1388 = vunpack.c.l.b16 %v246
        %v1389 = vunpack.c.h.b16 %v246
        %v1390 = vunpack.c.l.b16 %v247
        %v1391 = vunpack.c.h.b16 %v247
        %v1392 = vunpack.c.l.b16 %v248
        %v1393 = vunpack.c.h.b16 %v248
        %v1394 = vunpack.c.l.b16 %v249
        %v1395 = vunpack.c.h.b16 %v249
        %v1396 = vunpack.c.l.b16 %v250
        %v1397 = vunpack.c.h.b16 %v250
        %v1398 = vunpack.c.l.b16 %v251
        %v1399 = vunpack.c.h.b16 %v251
        %v1400 = vunpack.c.l.b16 %v252
        %v1401 = vunpack.c.h.b16 %v252
        %v1402 = vunpack.c.l.b16 %v253
        %v1403 = vunpack.c.h.b16 %v253
        %v1404 = vunpack.c.l.b16 %v254
        %v1405 = vunpack.c.h.b16 %v254
        %v1406 = vunpack.c.l.b16 %v255
        %v1407 = vunpack.c.h.b16 %v255
        %v1408 = vunpack.c.l.b16 %v256
        %v1409 = vunpack.c.h.b16 %v256
        %v1410 = vunpack.c.l.b16 %v257
        %v1411 = vunpack.c.h.b16 %v257
        %v1412 = vunpack.c.l.b16 %v258
        %v1413 = vunpack.c.h.b16 %v258
        %v1414 = vunpack.c.l.b16 %v259
        %v1415 = vunpack.c.h.b16 %v259
        %v1416 = vunpack.c.l.b16 %v260
        %v1417 = vunpack.c.h.b16 %v260
        %v1418 = vunpack.c.l.b16 %v261
        %v1419 = vunpack.c.h.b16 %v261
        %v1420 = vunpack.c.l.b16 %v262
        %v1421 = vunpack.c.h.b16 %v262
        %v1422 = vunpack.c.l.b16 %v263
        %v1423 = vunpack.c.h.b16 %v263
        %v1424 = vunpack.c.l.b16 %v264
        %v1425 = vunpack.c.h.b16 %v264
        %v1426 = vunpack.c.l.b16 %v265
        %v1427 = vunpack.c.h.b16 %v265
        %v1428 = vunpack.c.l.b16 %v266
        %v1429 = vunpack.c.h.b16 %v266
        %v1430 = vunpack.c.l.b16 %v267
        %v1431 = vunpack.c.h.b16 %v267
        %v1432 = vunpack.c.l.b16 %v268
        %v1433 = vunpack.c.h.b16 %v268
        %v1434 = vunpack.c.l.b16 %v269
        %v1435 = vunpack.c.h.b16 %v269
        %v1436 = vunpack.c.l.b16 %v270
        %v1437 = vunpack.c.h.b16 %v270
        %v1438 = vunpack.c.l.b16 %v271
        %v1439 = vunpack.c.h.b16 %v271
        %v1440 = vunpack.c.l.b16 %v272
        %v1441 = vunpack.c.h.b16 %v272
        %v1442 = vunpack.c.l.b16 %v273
        %v1443 = vunpack.c.h.b16 %v273
        %v1444 = vunpack.c.l.b16 %v274
        %v1445 = vunpack.c.h.b16 %v274
        %v1446 = vunpack.c.l.b16 %v275
        %v1447 = vunpack.c.h.b16 %v275
        %v1448 = vunpack.c.l.b16 %v276
        %v1449 = vunpack.c.h.b16 %v276
        %v1450 = vunpack.c.l.b16 %v277
        %v1451 = vunpack.c.h.b16 %v277
        %v1452 = vunpack.c.l.b16 %v278
        %v1453 = vunpack.c.h.b16 %v278
        %v1454 = vunpack.c.l.b16 %v279
        %v1455 = vunpack.c.h.b16 %v279
        %v1456 = vunpack.c.l.b16 %v280
        %v1457 = vunpack.c.h.b16 %v280
        %v1458 = vunpack.c.l.b16 %v281
        %v1459 = vunpack.c.h.b16 %v281
        %v1460 = vunpack.c.l.b16 %v282
        %v1461 = vunpack.c.h.b16 %v282
        %v1462 = vunpack.c.l.b16 %v283
        %v1463 = vunpack.c.h.b16 %v283
        %v1464 = vunpack.c.l.b16 %v284
        %v1465 = vunpack.c.h.b16 %v284
        %v1466 = vunpack.c.l.b16 %v285
        %v1467 = vunpack.c.h.b16 %v285
        %v1468 = vunpack.c.l.b16 %v286
        %v1469 = vunpack.c.h.b16 %v286
        %v1470 = vunpack.c.l.b16 %v287
        %v1471 = vunpack.c.h.b16 %v287
        %v1472 = vunpack.c.l.b16 %v288
        %v1473 = vunpack.c.h.b16 %v288
        %v1474 = vunpack.c.l.b16 %v289
        %v1475 = vunpack.c.h.b16 %v289
        %v1476 = vunpack.c.l.b16 %v290
        %v1477 = vunpack.c.h.b16 %v290
        %v1478 = vunpack.c.l.b16 %v291
        %v1479 = vunpack.c.h.b16 %v291
        %v1480 = vunpack.c.l.b16 %v292
        %v1481 = vunpack.c.h.b16 %v292
        %v1482 = vunpack.c.l.b16 %v293
        %v1483 = vunpack.c.h.b16 %v293
        %v1484 = vunpack.c.l.b16 %v294
        %v1485 = vunpack.c.h.b16 %v294
        %v1486 = vunpack.c.l.b16 %v295
        %v1487 = vunpack.c.h.b16 %v295
        %v1488 = vunpack.c.l.b16 %v296
        %v1489 = vunpack.c.h.b16 %v296
        %v1490 = vunpack.c.l.b16 %v297
        %v1491 = vunpack.c.h.b16 %v297
        %v1492 = vunpack.c.l.b16 %v298
        %v1493 = vunpack.c.h.b16 %v298
        %v1494 = vunpack.c.l.b16 %v299
        %v1495 = vunpack.c.h.b16 %v299
        %v1496 = vunpack.c.l.b16 %v300
        %v1497 = vunpack.c.h.b16 %v300
        %v1498 = vunpack.c.l.b16 %v301
        %v1499 = vunpack.c.h.b16 %v301
        %v1500 = vunpack.c.l.b16 %v302
        %v1501 = vunpack.c.h.b16 %v302
        %v1502 = vunpack.c.l.b16 %v303
        %v1503 = vunpack.c.h.b16 %v303
        %v1504 = vunpack.c.l.b16 %v304
        %v1505 = vunpack.c.h.b16 %v304
        %v1506 = vunpack.c.l.b16 %v305
        %v1507 = vunpack.c.h.b16 %v305
        %v1508 = vunpack.c.l.b16 %v306
        %v1509 = vunpack.c.h.b16 %v306
        %v1510 = vunpack.c.l.b16 %v307
        %v1511 = vunpack.c.h.b16 %v307
        %v1512 = vunpack.c.l.b16 %v308
        %v1513 = vunpack.c.h.b16 %v308
        %v1514 = vunpack.c.l.b16 %v309
        %v1515 = vunpack.c.h.b16 %v309
        %v1516 = vunpack.c.l.b16 %v310
        %v1517 = vunpack.c.h.b16 %v310
        %v1518 = vunpack.c.l.b16 %v311
        %v1519 = vunpack.c.h.b16 %v311
        %v1520 = vunpack.c.l.b16 %v312
        %v1521 = vunpack.c.h.b16 %v312
        %v1522 = vunpack.c.l.b16 %v313
        %v1523 = vunpack.c.h.b16 %v313
        %v1524 = vunpack.c.l.b16 %v314
        %v1525 = vunpack.c.h.b16 %v314
        %v1526 = vunpack.c.l.b16 %v315
        %v1527 = vunpack.c.h.b16 %v315
        %v1528 = vunpack.c.l.b16 %v316
        %v1529 = vunpack.c.h.b16 %v316
        %v1530 = vunpack.c.l.b16 %v317
        %v1531 = vunpack.c.h.b16 %v317
        %v1532 = vunpack.c.l.b16 %v318
        %v1533 = vunpack.c.h.b16 %v318
        %v1534 = vunpack.c.l.b16 %v319
        %v1535 = vunpack.c.h.b16 %v319
        %v1536 = vunpack.c.l.b16 %v320
        %v1537 = vunpack.c.h.b16 %v320
        %v1538 = vunpack.c.l.b16 %v321
        %v1539 = vunpack.c.h.b16 %v321
        %v1540 = vunpack.c.l.b16 %v322
        %v1541 = vunpack.c.h.b16 %v322
        %v1542 = vunpack.c.l.b16 %v323
        %v1543 = vunpack.c.h.b16 %v323
        %v1544 = vunpack.c.l.b16 %v324
        %v1545 = vunpack.c.h.b16 %v324
        %v1546 = vunpack.c.l.b16 %v325
        %v1547 = vunpack.c.h.b16 %v325
        %v1548 = vunpack.c.l.b16 %v326
        %v1549 = vunpack.c.h.b16 %v326
        %v1550 = vunpack.c.l.b16 %v327
        %v1551 = vunpack.c.h.b16 %v327
        %v1552 = vunpack.c.l.b16 %v328
        %v1553 = vunpack.c.h.b16 %v328
        %v1554 = vunpack.c.l.b16 %v329
        %v1555 = vunpack.c.h.b16 %v329
        %v1556 = vunpack.c.l.b16 %v330
        %v1557 = vunpack.c.h.b16 %v330
        %v1558 = vunpack.c.l.b16 %v331
        %v1559 = vunpack.c.h.b16 %v331
        %v1560 = vunpack.c.l.b16 %v332
        %v1561 = vunpack.c.h.b16 %v332
        %v1562 = vunpack.c.l.b16 %v333
        %v1563 = vunpack.c.h.b16 %v333
        %v1564 = vunpack.c.l.b16 %v334
        %v1565 = vunpack.c.h.b16 %v334
        %v1566 = vunpack.c.l.b16 %v335
        %v1567 = vunpack.c.h.b16 %v335
        %v1568 = vunpack.c.l.b16 %v336
        %v1569 = vunpack.c.h.b16 %v336
        %v1570 = vunpack.c.l.b16 %v337
        %v1571 = vunpack.c.h.b16 %v337
        %v1572 = vunpack.c.l.b16 %v338
        %v1573 = vunpack.c.h.b16 %v338
        %v1574 = vunpack.c.l.b16 %v339
        %v1575 = vunpack.c.h.b16 %v339
        %v1576 = vunpack.c.l.b16 %v340
        %v1577 = vunpack.c.h.b16 %v340
        %v1578 = vunpack.c.l.b16 %v341
        %v1579 = vunpack.c.h.b16 %v341
        %v1580 = vunpack.c.l.b16 %v342
        %v1581 = vunpack.c.h.b16 %v342
        %v1582 = vunpack.c.l.b16 %v343
        %v1583 = vunpack.c.h.b16 %v343
        %v1584 = vunpack.c.l.b16 %v344
        %v1585 = vunpack.c.h.b16 %v344
        %v1586 = vunpack.c.l.b16 %v345
        %v1587 = vunpack.c.h.b16 %v345
        %v1588 = vunpack.c.l.b16 %v346
        %v1589 = vunpack.c.h.b16 %v346
        %v1590 = vunpack.c.l.b16 %v347
        %v1591 = vunpack.c.h.b16 %v347
        %v1592 = vunpack.c.l.b16 %v348
        %v1593 = vunpack.c.h.b16 %v348
        %v1594 = vunpack.c.l.b16 %v349
        %v1595 = vunpack.c.h.b16 %v349
        %v1596 = vunpack.c.l.b16 %v350
        %v1597 = vunpack.c.h.b16 %v350
        %v1598 = vunpack.c.l.b16 %v351
        %v1599 = vunpack.c.h.b16 %v351
        %v1600 = vunpack.c.l.b16 %v352
        %v1601 = vunpack.c.h.b16 %v352
        %v1602 = vunpack.c.l.b16 %v353
        %v1603 = vunpack.c.h.b16 %v353
        %v1604 = vunpack.c.l.b16 %v354
        %v1605 = vunpack.c.h.b16 %v354
        %v1606 = vunpack.c.l.b16 %v355
        %v1607 = vunpack.c.h.b16 %v355
        %v1608 = vunpack.c.l.b16 %v356
        %v1609 = vunpack.c.h.b16 %v356
        %v1610 = vunpack.c.l.b16 %v357
        %v1611 = vunpack.c.h.b16 %v357
        %v1612 = vunpack.c.l.b16 %v358
        %v1613 = vunpack.c.h.b16 %v358
        %v1614 = vunpack.c.l.b16 %v359
        %v1615 = vunpack.c.h.b16 %v359
        %v1616 = vunpack.c.l.b16 %v360
        %v1617 = vunpack.c.h.b16 %v360
        %v1618 = vunpack.c.l.b16 %v361
        %v1619 = vunpack.c.h.b16 %v361
        %v1620 = vunpack.c.l.b16 %v362
        %v1621 = vunpack.c.h.b16 %v362
        %v1622 = vunpack.c.l.b16 %v363
        %v1623 = vunpack.c.h.b16 %v363
        %v1624 = vunpack.c.l.b16 %v364
        %v1625 = vunpack.c.h.b16 %v364
        %v1626 = vunpack.c.l.b16 %v365
        %v1627 = vunpack.c.h.b16 %v365
        %v1628 = vunpack.c.l.b16 %v366
        %v1629 = vunpack.c.h.b16 %v366
        %v1630 = vunpack.c.l.b16 %v367
        %v1631 = vunpack.c.h.b16 %v367
        %v1632 = vunpack.c.l.b16 %v368
        %v1633 = vunpack.c.h.b16 %v368
        %v1634 = vunpack.c.l.b16 %v369
        %v1635 = vunpack.c.h.b16 %v369
        %v1636 = vunpack.c.l.b16 %v370
        %v1637 = vunpack.c.h.b16 %v370
        %v1638 = vunpack.c.l.b16 %v371
        %v1639 = vunpack.c.h.b16 %v371
        %v1640 = vunpack.c.l.b16 %v372
        %v1641 = vunpack.c.h.b16 %v372
        %v1642 = vunpack.c.l.b16 %v373
        %v1643 = vunpack.c.h.b16 %v373
        %v1644 = vunpack.c.l.b16 %v374
        %v1645 = vunpack.c.h.b16 %v374
        %v1646 = vunpack.c.l.b16 %v375
        %v1647 = vunpack.c.h.b16 %v375
        %v1648 = vunpack.c.l.b16 %v376
        %v1649 = vunpack.c.h.b16 %v376
        %v1650 = vunpack.c.l.b16 %v377
        %v1651 = vunpack.c.h.b16 %v377
        %v1652 = vunpack.c.l.b16 %v378
        %v1653 = vunpack.c.h.b16 %v378
        %v1654 = vunpack.c.l.b16 %v379
        %v1655 = vunpack.c.h.b16 %v379
        %v1656 = vunpack.c.l.b16 %v380
        %v1657 = vunpack.c.h.b16 %v380
        %v1658 = vunpack.c.l.b16 %v381
        %v1659 = vunpack.c.h.b16 %v381
        %v1660 = vunpack.c.l.b16 %v382
        %v1661 = vunpack.c.h.b16 %v382
        %v1662 = vunpack.c.l.b16 %v383
        %v1663 = vunpack.c.h.b16 %v383
        %v1664 = vunpack.c.l.b16 %v384
        %v1665 = vunpack.c.h.b16 %v384
        %v1666 = vunpack.c.l.b16 %v385
        %v1667 = vunpack.c.h.b16 %v385
        %v1668 = vunpack.c.l.b16 %v386
        %v1669 = vunpack.c.h.b16 %v386
        %v1670 = vunpack.c.l.b16 %v387
        %v1671 = vunpack.c.h.b16 %v387
        %v1672 = vunpack.c.l.b16 %v388
        %v1673 = vunpack.c.h.b16 %v388
        %v1674 = vunpack.c.l.b16 %v389
        %v1675 = vunpack.c.h.b16 %v389
        %v1676 = vunpack.c.l.b16 %v390
        %v1677 = vunpack.c.h.b16 %v390
        %v1678 = vunpack.c.l.b16 %v391
        %v1679 = vunpack.c.h.b16 %v391
        %v1680 = vunpack.c.l.b16 %v392
        %v1681 = vunpack.c.h.b16 %v392
        %v1682 = vunpack.c.l.b16 %v393
        %v1683 = vunpack.c.h.b16 %v393
        %v1684 = vunpack.c.l.b16 %v394
        %v1685 = vunpack.c.h.b16 %v394
        %v1686 = vunpack.c.l.b16 %v395
        %v1687 = vunpack.c.h.b16 %v395
        %v1688 = vunpack.c.l.b16 %v396
        %v1689 = vunpack.c.h.b16 %v396
        %v1690 = vunpack.c.l.b16 %v397
        %v1691 = vunpack.c.h.b16 %v397
        %v1692 = vunpack.c.l.b16 %v398
        %v1693 = vunpack.c.h.b16 %v398
        %v1694 = vunpack.c.l.b16 %v399
        %v1695 = vunpack.c.h.b16 %v399
        %v1696 = vunpack.c.l.b16 %v400
        %v1697 = vunpack.c.h.b16 %v400
        %v1698 = vunpack.c.l.b16 %v401
        %v1699 = vunpack.c.h.b16 %v401
        %v1700 = vunpack.c.l.b16 %v402
        %v1701 = vunpack.c.h.b16 %v402
        %v1702 = vunpack.c.l.b16 %v403
        %v1703 = vunpack.c.h.b16 %v403
        %v1704 = vunpack.c.l.b16 %v404
        %v1705 = vunpack.c.h.b16 %v404
        %v1706 = vunpack.c.l.b16 %v405
        %v1707 = vunpack.c.h.b16 %v405
        %v1708 = vunpack.c.l.b16 %v406
        %v1709 = vunpack.c.h.b16 %v406
        %v1710 = vunpack.c.l.b16 %v407
        %v1711 = vunpack.c.h.b16 %v407
        %v1712 = vunpack.c.l.b16 %v408
        %v1713 = vunpack.c.h.b16 %v408
        %v1714 = vunpack.c.l.b16 %v409
        %v1715 = vunpack.c.h.b16 %v409
        %v1716 = vunpack.c.l.b16 %v410
        %v1717 = vunpack.c.h.b16 %v410
        %v1718 = vunpack.c.l.b16 %v411
        %v1719 = vunpack.c.h.b16 %v411
        %v1720 = vunpack.c.l.b16 %v412
        %v1721 = vunpack.c.h.b16 %v412
        %v1722 = vunpack.c.l.b16 %v413
        %v1723 = vunpack.c.h.b16 %v413
        %v1724 = vunpack.c.l.b16 %v414
        %v1725 = vunpack.c.h.b16 %v414
        %v1726 = vunpack.c.l.b16 %v415
        %v1727 = vunpack.c.h.b16 %v415
        %v1728 = vunpack.c.l.b16 %v416
        %v1729 = vunpack.c.h.b16 %v416
        %v1730 = vunpack.c.l.b16 %v417
        %v1731 = vunpack.c.h.b16 %v417
        %v1732 = vunpack.c.l.b16 %v418
        %v1733 = vunpack.c.h.b16 %v418
        %v1734 = vunpack.c.l.b16 %v419
        %v1735 = vunpack.c.h.b16 %v419
        %v1736 = vunpack.c.l.b16 %v420
        %v1737 = vunpack.c.h.b16 %v420
        %v1738 = vunpack.c.l.b16 %v421
        %v1739 = vunpack.c.h.b16 %v421
        %v1740 = vunpack.c.l.b16 %v422
        %v1741 = vunpack.c.h.b16 %v422
        %v1742 = vunpack.c.l.b16 %v423
        %v1743 = vunpack.c.h.b16 %v423
        %v1744 = vunpack.c.l.b16 %v424
        %v1745 = vunpack.c.h.b16 %v424
        %v1746 = vunpack.c.l.b16 %v425
        %v1747 = vunpack.c.h.b16 %v425
        %v1748 = vunpack.c.l.b16 %v426
        %v1749 = vunpack.c.h.b16 %v426
        %v1750 = vunpack.c.l.b16 %v427
        %v1751 = vunpack.c.h.b16 %v427
        %v1752 = vunpack.c.l.b16 %v428
        %v1753 = vunpack.c.h.b16 %v428
        %v1754 = vunpack.c.l.b16 %v429
        %v1755 = vunpack.c.h.b16 %v429
        %v1756 = vunpack.c.l.b16 %v430
        %v1757 = vunpack.c.h.b16 %v430
        %v1758 = vunpack.c.l.b16 %v431
        %v1759 = vunpack.c.h.b16 %v431
        %v1760 = vunpack.c.l.b16 %v432
        %v1761 = vunpack.c.h.b16 %v432
        %v1762 = vunpack.c.l.b16 %v433
        %v1763 = vunpack.c.h.b16 %v433
        %v1764 = vunpack.c.l.b16 %v434
        %v1765 = vunpack.c.h.b16 %v434
        %v1766 = vunpack.c.l.b16 %v435
        %v1767 = vunpack.c.h.b16 %v435
        %v1768 = vunpack.c.l.b16 %v436
        %v1769 = vunpack.c.h.b16 %v436
        %v1770 = vunpack.c.l.b16 %v437
        %v1771 = vunpack.c.h.b16 %v437
        %v1772 = vunpack.c.l.b16 %v438
        %v1773 = vunpack.c.h.b16 %v438
        %v1774 = vunpack.c.l.b16 %v439
        %v1775 = vunpack.c.h.b16 %v439
        %v1776 = vunpack.c.l.b16 %v440
        %v1777 = vunpack.c.h.b16 %v440
        %v1778 = vunpack.c.l.b16 %v441
        %v1779 = vunpack.c.h.b16 %v441
        %v1780 = vunpack.c.l.b16 %v442
        %v1781 = vunpack.c.h.b16 %v442
        %v1782 = vunpack.c.l.b16 %v443
        %v1783 = vunpack.c.h.b16 %v443
        %v1784 = vunpack.c.l.b16 %v444
        %v1785 = vunpack.c.h.b16 %v444
        %v1786 = vunpack.c.l.b16 %v445
        %v1787 = vunpack.c.h.b16 %v445
        %v1788 = vunpack.c.l.b16 %v446
        %v1789 = vunpack.c.h.b16 %v446
        %v1790 = vunpack.c.l.b16 %v447
        %v1791 = vunpack.c.h.b16 %v447
        %v1792 = vunpack.c.l.b16 %v448
        %v1793 = vunpack.c.h.b16 %v448
        %v1794 = vunpack.c.l.b16 %v449
        %v1795 = vunpack.c.h.b16 %v449
        %v1796 = vunpack.c.l.b16 %v450
        %v1797 = vunpack.c.h.b16 %v450
        %v1798 = vunpack.c.l.b16 %v451
        %v1799 = vunpack.c.h.b16 %v451
        %v1800 = vunpack.c.l.b16 %v452
        %v1801 = vunpack.c.h.b16 %v452
        %v1802 = vunpack.c.l.b16 %v453
        %v1803 = vunpack.c.h.b16 %v453
        %v1804 = vunpack.c.l.b16 %v454
        %v1805 = vunpack.c.h.b16 %v454
        %v1806 = vunpack.c.l.b16 %v455
        %v1807 = vunpack.c.h.b16 %v455
        %v1808 = vunpack.c.l.b16 %v456
        %v1809 = vunpack.c.h.b16 %v456
        %v1810 = vunpack.c.l.b16 %v457
        %v1811 = vunpack.c.h.b16 %v457
        %v1812 = vunpack.c.l.b16 %v458
        %v1813 = vunpack.c.h.b16 %v458
        %v1814 = vunpack.c.l.b16 %v459
        %v1815 = vunpack.c.h.b16 %v459
        %v1816 = vunpack.c.l.b16 %v460
        %v1817 = vunpack.c.h.b16 %v460
        %v1818 = vunpack.c.l.b16 %v461
        %v1819 = vunpack.c.h.b16 %v461
        %v1820 = vunpack.c.l.b16 %v462
        %v1821 = vunpack.c.h.b16 %v462
        %v1822 = vunpack.c.l.b16 %v463
        %v1823 = vunpack.c.h.b16 %v463
        %v1824 = vunpack.c.l.b16 %v464
        %v1825 = vunpack.c.h.b16 %v464
        %v1826 = vunpack.c.l.b16 %v465
        %v1827 = vunpack.c.h.b16 %v465
        %v1828 = vunpack.c.l.b16 %v466
        %v1829 = vunpack.c.h.b16 %v466
        %v1830 = vunpack.c.l.b16 %v467
        %v1831 = vunpack.c.h.b16 %v467
        %v1832 = vunpack.c.l.b16 %v468
        %v1833 = vunpack.c.h.b16 %v468
        %v1834 = vunpack.c.l.b16 %v469
        %v1835 = vunpack.c.h.b16 %v469
        %v1836 = vunpack.c.l.b16 %v470
        %v1837 = vunpack.c.h.b16 %v470
        %v1838 = vunpack.c.l.b16 %v471
        %v1839 = vunpack.c.h.b16 %v471
        %v1840 = vunpack.c.l.b16 %v472
        %v1841 = vunpack.c.h.b16 %v472
        %v1842 = vunpack.c.l.b16 %v473
        %v1843 = vunpack.c.h.b16 %v473
        %v1844 = vunpack.c.l.b16 %v474
        %v1845 = vunpack.c.h.b16 %v474
        %v1846 = vunpack.c.l.b16 %v475
        %v1847 = vunpack.c.h.b16 %v475
        %v1848 = vunpack.c.l.b16 %v476
        %v1849 = vunpack.c.h.b16 %v476
        %v1850 = vunpack.c.l.b16 %v477
        %v1851 = vunpack.c.h.b16 %v477
        %v1852 = vunpack.c.l.b16 %v478
        %v1853 = vunpack.c.h.b16 %v478
        %v1854 = vunpack.c.l.b16 %v479
        %v1855 = vunpack.c.h.b16 %v479
        %v1856 = vunpack.c.l.b16 %v480
        %v1857 = vunpack.c.h.b16 %v480
        %v1858 = vunpack.c.l.b16 %v481
        %v1859 = vunpack.c.h.b16 %v481
        %v1860 = vunpack.c.l.b16 %v482
        %v1861 = vunpack.c.h.b16 %v482
        %v1862 = vunpack.c.l.b16 %v483
        %v1863 = vunpack.c.h.b16 %v483
        %v1864 = vunpack.c.l.b16 %v484
        %v1865 = vunpack.c.h.b16 %v484
        %v1866 = vunpack.c.l.b16 %v485
        %v1867 = vunpack.c.h.b16 %v485
        %v1868 = vunpack.c.l.b16 %v486
        %v1869 = vunpack.c.h.b16 %v486
        %v1870 = vunpack.c.l.b16 %v487
        %v1871 = vunpack.c.h.b16 %v487
        %v1872 = vunpack.c.l.b16 %v488
        %v1873 = vunpack.c.h.b16 %v488
        %v1874 = vunpack.c.l.b16 %v489
        %v1875 = vunpack.c.h.b16 %v489
        %v1876 = vunpack.c.l.b16 %v490
        %v1877 = vunpack.c.h.b16 %v490
        %v1878 = vunpack.c.l.b16 %v491
        %v1879 = vunpack.c.h.b16 %v491
        %v1880 = vunpack.c.l.b16 %v492
        %v1881 = vunpack.c.h.b16 %v492
        %v1882 = vunpack.c.l.b16 %v493
        %v1883 = vunpack.c.h.b16 %v493
        %v1884 = vunpack.c.l.b16 %v494
        %v1885 = vunpack.c.h.b16 %v494
        %v1886 = vunpack.c.l.b16 %v495
        %v1887 = vunpack.c.h.b16 %v495
        %v1888 = vunpack.c.l.b16 %v496
        %v1889 = vunpack.c.h.b16 %v496
        %v1890 = vunpack.c.l.b16 %v497
        %v1891 = vunpack.c.h.b16 %v497
        %v1892 = vunpack.c.l.b16 %v498
        %v1893 = vunpack.c.h.b16 %v498
        %v1894 = vunpack.c.l.b16 %v499
        %v1895 = vunpack.c.h.b16 %v499
        %v1896 = vunpack.c.l.b16 %v500
        %v1897 = vunpack.c.h.b16 %v500
        %v1898 = vunpack.c.l.b16 %v501
        %v1899 = vunpack.c.h.b16 %v501
        %v1900 = vunpack.c.l.b16 %v502
        %v1901 = vunpack.c.h.b16 %v502
        %v1902 = vunpack.c.l.b16 %v503
        %v1903 = vunpack.c.h.b16 %v503
        %v1904 = vunpack.c.l.b16 %v504
        %v1905 = vunpack.c.h.b16 %v504
        %v1906 = vunpack.c.l.b16 %v505
        %v1907 = vunpack.c.h.b16 %v505
        %v1908 = vunpack.c.l.b16 %v506
        %v1909 = vunpack.c.h.b16 %v506
        %v1910 = vunpack.c.l.b16 %v507
        %v1911 = vunpack.c.h.b16 %v507
        %v1912 = vunpack.c.l.b16 %v508
        %v1913 = vunpack.c.h.b16 %v508
        %v1914 = vunpack.c.l.b16 %v509
        %v1915 = vunpack.c.h.b16 %v509
        %v1916 = vunpack.c.l.b16 %v510
        %v1917 = vunpack.c.h.b16 %v510
        %v1918 = vunpack.c.l.b16 %v511
        %v1919 = vunpack.c.h.b16 %v511
        %v1920 = vunpack.c.l.b16 %v512
        %v1921 = vunpack.c.h.b16 %v512
        %v1922 = vunpack.c.l.b16 %v513
        %v1923 = vunpack.c.h.b16 %v513
        %v1924 = vunpack.c.l.b16 %v514
        %v1925 = vunpack.c.h.b16 %v514
        %v1926 = vunpack.c.l.b16 %v515
        %v1927 = vunpack.c.h.b16 %v515
        %v1928 = vunpack.c.l.b16 %v516
        %v1929 = vunpack.c.h.b16 %v516
        %v1930 = vunpack.c.l.b16 %v517
        %v1931 = vunpack.c.h.b16 %v517
        %v1932 = vunpack.c.l.b16 %v518
        %v1933 = vunpack.c.h.b16 %v518
        %v1934 = vunpack.c.l.b16 %v519
        %v1935 = vunpack.c.h.b16 %v519
        %v1936 = vunpack.c.l.b16 %v520
        %v1937 = vunpack.c.h.b16 %v520
        %v1938 = vunpack.c.l.b16 %v521
        %v1939 = vunpack.c.h.b16 %v521
        %v1940 = vunpack.c.l.b16 %v522
        %v1941 = vunpack.c.h.b16 %v522
        %v1942 = vunpack.c.l.b16 %v523
        %v1943 = vunpack.c.h.b16 %v523
        %v1944 = vunpack.c.l.b16 %v524
        %v1945 = vunpack.c.h.b16 %v524
        %v1946 = vunpack.c.l.b16 %v525
        %v1947 = vunpack.c.h.b16 %v525
        %v1948 = vunpack.c.l.b16 %v526
        %v1949 = vunpack.c.h.b16 %v526
        %v1950 = vunpack.c.l.b16 %v527
        %v1951 = vunpack.c.h.b16 %v527
        %v1952 = vunpack.c.l.b16 %v528
        %v1953 = vunpack.c.h.b16 %v528
        %v1954 = vunpack.c.l.b16 %v529
        %v1955 = vunpack.c.h.b16 %v529
        %v1956 = vunpack.c.l.b16 %v530
        %v1957 = vunpack.c.h.b16 %v530
        %v1958 = vunpack.c.l.b16 %v531
        %v1959 = vunpack.c.h.b16 %v531
        %v1960 = vunpack.c.l.b16 %v532
        %v1961 = vunpack.c.h.b16 %v532
        %v1962 = vunpack.c.l.b16 %v533
        %v1963 = vunpack.c.h.b16 %v533
        %v1964 = vunpack.c.l.b16 %v534
        %v1965 = vunpack.c.h.b16 %v534
        %v1966 = vunpack.c.l.b16 %v535
        %v1967 = vunpack.c.h.b16 %v535
        %v1968 = vunpack.c.l.b16 %v536
        %v1969 = vunpack.c.h.b16 %v536
        %v1970 = vunpack.c.l.b16 %v537
        %v1971 = vunpack.c.h.b16 %v537
        %v1972 = vunpack.c.l.b16 %v538
        %v1973 = vunpack.c.h.b16 %v538
        %v1974 = vunpack.c.l.b16 %v539
        %v1975 = vunpack.c.h.b16 %v539
        %v1976 = vunpack.c.l.b16 %v540
        %v1977 = vunpack.c.h.b16 %v540
        %v1978 = vunpack.c.l.b16 %v541
        %v1979 = vunpack.c.h.b16 %v541
        %v1980 = vunpack.c.l.b16 %v542
        %v1981 = vunpack.c.h.b16 %v542
        %v1982 = vunpack.c.l.b16 %v543
        %v1983 = vunpack.c.h.b16 %v543
        %v1984 = vunpack.c.l.b16 %v544
        %v1985 = vunpack.c.h.b16 %v544
        %v1986 = vunpack.c.l.b16 %v545
        %v1987 = vunpack.c.h.b16 %v545
        %v1988 = vunpack.c.l.b16 %v546
        %v1989 = vunpack.c.h.b16 %v546
        %v1990 = vunpack.c.l.b16 %v547
        %v1991 = vunpack.c.h.b16 %v547
        %v1992 = vunpack.c.l.b16 %v548
        %v1993 = vunpack.c.h.b16 %v548
        %v1994 = vunpack.c.l.b16 %v549
        %v1995 = vunpack.c.h.b16 %v549
        %v1996 = vunpack.c.l.b16 %v550
        %v1997 = vunpack.c.h.b16 %v550
        %v1998 = vunpack.c.l.b16 %v551
        %v1999 = vunpack.c.h.b16 %v551
        %v2000 = vunpack.c.l.b16 %v552
        %v2001 = vunpack.c.h.b16 %v552
        %v2002 = vunpack.c.l.b16 %v553
        %v2003 = vunpack.c.h.b16 %v553
        %v2004 = vunpack.c.l.b16 %v554
        %v2005 = vunpack.c.h.b16 %v554
        %v2006 = vunpack.c.l.b16 %v555
        %v2007 = vunpack.c.h.b16 %v555
        %v2008 = vunpack.c.l.b16 %v556
        %v2009 = vunpack.c.h.b16 %v556
        %v2010 = vunpack.c.l.b16 %v557
        %v2011 = vunpack.c.h.b16 %v557
        %v2012 = vunpack.c.l.b16 %v558
        %v2013 = vunpack.c.h.b16 %v558
        %v2014 = vunpack.c.l.b16 %v559
        %v2015 = vunpack.c.h.b16 %v559
        %v2016 = vunpack.c.l.b16 %v560
        %v2017 = vunpack.c.h.b16 %v560
        %v2018 = vunpack.c.l.b16 %v561
        %v2019 = vunpack.c.h.b16 %v561
        %v2020 = vunpack.c.l.b16 %v562
        %v2021 = vunpack.c.h.b16 %v562
        %v2022 = vunpack.c.l.b16 %v563
        %v2023 = vunpack.c.h.b16 %v563
        %v2024 = vunpack.c.l.b16 %v564
        %v2025 = vunpack.c.h.b16 %v564
        %v2026 = vunpack.c.l.b16 %v565
        %v2027 = vunpack.c.h.b16 %v565
        %v2028 = vunpack.c.l.b16 %v566
        %v2029 = vunpack.c.h.b16 %v566
        %v2030 = vunpack.c.l.b16 %v567
        %v2031 = vunpack.c.h.b16 %v567
        %v2032 = vunpack.c.l.b16 %v568
        %v2033 = vunpack.c.h.b16 %v568
        %v2034 = vunpack.c.l.b16 %v569
        %v2035 = vunpack.c.h.b16 %v569
        %v2036 = vunpack.c.l.b16 %v570
        %v2037 = vunpack.c.h.b16 %v570
        %v2038 = vunpack.c.l.b16 %v571
        %v2039 = vunpack.c.h.b16 %v571
        %v2040 = vunpack.c.l.b16 %v572
        %v2041 = vunpack.c.h.b16 %v572
        %v2042 = vunpack.c.l.b16 %v573
        %v2043 = vunpack.c.h.b16 %v573
        %v2044 = vunpack.c.l.b16 %v574
        %v2045 = vunpack.c.h.b16 %v574
        %v2046 = vunpack.c.l.b16 %v575
        %v2047 = vunpack.c.h.b16 %v575
        %v2048 = vunpack.c.l.b16 %v576
        %v2049 = vunpack.c.h.b16 %v576
        %v2050 = vunpack.c.l.b16 %v577
        %v2051 = vunpack.c.h.b16 %v577
        %v2052 = vunpack.c.l.b16 %v578
        %v2053 = vunpack.c.h.b16 %v578
        %v2054 = vunpack.c.l.b16 %v579
        %v2055 = vunpack.c.h.b16 %v579
        %v2056 = vunpack.c.l.b16 %v580
        %v2057 = vunpack.c.h.b16 %v580
        %v2058 = vunpack.c.l.b16 %v581
        %v2059 = vunpack.c.h.b16 %v581
        %v2060 = vunpack.c.l.b16 %v582
        %v2061 = vunpack.c.h.b16 %v582
        %v2062 = vunpack.c.l.b16 %v583
        %v2063 = vunpack.c.h.b16 %v583
        %v2064 = vunpack.c.l.b16 %v584
        %v2065 = vunpack.c.h.b16 %v584
        %v2066 = vunpack.c.l.b16 %v585
        %v2067 = vunpack.c.h.b16 %v585
        %v2068 = vunpack.c.l.b16 %v586
        %v2069 = vunpack.c.h.b16 %v586
        %v2070 = vunpack.c.l.b16 %v587
        %v2071 = vunpack.c.h.b16 %v587
        %v2072 = vunpack.c.l.b16 %v588
        %v2073 = vunpack.c.h.b16 %v588
        %v2074 = vunpack.c.l.b16 %v589
        %v2075 = vunpack.c.h.b16 %v589
        %v2076 = vunpack.c.l.b16 %v590
        %v2077 = vunpack.c.h.b16 %v590
        %v2078 = vunpack.c.l.b16 %v591
        %v2079 = vunpack.c.h.b16 %v591
        %v2080 = vunpack.c.l.b16 %v592
        %v2081 = vunpack.c.h.b16 %v592
        %v2082 = vunpack.c.l.b16 %v593
        %v2083 = vunpack.c.h.b16 %v593
        %v2084 = vunpack.c.l.b16 %v594
        %v2085 = vunpack.c.h.b16 %v594
        %v2086 = vunpack.c.l.b16 %v595
        %v2087 = vunpack.c.h.b16 %v595
        %v2088 = vunpack.c.l.b16 %v596
        %v2089 = vunpack.c.h.b16 %v596
        %v2090 = vunpack.c.l.b16 %v597
        %v2091 = vunpack.c.h.b16 %v597
        %v2092 = vunpack.c.l.b16 %v598
        %v2093 = vunpack.c.h.b16 %v598
        %v2094 = vunpack.c.l.b16 %v599
        %v2095 = vunpack.c.h.b16 %v599
        %v2096 = vunpack.c.l.b16 %v600
        %v2097 = vunpack.c.h.b16 %v600
        %v2098 = vunpack.c.l.b16 %v601
        %v2099 = vunpack.c.h.b16 %v601
        %v2100 = vunpack.c.l.b16 %v602
        %v2101 = vunpack.c.h.b16 %v602
        %v2102 = vunpack.c.l.b16 %v603
        %v2103 = vunpack.c.h.b16 %v603
        %v2104 = vunpack.c.l.b16 %v604
        %v2105 = vunpack.c.h.b16 %v604
        %v2106 = vunpack.c.l.b16 %v605
        %v2107 = vunpack.c.h.b16 %v605
        %v2108 = vunpack.c.l.b16 %v606
        %v2109 = vunpack.c.h.b16 %v606
        %v2110 = vunpack.c.l.b16 %v607
        %v2111 = vunpack.c.h.b16 %v607
        %v2112 = vunpack.c.l.b16 %v608
        %v2113 = vunpack.c.h.b16 %v608
        %v2114 = vunpack.c.l.b16 %v609
        %v2115 = vunpack.c.h.b16 %v609
        %v2116 = vunpack.c.l.b16 %v610
        %v2117 = vunpack.c.h.b16 %v610
        %v2118 = vunpack.c.l.b16 %v611
        %v2119 = vunpack.c.h.b16 %v611
        %v2120 = vunpack.c.l.b16 %v612
        %v2121 = vunpack.c.h.b16 %v612
        %v2122 = vunpack.c.l.b16 %v613
        %v2123 = vunpack.c.h.b16 %v613
        %v2124 = vunpack.c.l.b16 %v614
        %v2125 = vunpack.c.h.b16 %v614
        %v2126 = vunpack.c.l.b16 %v615
        %v2127 = vunpack.c.h.b16 %v615
        %v2128 = vunpack.c.l.b16 %v616
        %v2129 = vunpack.c.h.b16 %v616
        %v2130 = vunpack.c.l.b16 %v617
        %v2131 = vunpack.c.h.b16 %v617
        %v2132 = vunpack.c.l.b16 %v618
        %v2133 = vunpack.c.h.b16 %v618
        %v2134 = vunpack.c.l.b16 %v619
        %v2135 = vunpack.c.h.b16 %v619
        %v2136 = vunpack.c.l.b16 %v620
        %v2137 = vunpack.c.h.b16 %v620
        %v2138 = vunpack.c.l.b16 %v621
        %v2139 = vunpack.c.h.b16 %v621
        %v2140 = vunpack.c.l.b16 %v622
        %v2141 = vunpack.c.h.b16 %v622
        %v2142 = vunpack.c.l.b16 %v623
        %v2143 = vunpack.c.h.b16 %v623
        %v2144 = vunpack.c.l.b16 %v624
        %v2145 = vunpack.c.h.b16 %v624
        %v2146 = vunpack.c.l.b16 %v625
        %v2147 = vunpack.c.h.b16 %v625
        %v2148 = vunpack.c.l.b16 %v626
        %v2149 = vunpack.c.h.b16 %v626
        %v2150 = vunpack.c.l.b16 %v627
        %v2151 = vunpack.c.h.b16 %v627
        %v2152 = vunpack.c.l.b16 %v628
        %v2153 = vunpack.c.h.b16 %v628
        %v2154 = vunpack.c.l.b16 %v629
        %v2155 = vunpack.c.h.b16 %v629
        %v2156 = vunpack.c.l.b16 %v630
        %v2157 = vunpack.c.h.b16 %v630
        %v2158 = vunpack.c.l.b16 %v631
        %v2159 = vunpack.c.h.b16 %v631
        %v2160 = vunpack.c.l.b16 %v632
        %v2161 = vunpack.c.h.b16 %v632
        %v2162 = vunpack.c.l.b16 %v633
        %v2163 = vunpack.c.h.b16 %v633
        %v2164 = vunpack.c.l.b16 %v634
        %v2165 = vunpack.c.h.b16 %v634
        %v2166 = vunpack.c.l.b16 %v635
        %v2167 = vunpack.c.h.b16 %v635
        %v2168 = vunpack.c.l.b16 %v636
        %v2169 = vunpack.c.h.b16 %v636
        %v2170 = vunpack.c.l.b16 %v637
        %v2171 = vunpack.c.h.b16 %v637
        %v2172 = vunpack.c.l.b16 %v638
        %v2173 = vunpack.c.h.b16 %v638
        %v2174 = vunpack.c.l.b16 %v639
        %v2175 = vunpack.c.h.b16 %v639
        %v2176 = vunpack.c.l.b16 %v640
        %v2177 = vunpack.c.h.b16 %v640
        %v2178 = vunpack.c.l.b16 %v641
        %v2179 = vunpack.c.h.b16 %v641
        %v2180 = vunpack.c.l.b16 %v642
        %v2181 = vunpack.c.h.b16 %v642
        %v2182 = vunpack.c.l.b16 %v643
        %v2183 = vunpack.c.h.b16 %v643
        %v2184 = vunpack.c.l.b16 %v644
        %v2185 = vunpack.c.h.b16 %v644
        %v2186 = vunpack.c.l.b16 %v645
        %v2187 = vunpack.c.h.b16 %v645
        %v2188 = vunpack.c.l.b16 %v646
        %v2189 = vunpack.c.h.b16 %v646
        %v2190 = vunpack.c.l.b16 %v647
        %v2191 = vunpack.c.h.b16 %v647
        %v2192 = vunpack.c.l.b16 %v648
        %v2193 = vunpack.c.h.b16 %v648
        %v2194 = vunpack.c.l.b16 %v649
        %v2195 = vunpack.c.h.b16 %v649
        %v2196 = vunpack.c.l.b16 %v650
        %v2197 = vunpack.c.h.b16 %v650
        %v2198 = vunpack.c.l.b16 %v651
        %v2199 = vunpack.c.h.b16 %v651
        %v2200 = vunpack.c.l.b16 %v652
        %v2201 = vunpack.c.h.b16 %v652
        %v2202 = vunpack.c.l.b16 %v653
        %v2203 = vunpack.c.h.b16 %v653
        %v2204 = vunpack.c.l.b16 %v654
        %v2205 = vunpack.c.h.b16 %v654
        %v2206 = vunpack.c.l.b16 %v655
        %v2207 = vunpack.c.h.b16 %v655
        %v2208 = vunpack.c.l.b16 %v656
        %v2209 = vunpack.c.h.b16 %v656
        %v2210 = vunpack.c.l.b16 %v657
        %v2211 = vunpack.c.h.b16 %v657
        %v2212 = vunpack.c.l.b16 %v658
        %v2213 = vunpack.c.h.b16 %v658
        %v2214 = vunpack.c.l.b16 %v659
        %v2215 = vunpack.c.h.b16 %v659
        %v2216 = vunpack.c.l.b16 %v660
        %v2217 = vunpack.c.h.b16 %v660
        %v2218 = vunpack.c.l.b16 %v661
        %v2219 = vunpack.c.h.b16 %v661
        %v2220 = vunpack.c.l.b16 %v662
        %v2221 = vunpack.c.h.b16 %v662
        %v2222 = vunpack.c.l.b16 %v663
        %v2223 = vunpack.c.h.b16 %v663
        %v2224 = vunpack.c.l.b16 %v664
        %v2225 = vunpack.c.h.b16 %v664
        %v2226 = vunpack.c.l.b16 %v665
        %v2227 = vunpack.c.h.b16 %v665
        %v2228 = vunpack.c.l.b16 %v666
        %v2229 = vunpack.c.h.b16 %v666
        %v2230 = vunpack.c.l.b16 %v667
        %v2231 = vunpack.c.h.b16 %v667
        %v2232 = vunpack.c.l.b16 %v668
        %v2233 = vunpack.c.h.b16 %v668
        %v2234 = vunpack.c.l.b16 %v669
        %v2235 = vunpack.c.h.b16 %v669
        %v2236 = vunpack.c.l.b16 %v670
        %v2237 = vunpack.c.h.b16 %v670
        %v2238 = vunpack.c.l.b16 %v671
        %v2239 = vunpack.c.h.b16 %v671
        %v2240 = vunpack.c.l.b16 %v672
        %v2241 = vunpack.c.h.b16 %v672
        %v2242 = vunpack.c.l.b16 %v673
        %v2243 = vunpack.c.h.b16 %v673
        %v2244 = vunpack.c.l.b16 %v674
        %v2245 = vunpack.c.h.b16 %v674
        %v2246 = vunpack.c.l.b16 %v675
        %v2247 = vunpack.c.h.b16 %v675
        %v2248 = vunpack.c.l.b16 %v676
        %v2249 = vunpack.c.h.b16 %v676
        %v2250 = vunpack.c.l.b16 %v677
        %v2251 = vunpack.c.h.b16 %v677
        %v2252 = vunpack.c.l.b16 %v678
        %v2253 = vunpack.c.h.b16 %v678
        %v2254 = vunpack.c.l.b16 %v679
        %v2255 = vunpack.c.h.b16 %v679
        %v2256 = vunpack.c.l.b16 %v680
        %v2257 = vunpack.c.h.b16 %v680
        %v2258 = vunpack.c.l.b16 %v681
        %v2259 = vunpack.c.h.b16 %v681
        %v2260 = vunpack.c.l.b16 %v682
        %v2261 = vunpack.c.h.b16 %v682
        %v2262 = vunpack.c.l.b16 %v683
        %v2263 = vunpack.c.h.b16 %v683
        %v2264 = vunpack.c.l.b16 %v684
        %v2265 = vunpack.c.h.b16 %v684
        %v2266 = vunpack.c.l.b16 %v685
        %v2267 = vunpack.c.h.b16 %v685
        %v2268 = vunpack.c.l.b16 %v686
        %v2269 = vunpack.c.h.b16 %v686
        %v2270 = vunpack.c.l.b16 %v687
        %v2271 = vunpack.c.h.b16 %v687
        %v2272 = vunpack.c.l.b16 %v688
        %v2273 = vunpack.c.h.b16 %v688
        %v2274 = vunpack.c.l.b16 %v689
        %v2275 = vunpack.c.h.b16 %v689
        %v2276 = vunpack.c.l.b16 %v690
        %v2277 = vunpack.c.h.b16 %v690
        %v2278 = vunpack.c.l.b16 %v691
        %v2279 = vunpack.c.h.b16 %v691
        %v2280 = vunpack.c.l.b16 %v692
        %v2281 = vunpack.c.h.b16 %v692
        %v2282 = vunpack.c.l.b16 %v693
        %v2283 = vunpack.c.h.b16 %v693
        %v2284 = vunpack.c.l.b16 %v694
        %v2285 = vunpack.c.h.b16 %v694
        %v2286 = vunpack.c.l.b16 %v695
        %v2287 = vunpack.c.h.b16 %v695
        %v2288 = vunpack.c.l.b16 %v696
        %v2289 = vunpack.c.h.b16 %v696
        %v2290 = vunpack.c.l.b16 %v697
        %v2291 = vunpack.c.h.b16 %v697
        %v2292 = vunpack.c.l.b16 %v698
        %v2293 = vunpack.c.h.b16 %v698
        %v2294 = vunpack.c.l.b16 %v699
        %v2295 = vunpack.c.h.b16 %v699
        %v2296 = vunpack.c.l.b16 %v700
        %v2297 = vunpack.c.h.b16 %v700
        %v2298 = vunpack.c.l.b16 %v701
        %v2299 = vunpack.c.h.b16 %v701
        %v2300 = vunpack.c.l.b16 %v702
        %v2301 = vunpack.c.h.b16 %v702
        %v2302 = vunpack.c.l.b16 %v703
        %v2303 = vunpack.c.h.b16 %v703
        %v2304 = vunpack.c.l.b16 %v704
        %v2305 = vunpack.c.h.b16 %v704
        %v2306 = vunpack.c.l.b16 %v705
        %v2307 = vunpack.c.h.b16 %v705
        %v2308 = vunpack.c.l.b16 %v706
        %v2309 = vunpack.c.h.b16 %v706
        %v2310 = vunpack.c.l.b16 %v707
        %v2311 = vunpack.c.h.b16 %v707
        %v2312 = vunpack.c.l.b16 %v708
        %v2313 = vunpack.c.h.b16 %v708
        %v2314 = vunpack.c.l.b16 %v709
        %v2315 = vunpack.c.h.b16 %v709
        %v2316 = vunpack.c.l.b16 %v710
        %v2317 = vunpack.c.h.b16 %v710
        %v2318 = vunpack.c.l.b16 %v711
        %v2319 = vunpack.c.h.b16 %v711
        %v2320 = vunpack.c.l.b16 %v712
        %v2321 = vunpack.c.h.b16 %v712
        %v2322 = vunpack.c.l.b16 %v713
        %v2323 = vunpack.c.h.b16 %v713
        %v2324 = vunpack.c.l.b16 %v714
        %v2325 = vunpack.c.h.b16 %v714
        %v2326 = vunpack.c.l.b16 %v715
        %v2327 = vunpack.c.h.b16 %v715
        %v2328 = vunpack.c.l.b16 %v716
        %v2329 = vunpack.c.h.b16 %v716
        %v2330 = vunpack.c.l.b16 %v717
        %v2331 = vunpack.c.h.b16 %v717
        %v2332 = vunpack.c.l.b16 %v718
        %v2333 = vunpack.c.h.b16 %v718
        %v2334 = vunpack.c.l.b16 %v719
        %v2335 = vunpack.c.h.b16 %v719
        %v2336 = vunpack.c.l.b16 %v720
        %v2337 = vunpack.c.h.b16 %v720
        %v2338 = vunpack.c.l.b16 %v721
        %v2339 = vunpack.c.h.b16 %v721
        %v2340 = vunpack.c.l.b16 %v722
        %v2341 = vunpack.c.h.b16 %v722
        %v2342 = vunpack.c.l.b16 %v723
        %v2343 = vunpack.c.h.b16 %v723
        %v2344 = vunpack.c.l.b16 %v724
        %v2345 = vunpack.c.h.b16 %v724
        %v2346 = vunpack.c.l.b16 %v725
        %v2347 = vunpack.c.h.b16 %v725
        %v2348 = vunpack.c.l.b16 %v726
        %v2349 = vunpack.c.h.b16 %v726
        %v2350 = vunpack.c.l.b16 %v727
        %v2351 = vunpack.c.h.b16 %v727
        %v2352 = vunpack.c.l.b16 %v728
        %v2353 = vunpack.c.h.b16 %v728
        %v2354 = vunpack.c.l.b16 %v729
        %v2355 = vunpack.c.h.b16 %v729
        %v2356 = vunpack.c.l.b16 %v730
        %v2357 = vunpack.c.h.b16 %v730
        %v2358 = vunpack.c.l.b16 %v731
        %v2359 = vunpack.c.h.b16 %v731
        %v2360 = vunpack.c.l.b16 %v732
        %v2361 = vunpack.c.h.b16 %v732
        %v2362 = vunpack.c.l.b16 %v733
        %v2363 = vunpack.c.h.b16 %v733
        %v2364 = vunpack.c.l.b16 %v734
        %v2365 = vunpack.c.h.b16 %v734
        %v2366 = vunpack.c.l.b16 %v735
        %v2367 = vunpack.c.h.b16 %v735
        %v2368 = vunpack.c.l.b16 %v736
        %v2369 = vunpack.c.h.b16 %v736
        %v2370 = vunpack.c.l.b16 %v737
        %v2371 = vunpack.c.h.b16 %v737
        %v2372 = vunpack.c.l.b16 %v738
        %v2373 = vunpack.c.h.b16 %v738
        %v2374 = vunpack.c.l.b16 %v739
        %v2375 = vunpack.c.h.b16 %v739
        %v2376 = vunpack.c.l.b16 %v740
        %v2377 = vunpack.c.h.b16 %v740
        %v2378 = vunpack.c.l.b16 %v741
        %v2379 = vunpack.c.h.b16 %v741
        %v2380 = vunpack.c.l.b16 %v742
        %v2381 = vunpack.c.h.b16 %v742
        %v2382 = vunpack.c.l.b16 %v743
        %v2383 = vunpack.c.h.b16 %v743
        %v2384 = vunpack.c.l.b16 %v744
        %v2385 = vunpack.c.h.b16 %v744
        %v2386 = vunpack.c.l.b16 %v745
        %v2387 = vunpack.c.h.b16 %v745
        %v2388 = vunpack.c.l.b16 %v746
        %v2389 = vunpack.c.h.b16 %v746
        %v2390 = vunpack.c.l.b16 %v747
        %v2391 = vunpack.c.h.b16 %v747
        %v2392 = vunpack.c.l.b16 %v748
        %v2393 = vunpack.c.h.b16 %v748
        %v2394 = vunpack.c.l.b16 %v749
        %v2395 = vunpack.c.h.b16 %v749
        %v2396 = vunpack.c.l.b16 %v750
        %v2397 = vunpack.c.h.b16 %v750
        %v2398 = vunpack.c.l.b16 %v751
        %v2399 = vunpack.c.h.b16 %v751
        %v2400 = vunpack.c.l.b16 %v752
        %v2401 = vunpack.c.h.b16 %v752
        %v2402 = vunpack.c.l.b16 %v753
        %v2403 = vunpack.c.h.b16 %v753
        %v2404 = vunpack.c.l.b16 %v754
        %v2405 = vunpack.c.h.b16 %v754
        %v2406 = vunpack.c.l.b16 %v755
        %v2407 = vunpack.c.h.b16 %v755
        %v2408 = vpack.c.b16 %v1388, %v1384
        %v2409 = vpack.c.b16 %v1389, %v1385
        %v2410 = vpack.c.b16 %v1390, %v1386
        %v2411 = vpack.c.b16 %v1391, %v1387
        %v2412 = vpack.c.b16 %v1396, %v1392
        %v2413 = vpack.c.b16 %v1397, %v1393
        %v2414 = vpack.c.b16 %v1398, %v1394
        %v2415 = vpack.c.b16 %v1399, %v1395
        %v2416 = vpack.c.b16 %v1404, %v1400
        %v2417 = vpack.c.b16 %v1405, %v1401
        %v2418 = vpack.c.b16 %v1406, %v1402
        %v2419 = vpack.c.b16 %v1407, %v1403
        %v2420 = vpack.c.b16 %v1412, %v1408
        %v2421 = vpack.c.b16 %v1413, %v1409
        %v2422 = vpack.c.b16 %v1414, %v1410
        %v2423 = vpack.c.b16 %v1415, %v1411
        %v2424 = vpack.c.b16 %v1420, %v1416
        %v2425 = vpack.c.b16 %v1421, %v1417
        %v2426 = vpack.c.b16 %v1422, %v1418
        %v2427 = vpack.c.b16 %v1423, %v1419
        %v2428 = vpack.c.b16 %v1428, %v1424
        %v2429 = vpack.c.b16 %v1429, %v1425
        %v2430 = vpack.c.b16 %v1430, %v1426
        %v2431 = vpack.c.b16 %v1431, %v1427
        %v2432 = vpack.c.b16 %v1436, %v1432
        %v2433 = vpack.c.b16 %v1437, %v1433
        %v2434 = vpack.c.b16 %v1438, %v1434
        %v2435 = vpack.c.b16 %v1439, %v1435
        %v2436 = vpack.c.b16 %v1444, %v1440
        %v2437 = vpack.c.b16 %v1445, %v1441
        %v2438 = vpack.c.b16 %v1446, %v1442
        %v2439 = vpack.c.b16 %v1447, %v1443
        %v2440 = vpack.c.b16 %v1452, %v1448
        %v2441 = vpack.c.b16 %v1453, %v1449
        %v2442 = vpack.c.b16 %v1454, %v1450
        %v2443 = vpack.c.b16 %v1455, %v1451
        %v2444 = vpack.c.b16 %v1460, %v1456
        %v2445 = vpack.c.b16 %v1461, %v1457
        %v2446 = vpack.c.b16 %v1462, %v1458
        %v2447 = vpack.c.b16 %v1463, %v1459
        %v2448 = vpack.c.b16 %v1468, %v1464
        %v2449 = vpack.c.b16 %v1469, %v1465
        %v2450 = vpack.c.b16 %v1470, %v1466
        %v2451 = vpack.c.b16 %v1471, %v1467
        %v2452 = vpack.c.b16 %v1476, %v1472
        %v2453 = vpack.c.b16 %v1477, %v1473
        %v2454 = vpack.c.b16 %v1478, %v1474
        %v2455 = vpack.c.b16 %v1479, %v1475
        %v2456 = vpack.c.b16 %v1484, %v1480
        %v2457 = vpack.c.b16 %v1485, %v1481
        %v2458 = vpack.c.b16 %v1486, %v1482
        %v2459 = vpack.c.b16 %v1487, %v1483
        %v2460 = vpack.c.b16 %v1492, %v1488
        %v2461 = vpack.c.b16 %v1493, %v1489
        %v2462 = vpack.c.b16 %v1494, %v1490
        %v2463 = vpack.c.b16 %v1495, %v1491
        %v2464 = vpack.c.b16 %v1500, %v1496
        %v2465 = vpack.c.b16 %v1501, %v1497
        %v2466 = vpack.c.b16 %v1502, %v1498
        %v2467 = vpack.c.b16 %v1503, %v1499
        %v2468 = vpack.c.b16 %v1508, %v1504
        %v2469 = vpack.c.b16 %v1509, %v1505
        %v2470 = vpack.c.b16 %v1510, %v1506
        %v2471 = vpack.c.b16 %v1511, %v1507
        %v2472 = vpack.c.b16 %v1516, %v1512
        %v2473 = vpack.c.b16 %v1517, %v1513
        %v2474 = vpack.c.b16 %v1518, %v1514
        %v2475 = vpack.c.b16 %v1519, %v1515
        %v2476 = vpack.c.b16 %v1524, %v1520
        %v2477 = vpack.c.b16 %v1525, %v1521
        %v2478 = vpack.c.b16 %v1526, %v1522
        %v2479 = vpack.c.b16 %v1527, %v1523
        %v2480 = vpack.c.b16 %v1532, %v1528
        %v2481 = vpack.c.b16 %v1533, %v1529
        %v2482 = vpack.c.b16 %v1534, %v1530
        %v2483 = vpack.c.b16 %v1535, %v1531
        %v2484 = vpack.c.b16 %v1540, %v1536
        %v2485 = vpack.c.b16 %v1541, %v1537
        %v2486 = vpack.c.b16 %v1542, %v1538
        %v2487 = vpack.c.b16 %v1543, %v1539
        %v2488 = vpack.c.b16 %v1548, %v1544
        %v2489 = vpack.c.b16 %v1549, %v1545
        %v2490 = vpack.c.b16 %v1550, %v1546
        %v2491 = vpack.c.b16 %v1551, %v1547
        %v2492 = vpack.c.b16 %v1556, %v1552
        %v2493 = vpack.c.b16 %v1557, %v1553
        %v2494 = vpack.c.b16 %v1558, %v1554
        %v2495 = vpack.c.b16 %v1559, %v1555
        %v2496 = vpack.c.b16 %v1564, %v1560
        %v2497 = vpack.c.b16 %v1565, %v1561
        %v2498 = vpack.c.b16 %v1566, %v1562
        %v2499 = vpack.c.b16 %v1567, %v1563
        %v2500 = vpack.c.b16 %v1572, %v1568
        %v2501 = vpack.c.b16 %v1573, %v1569
        %v2502 = vpack.c.b16 %v1574, %v1570
        %v2503 = vpack.c.b16 %v1575, %v1571
        %v2504 = vpack.c.b16 %v1580, %v1576
        %v2505 = vpack.c.b16 %v1581, %v1577
        %v2506 = vpack.c.b16 %v1582, %v1578
        %v2507 = vpack.c.b16 %v1583, %v1579
        %v2508 = vpack.c.b16 %v1588, %v1584
        %v2509 = vpack.c.b16 %v1589, %v1585
        %v2510 = vpack.c.b16 %v1590, %v1586
        %v2511 = vpack.c.b16 %v1591, %v1587
        %v2512 = vpack.c.b16 %v1596, %v1592
        %v2513 = vpack.c.b16 %v1597, %v1593
        %v2514 = vpack.c.b16 %v1598, %v1594
        %v2515 = vpack.c.b16 %v1599, %v1595
        %v2516 = vpack.c.b16 %v1604, %v1600
        %v2517 = vpack.c.b16 %v1605, %v1601
        %v2518 = vpack.c.b16 %v1606, %v1602
        %v2519 = vpack.c.b16 %v1607, %v1603
        %v2520 = vpack.c.b16 %v1612, %v1608
        %v2521 = vpack.c.b16 %v1613, %v1609
        %v2522 = vpack.c.b16 %v1614, %v1610
        %v2523 = vpack.c.b16 %v1615, %v1611
        %v2524 = vpack.c.b16 %v1620, %v1616
        %v2525 = vpack.c.b16 %v1621, %v1617
        %v2526 = vpack.c.b16 %v1622, %v1618
        %v2527 = vpack.c.b16 %v1623, %v1619
        %v2528 = vpack.c.b16 %v1628, %v1624
        %v2529 = vpack.c.b16 %v1629, %v1625
        %v2530 = vpack.c.b16 %v1630, %v1626
        %v2531 = vpack.c.b16 %v1631, %v1627
        %v2532 = vpack.c.b16 %v1636, %v1632
        %v2533 = vpack.c.b16 %v1637, %v1633
        %v2534 = vpack.c.b16 %v1638, %v1634
        %v2535 = vpack.c.b16 %v1639, %v1635
        %v2536 = vpack.c.b16 %v1644, %v1640
        %v2537 = vpack.c.b16 %v1645, %v1641
        %v2538 = vpack.c.b16 %v1646, %v1642
        %v2539 = vpack.c.b16 %v1647, %v1643
        %v2540 = vpack.c.b16 %v1652, %v1648
        %v2541 = vpack.c.b16 %v1653, %v1649
        %v2542 = vpack.c.b16 %v1654, %v1650
        %v2543 = vpack.c.b16 %v1655, %v1651
        %v2544 = vpack.c.b16 %v1660, %v1656
        %v2545 = vpack.c.b16 %v1661, %v1657
        %v2546 = vpack.c.b16 %v1662, %v1658
        %v2547 = vpack.c.b16 %v1663, %v1659
        %v2548 = vpack.c.b16 %v1668, %v1664
        %v2549 = vpack.c.b16 %v1669, %v1665
        %v2550 = vpack.c.b16 %v1670, %v1666
        %v2551 = vpack.c.b16 %v1671, %v1667
        %v2552 = vpack.c.b16 %v1676, %v1672
        %v2553 = vpack.c.b16 %v1677, %v1673
        %v2554 = vpack.c.b16 %v1678, %v1674
        %v2555 = vpack.c.b16 %v1679, %v1675
        %v2556 = vpack.c.b16 %v1684, %v1680
        %v2557 = vpack.c.b16 %v1685, %v1681
        %v2558 = vpack.c.b16 %v1686, %v1682
        %v2559 = vpack.c.b16 %v1687, %v1683
        %v2560 = vpack.c.b16 %v1692, %v1688
        %v2561 = vpack.c.b16 %v1693, %v1689
        %v2562 = vpack.c.b16 %v1694, %v1690
        %v2563 = vpack.c.b16 %v1695, %v1691
        %v2564 = vpack.c.b16 %v1700, %v1696
        %v2565 = vpack.c.b16 %v1701, %v1697
        %v2566 = vpack.c.b16 %v1702, %v1698
        %v2567 = vpack.c.b16 %v1703, %v1699
        %v2568 = vpack.c.b16 %v1708, %v1704
        %v2569 = vpack.c.b16 %v1709, %v1705
        %v2570 = vpack.c.b16 %v1710, %v1706
        %v2571 = vpack.c.b16 %v1711, %v1707
        %v2572 = vpack.c.b16 %v1716, %v1712
        %v2573 = vpack.c.b16 %v1717, %v1713
        %v2574 = vpack.c.b16 %v1718, %v1714
        %v2575 = vpack.c.b16 %v1719, %v1715
        %v2576 = vpack.c.b16 %v1724, %v1720
        %v2577 = vpack.c.b16 %v1725, %v1721
        %v2578 = vpack.c.b16 %v1726, %v1722
        %v2579 = vpack.c.b16 %v1727, %v1723
        %v2580 = vpack.c.b16 %v1732, %v1728
        %v2581 = vpack.c.b16 %v1733, %v1729
        %v2582 = vpack.c.b16 %v1734, %v1730
        %v2583 = vpack.c.b16 %v1735, %v1731
        %v2584 = vpack.c.b16 %v1740, %v1736
        %v2585 = vpack.c.b16 %v1741, %v1737
        %v2586 = vpack.c.b16 %v1742, %v1738
        %v2587 = vpack.c.b16 %v1743, %v1739
        %v2588 = vpack.c.b16 %v1748, %v1744
        %v2589 = vpack.c.b16 %v1749, %v1745
        %v2590 = vpack.c.b16 %v1750, %v1746
        %v2591 = vpack.c.b16 %v1751, %v1747
        %v2592 = vpack.c.b16 %v1756, %v1752
        %v2593 = vpack.c.b16 %v1757, %v1753
        %v2594 = vpack.c.b16 %v1758, %v1754
        %v2595 = vpack.c.b16 %v1759, %v1755
        %v2596 = vpack.c.b16 %v1764, %v1760
        %v2597 = vpack.c.b16 %v1765, %v1761
        %v2598 = vpack.c.b16 %v1766, %v1762
        %v2599 = vpack.c.b16 %v1767, %v1763
        %v2600 = vpack.c.b16 %v1772, %v1768
        %v2601 = vpack.c.b16 %v1773, %v1769
        %v2602 = vpack.c.b16 %v1774, %v1770
        %v2603 = vpack.c.b16 %v1775, %v1771
        %v2604 = vpack.c.b16 %v1780, %v1776
        %v2605 = vpack.c.b16 %v1781, %v1777
        %v2606 = vpack.c.b16 %v1782, %v1778
        %v2607 = vpack.c.b16 %v1783, %v1779
        %v2608 = vpack.c.b16 %v1788, %v1784
        %v2609 = vpack.c.b16 %v1789, %v1785
        %v2610 = vpack.c.b16 %v1790, %v1786
        %v2611 = vpack.c.b16 %v1791, %v1787
        %v2612 = vpack.c.b16 %v1796, %v1792
        %v2613 = vpack.c.b16 %v1797, %v1793
        %v2614 = vpack.c.b16 %v1798, %v1794
        %v2615 = vpack.c.b16 %v1799, %v1795
        %v2616 = vpack.c.b16 %v1804, %v1800
        %v2617 = vpack.c.b16 %v1805, %v1801
        %v2618 = vpack.c.b16 %v1806, %v1802
        %v2619 = vpack.c.b16 %v1807, %v1803
        %v2620 = vpack.c.b16 %v1812, %v1808
        %v2621 = vpack.c.b16 %v1813, %v1809
        %v2622 = vpack.c.b16 %v1814, %v1810
        %v2623 = vpack.c.b16 %v1815, %v1811
        %v2624 = vpack.c.b16 %v1820, %v1816
        %v2625 = vpack.c.b16 %v1821, %v1817
        %v2626 = vpack.c.b16 %v1822, %v1818
        %v2627 = vpack.c.b16 %v1823, %v1819
        %v2628 = vpack.c.b16 %v1828, %v1824
        %v2629 = vpack.c.b16 %v1829, %v1825
        %v2630 = vpack.c.b16 %v1830, %v1826
        %v2631 = vpack.c.b16 %v1831, %v1827
        %v2632 = vpack.c.b16 %v1836, %v1832
        %v2633 = vpack.c.b16 %v1837, %v1833
        %v2634 = vpack.c.b16 %v1838, %v1834
        %v2635 = vpack.c.b16 %v1839, %v1835
        %v2636 = vpack.c.b16 %v1844, %v1840
        %v2637 = vpack.c.b16 %v1845, %v1841
        %v2638 = vpack.c.b16 %v1846, %v1842
        %v2639 = vpack.c.b16 %v1847, %v1843
        %v2640 = vpack.c.b16 %v1852, %v1848
        %v2641 = vpack.c.b16 %v1853, %v1849
        %v2642 = vpack.c.b16 %v1854, %v1850
        %v2643 = vpack.c.b16 %v1855, %v1851
        %v2644 = vpack.c.b16 %v1860, %v1856
        %v2645 = vpack.c.b16 %v1861, %v1857
        %v2646 = vpack.c.b16 %v1862, %v1858
        %v2647 = vpack.c.b16 %v1863, %v1859
        %v2648 = vpack.c.b16 %v1868, %v1864
        %v2649 = vpack.c.b16 %v1869, %v1865
        %v2650 = vpack.c.b16 %v1870, %v1866
        %v2651 = vpack.c.b16 %v1871, %v1867
        %v2652 = vpack.c.b16 %v1876, %v1872
        %v2653 = vpack.c.b16 %v1877, %v1873
        %v2654 = vpack.c.b16 %v1878, %v1874
        %v2655 = vpack.c.b16 %v1879, %v1875
        %v2656 = vpack.c.b16 %v1884, %v1880
        %v2657 = vpack.c.b16 %v1885, %v1881
        %v2658 = vpack.c.b16 %v1886, %v1882
        %v2659 = vpack.c.b16 %v1887, %v1883
        %v2660 = vpack.c.b16 %v1892, %v1888
        %v2661 = vpack.c.b16 %v1893, %v1889
        %v2662 = vpack.c.b16 %v1894, %v1890
        %v2663 = vpack.c.b16 %v1895, %v1891
        %v2664 = vpack.c.b16 %v1900, %v1896
        %v2665 = vpack.c.b16 %v1901, %v1897
        %v2666 = vpack.c.b16 %v1902, %v1898
        %v2667 = vpack.c.b16 %v1903, %v1899
        %v2668 = vpack.c.b16 %v1908, %v1904
        %v2669 = vpack.c.b16 %v1909, %v1905
        %v2670 = vpack.c.b16 %v1910, %v1906
        %v2671 = vpack.c.b16 %v1911, %v1907
        %v2672 = vpack.c.b16 %v1916, %v1912
        %v2673 = vpack.c.b16 %v1917, %v1913
        %v2674 = vpack.c.b16 %v1918, %v1914
        %v2675 = vpack.c.b16 %v1919, %v1915
        %v2676 = vpack.c.b16 %v1924, %v1920
        %v2677 = vpack.c.b16 %v1925, %v1921
        %v2678 = vpack.c.b16 %v1926, %v1922
        %v2679 = vpack.c.b16 %v1927, %v1923
        %v2680 = vpack.c.b16 %v1932, %v1928
        %v2681 = vpack.c.b16 %v1933, %v1929
        %v2682 = vpack.c.b16 %v1934, %v1930
        %v2683 = vpack.c.b16 %v1935, %v1931
        %v2684 = vpack.c.b16 %v1940, %v1936
        %v2685 = vpack.c.b16 %v1941, %v1937
        %v2686 = vpack.c.b16 %v1942, %v1938
        %v2687 = vpack.c.b16 %v1943, %v1939
        %v2688 = vpack.c.b16 %v1948, %v1944
        %v2689 = vpack.c.b16 %v1949, %v1945
        %v2690 = vpack.c.b16 %v1950, %v1946
        %v2691 = vpack.c.b16 %v1951, %v1947
        %v2692 = vpack.c.b16 %v1956, %v1952
        %v2693 = vpack.c.b16 %v1957, %v1953
        %v2694 = vpack.c.b16 %v1958, %v1954
        %v2695 = vpack.c.b16 %v1959, %v1955
        %v2696 = vpack.c.b16 %v1964, %v1960
        %v2697 = vpack.c.b16 %v1965, %v1961
        %v2698 = vpack.c.b16 %v1966, %v1962
        %v2699 = vpack.c.b16 %v1967, %v1963
        %v2700 = vpack.c.b16 %v1972, %v1968
        %v2701 = vpack.c.b16 %v1973, %v1969
        %v2702 = vpack.c.b16 %v1974, %v1970
        %v2703 = vpack.c.b16 %v1975, %v1971
        %v2704 = vpack.c.b16 %v1980, %v1976
        %v2705 = vpack.c.b16 %v1981, %v1977
        %v2706 = vpack.c.b16 %v1982, %v1978
        %v2707 = vpack.c.b16 %v1983, %v1979
        %v2708 = vpack.c.b16 %v1988, %v1984
        %v2709 = vpack.c.b16 %v1989, %v1985
        %v2710 = vpack.c.b16 %v1990, %v1986
        %v2711 = vpack.c.b16 %v1991, %v1987
        %v2712 = vpack.c.b16 %v1996, %v1992
        %v2713 = vpack.c.b16 %v1997, %v1993
        %v2714 = vpack.c.b16 %v1998, %v1994
        %v2715 = vpack.c.b16 %v1999, %v1995
        %v2716 = vpack.c.b16 %v2004, %v2000
        %v2717 = vpack.c.b16 %v2005, %v2001
        %v2718 = vpack.c.b16 %v2006, %v2002
        %v2719 = vpack.c.b16 %v2007, %v2003
        %v2720 = vpack.c.b16 %v2012, %v2008
        %v2721 = vpack.c.b16 %v2013, %v2009
        %v2722 = vpack.c.b16 %v2014, %v2010
        %v2723 = vpack.c.b16 %v2015, %v2011
        %v2724 = vpack.c.b16 %v2020, %v2016
        %v2725 = vpack.c.b16 %v2021, %v2017
        %v2726 = vpack.c.b16 %v2022, %v2018
        %v2727 = vpack.c.b16 %v2023, %v2019
        %v2728 = vpack.c.b16 %v2028, %v2024
        %v2729 = vpack.c.b16 %v2029, %v2025
        %v2730 = vpack.c.b16 %v2030, %v2026
        %v2731 = vpack.c.b16 %v2031, %v2027
        %v2732 = vpack.c.b16 %v2036, %v2032
        %v2733 = vpack.c.b16 %v2037, %v2033
        %v2734 = vpack.c.b16 %v2038, %v2034
        %v2735 = vpack.c.b16 %v2039, %v2035
        %v2736 = vpack.c.b16 %v2044, %v2040
        %v2737 = vpack.c.b16 %v2045, %v2041
        %v2738 = vpack.c.b16 %v2046, %v2042
        %v2739 = vpack.c.b16 %v2047, %v2043
        %v2740 = vpack.c.b16 %v2052, %v2048
        %v2741 = vpack.c.b16 %v2053, %v2049
        %v2742 = vpack.c.b16 %v2054, %v2050
        %v2743 = vpack.c.b16 %v2055, %v2051
        %v2744 = vpack.c.b16 %v2060, %v2056
        %v2745 = vpack.c.b16 %v2061, %v2057
        %v2746 = vpack.c.b16 %v2062, %v2058
        %v2747 = vpack.c.b16 %v2063, %v2059
        %v2748 = vpack.c.b16 %v2068, %v2064
        %v2749 = vpack.c.b16 %v2069, %v2065
        %v2750 = vpack.c.b16 %v2070, %v2066
        %v2751 = vpack.c.b16 %v2071, %v2067
        %v2752 = vpack.c.b16 %v2076, %v2072
        %v2753 = vpack.c.b16 %v2077, %v2073
        %v2754 = vpack.c.b16 %v2078, %v2074
        %v2755 = vpack.c.b16 %v2079, %v2075
        %v2756 = vpack.c.b16 %v2084, %v2080
        %v2757 = vpack.c.b16 %v2085, %v2081
        %v2758 = vpack.c.b16 %v2086, %v2082
        %v2759 = vpack.c.b16 %v2087, %v2083
        %v2760 = vpack.c.b16 %v2092, %v2088
        %v2761 = vpack.c.b16 %v2093, %v2089
        %v2762 = vpack.c.b16 %v2094, %v2090
        %v2763 = vpack.c.b16 %v2095, %v2091
        %v2764 = vpack.c.b16 %v2100, %v2096
        %v2765 = vpack.c.b16 %v2101, %v2097
        %v2766 = vpack.c.b16 %v2102, %v2098
        %v2767 = vpack.c.b16 %v2103, %v2099
        %v2768 = vpack.c.b16 %v2108, %v2104
        %v2769 = vpack.c.b16 %v2109, %v2105
        %v2770 = vpack.c.b16 %v2110, %v2106
        %v2771 = vpack.c.b16 %v2111, %v2107
        %v2772 = vpack.c.b16 %v2116, %v2112
        %v2773 = vpack.c.b16 %v2117, %v2113
        %v2774 = vpack.c.b16 %v2118, %v2114
        %v2775 = vpack.c.b16 %v2119, %v2115
        %v2776 = vpack.c.b16 %v2124, %v2120
        %v2777 = vpack.c.b16 %v2125, %v2121
        %v2778 = vpack.c.b16 %v2126, %v2122
        %v2779 = vpack.c.b16 %v2127, %v2123
        %v2780 = vpack.c.b16 %v2132, %v2128
        %v2781 = vpack.c.b16 %v2133, %v2129
        %v2782 = vpack.c.b16 %v2134, %v2130
        %v2783 = vpack.c.b16 %v2135, %v2131
        %v2784 = vpack.c.b16 %v2140, %v2136
        %v2785 = vpack.c.b16 %v2141, %v2137
        %v2786 = vpack.c.b16 %v2142, %v2138
        %v2787 = vpack.c.b16 %v2143, %v2139
        %v2788 = vpack.c.b16 %v2148, %v2144
        %v2789 = vpack.c.b16 %v2149, %v2145
        %v2790 = vpack.c.b16 %v2150, %v2146
        %v2791 = vpack.c.b16 %v2151, %v2147
        %v2792 = vpack.c.b16 %v2156, %v2152
        %v2793 = vpack.c.b16 %v2157, %v2153
        %v2794 = vpack.c.b16 %v2158, %v2154
        %v2795 = vpack.c.b16 %v2159, %v2155
        %v2796 = vpack.c.b16 %v2164, %v2160
        %v2797 = vpack.c.b16 %v2165, %v2161
        %v2798 = vpack.c.b16 %v2166, %v2162
        %v2799 = vpack.c.b16 %v2167, %v2163
        %v2800 = vpack.c.b16 %v2172, %v2168
        %v2801 = vpack.c.b16 %v2173, %v2169
        %v2802 = vpack.c.b16 %v2174, %v2170
        %v2803 = vpack.c.b16 %v2175, %v2171
        %v2804 = vpack.c.b16 %v2180, %v2176
        %v2805 = vpack.c.b16 %v2181, %v2177
        %v2806 = vpack.c.b16 %v2182, %v2178
        %v2807 = vpack.c.b16 %v2183, %v2179
        %v2808 = vpack.c.b16 %v2188, %v2184
        %v2809 = vpack.c.b16 %v2189, %v2185
        %v2810 = vpack.c.b16 %v2190, %v2186
        %v2811 = vpack.c.b16 %v2191, %v2187
        %v2812 = vpack.c.b16 %v2196, %v2192
        %v2813 = vpack.c.b16 %v2197, %v2193
        %v2814 = vpack.c.b16 %v2198, %v2194
        %v2815 = vpack.c.b16 %v2199, %v2195
        %v2816 = vpack.c.b16 %v2204, %v2200
        %v2817 = vpack.c.b16 %v2205, %v2201
        %v2818 = vpack.c.b16 %v2206, %v2202
        %v2819 = vpack.c.b16 %v2207, %v2203
        %v2820 = vpack.c.b16 %v2212, %v2208
        %v2821 = vpack.c.b16 %v2213, %v2209
        %v2822 = vpack.c.b16 %v2214, %v2210
        %v2823 = vpack.c.b16 %v2215, %v2211
        %v2824 = vpack.c.b16 %v2220, %v2216
        %v2825 = vpack.c.b16 %v2221, %v2217
        %v2826 = vpack.c.b16 %v2222, %v2218
        %v2827 = vpack.c.b16 %v2223, %v2219
        %v2828 = vpack.c.b16 %v2228, %v2224
        %v2829 = vpack.c.b16 %v2229, %v2225
        %v2830 = vpack.c.b16 %v2230, %v2226
        %v2831 = vpack.c.b16 %v2231, %v2227
        %v2832 = vpack.c.b16 %v2236, %v2232
        %v2833 = vpack.c.b16 %v2237, %v2233
        %v2834 = vpack.c.b16 %v2238, %v2234
        %v2835 = vpack.c.b16 %v2239, %v2235
        %v2836 = vpack.c.b16 %v2244, %v2240
        %v2837 = vpack.c.b16 %v2245, %v2241
        %v2838 = vpack.c.b16 %v2246, %v2242
        %v2839 = vpack.c.b16 %v2247, %v2243
        %v2840 = vpack.c.b16 %v2252, %v2248
        %v2841 = vpack.c.b16 %v2253, %v2249
        %v2842 = vpack.c.b16 %v2254, %v2250
        %v2843 = vpack.c.b16 %v2255, %v2251
        %v2844 = vpack.c.b16 %v2260, %v2256
        %v2845 = vpack.c.b16 %v2261, %v2257
        %v2846 = vpack.c.b16 %v2262, %v2258
        %v2847 = vpack.c.b16 %v2263, %v2259
        %v2848 = vpack.c.b16 %v2268, %v2264
        %v2849 = vpack.c.b16 %v2269, %v2265
        %v2850 = vpack.c.b16 %v2270, %v2266
        %v2851 = vpack.c.b16 %v2271, %v2267
        %v2852 = vpack.c.b16 %v2276, %v2272
        %v2853 = vpack.c.b16 %v2277, %v2273
        %v2854 = vpack.c.b16 %v2278, %v2274
        %v2855 = vpack.c.b16 %v2279, %v2275
        %v2856 = vpack.c.b16 %v2284, %v2280
        %v2857 = vpack.c.b16 %v2285, %v2281
        %v2858 = vpack.c.b16 %v2286, %v2282
        %v2859 = vpack.c.b16 %v2287, %v2283
        %v2860 = vpack.c.b16 %v2292, %v2288
        %v2861 = vpack.c.b16 %v2293, %v2289
        %v2862 = vpack.c.b16 %v2294, %v2290
        %v2863 = vpack.c.b16 %v2295, %v2291
        %v2864 = vpack.c.b16 %v2300, %v2296
        %v2865 = vpack.c.b16 %v2301, %v2297
        %v2866 = vpack.c.b16 %v2302, %v2298
        %v2867 = vpack.c.b16 %v2303, %v2299
        %v2868 = vpack.c.b16 %v2308, %v2304
        %v2869 = vpack.c.b16 %v2309, %v2305
        %v2870 = vpack.c.b16 %v2310, %v2306
        %v2871 = vpack.c.b16 %v2311, %v2307
        %v2872 = vpack.c.b16 %v2316, %v2312
        %v2873 = vpack.c.b16 %v2317, %v2313
        %v2874 = vpack.c.b16 %v2318, %v2314
        %v2875 = vpack.c.b16 %v2319, %v2315
        %v2876 = vpack.c.b16 %v2324, %v2320
        %v2877 = vpack.c.b16 %v2325, %v2321
        %v2878 = vpack.c.b16 %v2326, %v2322
        %v2879 = vpack.c.b16 %v2327, %v2323
        %v2880 = vpack.c.b16 %v2332, %v2328
        %v2881 = vpack.c.b16 %v2333, %v2329
        %v2882 = vpack.c.b16 %v2334, %v2330
        %v2883 = vpack.c.b16 %v2335, %v2331
        %v2884 = vpack.c.b16 %v2340, %v2336
        %v2885 = vpack.c.b16 %v2341, %v2337
        %v2886 = vpack.c.b16 %v2342, %v2338
        %v2887 = vpack.c.b16 %v2343, %v2339
        %v2888 = vpack.c.b16 %v2348, %v2344
        %v2889 = vpack.c.b16 %v2349, %v2345
        %v2890 = vpack.c.b16 %v2350, %v2346
        %v2891 = vpack.c.b16 %v2351, %v2347
        %v2892 = vpack.c.b16 %v2356, %v2352
        %v2893 = vpack.c.b16 %v2357, %v2353
        %v2894 = vpack.c.b16 %v2358, %v2354
        %v2895 = vpack.c.b16 %v2359, %v2355
        %v2896 = vpack.c.b16 %v2364, %v2360
        %v2897 = vpack.c.b16 %v2365, %v2361
        %v2898 = vpack.c.b16 %v2366, %v2362
        %v2899 = vpack.c.b16 %v2367, %v2363
        %v2900 = vpack.c.b16 %v2372, %v2368
        %v2901 = vpack.c.b16 %v2373, %v2369
        %v2902 = vpack.c.b16 %v2374, %v2370
        %v2903 = vpack.c.b16 %v2375, %v2371
        %v2904 = vpack.c.b16 %v2380, %v2376
        %v2905 = vpack.c.b16 %v2381, %v2377
        %v2906 = vpack.c.b16 %v2382, %v2378
        %v2907 = vpack.c.b16 %v2383, %v2379
        %v2908 = vpack.c.b16 %v2388, %v2384
        %v2909 = vpack.c.b16 %v2389, %v2385
        %v2910 = vpack.c.b16 %v2390, %v2386
        %v2911 = vpack.c.b16 %v2391, %v2387
        %v2912 = vpack.c.b16 %v2396, %v2392
        %v2913 = vpack.c.b16 %v2397, %v2393
        %v2914 = vpack.c.b16 %v2398, %v2394
        %v2915 = vpack.c.b16 %v2399, %v2395
        %v2916 = vpack.c.b16 %v2404, %v2400
        %v2917 = vpack.c.b16 %v2405, %v2401
        %v2918 = vpack.c.b16 %v2406, %v2402
        %v2919 = vpack.c.b16 %v2407, %v2403
        %3432 = vmatprep.subr.bf16.mxu0 %v2409
        %3433 = vmatpush1.bf16.msra.mxu0 %v2408
        %3434 = vmatprep.subr.bf16.mxu0 %v2413
        %3435 = vmatpush1.bf16.msra.mxu0 %v2412
        %3436 = vmatprep.subr.bf16.mxu0 %v2417
        %3437 = vmatpush1.bf16.msra.mxu0 %v2416
        %3438 = vmatprep.subr.bf16.mxu0 %v2421
        %3439 = vmatpush1.bf16.msra.mxu0 %v2420
        %3440 = vmatprep.subr.bf16.mxu0 %v2425
        %3441 = vmatpush1.bf16.msra.mxu0 %v2424
        %3442 = vmatprep.subr.bf16.mxu0 %v2429
        %3443 = vmatpush1.bf16.msra.mxu0 %v2428
        %3444 = vmatprep.subr.bf16.mxu0 %v2433
        %3445 = vmatpush1.bf16.msra.mxu0 %v2432
        %3446 = vmatprep.subr.bf16.mxu0 %v2437
        %3447 = vmatpush1.bf16.msra.mxu0 %v2436
        %3448 = vmatprep.subr.bf16.mxu0 %v2441
        %3449 = vmatpush1.bf16.msra.mxu0 %v2440
        %3450 = vmatprep.subr.bf16.mxu0 %v2445
        %3451 = vmatpush1.bf16.msra.mxu0 %v2444
        %3452 = vmatprep.subr.bf16.mxu0 %v2449
        %3453 = vmatpush1.bf16.msra.mxu0 %v2448
        %3454 = vmatprep.subr.bf16.mxu0 %v2453
        %3455 = vmatpush1.bf16.msra.mxu0 %v2452
        %3456 = vmatprep.subr.bf16.mxu0 %v2457
        %3457 = vmatpush1.bf16.msra.mxu0 %v2456
        %3458 = vmatprep.subr.bf16.mxu0 %v2461
        %3459 = vmatpush1.bf16.msra.mxu0 %v2460
        %3460 = vmatprep.subr.bf16.mxu0 %v2465
        %3461 = vmatpush1.bf16.msra.mxu0 %v2464
        %3462 = vmatprep.subr.bf16.mxu0 %v2469
        %3463 = vmatpush1.bf16.msra.mxu0 %v2468
        %3464 = vmatprep.mubr.bf16.mxu0 %v795
        %3465 = vmatmul.mubr.bf16.gmra.mrb[0].mxu0 %v781
        %v3466 = vpop.f32.mrb[0].mxu0
        %v3467 = vadd.f32 0.0, %v3466
        %v3468 = vpop.f32.mrb[0].mxu0
        %v3469 = vadd.f32 0.0, %v3468
        %v3470 = vpop.f32.mrb[0].mxu0
        %v3471 = vpop.f32.mrb[0].mxu0
        %3472 = vdwg.mxu0
        %3473 = vmatprep.subr.bf16.mxu0 %v2473
        %3474 = vmatpush1.bf16.msra.mxu0 %v2472
        %3475 = vmatprep.subr.bf16.mxu0 %v2477
        %3476 = vmatpush1.bf16.msra.mxu0 %v2476
        %3477 = vmatprep.subr.bf16.mxu0 %v2481
        %3478 = vmatpush1.bf16.msra.mxu0 %v2480
        %3479 = vmatprep.subr.bf16.mxu0 %v2485
        %3480 = vmatpush1.bf16.msra.mxu0 %v2484
        %3481 = vmatprep.subr.bf16.mxu0 %v2489
        %3482 = vmatpush1.bf16.msra.mxu0 %v2488
        %3483 = vmatprep.subr.bf16.mxu0 %v2493
        %3484 = vmatpush1.bf16.msra.mxu0 %v2492
        %3485 = vmatprep.subr.bf16.mxu0 %v2497
        %3486 = vmatpush1.bf16.msra.mxu0 %v2496
        %3487 = vmatprep.subr.bf16.mxu0 %v2501
        %3488 = vmatpush1.bf16.msra.mxu0 %v2500
        %3489 = vmatprep.subr.bf16.mxu0 %v2505
        %3490 = vmatpush1.bf16.msra.mxu0 %v2504
        %3491 = vmatprep.subr.bf16.mxu0 %v2509
        %3492 = vmatpush1.bf16.msra.mxu0 %v2508
        %3493 = vmatprep.subr.bf16.mxu0 %v2513
        %3494 = vmatpush1.bf16.msra.mxu0 %v2512
        %3495 = vmatprep.subr.bf16.mxu0 %v2517
        %3496 = vmatpush1.bf16.msra.mxu0 %v2516
        %3497 = vmatprep.subr.bf16.mxu0 %v2521
        %3498 = vmatpush1.bf16.msra.mxu0 %v2520
        %3499 = vmatprep.subr.bf16.mxu0 %v2525
        %3500 = vmatpush1.bf16.msra.mxu0 %v2524
        %3501 = vmatprep.subr.bf16.mxu0 %v2529
        %3502 = vmatpush1.bf16.msra.mxu0 %v2528
        %3503 = vmatprep.subr.bf16.mxu0 %v2533
        %3504 = vmatpush1.bf16.msra.mxu0 %v2532
        %3505 = vmatprep.mubr.bf16.mxu0 %v805
        %3506 = vmatmul.mubr.bf16.gmra.mrb[0].mxu0 %v803
        %v3507 = vpop.f32.mrb[0].mxu0
        %v3508 = vadd.f32 %v3467, %v3507
        %v3509 = vpop.f32.mrb[0].mxu0
        %v3510 = vadd.f32 %v3469, %v3509
        %v3511 = vpop.f32.mrb[0].mxu0
        %v3512 = vpop.f32.mrb[0].mxu0
        %3513 = vdwg.mxu0
        %3514 = vmatprep.subr.bf16.mxu0 %v2537
        %3515 = vmatpush1.bf16.msra.mxu0 %v2536
        %3516 = vmatprep.subr.bf16.mxu0 %v2541
        %3517 = vmatpush1.bf16.msra.mxu0 %v2540
        %3518 = vmatprep.subr.bf16.mxu0 %v2545
        %3519 = vmatpush1.bf16.msra.mxu0 %v2544
        %3520 = vmatprep.subr.bf16.mxu0 %v2549
        %3521 = vmatpush1.bf16.msra.mxu0 %v2548
        %3522 = vmatprep.subr.bf16.mxu0 %v2553
        %3523 = vmatpush1.bf16.msra.mxu0 %v2552
        %3524 = vmatprep.subr.bf16.mxu0 %v2557
        %3525 = vmatpush1.bf16.msra.mxu0 %v2556
        %3526 = vmatprep.subr.bf16.mxu0 %v2561
        %3527 = vmatpush1.bf16.msra.mxu0 %v2560
        %3528 = vmatprep.subr.bf16.mxu0 %v2565
        %3529 = vmatpush1.bf16.msra.mxu0 %v2564
        %3530 = vmatprep.subr.bf16.mxu0 %v2569
        %3531 = vmatpush1.bf16.msra.mxu0 %v2568
        %3532 = vmatprep.subr.bf16.mxu0 %v2573
        %3533 = vmatpush1.bf16.msra.mxu0 %v2572
        %3534 = vmatprep.subr.bf16.mxu0 %v2577
        %3535 = vmatpush1.bf16.msra.mxu0 %v2576
        %3536 = vmatprep.subr.bf16.mxu0 %v2581
        %3537 = vmatpush1.bf16.msra.mxu0 %v2580
        %3538 = vmatprep.subr.bf16.mxu0 %v2585
        %3539 = vmatpush1.bf16.msra.mxu0 %v2584
        %3540 = vmatprep.subr.bf16.mxu0 %v2589
        %3541 = vmatpush1.bf16.msra.mxu0 %v2588
        %3542 = vmatprep.subr.bf16.mxu0 %v2593
        %3543 = vmatpush1.bf16.msra.mxu0 %v2592
        %3544 = vmatprep.subr.bf16.mxu0 %v2597
        %3545 = vmatpush1.bf16.msra.mxu0 %v2596
        %3546 = vmatprep.mubr.bf16.mxu0 %v802
        %3547 = vmatmul.mubr.bf16.gmra.mrb[0].mxu0 %v788
        %v3548 = vpop.f32.mrb[0].mxu0
        %v3549 = vadd.f32 %v3508, %v3548
        %v3550 = vpop.f32.mrb[0].mxu0
        %v3551 = vadd.f32 %v3510, %v3550
        %v3552 = vpop.f32.mrb[0].mxu0
        %v3553 = vpop.f32.mrb[0].mxu0
        %3554 = vdwg.mxu0
        %3555 = vmatprep.subr.bf16.mxu0 %v2601
        %3556 = vmatpush1.bf16.msra.mxu0 %v2600
        %3557 = vmatprep.subr.bf16.mxu0 %v2605
        %3558 = vmatpush1.bf16.msra.mxu0 %v2604
        %3559 = vmatprep.subr.bf16.mxu0 %v2609
        %3560 = vmatpush1.bf16.msra.mxu0 %v2608
        %3561 = vmatprep.subr.bf16.mxu0 %v2613
        %3562 = vmatpush1.bf16.msra.mxu0 %v2612
        %3563 = vmatprep.subr.bf16.mxu0 %v2617
        %3564 = vmatpush1.bf16.msra.mxu0 %v2616
        %3565 = vmatprep.subr.bf16.mxu0 %v2621
        %3566 = vmatpush1.bf16.msra.mxu0 %v2620
        %3567 = vmatprep.subr.bf16.mxu0 %v2625
        %3568 = vmatpush1.bf16.msra.mxu0 %v2624
        %3569 = vmatprep.subr.bf16.mxu0 %v2629
        %3570 = vmatpush1.bf16.msra.mxu0 %v2628
        %3571 = vmatprep.subr.bf16.mxu0 %v2633
        %3572 = vmatpush1.bf16.msra.mxu0 %v2632
        %3573 = vmatprep.subr.bf16.mxu0 %v2637
        %3574 = vmatpush1.bf16.msra.mxu0 %v2636
        %3575 = vmatprep.subr.bf16.mxu0 %v2641
        %3576 = vmatpush1.bf16.msra.mxu0 %v2640
        %3577 = vmatprep.subr.bf16.mxu0 %v2645
        %3578 = vmatpush1.bf16.msra.mxu0 %v2644
        %3579 = vmatprep.subr.bf16.mxu0 %v2649
        %3580 = vmatpush1.bf16.msra.mxu0 %v2648
        %3581 = vmatprep.subr.bf16.mxu0 %v2653
        %3582 = vmatpush1.bf16.msra.mxu0 %v2652
        %3583 = vmatprep.subr.bf16.mxu0 %v2657
        %3584 = vmatpush1.bf16.msra.mxu0 %v2656
        %3585 = vmatprep.subr.bf16.mxu0 %v2661
        %3586 = vmatpush1.bf16.msra.mxu0 %v2660
        %3587 = vmatprep.mubr.bf16.mxu0 %v806
        %3588 = vmatmul.mubr.bf16.gmra.mrb[0].mxu0 %v804
        %v3589 = vpop.f32.mrb[0].mxu0
        %v3590 = vadd.f32 %v3549, %v3589
        %v3591 = vpop.f32.mrb[0].mxu0
        %v3592 = vadd.f32 %v3551, %v3591
        %v3593 = vpop.f32.mrb[0].mxu0
        %v3594 = vpop.f32.mrb[0].mxu0
        %3595 = vdwg.mxu0
        %3596 = vmatprep.subr.bf16.mxu0 %v2665
        %3597 = vmatpush1.bf16.msra.mxu0 %v2664
        %3598 = vmatprep.subr.bf16.mxu0 %v2669
        %3599 = vmatpush1.bf16.msra.mxu0 %v2668
        %3600 = vmatprep.subr.bf16.mxu0 %v2673
        %3601 = vmatpush1.bf16.msra.mxu0 %v2672
        %3602 = vmatprep.subr.bf16.mxu0 %v2677
        %3603 = vmatpush1.bf16.msra.mxu0 %v2676
        %3604 = vmatprep.subr.bf16.mxu0 %v2681
        %3605 = vmatpush1.bf16.msra.mxu0 %v2680
        %3606 = vmatprep.subr.bf16.mxu0 %v2685
        %3607 = vmatpush1.bf16.msra.mxu0 %v2684
        %3608 = vmatprep.subr.bf16.mxu0 %v2689
        %3609 = vmatpush1.bf16.msra.mxu0 %v2688
        %3610 = vmatprep.subr.bf16.mxu0 %v2693
        %3611 = vmatpush1.bf16.msra.mxu0 %v2692
        %3612 = vmatprep.subr.bf16.mxu0 %v2697
        %3613 = vmatpush1.bf16.msra.mxu0 %v2696
        %3614 = vmatprep.subr.bf16.mxu0 %v2701
        %3615 = vmatpush1.bf16.msra.mxu0 %v2700
        %3616 = vmatprep.subr.bf16.mxu0 %v2705
        %3617 = vmatpush1.bf16.msra.mxu0 %v2704
        %3618 = vmatprep.subr.bf16.mxu0 %v2709
        %3619 = vmatpush1.bf16.msra.mxu0 %v2708
        %3620 = vmatprep.subr.bf16.mxu0 %v2713
        %3621 = vmatpush1.bf16.msra.mxu0 %v2712
        %3622 = vmatprep.subr.bf16.mxu0 %v2717
        %3623 = vmatpush1.bf16.msra.mxu0 %v2716
        %3624 = vmatprep.subr.bf16.mxu0 %v2721
        %3625 = vmatpush1.bf16.msra.mxu0 %v2720
        %3626 = vmatprep.subr.bf16.mxu0 %v2725
        %3627 = vmatpush1.bf16.msra.mxu0 %v2724
        %3628 = vmatprep.mubr.bf16.mxu0 %v844
        %3629 = vmatmul.mubr.bf16.gmra.mrb[0].mxu0 %v830
        %v3630 = vpop.f32.mrb[0].mxu0
        %v3631 = vadd.f32 %v3590, %v3630
        %v3632 = vpop.f32.mrb[0].mxu0
        %v3633 = vadd.f32 %v3592, %v3632
        %v3634 = vpop.f32.mrb[0].mxu0
        %v3635 = vpop.f32.mrb[0].mxu0
        %3636 = vdwg.mxu0
        %3637 = vmatprep.subr.bf16.mxu0 %v2729
        %3638 = vmatpush1.bf16.msra.mxu0 %v2728
        %3639 = vmatprep.subr.bf16.mxu0 %v2733
        %3640 = vmatpush1.bf16.msra.mxu0 %v2732
        %3641 = vmatprep.subr.bf16.mxu0 %v2737
        %3642 = vmatpush1.bf16.msra.mxu0 %v2736
        %3643 = vmatprep.subr.bf16.mxu0 %v2741
        %3644 = vmatpush1.bf16.msra.mxu0 %v2740
        %3645 = vmatprep.subr.bf16.mxu0 %v2745
        %3646 = vmatpush1.bf16.msra.mxu0 %v2744
        %3647 = vmatprep.subr.bf16.mxu0 %v2749
        %3648 = vmatpush1.bf16.msra.mxu0 %v2748
        %3649 = vmatprep.subr.bf16.mxu0 %v2753
        %3650 = vmatpush1.bf16.msra.mxu0 %v2752
        %3651 = vmatprep.subr.bf16.mxu0 %v2757
        %3652 = vmatpush1.bf16.msra.mxu0 %v2756
        %3653 = vmatprep.subr.bf16.mxu0 %v2761
        %3654 = vmatpush1.bf16.msra.mxu0 %v2760
        %3655 = vmatprep.subr.bf16.mxu0 %v2765
        %3656 = vmatpush1.bf16.msra.mxu0 %v2764
        %3657 = vmatprep.subr.bf16.mxu0 %v2769
        %3658 = vmatpush1.bf16.msra.mxu0 %v2768
        %3659 = vmatprep.subr.bf16.mxu0 %v2773
        %3660 = vmatpush1.bf16.msra.mxu0 %v2772
        %3661 = vmatprep.subr.bf16.mxu0 %v2777
        %3662 = vmatpush1.bf16.msra.mxu0 %v2776
        %3663 = vmatprep.subr.bf16.mxu0 %v2781
        %3664 = vmatpush1.bf16.msra.mxu0 %v2780
        %3665 = vmatprep.subr.bf16.mxu0 %v2785
        %3666 = vmatpush1.bf16.msra.mxu0 %v2784
        %3667 = vmatprep.subr.bf16.mxu0 %v2789
        %3668 = vmatpush1.bf16.msra.mxu0 %v2788
        %3669 = vmatprep.mubr.bf16.mxu0 %v854
        %3670 = vmatmul.mubr.bf16.gmra.mrb[0].mxu0 %v852
        %v3671 = vpop.f32.mrb[0].mxu0
        %v3672 = vadd.f32 %v3631, %v3671
        %v3673 = vpop.f32.mrb[0].mxu0
        %v3674 = vadd.f32 %v3633, %v3673
        %v3675 = vpop.f32.mrb[0].mxu0
        %v3676 = vpop.f32.mrb[0].mxu0
        %3677 = vdwg.mxu0
        %3678 = vmatprep.subr.bf16.mxu0 %v2793
        %3679 = vmatpush1.bf16.msra.mxu0 %v2792
        %3680 = vmatprep.subr.bf16.mxu0 %v2797
        %3681 = vmatpush1.bf16.msra.mxu0 %v2796
        %3682 = vmatprep.subr.bf16.mxu0 %v2801
        %3683 = vmatpush1.bf16.msra.mxu0 %v2800
        %3684 = vmatprep.subr.bf16.mxu0 %v2805
        %3685 = vmatpush1.bf16.msra.mxu0 %v2804
        %3686 = vmatprep.subr.bf16.mxu0 %v2809
        %3687 = vmatpush1.bf16.msra.mxu0 %v2808
        %3688 = vmatprep.subr.bf16.mxu0 %v2813
        %3689 = vmatpush1.bf16.msra.mxu0 %v2812
        %3690 = vmatprep.subr.bf16.mxu0 %v2817
        %3691 = vmatpush1.bf16.msra.mxu0 %v2816
        %3692 = vmatprep.subr.bf16.mxu0 %v2821
        %3693 = vmatpush1.bf16.msra.mxu0 %v2820
        %3694 = vmatprep.subr.bf16.mxu0 %v2825
        %3695 = vmatpush1.bf16.msra.mxu0 %v2824
        %3696 = vmatprep.subr.bf16.mxu0 %v2829
        %3697 = vmatpush1.bf16.msra.mxu0 %v2828
        %3698 = vmatprep.subr.bf16.mxu0 %v2833
        %3699 = vmatpush1.bf16.msra.mxu0 %v2832
        %3700 = vmatprep.subr.bf16.mxu0 %v2837
        %3701 = vmatpush1.bf16.msra.mxu0 %v2836
        %3702 = vmatprep.subr.bf16.mxu0 %v2841
        %3703 = vmatpush1.bf16.msra.mxu0 %v2840
        %3704 = vmatprep.subr.bf16.mxu0 %v2845
        %3705 = vmatpush1.bf16.msra.mxu0 %v2844
        %3706 = vmatprep.subr.bf16.mxu0 %v2849
        %3707 = vmatpush1.bf16.msra.mxu0 %v2848
        %3708 = vmatprep.subr.bf16.mxu0 %v2853
        %3709 = vmatpush1.bf16.msra.mxu0 %v2852
        %3710 = vmatprep.mubr.bf16.mxu0 %v851
        %3711 = vmatmul.mubr.bf16.gmra.mrb[0].mxu0 %v837
        %v3712 = vpop.f32.mrb[0].mxu0
        %v3713 = vadd.f32 %v3672, %v3712
        %v3714 = vpop.f32.mrb[0].mxu0
        %v3715 = vadd.f32 %v3674, %v3714
        %v3716 = vpop.f32.mrb[0].mxu0
        %v3717 = vpop.f32.mrb[0].mxu0
        %3718 = vdwg.mxu0
        %3719 = vmatprep.subr.bf16.mxu0 %v2857
        %3720 = vmatpush1.bf16.msra.mxu0 %v2856
        %3721 = vmatprep.subr.bf16.mxu0 %v2861
        %3722 = vmatpush1.bf16.msra.mxu0 %v2860
        %3723 = vmatprep.subr.bf16.mxu0 %v2865
        %3724 = vmatpush1.bf16.msra.mxu0 %v2864
        %3725 = vmatprep.subr.bf16.mxu0 %v2869
        %3726 = vmatpush1.bf16.msra.mxu0 %v2868
        %3727 = vmatprep.subr.bf16.mxu0 %v2873
        %3728 = vmatpush1.bf16.msra.mxu0 %v2872
        %3729 = vmatprep.subr.bf16.mxu0 %v2877
        %3730 = vmatpush1.bf16.msra.mxu0 %v2876
        %3731 = vmatprep.subr.bf16.mxu0 %v2881
        %3732 = vmatpush1.bf16.msra.mxu0 %v2880
        %3733 = vmatprep.subr.bf16.mxu0 %v2885
        %3734 = vmatpush1.bf16.msra.mxu0 %v2884
        %3735 = vmatprep.subr.bf16.mxu0 %v2889
        %3736 = vmatpush1.bf16.msra.mxu0 %v2888
        %3737 = vmatprep.subr.bf16.mxu0 %v2893
        %3738 = vmatpush1.bf16.msra.mxu0 %v2892
        %3739 = vmatprep.subr.bf16.mxu0 %v2897
        %3740 = vmatpush1.bf16.msra.mxu0 %v2896
        %3741 = vmatprep.subr.bf16.mxu0 %v2901
        %3742 = vmatpush1.bf16.msra.mxu0 %v2900
        %3743 = vmatprep.subr.bf16.mxu0 %v2905
        %3744 = vmatpush1.bf16.msra.mxu0 %v2904
        %3745 = vmatprep.subr.bf16.mxu0 %v2909
        %3746 = vmatpush1.bf16.msra.mxu0 %v2908
        %3747 = vmatprep.subr.bf16.mxu0 %v2913
        %3748 = vmatpush1.bf16.msra.mxu0 %v2912
        %3749 = vmatprep.subr.bf16.mxu0 %v2917
        %3750 = vmatpush1.bf16.msra.mxu0 %v2916
        %3751 = vmatprep.mubr.bf16.mxu0 %v855
        %3752 = vmatmul.mubr.bf16.gmra.mrb[0].mxu0 %v853
        %v3753 = vpop.f32.mrb[0].mxu0
        %v3754 = vadd.f32 %v3713, %v3753
        %v3755 = vpop.f32.mrb[0].mxu0
        %v3756 = vadd.f32 %v3715, %v3755
        %v3757 = vpop.f32.mrb[0].mxu0
        %v3758 = vpop.f32.mrb[0].mxu0
        %3759 = vdwg.mxu0
        %3760 = vmatprep.subr.bf16.mxu0 %v2411
        %3761 = vmatpush1.bf16.msra.mxu0 %v2410
        %3762 = vmatprep.subr.bf16.mxu0 %v2415
        %3763 = vmatpush1.bf16.msra.mxu0 %v2414
        %3764 = vmatprep.subr.bf16.mxu0 %v2419
        %3765 = vmatpush1.bf16.msra.mxu0 %v2418
        %3766 = vmatprep.subr.bf16.mxu0 %v2423
        %3767 = vmatpush1.bf16.msra.mxu0 %v2422
        %3768 = vmatprep.subr.bf16.mxu0 %v2427
        %3769 = vmatpush1.bf16.msra.mxu0 %v2426
        %3770 = vmatprep.subr.bf16.mxu0 %v2431
        %3771 = vmatpush1.bf16.msra.mxu0 %v2430
        %3772 = vmatprep.subr.bf16.mxu0 %v2435
        %3773 = vmatpush1.bf16.msra.mxu0 %v2434
        %3774 = vmatprep.subr.bf16.mxu0 %v2439
        %3775 = vmatpush1.bf16.msra.mxu0 %v2438
        %3776 = vmatprep.subr.bf16.mxu0 %v2443
        %3777 = vmatpush1.bf16.msra.mxu0 %v2442
        %3778 = vmatprep.subr.bf16.mxu0 %v2447
        %3779 = vmatpush1.bf16.msra.mxu0 %v2446
        %3780 = vmatprep.subr.bf16.mxu0 %v2451
        %3781 = vmatpush1.bf16.msra.mxu0 %v2450
        %3782 = vmatprep.subr.bf16.mxu0 %v2455
        %3783 = vmatpush1.bf16.msra.mxu0 %v2454
        %3784 = vmatprep.subr.bf16.mxu0 %v2459
        %3785 = vmatpush1.bf16.msra.mxu0 %v2458
        %3786 = vmatprep.subr.bf16.mxu0 %v2463
        %3787 = vmatpush1.bf16.msra.mxu0 %v2462
        %3788 = vmatprep.subr.bf16.mxu0 %v2467
        %3789 = vmatpush1.bf16.msra.mxu0 %v2466
        %3790 = vmatprep.subr.bf16.mxu0 %v2471
        %3791 = vmatpush1.bf16.msra.mxu0 %v2470
        %3792 = vmatprep.mubr.bf16.mxu0 %v795
        %3793 = vmatmul.mubr.bf16.gmra.mrb[0].mxu0 %v781
        %v3794 = vpop.f32.mrb[0].mxu0
        %v3795 = vadd.f32 0.0, %v3794
        %v3796 = vpop.f32.mrb[0].mxu0
        %v3797 = vadd.f32 0.0, %v3796
        %v3798 = vpop.f32.mrb[0].mxu0
        %v3799 = vpop.f32.mrb[0].mxu0
        %3800 = vdwg.mxu0
        %3801 = vmatprep.subr.bf16.mxu0 %v2475
        %3802 = vmatpush1.bf16.msra.mxu0 %v2474
        %3803 = vmatprep.subr.bf16.mxu0 %v2479
        %3804 = vmatpush1.bf16.msra.mxu0 %v2478
        %3805 = vmatprep.subr.bf16.mxu0 %v2483
        %3806 = vmatpush1.bf16.msra.mxu0 %v2482
        %3807 = vmatprep.subr.bf16.mxu0 %v2487
        %3808 = vmatpush1.bf16.msra.mxu0 %v2486
        %3809 = vmatprep.subr.bf16.mxu0 %v2491
        %3810 = vmatpush1.bf16.msra.mxu0 %v2490
        %3811 = vmatprep.subr.bf16.mxu0 %v2495
        %3812 = vmatpush1.bf16.msra.mxu0 %v2494
        %3813 = vmatprep.subr.bf16.mxu0 %v2499
        %3814 = vmatpush1.bf16.msra.mxu0 %v2498
        %3815 = vmatprep.subr.bf16.mxu0 %v2503
        %3816 = vmatpush1.bf16.msra.mxu0 %v2502
        %3817 = vmatprep.subr.bf16.mxu0 %v2507
        %3818 = vmatpush1.bf16.msra.mxu0 %v2506
        %3819 = vmatprep.subr.bf16.mxu0 %v2511
        %3820 = vmatpush1.bf16.msra.mxu0 %v2510
        %3821 = vmatprep.subr.bf16.mxu0 %v2515
        %3822 = vmatpush1.bf16.msra.mxu0 %v2514
        %3823 = vmatprep.subr.bf16.mxu0 %v2519
        %3824 = vmatpush1.bf16.msra.mxu0 %v2518
        %3825 = vmatprep.subr.bf16.mxu0 %v2523
        %3826 = vmatpush1.bf16.msra.mxu0 %v2522
        %3827 = vmatprep.subr.bf16.mxu0 %v2527
        %3828 = vmatpush1.bf16.msra.mxu0 %v2526
        %3829 = vmatprep.subr.bf16.mxu0 %v2531
        %3830 = vmatpush1.bf16.msra.mxu0 %v2530
        %3831 = vmatprep.subr.bf16.mxu0 %v2535
        %3832 = vmatpush1.bf16.msra.mxu0 %v2534
        %3833 = vmatprep.mubr.bf16.mxu0 %v805
        %3834 = vmatmul.mubr.bf16.gmra.mrb[0].mxu0 %v803
        %v3835 = vpop.f32.mrb[0].mxu0
        %v3836 = vadd.f32 %v3795, %v3835
        %v3837 = vpop.f32.mrb[0].mxu0
        %v3838 = vadd.f32 %v3797, %v3837
        %v3839 = vpop.f32.mrb[0].mxu0
        %v3840 = vpop.f32.mrb[0].mxu0
        %3841 = vdwg.mxu0
        %3842 = vmatprep.subr.bf16.mxu0 %v2539
        %3843 = vmatpush1.bf16.msra.mxu0 %v2538
        %3844 = vmatprep.subr.bf16.mxu0 %v2543
        %3845 = vmatpush1.bf16.msra.mxu0 %v2542
        %3846 = vmatprep.subr.bf16.mxu0 %v2547
        %3847 = vmatpush1.bf16.msra.mxu0 %v2546
        %3848 = vmatprep.subr.bf16.mxu0 %v2551
        %3849 = vmatpush1.bf16.msra.mxu0 %v2550
        %3850 = vmatprep.subr.bf16.mxu0 %v2555
        %3851 = vmatpush1.bf16.msra.mxu0 %v2554
        %3852 = vmatprep.subr.bf16.mxu0 %v2559
        %3853 = vmatpush1.bf16.msra.mxu0 %v2558
        %3854 = vmatprep.subr.bf16.mxu0 %v2563
        %3855 = vmatpush1.bf16.msra.mxu0 %v2562
        %3856 = vmatprep.subr.bf16.mxu0 %v2567
        %3857 = vmatpush1.bf16.msra.mxu0 %v2566
        %3858 = vmatprep.subr.bf16.mxu0 %v2571
        %3859 = vmatpush1.bf16.msra.mxu0 %v2570
        %3860 = vmatprep.subr.bf16.mxu0 %v2575
        %3861 = vmatpush1.bf16.msra.mxu0 %v2574
        %3862 = vmatprep.subr.bf16.mxu0 %v2579
        %3863 = vmatpush1.bf16.msra.mxu0 %v2578
        %3864 = vmatprep.subr.bf16.mxu0 %v2583
        %3865 = vmatpush1.bf16.msra.mxu0 %v2582
        %3866 = vmatprep.subr.bf16.mxu0 %v2587
        %3867 = vmatpush1.bf16.msra.mxu0 %v2586
        %3868 = vmatprep.subr.bf16.mxu0 %v2591
        %3869 = vmatpush1.bf16.msra.mxu0 %v2590
        %3870 = vmatprep.subr.bf16.mxu0 %v2595
        %3871 = vmatpush1.bf16.msra.mxu0 %v2594
        %3872 = vmatprep.subr.bf16.mxu0 %v2599
        %3873 = vmatpush1.bf16.msra.mxu0 %v2598
        %3874 = vmatprep.mubr.bf16.mxu0 %v802
        %3875 = vmatmul.mubr.bf16.gmra.mrb[0].mxu0 %v788
        %v3876 = vpop.f32.mrb[0].mxu0
        %v3877 = vadd.f32 %v3836, %v3876
        %v3878 = vpop.f32.mrb[0].mxu0
        %v3879 = vadd.f32 %v3838, %v3878
        %v3880 = vpop.f32.mrb[0].mxu0
        %v3881 = vpop.f32.mrb[0].mxu0
        %3882 = vdwg.mxu0
        %3883 = vmatprep.subr.bf16.mxu0 %v2603
        %3884 = vmatpush1.bf16.msra.mxu0 %v2602
        %3885 = vmatprep.subr.bf16.mxu0 %v2607
        %3886 = vmatpush1.bf16.msra.mxu0 %v2606
        %3887 = vmatprep.subr.bf16.mxu0 %v2611
        %3888 = vmatpush1.bf16.msra.mxu0 %v2610
        %3889 = vmatprep.subr.bf16.mxu0 %v2615
        %3890 = vmatpush1.bf16.msra.mxu0 %v2614
        %3891 = vmatprep.subr.bf16.mxu0 %v2619
        %3892 = vmatpush1.bf16.msra.mxu0 %v2618
        %3893 = vmatprep.subr.bf16.mxu0 %v2623
        %3894 = vmatpush1.bf16.msra.mxu0 %v2622
        %3895 = vmatprep.subr.bf16.mxu0 %v2627
        %3896 = vmatpush1.bf16.msra.mxu0 %v2626
        %3897 = vmatprep.subr.bf16.mxu0 %v2631
        %3898 = vmatpush1.bf16.msra.mxu0 %v2630
        %3899 = vmatprep.subr.bf16.mxu0 %v2635
        %3900 = vmatpush1.bf16.msra.mxu0 %v2634
        %3901 = vmatprep.subr.bf16.mxu0 %v2639
        %3902 = vmatpush1.bf16.msra.mxu0 %v2638
        %3903 = vmatprep.subr.bf16.mxu0 %v2643
        %3904 = vmatpush1.bf16.msra.mxu0 %v2642
        %3905 = vmatprep.subr.bf16.mxu0 %v2647
        %3906 = vmatpush1.bf16.msra.mxu0 %v2646
        %3907 = vmatprep.subr.bf16.mxu0 %v2651
        %3908 = vmatpush1.bf16.msra.mxu0 %v2650
        %3909 = vmatprep.subr.bf16.mxu0 %v2655
        %3910 = vmatpush1.bf16.msra.mxu0 %v2654
        %3911 = vmatprep.subr.bf16.mxu0 %v2659
        %3912 = vmatpush1.bf16.msra.mxu0 %v2658
        %3913 = vmatprep.subr.bf16.mxu0 %v2663
        %3914 = vmatpush1.bf16.msra.mxu0 %v2662
        %3915 = vmatprep.mubr.bf16.mxu0 %v806
        %3916 = vmatmul.mubr.bf16.gmra.mrb[0].mxu0 %v804
        %v3917 = vpop.f32.mrb[0].mxu0
        %v3918 = vadd.f32 %v3877, %v3917
        %v3919 = vpop.f32.mrb[0].mxu0
        %v3920 = vadd.f32 %v3879, %v3919
        %v3921 = vpop.f32.mrb[0].mxu0
        %v3922 = vpop.f32.mrb[0].mxu0
        %3923 = vdwg.mxu0
        %3924 = vmatprep.subr.bf16.mxu0 %v2667
        %3925 = vmatpush1.bf16.msra.mxu0 %v2666
        %3926 = vmatprep.subr.bf16.mxu0 %v2671
        %3927 = vmatpush1.bf16.msra.mxu0 %v2670
        %3928 = vmatprep.subr.bf16.mxu0 %v2675
        %3929 = vmatpush1.bf16.msra.mxu0 %v2674
        %3930 = vmatprep.subr.bf16.mxu0 %v2679
        %3931 = vmatpush1.bf16.msra.mxu0 %v2678
        %3932 = vmatprep.subr.bf16.mxu0 %v2683
        %3933 = vmatpush1.bf16.msra.mxu0 %v2682
        %3934 = vmatprep.subr.bf16.mxu0 %v2687
        %3935 = vmatpush1.bf16.msra.mxu0 %v2686
        %3936 = vmatprep.subr.bf16.mxu0 %v2691
        %3937 = vmatpush1.bf16.msra.mxu0 %v2690
        %3938 = vmatprep.subr.bf16.mxu0 %v2695
        %3939 = vmatpush1.bf16.msra.mxu0 %v2694
        %3940 = vmatprep.subr.bf16.mxu0 %v2699
        %3941 = vmatpush1.bf16.msra.mxu0 %v2698
        %3942 = vmatprep.subr.bf16.mxu0 %v2703
        %3943 = vmatpush1.bf16.msra.mxu0 %v2702
        %3944 = vmatprep.subr.bf16.mxu0 %v2707
        %3945 = vmatpush1.bf16.msra.mxu0 %v2706
        %3946 = vmatprep.subr.bf16.mxu0 %v2711
        %3947 = vmatpush1.bf16.msra.mxu0 %v2710
        %3948 = vmatprep.subr.bf16.mxu0 %v2715
        %3949 = vmatpush1.bf16.msra.mxu0 %v2714
        %3950 = vmatprep.subr.bf16.mxu0 %v2719
        %3951 = vmatpush1.bf16.msra.mxu0 %v2718
        %3952 = vmatprep.subr.bf16.mxu0 %v2723
        %3953 = vmatpush1.bf16.msra.mxu0 %v2722
        %3954 = vmatprep.subr.bf16.mxu0 %v2727
        %3955 = vmatpush1.bf16.msra.mxu0 %v2726
        %3956 = vmatprep.mubr.bf16.mxu0 %v844
        %3957 = vmatmul.mubr.bf16.gmra.mrb[0].mxu0 %v830
        %v3958 = vpop.f32.mrb[0].mxu0
        %v3959 = vadd.f32 %v3918, %v3958
        %v3960 = vpop.f32.mrb[0].mxu0
        %v3961 = vadd.f32 %v3920, %v3960
        %v3962 = vpop.f32.mrb[0].mxu0
        %v3963 = vpop.f32.mrb[0].mxu0
        %3964 = vdwg.mxu0
        %3965 = vmatprep.subr.bf16.mxu0 %v2731
        %3966 = vmatpush1.bf16.msra.mxu0 %v2730
        %3967 = vmatprep.subr.bf16.mxu0 %v2735
        %3968 = vmatpush1.bf16.msra.mxu0 %v2734
        %3969 = vmatprep.subr.bf16.mxu0 %v2739
        %3970 = vmatpush1.bf16.msra.mxu0 %v2738
        %3971 = vmatprep.subr.bf16.mxu0 %v2743
        %3972 = vmatpush1.bf16.msra.mxu0 %v2742
        %3973 = vmatprep.subr.bf16.mxu0 %v2747
        %3974 = vmatpush1.bf16.msra.mxu0 %v2746
        %3975 = vmatprep.subr.bf16.mxu0 %v2751
        %3976 = vmatpush1.bf16.msra.mxu0 %v2750
        %3977 = vmatprep.subr.bf16.mxu0 %v2755
        %3978 = vmatpush1.bf16.msra.mxu0 %v2754
        %3979 = vmatprep.subr.bf16.mxu0 %v2759
        %3980 = vmatpush1.bf16.msra.mxu0 %v2758
        %3981 = vmatprep.subr.bf16.mxu0 %v2763
        %3982 = vmatpush1.bf16.msra.mxu0 %v2762
        %3983 = vmatprep.subr.bf16.mxu0 %v2767
        %3984 = vmatpush1.bf16.msra.mxu0 %v2766
        %3985 = vmatprep.subr.bf16.mxu0 %v2771
        %3986 = vmatpush1.bf16.msra.mxu0 %v2770
        %3987 = vmatprep.subr.bf16.mxu0 %v2775
        %3988 = vmatpush1.bf16.msra.mxu0 %v2774
        %3989 = vmatprep.subr.bf16.mxu0 %v2779
        %3990 = vmatpush1.bf16.msra.mxu0 %v2778
        %3991 = vmatprep.subr.bf16.mxu0 %v2783
        %3992 = vmatpush1.bf16.msra.mxu0 %v2782
        %3993 = vmatprep.subr.bf16.mxu0 %v2787
        %3994 = vmatpush1.bf16.msra.mxu0 %v2786
        %3995 = vmatprep.subr.bf16.mxu0 %v2791
        %3996 = vmatpush1.bf16.msra.mxu0 %v2790
        %3997 = vmatprep.mubr.bf16.mxu0 %v854
        %3998 = vmatmul.mubr.bf16.gmra.mrb[0].mxu0 %v852
        %v3999 = vpop.f32.mrb[0].mxu0
        %v4000 = vadd.f32 %v3959, %v3999
        %v4001 = vpop.f32.mrb[0].mxu0
        %v4002 = vadd.f32 %v3961, %v4001
        %v4003 = vpop.f32.mrb[0].mxu0
        %v4004 = vpop.f32.mrb[0].mxu0
        %4005 = vdwg.mxu0
        %4006 = vmatprep.subr.bf16.mxu0 %v2795
        %4007 = vmatpush1.bf16.msra.mxu0 %v2794
        %4008 = vmatprep.subr.bf16.mxu0 %v2799
        %4009 = vmatpush1.bf16.msra.mxu0 %v2798
        %4010 = vmatprep.subr.bf16.mxu0 %v2803
        %4011 = vmatpush1.bf16.msra.mxu0 %v2802
        %4012 = vmatprep.subr.bf16.mxu0 %v2807
        %4013 = vmatpush1.bf16.msra.mxu0 %v2806
        %4014 = vmatprep.subr.bf16.mxu0 %v2811
        %4015 = vmatpush1.bf16.msra.mxu0 %v2810
        %4016 = vmatprep.subr.bf16.mxu0 %v2815
        %4017 = vmatpush1.bf16.msra.mxu0 %v2814
        %4018 = vmatprep.subr.bf16.mxu0 %v2819
        %4019 = vmatpush1.bf16.msra.mxu0 %v2818
        %4020 = vmatprep.subr.bf16.mxu0 %v2823
        %4021 = vmatpush1.bf16.msra.mxu0 %v2822
        %4022 = vmatprep.subr.bf16.mxu0 %v2827
        %4023 = vmatpush1.bf16.msra.mxu0 %v2826
        %4024 = vmatprep.subr.bf16.mxu0 %v2831
        %4025 = vmatpush1.bf16.msra.mxu0 %v2830
        %4026 = vmatprep.subr.bf16.mxu0 %v2835
        %4027 = vmatpush1.bf16.msra.mxu0 %v2834
        %4028 = vmatprep.subr.bf16.mxu0 %v2839
        %4029 = vmatpush1.bf16.msra.mxu0 %v2838
        %4030 = vmatprep.subr.bf16.mxu0 %v2843
        %4031 = vmatpush1.bf16.msra.mxu0 %v2842
        %4032 = vmatprep.subr.bf16.mxu0 %v2847
        %4033 = vmatpush1.bf16.msra.mxu0 %v2846
        %4034 = vmatprep.subr.bf16.mxu0 %v2851
        %4035 = vmatpush1.bf16.msra.mxu0 %v2850
        %4036 = vmatprep.subr.bf16.mxu0 %v2855
        %4037 = vmatpush1.bf16.msra.mxu0 %v2854
        %4038 = vmatprep.mubr.bf16.mxu0 %v851
        %4039 = vmatmul.mubr.bf16.gmra.mrb[0].mxu0 %v837
        %v4040 = vpop.f32.mrb[0].mxu0
        %v4041 = vadd.f32 %v4000, %v4040
        %v4042 = vpop.f32.mrb[0].mxu0
        %v4043 = vadd.f32 %v4002, %v4042
        %v4044 = vpop.f32.mrb[0].mxu0
        %v4045 = vpop.f32.mrb[0].mxu0
        %4046 = vdwg.mxu0
        %4047 = vmatprep.subr.bf16.mxu0 %v2859
        %4048 = vmatpush1.bf16.msra.mxu0 %v2858
        %4049 = vmatprep.subr.bf16.mxu0 %v2863
        %4050 = vmatpush1.bf16.msra.mxu0 %v2862
        %4051 = vmatprep.subr.bf16.mxu0 %v2867
        %4052 = vmatpush1.bf16.msra.mxu0 %v2866
        %4053 = vmatprep.subr.bf16.mxu0 %v2871
        %4054 = vmatpush1.bf16.msra.mxu0 %v2870
        %4055 = vmatprep.subr.bf16.mxu0 %v2875
        %4056 = vmatpush1.bf16.msra.mxu0 %v2874
        %4057 = vmatprep.subr.bf16.mxu0 %v2879
        %4058 = vmatpush1.bf16.msra.mxu0 %v2878
        %4059 = vmatprep.subr.bf16.mxu0 %v2883
        %4060 = vmatpush1.bf16.msra.mxu0 %v2882
        %4061 = vmatprep.subr.bf16.mxu0 %v2887
        %4062 = vmatpush1.bf16.msra.mxu0 %v2886
        %4063 = vmatprep.subr.bf16.mxu0 %v2891
        %4064 = vmatpush1.bf16.msra.mxu0 %v2890
        %4065 = vmatprep.subr.bf16.mxu0 %v2895
        %4066 = vmatpush1.bf16.msra.mxu0 %v2894
        %4067 = vmatprep.subr.bf16.mxu0 %v2899
        %4068 = vmatpush1.bf16.msra.mxu0 %v2898
        %4069 = vmatprep.subr.bf16.mxu0 %v2903
        %4070 = vmatpush1.bf16.msra.mxu0 %v2902
        %4071 = vmatprep.subr.bf16.mxu0 %v2907
        %4072 = vmatpush1.bf16.msra.mxu0 %v2906
        %4073 = vmatprep.subr.bf16.mxu0 %v2911
        %4074 = vmatpush1.bf16.msra.mxu0 %v2910
        %4075 = vmatprep.subr.bf16.mxu0 %v2915
        %4076 = vmatpush1.bf16.msra.mxu0 %v2914
        %4077 = vmatprep.subr.bf16.mxu0 %v2919
        %4078 = vmatpush1.bf16.msra.mxu0 %v2918
        %4079 = vmatprep.mubr.bf16.mxu0 %v855
        %4080 = vmatmul.mubr.bf16.gmra.mrb[0].mxu0 %v853
        %v4081 = vpop.f32.mrb[0].mxu0
        %v4082 = vadd.f32 %v4041, %v4081
        %v4083 = vpop.f32.mrb[0].mxu0
        %v4084 = vadd.f32 %v4043, %v4083
        %v4085 = vpop.f32.mrb[0].mxu0
        %v4086 = vpop.f32.mrb[0].mxu0
        %4087 = vdwg.mxu0
        %v4092 = vcombine.low %v3754, %v3756
        %v4093 = vcombine.low %v4082, %v4084
        %v4095 = vunpack.c.l.s4 1983009808
        %v4096 = vunpack.c.0.s8 %v4095
        %v4097 = vlaneseq
        %v4098 = vshrl.u32 %v4097, 7
        %v4099 = vsub.s32 %v4096, %v4098
        %v4100 = vrot.slane %v4092, %v4099
        %v4102 = vunpack.c.l.s4 1983009808
        %v4103 = vunpack.c.0.s8 %v4102
        %v4104 = vlaneseq
        %v4105 = vshrl.u32 %v4104, 7
        %v4106 = vsub.s32 %v4103, %v4105
        %v4107 = vrot.slane %v4093, %v4106
        %v4108 = vcombine.low %v4100, %v4107
        %v4110 = vadd.f32 %v241, %v4108
        %4111 = vst [vmem:[#allocation2] sm:$0xff] %v4110
        %p4112 = scmp.eq.s32.totalorder %s17, 1
        // Predicated region
        $region45: #{simple_cnn_forward.9} parent=39 // pred_check
          %p4113 = pneg %p4112
        $region46: #{simple_cnn_forward.9} parent=39 // pred_check_branch
          %4115 = sbr.rel (%p4113) target = $region48
        $region47: #{simple_cnn_forward.9} parent=39 // pred_region
          %v4116 = vld [vmem:[#allocation2] sm:$0xff]
          %v4117 = vld [vmem:[%s2] sm:$0xf]
          %v4119 = vlaneseq
          %v4120 = vshrl.u32 %v4119, 7
          %v4121 = vsub.s32 0, %v4120
          %v4122 = vrot.slane %v4117, %v4121
          %v4123 = vlaneseq
          %v4124 = vshrl.u32 %v4123, 7
          %v4125 = vsub.s32 1, %v4124
          %v4126 = vrot.slane %v4117, %v4125
          %v4127 = vlaneseq
          %v4128 = vshrl.u32 %v4127, 7
          %v4129 = vsub.s32 2, %v4128
          %v4130 = vrot.slane %v4117, %v4129
          %v4131 = vlaneseq
          %v4132 = vshrl.u32 %v4131, 7
          %v4133 = vsub.s32 3, %v4132
          %v4134 = vrot.slane %v4117, %v4133
          %v4135 = vcombine.low %v4122, %v4126
          %v4136 = vcombine.low %v4130, %v4134
          %v4138 = vunpack.c.l.s4 1983009808
          %v4139 = vunpack.c.0.s8 %v4138
          %v4140 = vlaneseq
          %v4141 = vshrl.u32 %v4140, 7
          %v4142 = vsub.s32 %v4139, %v4141
          %v4143 = vrot.slane %v4135, %v4142
          %v4145 = vunpack.c.l.s4 1983009808
          %v4146 = vunpack.c.0.s8 %v4145
          %v4147 = vlaneseq
          %v4148 = vshrl.u32 %v4147, 7
          %v4149 = vsub.s32 %v4146, %v4148
          %v4150 = vrot.slane %v4136, %v4149
          %v4151 = vcombine.low %v4143, %v4150
          %v4153 = vadd.f32 %v4116, %v4151
          %v4154 = vmax.f32 %v4153, 0.0
          %v4156 = vcombine.high %v4154, %v4154
          %v4158 = vunpack.c.l.s4 1983009808
          %v4159 = vunpack.c.0.s8 %v4158
          %v4160 = vlaneseq
          %v4161 = vshrl.u32 %v4160, 7
          %v4162 = vsub.s32 %v4159, %v4161
          %v4163 = vrot.slane %v4154, %v4162
          %v4165 = vunpack.c.l.s4 1983009808
          %v4166 = vunpack.c.0.s8 %v4165
          %v4167 = vlaneseq
          %v4168 = vshrl.u32 %v4167, 7
          %v4169 = vsub.s32 %v4166, %v4168
          %v4170 = vrot.slane %v4156, %v4169
          %v4171 = vcombine.high %v4163, %v4163
          %v4172 = vcombine.high %v4170, %v4170
          %v4177 = vpack.c.bf16 %v4163, %v4163
          %v4178 = vpack.c.bf16 %v4171, %v4171
          %v4179 = vpack.c.bf16 %v4170, %v4170
          %v4180 = vpack.c.bf16 %v4172, %v4172
          %v4181 = vld [vmem:[%s3] sm:$0xf]
          %v4182 = vld [vmem:[%s3 + $0x4] sm:$0xf]
          %v4183 = vld [vmem:[%s3 + $0x8] sm:$0xf]
          %v4184 = vld [vmem:[%s3 + $0xc] sm:$0xf]
          %v4185 = vld [vmem:[%s3 + $0x10] sm:$0xf]
          %v4186 = vld [vmem:[%s3 + $0x14] sm:$0xf]
          %v4187 = vld [vmem:[%s3 + $0x18] sm:$0xf]
          %v4188 = vld [vmem:[%s3 + $0x1c] sm:$0xf]
          %v4189 = vld [vmem:[%s3 + $0x20] sm:$0xf]
          %v4190 = vld [vmem:[%s3 + $0x24] sm:$0xf]
          %v4191 = vld [vmem:[%s3 + $0x28] sm:$0xf]
          %v4192 = vld [vmem:[%s3 + $0x2c] sm:$0xf]
          %v4193 = vld [vmem:[%s3 + $0x30] sm:$0xf]
          %v4194 = vld [vmem:[%s3 + $0x34] sm:$0xf]
          %v4195 = vld [vmem:[%s3 + $0x38] sm:$0xf]
          %v4196 = vld [vmem:[%s3 + $0x3c] sm:$0xf]
          %v4197 = vld [vmem:[%s3 + $0x40] sm:$0xf]
          %v4198 = vld [vmem:[%s3 + $0x44] sm:$0xf]
          %v4199 = vld [vmem:[%s3 + $0x48] sm:$0xf]
          %v4200 = vld [vmem:[%s3 + $0x4c] sm:$0xf]
          %v4201 = vld [vmem:[%s3 + $0x50] sm:$0xf]
          %v4202 = vld [vmem:[%s3 + $0x54] sm:$0xf]
          %v4203 = vld [vmem:[%s3 + $0x58] sm:$0xf]
          %v4204 = vld [vmem:[%s3 + $0x5c] sm:$0xf]
          %v4205 = vld [vmem:[%s3 + $0x60] sm:$0xf]
          %v4206 = vld [vmem:[%s3 + $0x64] sm:$0xf]
          %v4207 = vld [vmem:[%s3 + $0x68] sm:$0xf]
          %v4208 = vld [vmem:[%s3 + $0x6c] sm:$0xf]
          %v4209 = vld [vmem:[%s3 + $0x70] sm:$0xf]
          %v4210 = vld [vmem:[%s3 + $0x74] sm:$0xf]
          %v4211 = vld [vmem:[%s3 + $0x78] sm:$0xf]
          %v4212 = vld [vmem:[%s3 + $0x7c] sm:$0xf]
          %v4213 = vld [vmem:[%s3 + $0x80] sm:$0xf]
          %v4214 = vld [vmem:[%s3 + $0x84] sm:$0xf]
          %v4215 = vld [vmem:[%s3 + $0x88] sm:$0xf]
          %v4216 = vld [vmem:[%s3 + $0x8c] sm:$0xf]
          %v4217 = vld [vmem:[%s3 + $0x90] sm:$0xf]
          %v4218 = vld [vmem:[%s3 + $0x94] sm:$0xf]
          %v4219 = vld [vmem:[%s3 + $0x98] sm:$0xf]
          %v4220 = vld [vmem:[%s3 + $0x9c] sm:$0xf]
          %v4221 = vld [vmem:[%s3 + $0xa0] sm:$0xf]
          %v4222 = vld [vmem:[%s3 + $0xa4] sm:$0xf]
          %v4223 = vld [vmem:[%s3 + $0xa8] sm:$0xf]
          %v4224 = vld [vmem:[%s3 + $0xac] sm:$0xf]
          %v4225 = vld [vmem:[%s3 + $0xb0] sm:$0xf]
          %v4226 = vld [vmem:[%s3 + $0xb4] sm:$0xf]
          %v4227 = vld [vmem:[%s3 + $0xb8] sm:$0xf]
          %v4228 = vld [vmem:[%s3 + $0xbc] sm:$0xf]
          %v4229 = vld [vmem:[%s3 + $0xc0] sm:$0xf]
          %v4230 = vld [vmem:[%s3 + $0xc4] sm:$0xf]
          %v4231 = vld [vmem:[%s3 + $0xc8] sm:$0xf]
          %v4232 = vld [vmem:[%s3 + $0xcc] sm:$0xf]
          %v4233 = vld [vmem:[%s3 + $0xd0] sm:$0xf]
          %v4234 = vld [vmem:[%s3 + $0xd4] sm:$0xf]
          %v4235 = vld [vmem:[%s3 + $0xd8] sm:$0xf]
          %v4236 = vld [vmem:[%s3 + $0xdc] sm:$0xf]
          %v4237 = vld [vmem:[%s3 + $0xe0] sm:$0xf]
          %v4238 = vld [vmem:[%s3 + $0xe4] sm:$0xf]
          %v4239 = vld [vmem:[%s3 + $0xe8] sm:$0xf]
          %v4240 = vld [vmem:[%s3 + $0xec] sm:$0xf]
          %v4241 = vld [vmem:[%s3 + $0xf0] sm:$0xf]
          %v4242 = vld [vmem:[%s3 + $0xf4] sm:$0xf]
          %v4243 = vld [vmem:[%s3 + $0xf8] sm:$0xf]
          %v4244 = vld [vmem:[%s3 + $0xfc] sm:$0xf]
          %v4245 = vld [vmem:[%s4] sm:$0x1]
          %v4247 = vlaneseq
          %v4248 = vshrl.u32 %v4247, 7
          %v4249 = vsub.s32 0, %v4248
          %v4250 = vrot.slane %v4245, %v4249
          %v4316 = vunpack.c.l.b16 %v4181
          %v4317 = vunpack.c.l.b16 %v4182
          %v4318 = vunpack.c.l.b16 %v4183
          %v4319 = vunpack.c.l.b16 %v4184
          %v4320 = vunpack.c.l.b16 %v4185
          %v4321 = vunpack.c.l.b16 %v4186
          %v4322 = vunpack.c.l.b16 %v4187
          %v4323 = vunpack.c.l.b16 %v4188
          %v4324 = vunpack.c.l.b16 %v4189
          %v4325 = vunpack.c.l.b16 %v4190
          %v4326 = vunpack.c.l.b16 %v4191
          %v4327 = vunpack.c.l.b16 %v4192
          %v4328 = vunpack.c.l.b16 %v4193
          %v4329 = vunpack.c.l.b16 %v4194
          %v4330 = vunpack.c.l.b16 %v4195
          %v4331 = vunpack.c.l.b16 %v4196
          %v4332 = vunpack.c.l.b16 %v4197
          %v4333 = vunpack.c.l.b16 %v4198
          %v4334 = vunpack.c.l.b16 %v4199
          %v4335 = vunpack.c.l.b16 %v4200
          %v4336 = vunpack.c.l.b16 %v4201
          %v4337 = vunpack.c.l.b16 %v4202
          %v4338 = vunpack.c.l.b16 %v4203
          %v4339 = vunpack.c.l.b16 %v4204
          %v4340 = vunpack.c.l.b16 %v4205
          %v4341 = vunpack.c.l.b16 %v4206
          %v4342 = vunpack.c.l.b16 %v4207
          %v4343 = vunpack.c.l.b16 %v4208
          %v4344 = vunpack.c.l.b16 %v4209
          %v4345 = vunpack.c.l.b16 %v4210
          %v4346 = vunpack.c.l.b16 %v4211
          %v4347 = vunpack.c.l.b16 %v4212
          %v4348 = vunpack.c.l.b16 %v4213
          %v4349 = vunpack.c.l.b16 %v4214
          %v4350 = vunpack.c.l.b16 %v4215
          %v4351 = vunpack.c.l.b16 %v4216
          %v4352 = vunpack.c.l.b16 %v4217
          %v4353 = vunpack.c.l.b16 %v4218
          %v4354 = vunpack.c.l.b16 %v4219
          %v4355 = vunpack.c.l.b16 %v4220
          %v4356 = vunpack.c.l.b16 %v4221
          %v4357 = vunpack.c.l.b16 %v4222
          %v4358 = vunpack.c.l.b16 %v4223
          %v4359 = vunpack.c.l.b16 %v4224
          %v4360 = vunpack.c.l.b16 %v4225
          %v4361 = vunpack.c.l.b16 %v4226
          %v4362 = vunpack.c.l.b16 %v4227
          %v4363 = vunpack.c.l.b16 %v4228
          %v4364 = vunpack.c.l.b16 %v4229
          %v4365 = vunpack.c.l.b16 %v4230
          %v4366 = vunpack.c.l.b16 %v4231
          %v4367 = vunpack.c.l.b16 %v4232
          %v4368 = vunpack.c.l.b16 %v4233
          %v4369 = vunpack.c.l.b16 %v4234
          %v4370 = vunpack.c.l.b16 %v4235
          %v4371 = vunpack.c.l.b16 %v4236
          %v4372 = vunpack.c.l.b16 %v4237
          %v4373 = vunpack.c.l.b16 %v4238
          %v4374 = vunpack.c.l.b16 %v4239
          %v4375 = vunpack.c.l.b16 %v4240
          %v4376 = vunpack.c.l.b16 %v4241
          %v4377 = vunpack.c.l.b16 %v4242
          %v4378 = vunpack.c.l.b16 %v4243
          %v4379 = vunpack.c.l.b16 %v4244
          %v4380 = vpack.c.b16 %v4317, %v4316
          %v4381 = vpack.c.b16 %v4319, %v4318
          %v4382 = vpack.c.b16 %v4321, %v4320
          %v4383 = vpack.c.b16 %v4323, %v4322
          %v4384 = vpack.c.b16 %v4325, %v4324
          %v4385 = vpack.c.b16 %v4327, %v4326
          %v4386 = vpack.c.b16 %v4329, %v4328
          %v4387 = vpack.c.b16 %v4331, %v4330
          %v4388 = vpack.c.b16 %v4333, %v4332
          %v4389 = vpack.c.b16 %v4335, %v4334
          %v4390 = vpack.c.b16 %v4337, %v4336
          %v4391 = vpack.c.b16 %v4339, %v4338
          %v4392 = vpack.c.b16 %v4341, %v4340
          %v4393 = vpack.c.b16 %v4343, %v4342
          %v4394 = vpack.c.b16 %v4345, %v4344
          %v4395 = vpack.c.b16 %v4347, %v4346
          %v4396 = vpack.c.b16 %v4349, %v4348
          %v4397 = vpack.c.b16 %v4351, %v4350
          %v4398 = vpack.c.b16 %v4353, %v4352
          %v4399 = vpack.c.b16 %v4355, %v4354
          %v4400 = vpack.c.b16 %v4357, %v4356
          %v4401 = vpack.c.b16 %v4359, %v4358
          %v4402 = vpack.c.b16 %v4361, %v4360
          %v4403 = vpack.c.b16 %v4363, %v4362
          %v4404 = vpack.c.b16 %v4365, %v4364
          %v4405 = vpack.c.b16 %v4367, %v4366
          %v4406 = vpack.c.b16 %v4369, %v4368
          %v4407 = vpack.c.b16 %v4371, %v4370
          %v4408 = vpack.c.b16 %v4373, %v4372
          %v4409 = vpack.c.b16 %v4375, %v4374
          %v4410 = vpack.c.b16 %v4377, %v4376
          %v4411 = vpack.c.b16 %v4379, %v4378
          %4444 = vmatprep.subr.bf16.mxu0 0
          %4445 = vmatpush1.bf16.msra.mxu0 %v4380
          %4446 = vmatprep.subr.bf16.mxu0 0
          %4447 = vmatpush1.bf16.msra.mxu0 %v4381
          %4448 = vmatprep.subr.bf16.mxu0 0
          %4449 = vmatpush1.bf16.msra.mxu0 %v4382
          %4450 = vmatprep.subr.bf16.mxu0 0
          %4451 = vmatpush1.bf16.msra.mxu0 %v4383
          %4452 = vmatprep.subr.bf16.mxu0 0
          %4453 = vmatpush1.bf16.msra.mxu0 %v4384
          %4454 = vmatprep.subr.bf16.mxu0 0
          %4455 = vmatpush1.bf16.msra.mxu0 %v4385
          %4456 = vmatprep.subr.bf16.mxu0 0
          %4457 = vmatpush1.bf16.msra.mxu0 %v4386
          %4458 = vmatprep.subr.bf16.mxu0 0
          %4459 = vmatpush1.bf16.msra.mxu0 %v4387
          %4460 = vmatprep.subr.bf16.mxu0 0
          %4461 = vmatpush1.bf16.msra.mxu0 %v4388
          %4462 = vmatprep.subr.bf16.mxu0 0
          %4463 = vmatpush1.bf16.msra.mxu0 %v4389
          %4464 = vmatprep.subr.bf16.mxu0 0
          %4465 = vmatpush1.bf16.msra.mxu0 %v4390
          %4466 = vmatprep.subr.bf16.mxu0 0
          %4467 = vmatpush1.bf16.msra.mxu0 %v4391
          %4468 = vmatprep.subr.bf16.mxu0 0
          %4469 = vmatpush1.bf16.msra.mxu0 %v4392
          %4470 = vmatprep.subr.bf16.mxu0 0
          %4471 = vmatpush1.bf16.msra.mxu0 %v4393
          %4472 = vmatprep.subr.bf16.mxu0 0
          %4473 = vmatpush1.bf16.msra.mxu0 %v4394
          %4474 = vmatprep.subr.bf16.mxu0 0
          %4475 = vmatpush1.bf16.msra.mxu0 %v4395
          %4476 = vmatprep.mubr.bf16.mxu0 %v4178
          %4477 = vmatmul.mubr.bf16.gmra.mrb[0].mxu0 %v4177
          %v4478 = vpop.f32.mrb[0].mxu0
          %v4479 = vadd.f32 %v4250, %v4478
          %v4480 = vpop.f32.mrb[0].mxu0
          %v4481 = vpop.f32.mrb[0].mxu0
          %v4482 = vpop.f32.mrb[0].mxu0
          %4483 = vdwg.mxu0
          %4484 = vmatprep.subr.bf16.mxu0 0
          %4485 = vmatpush1.bf16.msra.mxu0 %v4396
          %4486 = vmatprep.subr.bf16.mxu0 0
          %4487 = vmatpush1.bf16.msra.mxu0 %v4397
          %4488 = vmatprep.subr.bf16.mxu0 0
          %4489 = vmatpush1.bf16.msra.mxu0 %v4398
          %4490 = vmatprep.subr.bf16.mxu0 0
          %4491 = vmatpush1.bf16.msra.mxu0 %v4399
          %4492 = vmatprep.subr.bf16.mxu0 0
          %4493 = vmatpush1.bf16.msra.mxu0 %v4400
          %4494 = vmatprep.subr.bf16.mxu0 0
          %4495 = vmatpush1.bf16.msra.mxu0 %v4401
          %4496 = vmatprep.subr.bf16.mxu0 0
          %4497 = vmatpush1.bf16.msra.mxu0 %v4402
          %4498 = vmatprep.subr.bf16.mxu0 0
          %4499 = vmatpush1.bf16.msra.mxu0 %v4403
          %4500 = vmatprep.subr.bf16.mxu0 0
          %4501 = vmatpush1.bf16.msra.mxu0 %v4404
          %4502 = vmatprep.subr.bf16.mxu0 0
          %4503 = vmatpush1.bf16.msra.mxu0 %v4405
          %4504 = vmatprep.subr.bf16.mxu0 0
          %4505 = vmatpush1.bf16.msra.mxu0 %v4406
          %4506 = vmatprep.subr.bf16.mxu0 0
          %4507 = vmatpush1.bf16.msra.mxu0 %v4407
          %4508 = vmatprep.subr.bf16.mxu0 0
          %4509 = vmatpush1.bf16.msra.mxu0 %v4408
          %4510 = vmatprep.subr.bf16.mxu0 0
          %4511 = vmatpush1.bf16.msra.mxu0 %v4409
          %4512 = vmatprep.subr.bf16.mxu0 0
          %4513 = vmatpush1.bf16.msra.mxu0 %v4410
          %4514 = vmatprep.subr.bf16.mxu0 0
          %4515 = vmatpush1.bf16.msra.mxu0 %v4411
          %4516 = vmatprep.mubr.bf16.mxu0 %v4180
          %4517 = vmatmul.mubr.bf16.gmra.mrb[0].mxu0 %v4179
          %v4518 = vpop.f32.mrb[0].mxu0
          %v4519 = vadd.f32 %v4479, %v4518
          %v4520 = vpop.f32.mrb[0].mxu0
          %v4521 = vpop.f32.mrb[0].mxu0
          %v4522 = vpop.f32.mrb[0].mxu0
          %4523 = vdwg.mxu0
          %4524 = vst [vmem:[#allocation3] sm:$0x3] %v4519
        $region48: #{simple_cnn_forward.9} parent=39 // pred_fallthru
          _
        // Predicated region
        $region49: #{simple_cnn_forward.9} parent=39 // pred_check
          %p4525 = pneg %p145
        $region50: #{simple_cnn_forward.9} parent=39 // pred_check_branch
          %4527 = sbr.rel (%p4525) target = $region52
        $region51: #{simple_cnn_forward.9} parent=39 // pred_region
          %s4529 = ssub.s32 32, 32
          %4530 = vsyncadd [#allocation4], %s4529
          %s4532 = sshll.u32 [#allocation3], 4
          %s4533 = int_to_ptr.vmem [resolvable:$true] %s4532
          %4535 = dma.vmem_to_hbm [thread:$0]  %s4533, 32, %s5, [#allocation4]
        $region52: #{simple_cnn_forward.9} parent=39 // pred_fallthru
          _
        // Predicated region
        $region53: #{simple_cnn_forward.9} parent=39 // pred_check
          %p4536 = pneg %p145
        $region54: #{simple_cnn_forward.9} parent=39 // pred_check_branch
          %4538 = sbr.rel (%p4536) target = $region56
        $region55: #{simple_cnn_forward.9} parent=39 // pred_region
          %4539 = dma.done [#allocation4], 32
        $region56: #{simple_cnn_forward.9} parent=39 // pred_fallthru
          _
      $region40: #{simple_cnn_forward.9} parent=5 // pred_fallthru
        _
      %p4540 = scmp.le.s32.totalorder 2, %s12
      // Predicated region
      $region57: #{simple_cnn_forward.9} parent=5 // pred_check
        %p4541 = pneg %p4540
      $region58: #{simple_cnn_forward.9} parent=5 // pred_check_branch
        %4543 = sbr.rel (%p4541) target = $region60
      $region59: #{simple_cnn_forward.9} parent=5 // pred_region
        %s4544 = ssub.s32 %s12, 2
      $region60: #{simple_cnn_forward.9} parent=5 // pred_fallthru
        _
    $region6: #{simple_cnn_forward.9} parent=1 // loop_footer
      %s16 = sadd.s32 1, %s12
    $region7: #{simple_cnn_forward.9} parent=1 // loop_footer_branch
      %11 = sbr.rel target = $region3
    $region8: #{simple_cnn_forward.9} parent=1 // loop_exit
      _
    %4545 = vsyncpa [#allocation4], 1
    %s4546 = scalar_lea.sflag [#allocation4], 1
    %4547 = vsyncpa %s4546, 1

</llo_original>
